<compile_context>
chip_gen: v6e
topology: v6e:2x2x1
jax: 0.10.0
libtpu: 0.0.40
codegen_flags: <defaults>
</compile_context>

<pallas_src>
import functools

import jax
import jax.numpy as jnp
from jax.experimental import pallas as pl
from jax.experimental.pallas import tpu as pltpu


def _round_up(x, m):
    return (x + m - 1) // m * m


def _pad_axis(x, axis, new_size):
    pad = [(0, 0)] * x.ndim
    pad[axis] = (0, new_size - x.shape[axis])
    return jnp.pad(x, pad)


def _pad_gates(w, h, hp):
    """(..., 4*h) in PyTorch gate order (i,f,g,o) -> (..., 4*hp); each gate block
    is zero-padded so gate slices land on lane(128)-aligned boundaries."""
    lead = w.shape[:-1]
    w4 = w.reshape(lead + (4, h))
    w4 = jnp.pad(w4, [(0, 0)] * len(lead) + [(0, 0), (0, hp - h)])
    return w4.reshape(lead + (4 * hp,))


# ----------------------------------------------------------------------------- #
# Recurrent kernel: only the sequential part of the 2-layer LSTM lives here.
# ----------------------------------------------------------------------------- #
def decoder_lstm_kernel(xg_ref, whh0_ref, wih1_ref, whh1_ref, b1_ref, h1_out_ref,
                        h0_s, c0_s, h1_s, c1_s, *, unroll=True):
    """Grid = (batch tiles [parallel], time chunks [arbitrary]).

    xg_ref    : (Tc, Bt, 4*Hp) f32  precomputed layer-0 input gates (x @ W_ih0 + b0)
    whh0_ref  : (Hp, 4*Hp)  wd      layer-0 recurrent weights
    wih1_ref  : (Hp, 4*Hp)  wd      layer-1 input weights
    whh1_ref  : (Hp, 4*Hp)  wd      layer-1 recurrent weights
    b1_ref    : (1, 4*Hp)   f32     layer-1 bias (b_ih1 + b_hh1)
    h1_out_ref: (Tc, Bt, Hp) wd     layer-1 hidden states (vocab projection is outside)
    h0_s/c0_s/h1_s/c1_s : (Bt, Hp) f32  chunk-boundary state handoff (scratch)
    """
    bt, hp = c0_s.shape
    tc_steps = xg_ref.shape[0]
    in_dt = whh0_ref.dtype            # bf16 (perf) or f32 (strict-correctness path)

    @pl.when(pl.program_id(1) == 0)   # new batch tile -> reset recurrent state
    def _():
        h0_s[...] = jnp.zeros_like(h0_s)
        c0_s[...] = jnp.zeros_like(c0_s)
        h1_s[...] = jnp.zeros_like(h1_s)
        c1_s[...] = jnp.zeros_like(c1_s)

    # Loop-invariant broadcast hoisted (JAX does not CSE broadcast_in_dim).
    b1 = jnp.broadcast_to(b1_ref[...], (bt, 4 * hp))

    def sigmoid(x):                   # 1 EUP tanh instead of exp + recip
        return 0.5 * (jnp.tanh(0.5 * x) + 1.0)

    def activations(gates, c_prev):   # f32 gate math / f32 cell state
        i = sigmoid(gates[:, 0 * hp:1 * hp])
        f = sigmoid(gates[:, 1 * hp:2 * hp])
        g = jnp.tanh(gates[:, 2 * hp:3 * hp])
        o = sigmoid(gates[:, 3 * hp:4 * hp])
        c_new = f * c_prev + i * g
        return o * jnp.tanh(c_new), c_new

    def step(t, carry):
        h0, c0, h1, c1 = carry        # carried in vregs; no per-step VMEM round trip
        # ---- layer 0: input gates precomputed; only the recurrent matmul here.
        g0 = xg_ref[t] + jnp.dot(h0.astype(in_dt), whh0_ref[...],
                                 preferred_element_type=jnp.float32)
        h0, c0 = activations(g0, c0)
        # ---- layer 1: split dots (no staging store/reload between them).
        # TODO(synk): PyTorch applies dropout(p=0.5) to h0 here only in training
        # mode; forward() here uses inference semantics (no dropout).
        g1 = (jnp.dot(h0.astype(in_dt), wih1_ref[...],
                      preferred_element_type=jnp.float32)
              + jnp.dot(h1.astype(in_dt), whh1_ref[...],
                        preferred_element_type=jnp.float32)
              + b1)
        h1, c1 = activations(g1, c1)
        h1_out_ref[t] = h1.astype(h1_out_ref.dtype)
        return (h0, c0, h1, c1)

    carry0 = (h0_s[...], c0_s[...], h1_s[...], c1_s[...])
    # For Hp >= 512 sweep unroll in {2, 4, True} and check the bundle for spills.
    h0, c0, h1, c1 = jax.lax.fori_loop(0, tc_steps, step, carry0, unroll=unroll)
    h0_s[...] = h0
    c0_s[...] = c0
    h1_s[...] = h1
    c1_s[...] = c1


# ----------------------------------------------------------------------------- #
# Hoisted vocab projection: one big, fully-parallel (T*B, Hp) @ (Hp, Vp) matmul.
# ----------------------------------------------------------------------------- #
def vocab_proj_kernel(h_ref, w_ref, b_ref, o_ref):
    o_ref[...] = (jnp.dot(h_ref[...], w_ref[...],
                          preferred_element_type=jnp.float32) + b_ref[...])


def decoder_forward_pallas(features, captions, params, *, t_chunk=16, batch_tile=None,
                           weight_dtype=jnp.bfloat16, vmem_limit_bytes=48 << 20,
                           unroll=True):
    """features: (B, E) f32; captions: (B, L) int32 -> logits (B, L, V) f32.

    weight_dtype=bfloat16 (default): all weight matrices + the MXU operands are
    bf16; gate math, cell state and matmul accumulation stay f32.
    """
    # ---------------- plain-JAX glue: embedding lookup + feature prepend ----------
    emb = jnp.take(params["embed"], captions[:, :-1], axis=0)        # (B, L-1, E)
    seq = jnp.concatenate([features[:, None, :], emb], axis=1)       # (B, T, E)
    B, T, E = seq.shape
    H = params["whh0_t"].shape[0]
    V = params["wout_t"].shape[1]

    # ---------------- layout alignment ---------------------------------------------
    Bp = _round_up(B, 8)                      # sublane multiple
    if batch_tile is None:
        Bt = Bp                               # one batch tile (v5e/v6e single TC)
    else:                                     # v7x megacore split: only for real B >= 16
        Bt = max(8, _round_up(batch_tile, 8))
        Bp = _round_up(Bp, Bt)
    Hp = _round_up(H, 128)                    # lane multiple -> aligned gate slices
    Vp = _round_up(V, 128)
    Tc = min(t_chunk, T)                      # timesteps per grid step
    Tp = _round_up(T, Tc)
    wd = jnp.dtype(weight_dtype)

    # ---------------- weights: pad once (zero-padded gate blocks), cast ------------
    wih0_p = _pad_gates(params["wih0_t"], H, Hp).astype(wd)                  # (E, 4Hp)
    b0_p = _pad_gates(params["b0"], H, Hp)                                   # (1, 4Hp) f32
    whh0_p = _pad_gates(_pad_axis(params["whh0_t"], 0, Hp), H, Hp).astype(wd)  # (Hp, 4Hp)
    wih1_p = _pad_gates(_pad_axis(params["wih1_t"], 0, Hp), H, Hp).astype(wd)  # (Hp, 4Hp)
    whh1_p = _pad_gates(_pad_axis(params["whh1_t"], 0, Hp), H, Hp).astype(wd)  # (Hp, 4Hp)
    b1_p = _pad_gates(params["b1"], H, Hp)                                   # (1, 4Hp) f32

    # -------- hoisted time-independent work: layer-0 input gates -------------------
    # Computed directly in time-major, gate-padded layout: one matmul over the small
    # (Tp*Bp, E) sequence instead of padding/transposing the big (B,T,4H) tensor.
    seq_tm = jnp.swapaxes(seq, 0, 1)                                 # (T, B, E)
    seq_tm = jnp.pad(seq_tm, ((0, Tp - T), (0, Bp - B), (0, 0)))     # (Tp, Bp, E)
    xg_tm = (jnp.dot(seq_tm.reshape(Tp * Bp, E).astype(wd), wih0_p,
                     preferred_element_type=jnp.float32)
             + b0_p).reshape(Tp, Bp, 4 * Hp)                         # f32 gates

    # ---------------- recurrent kernel (sequential over time, parallel over batch) -
    # Constant-index weights/bias are single-buffered: double-buffering them would
    # only double their VMEM residency.
    weight_spec = functools.partial(pl.BlockSpec, index_map=lambda b, t: (0, 0),
                                    pipeline_mode=pl.Buffered(1))
    h1_tm = pl.pallas_call(
        functools.partial(decoder_lstm_kernel, unroll=unroll),
        out_shape=jax.ShapeDtypeStruct((Tp, Bp, Hp), wd),
        grid_spec=pltpu.PrefetchScalarGridSpec(
            num_scalar_prefetch=0,
            grid=(Bp // Bt, Tp // Tc),
            in_specs=[
                pl.BlockSpec((Tc, Bt, 4 * Hp), lambda b, t: (t, b, 0)),  # gates[t]
                weight_spec((Hp, 4 * Hp)),                               # W_hh layer 0
                weight_spec((Hp, 4 * Hp)),                               # W_ih layer 1
                weight_spec((Hp, 4 * Hp)),                               # W_hh layer 1
                weight_spec((1, 4 * Hp)),                                # b layer 1
            ],
            out_specs=pl.BlockSpec((Tc, Bt, Hp), lambda b, t: (t, b, 0)),
            scratch_shapes=[pltpu.VMEM((Bt, Hp), jnp.float32)] * 4,  # h0, c0, h1, c1
        ),
        # Time carries h/c state -> "arbitrary"; batch tiles independent -> "parallel"
        # (megacore-shardable; for guaranteed per-core split use pltpu.CORE_PARALLEL).
        # vmem_limit_bytes > v5e's 16 MiB default scoped limit, < v7x's 64 MiB phys.
        compiler_params=pltpu.CompilerParams(
            dimension_semantics=("parallel", "arbitrary"),
            vmem_limit_bytes=vmem_limit_bytes),
    )(xg_tm, whh0_p, wih1_p, whh1_p, b1_p)

    # ---------------- hoisted vocab projection -------------------------------------
    h_flat = jnp.swapaxes(h1_tm, 0, 1)[:B, :T].reshape(B * T, Hp)    # (M, Hp) wd
    M = B * T
    Mp8 = _round_up(M, 8)
    TN = Vp if Vp <= 2048 else 1024
    Vp2 = _round_up(Vp, TN)
    # Single M tile whenever the double-buffered (TM,Hp) input + (TM,TN) f32 output
    # tiles fit ~16 MiB: every extra M tile re-streams the entire (Hp,Vp2) weight.
    bytes_per_row = 2 * (Hp * wd.itemsize + TN * 4)
    if Mp8 * bytes_per_row <= (16 << 20):
        TM = Mp8
    else:
        TM = max(8, min(512, ((16 << 20) // bytes_per_row) // 8 * 8))
    Mp = _round_up(Mp8, TM)
    h_flat = jnp.pad(h_flat, ((0, Mp - M), (0, 0)))
    wout_p = _pad_axis(_pad_axis(params["wout_t"], 0, Hp), 1, Vp2).astype(wd)  # (Hp, Vp2)
    bout_p = _pad_axis(params["bout"], 1, Vp2)                                 # (1, Vp2) f32

    logits = pl.pallas_call(
        vocab_proj_kernel,
        out_shape=jax.ShapeDtypeStruct((Mp, Vp2), jnp.float32),
        grid_spec=pltpu.PrefetchScalarGridSpec(
            num_scalar_prefetch=0,
            grid=(Mp // TM, Vp2 // TN),
            in_specs=[
                pl.BlockSpec((TM, Hp), lambda i, j: (i, 0)),
                pl.BlockSpec((Hp, TN), lambda i, j: (0, j)),
                pl.BlockSpec((1, TN), lambda i, j: (0, j)),
            ],
            out_specs=pl.BlockSpec((TM, TN), lambda i, j: (i, j)),
        ),
        compiler_params=pltpu.CompilerParams(
            dimension_semantics=("parallel", "parallel"),
            vmem_limit_bytes=vmem_limit_bytes),
    )(h_flat, wout_p, bout_p)

    return logits[:M, :V].reshape(B, T, V)


# ----------------------------------------------------------------------------- #
# Pure-JAX reference (lax.scan) for correctness checking.
# ----------------------------------------------------------------------------- #
def decoder_forward_ref(features, captions, params):
    embed_tbl = params["embed"]
    emb = jnp.take(embed_tbl, captions[:, :-1], axis=0)
    seq = jnp.concatenate([features[:, None, :], emb], axis=1)
    B, T, E = seq.shape
    H = params["whh0_t"].shape[0]

    def cell(x, h, c, wih_t, whh_t, b):
        g = x @ wih_t + h @ whh_t + b
        i = jax.nn.sigmoid(g[:, :H])
        f = jax.nn.sigmoid(g[:, H:2 * H])
        gg = jnp.tanh(g[:, 2 * H:3 * H])
        o = jax.nn.sigmoid(g[:, 3 * H:])
        c = f * c + i * gg
        h = o * jnp.tanh(c)
        return h, c

    def step(carry, x_t):
        h0, c0, h1, c1 = carry
        h0, c0 = cell(x_t, h0, c0, params["wih0_t"], params["whh0_t"], params["b0"][0])
        h1, c1 = cell(h0, h1, c1, params["wih1_t"], params["whh1_t"], params["b1"][0])
        y = h1 @ params["wout_t"] + params["bout"][0]
        return (h0, c0, h1, c1), y

    init = tuple(jnp.zeros((B, H), jnp.float32) for _ in range(4))
    _, ys = jax.lax.scan(step, init, jnp.swapaxes(seq, 0, 1))
    return jnp.swapaxes(ys, 0, 1)


def make_params(key, embed_size, hidden_size, vocab_size):
    ks = jax.random.split(key, 12)
    s = 0.1
    f32 = jnp.float32
    return {
        "embed": jax.random.normal(ks[0], (vocab_size, embed_size), f32),
        # LSTM layer 0 (stored pre-transposed for x @ W; gate order i,f,g,o)
        "wih0_t": s * jax.random.normal(ks[1], (embed_size, 4 * hidden_size), f32),
        "whh0_t": s * jax.random.normal(ks[2], (hidden_size, 4 * hidden_size), f32),
        "b0": s * jax.random.normal(ks[3], (1, 4 * hidden_size), f32),   # b_ih + b_hh
        # LSTM layer 1
        "wih1_t": s * jax.random.normal(ks[4], (hidden_size, 4 * hidden_size), f32),
        "whh1_t": s * jax.random.normal(ks[5], (hidden_size, 4 * hidden_size), f32),
        "b1": s * jax.random.normal(ks[6], (1, 4 * hidden_size), f32),
        # Output linear (hidden -> vocab), pre-transposed
        "wout_t": s * jax.random.normal(ks[7], (hidden_size, vocab_size), f32),
        "bout": s * jax.random.normal(ks[8], (1, vocab_size), f32),
    }


if __name__ == "__main__":
    B, L = 2, 8                 # batch, caption length (T = L after feature prepend)
    embed_size, hidden_size, vocab_size = 32, 32, 64

    key = jax.random.PRNGKey(0)
    kp, kf, kc = jax.random.split(key, 3)
    params = make_params(kp, embed_size, hidden_size, vocab_size)

    features = jax.random.normal(kf, (B, embed_size), jnp.float32)
    captions = jax.random.randint(kc, (B, L), 0, vocab_size, dtype=jnp.int32)

    ref = decoder_forward_ref(features, captions, params)

    # Strict-correctness path: f32 weights must match the reference tightly.
    out_f32 = jax.block_until_ready(
        decoder_forward_pallas(features, captions, params, weight_dtype=jnp.float32))
    assert out_f32.shape == (B, L, vocab_size), out_f32.shape
    err_f32 = float(jnp.max(jnp.abs(out_f32 - ref)))
    assert jnp.allclose(out_f32, ref, atol=1e-4, rtol=1e-4), err_f32

    # Performance path: bf16 weights / MXU operands, f32 gate & cell-state math.
    out_bf16 = jax.block_until_ready(
        decoder_forward_pallas(features, captions, params))
    assert out_bf16.shape == (B, L, vocab_size), out_bf16.shape
    err_bf16 = float(jnp.max(jnp.abs(out_bf16 - ref)))
    assert jnp.allclose(out_bf16, ref, atol=8e-2, rtol=8e-2), err_bf16

    print("KERNEL_OK")
</pallas_src>

<mosaic_0001>
module attributes {stable_mosaic.version = 11 : i64} {
  func.func @decoder_lstm_kernel(%arg0: i32, %arg1: i32, %arg2: memref<8x8x512xf32, #tpu.memory_space<vmem>>, %arg3: memref<128x512xf32, #tpu.memory_space<vmem>>, %arg4: memref<128x512xf32, #tpu.memory_space<vmem>>, %arg5: memref<128x512xf32, #tpu.memory_space<vmem>>, %arg6: memref<1x512xf32, #tpu.memory_space<vmem>>, %arg7: memref<8x8x128xf32, #tpu.memory_space<vmem>>, %arg8: memref<8x128xf32, #tpu.memory_space<vmem>>, %arg9: memref<8x128xf32, #tpu.memory_space<vmem>>, %arg10: memref<8x128xf32, #tpu.memory_space<vmem>>, %arg11: memref<8x128xf32, #tpu.memory_space<vmem>>) attributes {dimension_semantics = [#tpu.dimension_semantics<parallel>, #tpu.dimension_semantics<arbitrary>], iteration_bounds = array<i64: 1, 1>, scalar_prefetch = 0 : i64, scratch_operands = 4 : i64, tpu.core_type = #tpu.core_type<tc>, window_params = [{transform_indices = @transform_0, window_bounds = array<i64: 8, 8, 512>}, {pipeline_mode = #tpu.pipeline_mode<synchronous>, transform_indices = @transform_1, window_bounds = array<i64: 128, 512>}, {pipeline_mode = #tpu.pipeline_mode<synchronous>, transform_indices = @transform_2, window_bounds = array<i64: 128, 512>}, {pipeline_mode = #tpu.pipeline_mode<synchronous>, transform_indices = @transform_3, window_bounds = array<i64: 128, 512>}, {pipeline_mode = #tpu.pipeline_mode<synchronous>, transform_indices = @transform_4, window_bounds = array<i64: 1, 512>}, {transform_indices = @transform_5, window_bounds = array<i64: 8, 8, 128>}]} {
    %c0_i32 = arith.constant 0 : i32
    %0 = arith.cmpi eq, %arg1, %c0_i32 : i32
    %1 = arith.extui %0 : i1 to i32
    %c0_i32_0 = arith.constant 0 : i32
    %2 = arith.cmpi ne, %1, %c0_i32_0 : i32
    scf.if %2 {
      %cst_266 = arith.constant 0.000000e+00 : f32
      %638 = vector.broadcast %cst_266 : f32 to vector<8x128xf32>
      %c0_267 = arith.constant 0 : index
      %c0_268 = arith.constant 0 : index
      %639 = vector.load %arg8[%c0_267, %c0_268] : memref<8x128xf32, #tpu.memory_space<vmem>>, vector<8x128xf32>
      tpu.vector_store %arg8[%c0_267, %c0_268], %638 {strides = array<i32>} : memref<8x128xf32, #tpu.memory_space<vmem>>, vector<8x128xf32>,
      %cst_269 = arith.constant 0.000000e+00 : f32
      %640 = vector.broadcast %cst_269 : f32 to vector<8x128xf32>
      %c0_270 = arith.constant 0 : index
      %c0_271 = arith.constant 0 : index
      %641 = vector.load %arg9[%c0_270, %c0_271] : memref<8x128xf32, #tpu.memory_space<vmem>>, vector<8x128xf32>
      tpu.vector_store %arg9[%c0_270, %c0_271], %640 {strides = array<i32>} : memref<8x128xf32, #tpu.memory_space<vmem>>, vector<8x128xf32>,
      %cst_272 = arith.constant 0.000000e+00 : f32
      %642 = vector.broadcast %cst_272 : f32 to vector<8x128xf32>
      %c0_273 = arith.constant 0 : index
      %c0_274 = arith.constant 0 : index
      %643 = vector.load %arg10[%c0_273, %c0_274] : memref<8x128xf32, #tpu.memory_space<vmem>>, vector<8x128xf32>
      tpu.vector_store %arg10[%c0_273, %c0_274], %642 {strides = array<i32>} : memref<8x128xf32, #tpu.memory_space<vmem>>, vector<8x128xf32>,
      %cst_275 = arith.constant 0.000000e+00 : f32
      %644 = vector.broadcast %cst_275 : f32 to vector<8x128xf32>
      %c0_276 = arith.constant 0 : index
      %c0_277 = arith.constant 0 : index
      %645 = vector.load %arg11[%c0_276, %c0_277] : memref<8x128xf32, #tpu.memory_space<vmem>>, vector<8x128xf32>
      tpu.vector_store %arg11[%c0_276, %c0_277], %644 {strides = array<i32>} : memref<8x128xf32, #tpu.memory_space<vmem>>, vector<8x128xf32>,
    } else {
    }
    %c0 = arith.constant 0 : index
    %c0_1 = arith.constant 0 : index
    %3 = vector.load %arg6[%c0, %c0_1] : memref<1x512xf32, #tpu.memory_space<vmem>>, vector<1x512xf32>
    %4 = vector.shape_cast %3 : vector<1x512xf32> to vector<1x512xf32>
    %5 = vector.broadcast %4 : vector<1x512xf32> to vector<8x512xf32>
    %c0_2 = arith.constant 0 : index
    %c0_3 = arith.constant 0 : index
    %6 = vector.load %arg8[%c0_2, %c0_3] : memref<8x128xf32, #tpu.memory_space<vmem>>, vector<8x128xf32>
    %c0_4 = arith.constant 0 : index
    %c0_5 = arith.constant 0 : index
    %7 = vector.load %arg9[%c0_4, %c0_5] : memref<8x128xf32, #tpu.memory_space<vmem>>, vector<8x128xf32>
    %c0_6 = arith.constant 0 : index
    %c0_7 = arith.constant 0 : index
    %8 = vector.load %arg10[%c0_6, %c0_7] : memref<8x128xf32, #tpu.memory_space<vmem>>, vector<8x128xf32>
    %c0_8 = arith.constant 0 : index
    %c0_9 = arith.constant 0 : index
    %9 = vector.load %arg11[%c0_8, %c0_9] : memref<8x128xf32, #tpu.memory_space<vmem>>, vector<8x128xf32>
    %c0_i32_10 = arith.constant 0 : i32
    %10 = arith.index_cast %c0_i32_10 : i32 to index
    %c0_11 = arith.constant 0 : index
    %c0_12 = arith.constant 0 : index
    %11 = vector.load %arg2[%10, %c0_11, %c0_12] : memref<8x8x512xf32, #tpu.memory_space<vmem>>, vector<1x8x512xf32>
    %12 = vector.shape_cast %11 : vector<1x8x512xf32> to vector<8x512xf32>
    %c0_13 = arith.constant 0 : index
    %c0_14 = arith.constant 0 : index
    %13 = vector.load %arg3[%c0_13, %c0_14] : memref<128x512xf32, #tpu.memory_space<vmem>>, vector<128x512xf32>
    %cst = arith.constant dense<0.000000e+00> : vector<8x512xf32>
    %14 = tpu.matmul %6, %13, %cst {dimension_numbers = #tpu.dot_dimension_numbers<[1], [0], [0], [1], [0, 0, 1, 1], [], []>} : vector<8x128xf32>, vector<128x512xf32>, vector<8x512xf32> -> vector<8x512xf32>
    %15 = arith.addf %12, %14 : vector<8x512xf32>
    %16 = vector.extract_strided_slice %15 {offsets = [0, 0], sizes = [8, 128], strides = [1, 1]} : vector<8x512xf32> to vector<8x128xf32>
    %cst_15 = arith.constant 5.000000e-01 : f32
    %17 = vector.broadcast %cst_15 : f32 to vector<8x128xf32>
    %18 = arith.mulf %17, %16 : vector<8x128xf32>
    %19 = math.tanh %18 : vector<8x128xf32>
    %cst_16 = arith.constant 1.000000e+00 : f32
    %20 = vector.broadcast %cst_16 : f32 to vector<8x128xf32>
    %21 = arith.addf %19, %20 : vector<8x128xf32>
    %cst_17 = arith.constant 5.000000e-01 : f32
    %22 = vector.broadcast %cst_17 : f32 to vector<8x128xf32>
    %23 = arith.mulf %22, %21 : vector<8x128xf32>
    %24 = vector.extract_strided_slice %15 {offsets = [0, 128], sizes = [8, 128], strides = [1, 1]} : vector<8x512xf32> to vector<8x128xf32>
    %cst_18 = arith.constant 5.000000e-01 : f32
    %25 = vector.broadcast %cst_18 : f32 to vector<8x128xf32>
    %26 = arith.mulf %25, %24 : vector<8x128xf32>
    %27 = math.tanh %26 : vector<8x128xf32>
    %cst_19 = arith.constant 1.000000e+00 : f32
    %28 = vector.broadcast %cst_19 : f32 to vector<8x128xf32>
    %29 = arith.addf %27, %28 : vector<8x128xf32>
    %cst_20 = arith.constant 5.000000e-01 : f32
    %30 = vector.broadcast %cst_20 : f32 to vector<8x128xf32>
    %31 = arith.mulf %30, %29 : vector<8x128xf32>
    %32 = vector.extract_strided_slice %15 {offsets = [0, 256], sizes = [8, 128], strides = [1, 1]} : vector<8x512xf32> to vector<8x128xf32>
    %33 = math.tanh %32 : vector<8x128xf32>
    %34 = vector.extract_strided_slice %15 {offsets = [0, 384], sizes = [8, 128], strides = [1, 1]} : vector<8x512xf32> to vector<8x128xf32>
    %cst_21 = arith.constant 5.000000e-01 : f32
    %35 = vector.broadcast %cst_21 : f32 to vector<8x128xf32>
    %36 = arith.mulf %35, %34 : vector<8x128xf32>
    %37 = math.tanh %36 : vector<8x128xf32>
    %cst_22 = arith.constant 1.000000e+00 : f32
    %38 = vector.broadcast %cst_22 : f32 to vector<8x128xf32>
    %39 = arith.addf %37, %38 : vector<8x128xf32>
    %cst_23 = arith.constant 5.000000e-01 : f32
    %40 = vector.broadcast %cst_23 : f32 to vector<8x128xf32>
    %41 = arith.mulf %40, %39 : vector<8x128xf32>
    %42 = arith.mulf %31, %7 : vector<8x128xf32>
    %43 = arith.mulf %23, %33 : vector<8x128xf32>
    %44 = arith.addf %42, %43 : vector<8x128xf32>
    %45 = math.tanh %44 : vector<8x128xf32>
    %46 = arith.mulf %41, %45 : vector<8x128xf32>
    %c0_24 = arith.constant 0 : index
    %c0_25 = arith.constant 0 : index
    %47 = vector.load %arg4[%c0_24, %c0_25] : memref<128x512xf32, #tpu.memory_space<vmem>>, vector<128x512xf32>
    %cst_26 = arith.constant dense<0.000000e+00> : vector<8x512xf32>
    %48 = tpu.matmul %46, %47, %cst_26 {dimension_numbers = #tpu.dot_dimension_numbers<[1], [0], [0], [1], [0, 0, 1, 1], [], []>} : vector<8x128xf32>, vector<128x512xf32>, vector<8x512xf32> -> vector<8x512xf32>
    %c0_27 = arith.constant 0 : index
    %c0_28 = arith.constant 0 : index
    %49 = vector.load %arg5[%c0_27, %c0_28] : memref<128x512xf32, #tpu.memory_space<vmem>>, vector<128x512xf32>
    %cst_29 = arith.constant dense<0.000000e+00> : vector<8x512xf32>
    %50 = tpu.matmul %8, %49, %cst_29 {dimension_numbers = #tpu.dot_dimension_numbers<[1], [0], [0], [1], [0, 0, 1, 1], [], []>} : vector<8x128xf32>, vector<128x512xf32>, vector<8x512xf32> -> vector<8x512xf32>
    %51 = arith.addf %48, %50 : vector<8x512xf32>
    %52 = arith.addf %51, %5 : vector<8x512xf32>
    %53 = vector.extract_strided_slice %52 {offsets = [0, 0], sizes = [8, 128], strides = [1, 1]} : vector<8x512xf32> to vector<8x128xf32>
    %cst_30 = arith.constant 5.000000e-01 : f32
    %54 = vector.broadcast %cst_30 : f32 to vector<8x128xf32>
    %55 = arith.mulf %54, %53 : vector<8x128xf32>
    %56 = math.tanh %55 : vector<8x128xf32>
    %cst_31 = arith.constant 1.000000e+00 : f32
    %57 = vector.broadcast %cst_31 : f32 to vector<8x128xf32>
    %58 = arith.addf %56, %57 : vector<8x128xf32>
    %cst_32 = arith.constant 5.000000e-01 : f32
    %59 = vector.broadcast %cst_32 : f32 to vector<8x128xf32>
    %60 = arith.mulf %59, %58 : vector<8x128xf32>
    %61 = vector.extract_strided_slice %52 {offsets = [0, 128], sizes = [8, 128], strides = [1, 1]} : vector<8x512xf32> to vector<8x128xf32>
    %cst_33 = arith.constant 5.000000e-01 : f32
    %62 = vector.broadcast %cst_33 : f32 to vector<8x128xf32>
    %63 = arith.mulf %62, %61 : vector<8x128xf32>
    %64 = math.tanh %63 : vector<8x128xf32>
    %cst_34 = arith.constant 1.000000e+00 : f32
    %65 = vector.broadcast %cst_34 : f32 to vector<8x128xf32>
    %66 = arith.addf %64, %65 : vector<8x128xf32>
    %cst_35 = arith.constant 5.000000e-01 : f32
    %67 = vector.broadcast %cst_35 : f32 to vector<8x128xf32>
    %68 = arith.mulf %67, %66 : vector<8x128xf32>
    %69 = vector.extract_strided_slice %52 {offsets = [0, 256], sizes = [8, 128], strides = [1, 1]} : vector<8x512xf32> to vector<8x128xf32>
    %70 = math.tanh %69 : vector<8x128xf32>
    %71 = vector.extract_strided_slice %52 {offsets = [0, 384], sizes = [8, 128], strides = [1, 1]} : vector<8x512xf32> to vector<8x128xf32>
    %cst_36 = arith.constant 5.000000e-01 : f32
    %72 = vector.broadcast %cst_36 : f32 to vector<8x128xf32>
    %73 = arith.mulf %72, %71 : vector<8x128xf32>
    %74 = math.tanh %73 : vector<8x128xf32>
    %cst_37 = arith.constant 1.000000e+00 : f32
    %75 = vector.broadcast %cst_37 : f32 to vector<8x128xf32>
    %76 = arith.addf %74, %75 : vector<8x128xf32>
    %cst_38 = arith.constant 5.000000e-01 : f32
    %77 = vector.broadcast %cst_38 : f32 to vector<8x128xf32>
    %78 = arith.mulf %77, %76 : vector<8x128xf32>
    %79 = arith.mulf %68, %9 : vector<8x128xf32>
    %80 = arith.mulf %60, %70 : vector<8x128xf32>
    %81 = arith.addf %79, %80 : vector<8x128xf32>
    %82 = math.tanh %81 : vector<8x128xf32>
    %83 = arith.mulf %78, %82 : vector<8x128xf32>
    %84 = arith.index_cast %c0_i32_10 : i32 to index
    %c0_39 = arith.constant 0 : index
    %c0_40 = arith.constant 0 : index
    %85 = vector.load %arg7[%84, %c0_39, %c0_40] : memref<8x8x128xf32, #tpu.memory_space<vmem>>, vector<1x8x128xf32>
    %86 = vector.shape_cast %85 : vector<1x8x128xf32> to vector<8x128xf32>
    %87 = vector.shape_cast %83 : vector<8x128xf32> to vector<1x8x128xf32>
    tpu.vector_store %arg7[%84, %c0_39, %c0_40], %87 {strides = array<i32>} : memref<8x8x128xf32, #tpu.memory_space<vmem>>, vector<1x8x128xf32>,
    %c1_i32 = arith.constant 1 : i32
    %88 = arith.index_cast %c1_i32 : i32 to index
    %c0_41 = arith.constant 0 : index
    %c0_42 = arith.constant 0 : index
    %89 = vector.load %arg2[%88, %c0_41, %c0_42] : memref<8x8x512xf32, #tpu.memory_space<vmem>>, vector<1x8x512xf32>
    %90 = vector.shape_cast %89 : vector<1x8x512xf32> to vector<8x512xf32>
    %c0_43 = arith.constant 0 : index
    %c0_44 = arith.constant 0 : index
    %91 = vector.load %arg3[%c0_43, %c0_44] : memref<128x512xf32, #tpu.memory_space<vmem>>, vector<128x512xf32>
    %cst_45 = arith.constant dense<0.000000e+00> : vector<8x512xf32>
    %92 = tpu.matmul %46, %91, %cst_45 {dimension_numbers = #tpu.dot_dimension_numbers<[1], [0], [0], [1], [0, 0, 1, 1], [], []>} : vector<8x128xf32>, vector<128x512xf32>, vector<8x512xf32> -> vector<8x512xf32>
    %93 = arith.addf %90, %92 : vector<8x512xf32>
    %94 = vector.extract_strided_slice %93 {offsets = [0, 0], sizes = [8, 128], strides = [1, 1]} : vector<8x512xf32> to vector<8x128xf32>
    %cst_46 = arith.constant 5.000000e-01 : f32
    %95 = vector.broadcast %cst_46 : f32 to vector<8x128xf32>
    %96 = arith.mulf %95, %94 : vector<8x128xf32>
    %97 = math.tanh %96 : vector<8x128xf32>
    %cst_47 = arith.constant 1.000000e+00 : f32
    %98 = vector.broadcast %cst_47 : f32 to vector<8x128xf32>
    %99 = arith.addf %97, %98 : vector<8x128xf32>
    %cst_48 = arith.constant 5.000000e-01 : f32
    %100 = vector.broadcast %cst_48 : f32 to vector<8x128xf32>
    %101 = arith.mulf %100, %99 : vector<8x128xf32>
    %102 = vector.extract_strided_slice %93 {offsets = [0, 128], sizes = [8, 128], strides = [1, 1]} : vector<8x512xf32> to vector<8x128xf32>
    %cst_49 = arith.constant 5.000000e-01 : f32
    %103 = vector.broadcast %cst_49 : f32 to vector<8x128xf32>
    %104 = arith.mulf %103, %102 : vector<8x128xf32>
    %105 = math.tanh %104 : vector<8x128xf32>
    %cst_50 = arith.constant 1.000000e+00 : f32
    %106 = vector.broadcast %cst_50 : f32 to vector<8x128xf32>
    %107 = arith.addf %105, %106 : vector<8x128xf32>
    %cst_51 = arith.constant 5.000000e-01 : f32
    %108 = vector.broadcast %cst_51 : f32 to vector<8x128xf32>
    %109 = arith.mulf %108, %107 : vector<8x128xf32>
    %110 = vector.extract_strided_slice %93 {offsets = [0, 256], sizes = [8, 128], strides = [1, 1]} : vector<8x512xf32> to vector<8x128xf32>
    %111 = math.tanh %110 : vector<8x128xf32>
    %112 = vector.extract_strided_slice %93 {offsets = [0, 384], sizes = [8, 128], strides = [1, 1]} : vector<8x512xf32> to vector<8x128xf32>
    %cst_52 = arith.constant 5.000000e-01 : f32
    %113 = vector.broadcast %cst_52 : f32 to vector<8x128xf32>
    %114 = arith.mulf %113, %112 : vector<8x128xf32>
    %115 = math.tanh %114 : vector<8x128xf32>
    %cst_53 = arith.constant 1.000000e+00 : f32
    %116 = vector.broadcast %cst_53 : f32 to vector<8x128xf32>
    %117 = arith.addf %115, %116 : vector<8x128xf32>
    %cst_54 = arith.constant 5.000000e-01 : f32
    %118 = vector.broadcast %cst_54 : f32 to vector<8x128xf32>
    %119 = arith.mulf %118, %117 : vector<8x128xf32>
    %120 = arith.mulf %109, %44 : vector<8x128xf32>
    %121 = arith.mulf %101, %111 : vector<8x128xf32>
    %122 = arith.addf %120, %121 : vector<8x128xf32>
    %123 = math.tanh %122 : vector<8x128xf32>
    %124 = arith.mulf %119, %123 : vector<8x128xf32>
    %c0_55 = arith.constant 0 : index
    %c0_56 = arith.constant 0 : index
    %125 = vector.load %arg4[%c0_55, %c0_56] : memref<128x512xf32, #tpu.memory_space<vmem>>, vector<128x512xf32>
    %cst_57 = arith.constant dense<0.000000e+00> : vector<8x512xf32>
    %126 = tpu.matmul %124, %125, %cst_57 {dimension_numbers = #tpu.dot_dimension_numbers<[1], [0], [0], [1], [0, 0, 1, 1], [], []>} : vector<8x128xf32>, vector<128x512xf32>, vector<8x512xf32> -> vector<8x512xf32>
    %c0_58 = arith.constant 0 : index
    %c0_59 = arith.constant 0 : index
    %127 = vector.load %arg5[%c0_58, %c0_59] : memref<128x512xf32, #tpu.memory_space<vmem>>, vector<128x512xf32>
    %cst_60 = arith.constant dense<0.000000e+00> : vector<8x512xf32>
    %128 = tpu.matmul %83, %127, %cst_60 {dimension_numbers = #tpu.dot_dimension_numbers<[1], [0], [0], [1], [0, 0, 1, 1], [], []>} : vector<8x128xf32>, vector<128x512xf32>, vector<8x512xf32> -> vector<8x512xf32>
    %129 = arith.addf %126, %128 : vector<8x512xf32>
    %130 = arith.addf %129, %5 : vector<8x512xf32>
    %131 = vector.extract_strided_slice %130 {offsets = [0, 0], sizes = [8, 128], strides = [1, 1]} : vector<8x512xf32> to vector<8x128xf32>
    %cst_61 = arith.constant 5.000000e-01 : f32
    %132 = vector.broadcast %cst_61 : f32 to vector<8x128xf32>
    %133 = arith.mulf %132, %131 : vector<8x128xf32>
    %134 = math.tanh %133 : vector<8x128xf32>
    %cst_62 = arith.constant 1.000000e+00 : f32
    %135 = vector.broadcast %cst_62 : f32 to vector<8x128xf32>
    %136 = arith.addf %134, %135 : vector<8x128xf32>
    %cst_63 = arith.constant 5.000000e-01 : f32
    %137 = vector.broadcast %cst_63 : f32 to vector<8x128xf32>
    %138 = arith.mulf %137, %136 : vector<8x128xf32>
    %139 = vector.extract_strided_slice %130 {offsets = [0, 128], sizes = [8, 128], strides = [1, 1]} : vector<8x512xf32> to vector<8x128xf32>
    %cst_64 = arith.constant 5.000000e-01 : f32
    %140 = vector.broadcast %cst_64 : f32 to vector<8x128xf32>
    %141 = arith.mulf %140, %139 : vector<8x128xf32>
    %142 = math.tanh %141 : vector<8x128xf32>
    %cst_65 = arith.constant 1.000000e+00 : f32
    %143 = vector.broadcast %cst_65 : f32 to vector<8x128xf32>
    %144 = arith.addf %142, %143 : vector<8x128xf32>
    %cst_66 = arith.constant 5.000000e-01 : f32
    %145 = vector.broadcast %cst_66 : f32 to vector<8x128xf32>
    %146 = arith.mulf %145, %144 : vector<8x128xf32>
    %147 = vector.extract_strided_slice %130 {offsets = [0, 256], sizes = [8, 128], strides = [1, 1]} : vector<8x512xf32> to vector<8x128xf32>
    %148 = math.tanh %147 : vector<8x128xf32>
    %149 = vector.extract_strided_slice %130 {offsets = [0, 384], sizes = [8, 128], strides = [1, 1]} : vector<8x512xf32> to vector<8x128xf32>
    %cst_67 = arith.constant 5.000000e-01 : f32
    %150 = vector.broadcast %cst_67 : f32 to vector<8x128xf32>
    %151 = arith.mulf %150, %149 : vector<8x128xf32>
    %152 = math.tanh %151 : vector<8x128xf32>
    %cst_68 = arith.constant 1.000000e+00 : f32
    %153 = vector.broadcast %cst_68 : f32 to vector<8x128xf32>
    %154 = arith.addf %152, %153 : vector<8x128xf32>
    %cst_69 = arith.constant 5.000000e-01 : f32
    %155 = vector.broadcast %cst_69 : f32 to vector<8x128xf32>
    %156 = arith.mulf %155, %154 : vector<8x128xf32>
    %157 = arith.mulf %146, %81 : vector<8x128xf32>
    %158 = arith.mulf %138, %148 : vector<8x128xf32>
    %159 = arith.addf %157, %158 : vector<8x128xf32>
    %160 = math.tanh %159 : vector<8x128xf32>
    %161 = arith.mulf %156, %160 : vector<8x128xf32>
    %162 = arith.index_cast %c1_i32 : i32 to index
    %c0_70 = arith.constant 0 : index
    %c0_71 = arith.constant 0 : index
    %163 = vector.load %arg7[%162, %c0_70, %c0_71] : memref<8x8x128xf32, #tpu.memory_space<vmem>>, vector<1x8x128xf32>
    %164 = vector.shape_cast %163 : vector<1x8x128xf32> to vector<8x128xf32>
    %165 = vector.shape_cast %161 : vector<8x128xf32> to vector<1x8x128xf32>
    tpu.vector_store %arg7[%162, %c0_70, %c0_71], %165 {strides = array<i32>} : memref<8x8x128xf32, #tpu.memory_space<vmem>>, vector<1x8x128xf32>,
    %c2_i32 = arith.constant 2 : i32
    %166 = arith.index_cast %c2_i32 : i32 to index
    %c0_72 = arith.constant 0 : index
    %c0_73 = arith.constant 0 : index
    %167 = vector.load %arg2[%166, %c0_72, %c0_73] : memref<8x8x512xf32, #tpu.memory_space<vmem>>, vector<1x8x512xf32>
    %168 = vector.shape_cast %167 : vector<1x8x512xf32> to vector<8x512xf32>
    %c0_74 = arith.constant 0 : index
    %c0_75 = arith.constant 0 : index
    %169 = vector.load %arg3[%c0_74, %c0_75] : memref<128x512xf32, #tpu.memory_space<vmem>>, vector<128x512xf32>
    %cst_76 = arith.constant dense<0.000000e+00> : vector<8x512xf32>
    %170 = tpu.matmul %124, %169, %cst_76 {dimension_numbers = #tpu.dot_dimension_numbers<[1], [0], [0], [1], [0, 0, 1, 1], [], []>} : vector<8x128xf32>, vector<128x512xf32>, vector<8x512xf32> -> vector<8x512xf32>
    %171 = arith.addf %168, %170 : vector<8x512xf32>
    %172 = vector.extract_strided_slice %171 {offsets = [0, 0], sizes = [8, 128], strides = [1, 1]} : vector<8x512xf32> to vector<8x128xf32>
    %cst_77 = arith.constant 5.000000e-01 : f32
    %173 = vector.broadcast %cst_77 : f32 to vector<8x128xf32>
    %174 = arith.mulf %173, %172 : vector<8x128xf32>
    %175 = math.tanh %174 : vector<8x128xf32>
    %cst_78 = arith.constant 1.000000e+00 : f32
    %176 = vector.broadcast %cst_78 : f32 to vector<8x128xf32>
    %177 = arith.addf %175, %176 : vector<8x128xf32>
    %cst_79 = arith.constant 5.000000e-01 : f32
    %178 = vector.broadcast %cst_79 : f32 to vector<8x128xf32>
    %179 = arith.mulf %178, %177 : vector<8x128xf32>
    %180 = vector.extract_strided_slice %171 {offsets = [0, 128], sizes = [8, 128], strides = [1, 1]} : vector<8x512xf32> to vector<8x128xf32>
    %cst_80 = arith.constant 5.000000e-01 : f32
    %181 = vector.broadcast %cst_80 : f32 to vector<8x128xf32>
    %182 = arith.mulf %181, %180 : vector<8x128xf32>
    %183 = math.tanh %182 : vector<8x128xf32>
    %cst_81 = arith.constant 1.000000e+00 : f32
    %184 = vector.broadcast %cst_81 : f32 to vector<8x128xf32>
    %185 = arith.addf %183, %184 : vector<8x128xf32>
    %cst_82 = arith.constant 5.000000e-01 : f32
    %186 = vector.broadcast %cst_82 : f32 to vector<8x128xf32>
    %187 = arith.mulf %186, %185 : vector<8x128xf32>
    %188 = vector.extract_strided_slice %171 {offsets = [0, 256], sizes = [8, 128], strides = [1, 1]} : vector<8x512xf32> to vector<8x128xf32>
    %189 = math.tanh %188 : vector<8x128xf32>
    %190 = vector.extract_strided_slice %171 {offsets = [0, 384], sizes = [8, 128], strides = [1, 1]} : vector<8x512xf32> to vector<8x128xf32>
    %cst_83 = arith.constant 5.000000e-01 : f32
    %191 = vector.broadcast %cst_83 : f32 to vector<8x128xf32>
    %192 = arith.mulf %191, %190 : vector<8x128xf32>
    %193 = math.tanh %192 : vector<8x128xf32>
    %cst_84 = arith.constant 1.000000e+00 : f32
    %194 = vector.broadcast %cst_84 : f32 to vector<8x128xf32>
    %195 = arith.addf %193, %194 : vector<8x128xf32>
    %cst_85 = arith.constant 5.000000e-01 : f32
    %196 = vector.broadcast %cst_85 : f32 to vector<8x128xf32>
    %197 = arith.mulf %196, %195 : vector<8x128xf32>
    %198 = arith.mulf %187, %122 : vector<8x128xf32>
    %199 = arith.mulf %179, %189 : vector<8x128xf32>
    %200 = arith.addf %198, %199 : vector<8x128xf32>
    %201 = math.tanh %200 : vector<8x128xf32>
    %202 = arith.mulf %197, %201 : vector<8x128xf32>
    %c0_86 = arith.constant 0 : index
    %c0_87 = arith.constant 0 : index
    %203 = vector.load %arg4[%c0_86, %c0_87] : memref<128x512xf32, #tpu.memory_space<vmem>>, vector<128x512xf32>
    %cst_88 = arith.constant dense<0.000000e+00> : vector<8x512xf32>
    %204 = tpu.matmul %202, %203, %cst_88 {dimension_numbers = #tpu.dot_dimension_numbers<[1], [0], [0], [1], [0, 0, 1, 1], [], []>} : vector<8x128xf32>, vector<128x512xf32>, vector<8x512xf32> -> vector<8x512xf32>
    %c0_89 = arith.constant 0 : index
    %c0_90 = arith.constant 0 : index
    %205 = vector.load %arg5[%c0_89, %c0_90] : memref<128x512xf32, #tpu.memory_space<vmem>>, vector<128x512xf32>
    %cst_91 = arith.constant dense<0.000000e+00> : vector<8x512xf32>
    %206 = tpu.matmul %161, %205, %cst_91 {dimension_numbers = #tpu.dot_dimension_numbers<[1], [0], [0], [1], [0, 0, 1, 1], [], []>} : vector<8x128xf32>, vector<128x512xf32>, vector<8x512xf32> -> vector<8x512xf32>
    %207 = arith.addf %204, %206 : vector<8x512xf32>
    %208 = arith.addf %207, %5 : vector<8x512xf32>
    %209 = vector.extract_strided_slice %208 {offsets = [0, 0], sizes = [8, 128], strides = [1, 1]} : vector<8x512xf32> to vector<8x128xf32>
    %cst_92 = arith.constant 5.000000e-01 : f32
    %210 = vector.broadcast %cst_92 : f32 to vector<8x128xf32>
    %211 = arith.mulf %210, %209 : vector<8x128xf32>
    %212 = math.tanh %211 : vector<8x128xf32>
    %cst_93 = arith.constant 1.000000e+00 : f32
    %213 = vector.broadcast %cst_93 : f32 to vector<8x128xf32>
    %214 = arith.addf %212, %213 : vector<8x128xf32>
    %cst_94 = arith.constant 5.000000e-01 : f32
    %215 = vector.broadcast %cst_94 : f32 to vector<8x128xf32>
    %216 = arith.mulf %215, %214 : vector<8x128xf32>
    %217 = vector.extract_strided_slice %208 {offsets = [0, 128], sizes = [8, 128], strides = [1, 1]} : vector<8x512xf32> to vector<8x128xf32>
    %cst_95 = arith.constant 5.000000e-01 : f32
    %218 = vector.broadcast %cst_95 : f32 to vector<8x128xf32>
    %219 = arith.mulf %218, %217 : vector<8x128xf32>
    %220 = math.tanh %219 : vector<8x128xf32>
    %cst_96 = arith.constant 1.000000e+00 : f32
    %221 = vector.broadcast %cst_96 : f32 to vector<8x128xf32>
    %222 = arith.addf %220, %221 : vector<8x128xf32>
    %cst_97 = arith.constant 5.000000e-01 : f32
    %223 = vector.broadcast %cst_97 : f32 to vector<8x128xf32>
    %224 = arith.mulf %223, %222 : vector<8x128xf32>
    %225 = vector.extract_strided_slice %208 {offsets = [0, 256], sizes = [8, 128], strides = [1, 1]} : vector<8x512xf32> to vector<8x128xf32>
    %226 = math.tanh %225 : vector<8x128xf32>
    %227 = vector.extract_strided_slice %208 {offsets = [0, 384], sizes = [8, 128], strides = [1, 1]} : vector<8x512xf32> to vector<8x128xf32>
    %cst_98 = arith.constant 5.000000e-01 : f32
    %228 = vector.broadcast %cst_98 : f32 to vector<8x128xf32>
    %229 = arith.mulf %228, %227 : vector<8x128xf32>
    %230 = math.tanh %229 : vector<8x128xf32>
    %cst_99 = arith.constant 1.000000e+00 : f32
    %231 = vector.broadcast %cst_99 : f32 to vector<8x128xf32>
    %232 = arith.addf %230, %231 : vector<8x128xf32>
    %cst_100 = arith.constant 5.000000e-01 : f32
    %233 = vector.broadcast %cst_100 : f32 to vector<8x128xf32>
    %234 = arith.mulf %233, %232 : vector<8x128xf32>
    %235 = arith.mulf %224, %159 : vector<8x128xf32>
    %236 = arith.mulf %216, %226 : vector<8x128xf32>
    %237 = arith.addf %235, %236 : vector<8x128xf32>
    %238 = math.tanh %237 : vector<8x128xf32>
    %239 = arith.mulf %234, %238 : vector<8x128xf32>
    %240 = arith.index_cast %c2_i32 : i32 to index
    %c0_101 = arith.constant 0 : index
    %c0_102 = arith.constant 0 : index
    %241 = vector.load %arg7[%240, %c0_101, %c0_102] : memref<8x8x128xf32, #tpu.memory_space<vmem>>, vector<1x8x128xf32>
    %242 = vector.shape_cast %241 : vector<1x8x128xf32> to vector<8x128xf32>
    %243 = vector.shape_cast %239 : vector<8x128xf32> to vector<1x8x128xf32>
    tpu.vector_store %arg7[%240, %c0_101, %c0_102], %243 {strides = array<i32>} : memref<8x8x128xf32, #tpu.memory_space<vmem>>, vector<1x8x128xf32>,
    %c3_i32 = arith.constant 3 : i32
    %244 = arith.index_cast %c3_i32 : i32 to index
    %c0_103 = arith.constant 0 : index
    %c0_104 = arith.constant 0 : index
    %245 = vector.load %arg2[%244, %c0_103, %c0_104] : memref<8x8x512xf32, #tpu.memory_space<vmem>>, vector<1x8x512xf32>
    %246 = vector.shape_cast %245 : vector<1x8x512xf32> to vector<8x512xf32>
    %c0_105 = arith.constant 0 : index
    %c0_106 = arith.constant 0 : index
    %247 = vector.load %arg3[%c0_105, %c0_106] : memref<128x512xf32, #tpu.memory_space<vmem>>, vector<128x512xf32>
    %cst_107 = arith.constant dense<0.000000e+00> : vector<8x512xf32>
    %248 = tpu.matmul %202, %247, %cst_107 {dimension_numbers = #tpu.dot_dimension_numbers<[1], [0], [0], [1], [0, 0, 1, 1], [], []>} : vector<8x128xf32>, vector<128x512xf32>, vector<8x512xf32> -> vector<8x512xf32>
    %249 = arith.addf %246, %248 : vector<8x512xf32>
    %250 = vector.extract_strided_slice %249 {offsets = [0, 0], sizes = [8, 128], strides = [1, 1]} : vector<8x512xf32> to vector<8x128xf32>
    %cst_108 = arith.constant 5.000000e-01 : f32
    %251 = vector.broadcast %cst_108 : f32 to vector<8x128xf32>
    %252 = arith.mulf %251, %250 : vector<8x128xf32>
    %253 = math.tanh %252 : vector<8x128xf32>
    %cst_109 = arith.constant 1.000000e+00 : f32
    %254 = vector.broadcast %cst_109 : f32 to vector<8x128xf32>
    %255 = arith.addf %253, %254 : vector<8x128xf32>
    %cst_110 = arith.constant 5.000000e-01 : f32
    %256 = vector.broadcast %cst_110 : f32 to vector<8x128xf32>
    %257 = arith.mulf %256, %255 : vector<8x128xf32>
    %258 = vector.extract_strided_slice %249 {offsets = [0, 128], sizes = [8, 128], strides = [1, 1]} : vector<8x512xf32> to vector<8x128xf32>
    %cst_111 = arith.constant 5.000000e-01 : f32
    %259 = vector.broadcast %cst_111 : f32 to vector<8x128xf32>
    %260 = arith.mulf %259, %258 : vector<8x128xf32>
    %261 = math.tanh %260 : vector<8x128xf32>
    %cst_112 = arith.constant 1.000000e+00 : f32
    %262 = vector.broadcast %cst_112 : f32 to vector<8x128xf32>
    %263 = arith.addf %261, %262 : vector<8x128xf32>
    %cst_113 = arith.constant 5.000000e-01 : f32
    %264 = vector.broadcast %cst_113 : f32 to vector<8x128xf32>
    %265 = arith.mulf %264, %263 : vector<8x128xf32>
    %266 = vector.extract_strided_slice %249 {offsets = [0, 256], sizes = [8, 128], strides = [1, 1]} : vector<8x512xf32> to vector<8x128xf32>
    %267 = math.tanh %266 : vector<8x128xf32>
    %268 = vector.extract_strided_slice %249 {offsets = [0, 384], sizes = [8, 128], strides = [1, 1]} : vector<8x512xf32> to vector<8x128xf32>
    %cst_114 = arith.constant 5.000000e-01 : f32
    %269 = vector.broadcast %cst_114 : f32 to vector<8x128xf32>
    %270 = arith.mulf %269, %268 : vector<8x128xf32>
    %271 = math.tanh %270 : vector<8x128xf32>
    %cst_115 = arith.constant 1.000000e+00 : f32
    %272 = vector.broadcast %cst_115 : f32 to vector<8x128xf32>
    %273 = arith.addf %271, %272 : vector<8x128xf32>
    %cst_116 = arith.constant 5.000000e-01 : f32
    %274 = vector.broadcast %cst_116 : f32 to vector<8x128xf32>
    %275 = arith.mulf %274, %273 : vector<8x128xf32>
    %276 = arith.mulf %265, %200 : vector<8x128xf32>
    %277 = arith.mulf %257, %267 : vector<8x128xf32>
    %278 = arith.addf %276, %277 : vector<8x128xf32>
    %279 = math.tanh %278 : vector<8x128xf32>
    %280 = arith.mulf %275, %279 : vector<8x128xf32>
    %c0_117 = arith.constant 0 : index
    %c0_118 = arith.constant 0 : index
    %281 = vector.load %arg4[%c0_117, %c0_118] : memref<128x512xf32, #tpu.memory_space<vmem>>, vector<128x512xf32>
    %cst_119 = arith.constant dense<0.000000e+00> : vector<8x512xf32>
    %282 = tpu.matmul %280, %281, %cst_119 {dimension_numbers = #tpu.dot_dimension_numbers<[1], [0], [0], [1], [0, 0, 1, 1], [], []>} : vector<8x128xf32>, vector<128x512xf32>, vector<8x512xf32> -> vector<8x512xf32>
    %c0_120 = arith.constant 0 : index
    %c0_121 = arith.constant 0 : index
    %283 = vector.load %arg5[%c0_120, %c0_121] : memref<128x512xf32, #tpu.memory_space<vmem>>, vector<128x512xf32>
    %cst_122 = arith.constant dense<0.000000e+00> : vector<8x512xf32>
    %284 = tpu.matmul %239, %283, %cst_122 {dimension_numbers = #tpu.dot_dimension_numbers<[1], [0], [0], [1], [0, 0, 1, 1], [], []>} : vector<8x128xf32>, vector<128x512xf32>, vector<8x512xf32> -> vector<8x512xf32>
    %285 = arith.addf %282, %284 : vector<8x512xf32>
    %286 = arith.addf %285, %5 : vector<8x512xf32>
    %287 = vector.extract_strided_slice %286 {offsets = [0, 0], sizes = [8, 128], strides = [1, 1]} : vector<8x512xf32> to vector<8x128xf32>
    %cst_123 = arith.constant 5.000000e-01 : f32
    %288 = vector.broadcast %cst_123 : f32 to vector<8x128xf32>
    %289 = arith.mulf %288, %287 : vector<8x128xf32>
    %290 = math.tanh %289 : vector<8x128xf32>
    %cst_124 = arith.constant 1.000000e+00 : f32
    %291 = vector.broadcast %cst_124 : f32 to vector<8x128xf32>
    %292 = arith.addf %290, %291 : vector<8x128xf32>
    %cst_125 = arith.constant 5.000000e-01 : f32
    %293 = vector.broadcast %cst_125 : f32 to vector<8x128xf32>
    %294 = arith.mulf %293, %292 : vector<8x128xf32>
    %295 = vector.extract_strided_slice %286 {offsets = [0, 128], sizes = [8, 128], strides = [1, 1]} : vector<8x512xf32> to vector<8x128xf32>
    %cst_126 = arith.constant 5.000000e-01 : f32
    %296 = vector.broadcast %cst_126 : f32 to vector<8x128xf32>
    %297 = arith.mulf %296, %295 : vector<8x128xf32>
    %298 = math.tanh %297 : vector<8x128xf32>
    %cst_127 = arith.constant 1.000000e+00 : f32
    %299 = vector.broadcast %cst_127 : f32 to vector<8x128xf32>
    %300 = arith.addf %298, %299 : vector<8x128xf32>
    %cst_128 = arith.constant 5.000000e-01 : f32
    %301 = vector.broadcast %cst_128 : f32 to vector<8x128xf32>
    %302 = arith.mulf %301, %300 : vector<8x128xf32>
    %303 = vector.extract_strided_slice %286 {offsets = [0, 256], sizes = [8, 128], strides = [1, 1]} : vector<8x512xf32> to vector<8x128xf32>
    %304 = math.tanh %303 : vector<8x128xf32>
    %305 = vector.extract_strided_slice %286 {offsets = [0, 384], sizes = [8, 128], strides = [1, 1]} : vector<8x512xf32> to vector<8x128xf32>
    %cst_129 = arith.constant 5.000000e-01 : f32
    %306 = vector.broadcast %cst_129 : f32 to vector<8x128xf32>
    %307 = arith.mulf %306, %305 : vector<8x128xf32>
    %308 = math.tanh %307 : vector<8x128xf32>
    %cst_130 = arith.constant 1.000000e+00 : f32
    %309 = vector.broadcast %cst_130 : f32 to vector<8x128xf32>
    %310 = arith.addf %308, %309 : vector<8x128xf32>
    %cst_131 = arith.constant 5.000000e-01 : f32
    %311 = vector.broadcast %cst_131 : f32 to vector<8x128xf32>
    %312 = arith.mulf %311, %310 : vector<8x128xf32>
    %313 = arith.mulf %302, %237 : vector<8x128xf32>
    %314 = arith.mulf %294, %304 : vector<8x128xf32>
    %315 = arith.addf %313, %314 : vector<8x128xf32>
    %316 = math.tanh %315 : vector<8x128xf32>
    %317 = arith.mulf %312, %316 : vector<8x128xf32>
    %318 = arith.index_cast %c3_i32 : i32 to index
    %c0_132 = arith.constant 0 : index
    %c0_133 = arith.constant 0 : index
    %319 = vector.load %arg7[%318, %c0_132, %c0_133] : memref<8x8x128xf32, #tpu.memory_space<vmem>>, vector<1x8x128xf32>
    %320 = vector.shape_cast %319 : vector<1x8x128xf32> to vector<8x128xf32>
    %321 = vector.shape_cast %317 : vector<8x128xf32> to vector<1x8x128xf32>
    tpu.vector_store %arg7[%318, %c0_132, %c0_133], %321 {strides = array<i32>} : memref<8x8x128xf32, #tpu.memory_space<vmem>>, vector<1x8x128xf32>,
    %c4_i32 = arith.constant 4 : i32
    %322 = arith.index_cast %c4_i32 : i32 to index
    %c0_134 = arith.constant 0 : index
    %c0_135 = arith.constant 0 : index
    %323 = vector.load %arg2[%322, %c0_134, %c0_135] : memref<8x8x512xf32, #tpu.memory_space<vmem>>, vector<1x8x512xf32>
    %324 = vector.shape_cast %323 : vector<1x8x512xf32> to vector<8x512xf32>
    %c0_136 = arith.constant 0 : index
    %c0_137 = arith.constant 0 : index
    %325 = vector.load %arg3[%c0_136, %c0_137] : memref<128x512xf32, #tpu.memory_space<vmem>>, vector<128x512xf32>
    %cst_138 = arith.constant dense<0.000000e+00> : vector<8x512xf32>
    %326 = tpu.matmul %280, %325, %cst_138 {dimension_numbers = #tpu.dot_dimension_numbers<[1], [0], [0], [1], [0, 0, 1, 1], [], []>} : vector<8x128xf32>, vector<128x512xf32>, vector<8x512xf32> -> vector<8x512xf32>
    %327 = arith.addf %324, %326 : vector<8x512xf32>
    %328 = vector.extract_strided_slice %327 {offsets = [0, 0], sizes = [8, 128], strides = [1, 1]} : vector<8x512xf32> to vector<8x128xf32>
    %cst_139 = arith.constant 5.000000e-01 : f32
    %329 = vector.broadcast %cst_139 : f32 to vector<8x128xf32>
    %330 = arith.mulf %329, %328 : vector<8x128xf32>
    %331 = math.tanh %330 : vector<8x128xf32>
    %cst_140 = arith.constant 1.000000e+00 : f32
    %332 = vector.broadcast %cst_140 : f32 to vector<8x128xf32>
    %333 = arith.addf %331, %332 : vector<8x128xf32>
    %cst_141 = arith.constant 5.000000e-01 : f32
    %334 = vector.broadcast %cst_141 : f32 to vector<8x128xf32>
    %335 = arith.mulf %334, %333 : vector<8x128xf32>
    %336 = vector.extract_strided_slice %327 {offsets = [0, 128], sizes = [8, 128], strides = [1, 1]} : vector<8x512xf32> to vector<8x128xf32>
    %cst_142 = arith.constant 5.000000e-01 : f32
    %337 = vector.broadcast %cst_142 : f32 to vector<8x128xf32>
    %338 = arith.mulf %337, %336 : vector<8x128xf32>
    %339 = math.tanh %338 : vector<8x128xf32>
    %cst_143 = arith.constant 1.000000e+00 : f32
    %340 = vector.broadcast %cst_143 : f32 to vector<8x128xf32>
    %341 = arith.addf %339, %340 : vector<8x128xf32>
    %cst_144 = arith.constant 5.000000e-01 : f32
    %342 = vector.broadcast %cst_144 : f32 to vector<8x128xf32>
    %343 = arith.mulf %342, %341 : vector<8x128xf32>
    %344 = vector.extract_strided_slice %327 {offsets = [0, 256], sizes = [8, 128], strides = [1, 1]} : vector<8x512xf32> to vector<8x128xf32>
    %345 = math.tanh %344 : vector<8x128xf32>
    %346 = vector.extract_strided_slice %327 {offsets = [0, 384], sizes = [8, 128], strides = [1, 1]} : vector<8x512xf32> to vector<8x128xf32>
    %cst_145 = arith.constant 5.000000e-01 : f32
    %347 = vector.broadcast %cst_145 : f32 to vector<8x128xf32>
    %348 = arith.mulf %347, %346 : vector<8x128xf32>
    %349 = math.tanh %348 : vector<8x128xf32>
    %cst_146 = arith.constant 1.000000e+00 : f32
    %350 = vector.broadcast %cst_146 : f32 to vector<8x128xf32>
    %351 = arith.addf %349, %350 : vector<8x128xf32>
    %cst_147 = arith.constant 5.000000e-01 : f32
    %352 = vector.broadcast %cst_147 : f32 to vector<8x128xf32>
    %353 = arith.mulf %352, %351 : vector<8x128xf32>
    %354 = arith.mulf %343, %278 : vector<8x128xf32>
    %355 = arith.mulf %335, %345 : vector<8x128xf32>
    %356 = arith.addf %354, %355 : vector<8x128xf32>
    %357 = math.tanh %356 : vector<8x128xf32>
    %358 = arith.mulf %353, %357 : vector<8x128xf32>
    %c0_148 = arith.constant 0 : index
    %c0_149 = arith.constant 0 : index
    %359 = vector.load %arg4[%c0_148, %c0_149] : memref<128x512xf32, #tpu.memory_space<vmem>>, vector<128x512xf32>
    %cst_150 = arith.constant dense<0.000000e+00> : vector<8x512xf32>
    %360 = tpu.matmul %358, %359, %cst_150 {dimension_numbers = #tpu.dot_dimension_numbers<[1], [0], [0], [1], [0, 0, 1, 1], [], []>} : vector<8x128xf32>, vector<128x512xf32>, vector<8x512xf32> -> vector<8x512xf32>
    %c0_151 = arith.constant 0 : index
    %c0_152 = arith.constant 0 : index
    %361 = vector.load %arg5[%c0_151, %c0_152] : memref<128x512xf32, #tpu.memory_space<vmem>>, vector<128x512xf32>
    %cst_153 = arith.constant dense<0.000000e+00> : vector<8x512xf32>
    %362 = tpu.matmul %317, %361, %cst_153 {dimension_numbers = #tpu.dot_dimension_numbers<[1], [0], [0], [1], [0, 0, 1, 1], [], []>} : vector<8x128xf32>, vector<128x512xf32>, vector<8x512xf32> -> vector<8x512xf32>
    %363 = arith.addf %360, %362 : vector<8x512xf32>
    %364 = arith.addf %363, %5 : vector<8x512xf32>
    %365 = vector.extract_strided_slice %364 {offsets = [0, 0], sizes = [8, 128], strides = [1, 1]} : vector<8x512xf32> to vector<8x128xf32>
    %cst_154 = arith.constant 5.000000e-01 : f32
    %366 = vector.broadcast %cst_154 : f32 to vector<8x128xf32>
    %367 = arith.mulf %366, %365 : vector<8x128xf32>
    %368 = math.tanh %367 : vector<8x128xf32>
    %cst_155 = arith.constant 1.000000e+00 : f32
    %369 = vector.broadcast %cst_155 : f32 to vector<8x128xf32>
    %370 = arith.addf %368, %369 : vector<8x128xf32>
    %cst_156 = arith.constant 5.000000e-01 : f32
    %371 = vector.broadcast %cst_156 : f32 to vector<8x128xf32>
    %372 = arith.mulf %371, %370 : vector<8x128xf32>
    %373 = vector.extract_strided_slice %364 {offsets = [0, 128], sizes = [8, 128], strides = [1, 1]} : vector<8x512xf32> to vector<8x128xf32>
    %cst_157 = arith.constant 5.000000e-01 : f32
    %374 = vector.broadcast %cst_157 : f32 to vector<8x128xf32>
    %375 = arith.mulf %374, %373 : vector<8x128xf32>
    %376 = math.tanh %375 : vector<8x128xf32>
    %cst_158 = arith.constant 1.000000e+00 : f32
    %377 = vector.broadcast %cst_158 : f32 to vector<8x128xf32>
    %378 = arith.addf %376, %377 : vector<8x128xf32>
    %cst_159 = arith.constant 5.000000e-01 : f32
    %379 = vector.broadcast %cst_159 : f32 to vector<8x128xf32>
    %380 = arith.mulf %379, %378 : vector<8x128xf32>
    %381 = vector.extract_strided_slice %364 {offsets = [0, 256], sizes = [8, 128], strides = [1, 1]} : vector<8x512xf32> to vector<8x128xf32>
    %382 = math.tanh %381 : vector<8x128xf32>
    %383 = vector.extract_strided_slice %364 {offsets = [0, 384], sizes = [8, 128], strides = [1, 1]} : vector<8x512xf32> to vector<8x128xf32>
    %cst_160 = arith.constant 5.000000e-01 : f32
    %384 = vector.broadcast %cst_160 : f32 to vector<8x128xf32>
    %385 = arith.mulf %384, %383 : vector<8x128xf32>
    %386 = math.tanh %385 : vector<8x128xf32>
    %cst_161 = arith.constant 1.000000e+00 : f32
    %387 = vector.broadcast %cst_161 : f32 to vector<8x128xf32>
    %388 = arith.addf %386, %387 : vector<8x128xf32>
    %cst_162 = arith.constant 5.000000e-01 : f32
    %389 = vector.broadcast %cst_162 : f32 to vector<8x128xf32>
    %390 = arith.mulf %389, %388 : vector<8x128xf32>
    %391 = arith.mulf %380, %315 : vector<8x128xf32>
    %392 = arith.mulf %372, %382 : vector<8x128xf32>
    %393 = arith.addf %391, %392 : vector<8x128xf32>
    %394 = math.tanh %393 : vector<8x128xf32>
    %395 = arith.mulf %390, %394 : vector<8x128xf32>
    %396 = arith.index_cast %c4_i32 : i32 to index
    %c0_163 = arith.constant 0 : index
    %c0_164 = arith.constant 0 : index
    %397 = vector.load %arg7[%396, %c0_163, %c0_164] : memref<8x8x128xf32, #tpu.memory_space<vmem>>, vector<1x8x128xf32>
    %398 = vector.shape_cast %397 : vector<1x8x128xf32> to vector<8x128xf32>
    %399 = vector.shape_cast %395 : vector<8x128xf32> to vector<1x8x128xf32>
    tpu.vector_store %arg7[%396, %c0_163, %c0_164], %399 {strides = array<i32>} : memref<8x8x128xf32, #tpu.memory_space<vmem>>, vector<1x8x128xf32>,
    %c5_i32 = arith.constant 5 : i32
    %400 = arith.index_cast %c5_i32 : i32 to index
    %c0_165 = arith.constant 0 : index
    %c0_166 = arith.constant 0 : index
    %401 = vector.load %arg2[%400, %c0_165, %c0_166] : memref<8x8x512xf32, #tpu.memory_space<vmem>>, vector<1x8x512xf32>
    %402 = vector.shape_cast %401 : vector<1x8x512xf32> to vector<8x512xf32>
    %c0_167 = arith.constant 0 : index
    %c0_168 = arith.constant 0 : index
    %403 = vector.load %arg3[%c0_167, %c0_168] : memref<128x512xf32, #tpu.memory_space<vmem>>, vector<128x512xf32>
    %cst_169 = arith.constant dense<0.000000e+00> : vector<8x512xf32>
    %404 = tpu.matmul %358, %403, %cst_169 {dimension_numbers = #tpu.dot_dimension_numbers<[1], [0], [0], [1], [0, 0, 1, 1], [], []>} : vector<8x128xf32>, vector<128x512xf32>, vector<8x512xf32> -> vector<8x512xf32>
    %405 = arith.addf %402, %404 : vector<8x512xf32>
    %406 = vector.extract_strided_slice %405 {offsets = [0, 0], sizes = [8, 128], strides = [1, 1]} : vector<8x512xf32> to vector<8x128xf32>
    %cst_170 = arith.constant 5.000000e-01 : f32
    %407 = vector.broadcast %cst_170 : f32 to vector<8x128xf32>
    %408 = arith.mulf %407, %406 : vector<8x128xf32>
    %409 = math.tanh %408 : vector<8x128xf32>
    %cst_171 = arith.constant 1.000000e+00 : f32
    %410 = vector.broadcast %cst_171 : f32 to vector<8x128xf32>
    %411 = arith.addf %409, %410 : vector<8x128xf32>
    %cst_172 = arith.constant 5.000000e-01 : f32
    %412 = vector.broadcast %cst_172 : f32 to vector<8x128xf32>
    %413 = arith.mulf %412, %411 : vector<8x128xf32>
    %414 = vector.extract_strided_slice %405 {offsets = [0, 128], sizes = [8, 128], strides = [1, 1]} : vector<8x512xf32> to vector<8x128xf32>
    %cst_173 = arith.constant 5.000000e-01 : f32
    %415 = vector.broadcast %cst_173 : f32 to vector<8x128xf32>
    %416 = arith.mulf %415, %414 : vector<8x128xf32>
    %417 = math.tanh %416 : vector<8x128xf32>
    %cst_174 = arith.constant 1.000000e+00 : f32
    %418 = vector.broadcast %cst_174 : f32 to vector<8x128xf32>
    %419 = arith.addf %417, %418 : vector<8x128xf32>
    %cst_175 = arith.constant 5.000000e-01 : f32
    %420 = vector.broadcast %cst_175 : f32 to vector<8x128xf32>
    %421 = arith.mulf %420, %419 : vector<8x128xf32>
    %422 = vector.extract_strided_slice %405 {offsets = [0, 256], sizes = [8, 128], strides = [1, 1]} : vector<8x512xf32> to vector<8x128xf32>
    %423 = math.tanh %422 : vector<8x128xf32>
    %424 = vector.extract_strided_slice %405 {offsets = [0, 384], sizes = [8, 128], strides = [1, 1]} : vector<8x512xf32> to vector<8x128xf32>
    %cst_176 = arith.constant 5.000000e-01 : f32
    %425 = vector.broadcast %cst_176 : f32 to vector<8x128xf32>
    %426 = arith.mulf %425, %424 : vector<8x128xf32>
    %427 = math.tanh %426 : vector<8x128xf32>
    %cst_177 = arith.constant 1.000000e+00 : f32
    %428 = vector.broadcast %cst_177 : f32 to vector<8x128xf32>
    %429 = arith.addf %427, %428 : vector<8x128xf32>
    %cst_178 = arith.constant 5.000000e-01 : f32
    %430 = vector.broadcast %cst_178 : f32 to vector<8x128xf32>
    %431 = arith.mulf %430, %429 : vector<8x128xf32>
    %432 = arith.mulf %421, %356 : vector<8x128xf32>
    %433 = arith.mulf %413, %423 : vector<8x128xf32>
    %434 = arith.addf %432, %433 : vector<8x128xf32>
    %435 = math.tanh %434 : vector<8x128xf32>
    %436 = arith.mulf %431, %435 : vector<8x128xf32>
    %c0_179 = arith.constant 0 : index
    %c0_180 = arith.constant 0 : index
    %437 = vector.load %arg4[%c0_179, %c0_180] : memref<128x512xf32, #tpu.memory_space<vmem>>, vector<128x512xf32>
    %cst_181 = arith.constant dense<0.000000e+00> : vector<8x512xf32>
    %438 = tpu.matmul %436, %437, %cst_181 {dimension_numbers = #tpu.dot_dimension_numbers<[1], [0], [0], [1], [0, 0, 1, 1], [], []>} : vector<8x128xf32>, vector<128x512xf32>, vector<8x512xf32> -> vector<8x512xf32>
    %c0_182 = arith.constant 0 : index
    %c0_183 = arith.constant 0 : index
    %439 = vector.load %arg5[%c0_182, %c0_183] : memref<128x512xf32, #tpu.memory_space<vmem>>, vector<128x512xf32>
    %cst_184 = arith.constant dense<0.000000e+00> : vector<8x512xf32>
    %440 = tpu.matmul %395, %439, %cst_184 {dimension_numbers = #tpu.dot_dimension_numbers<[1], [0], [0], [1], [0, 0, 1, 1], [], []>} : vector<8x128xf32>, vector<128x512xf32>, vector<8x512xf32> -> vector<8x512xf32>
    %441 = arith.addf %438, %440 : vector<8x512xf32>
    %442 = arith.addf %441, %5 : vector<8x512xf32>
    %443 = vector.extract_strided_slice %442 {offsets = [0, 0], sizes = [8, 128], strides = [1, 1]} : vector<8x512xf32> to vector<8x128xf32>
    %cst_185 = arith.constant 5.000000e-01 : f32
    %444 = vector.broadcast %cst_185 : f32 to vector<8x128xf32>
    %445 = arith.mulf %444, %443 : vector<8x128xf32>
    %446 = math.tanh %445 : vector<8x128xf32>
    %cst_186 = arith.constant 1.000000e+00 : f32
    %447 = vector.broadcast %cst_186 : f32 to vector<8x128xf32>
    %448 = arith.addf %446, %447 : vector<8x128xf32>
    %cst_187 = arith.constant 5.000000e-01 : f32
    %449 = vector.broadcast %cst_187 : f32 to vector<8x128xf32>
    %450 = arith.mulf %449, %448 : vector<8x128xf32>
    %451 = vector.extract_strided_slice %442 {offsets = [0, 128], sizes = [8, 128], strides = [1, 1]} : vector<8x512xf32> to vector<8x128xf32>
    %cst_188 = arith.constant 5.000000e-01 : f32
    %452 = vector.broadcast %cst_188 : f32 to vector<8x128xf32>
    %453 = arith.mulf %452, %451 : vector<8x128xf32>
    %454 = math.tanh %453 : vector<8x128xf32>
    %cst_189 = arith.constant 1.000000e+00 : f32
    %455 = vector.broadcast %cst_189 : f32 to vector<8x128xf32>
    %456 = arith.addf %454, %455 : vector<8x128xf32>
    %cst_190 = arith.constant 5.000000e-01 : f32
    %457 = vector.broadcast %cst_190 : f32 to vector<8x128xf32>
    %458 = arith.mulf %457, %456 : vector<8x128xf32>
    %459 = vector.extract_strided_slice %442 {offsets = [0, 256], sizes = [8, 128], strides = [1, 1]} : vector<8x512xf32> to vector<8x128xf32>
    %460 = math.tanh %459 : vector<8x128xf32>
    %461 = vector.extract_strided_slice %442 {offsets = [0, 384], sizes = [8, 128], strides = [1, 1]} : vector<8x512xf32> to vector<8x128xf32>
    %cst_191 = arith.constant 5.000000e-01 : f32
    %462 = vector.broadcast %cst_191 : f32 to vector<8x128xf32>
    %463 = arith.mulf %462, %461 : vector<8x128xf32>
    %464 = math.tanh %463 : vector<8x128xf32>
    %cst_192 = arith.constant 1.000000e+00 : f32
    %465 = vector.broadcast %cst_192 : f32 to vector<8x128xf32>
    %466 = arith.addf %464, %465 : vector<8x128xf32>
    %cst_193 = arith.constant 5.000000e-01 : f32
    %467 = vector.broadcast %cst_193 : f32 to vector<8x128xf32>
    %468 = arith.mulf %467, %466 : vector<8x128xf32>
    %469 = arith.mulf %458, %393 : vector<8x128xf32>
    %470 = arith.mulf %450, %460 : vector<8x128xf32>
    %471 = arith.addf %469, %470 : vector<8x128xf32>
    %472 = math.tanh %471 : vector<8x128xf32>
    %473 = arith.mulf %468, %472 : vector<8x128xf32>
    %474 = arith.index_cast %c5_i32 : i32 to index
    %c0_194 = arith.constant 0 : index
    %c0_195 = arith.constant 0 : index
    %475 = vector.load %arg7[%474, %c0_194, %c0_195] : memref<8x8x128xf32, #tpu.memory_space<vmem>>, vector<1x8x128xf32>
    %476 = vector.shape_cast %475 : vector<1x8x128xf32> to vector<8x128xf32>
    %477 = vector.shape_cast %473 : vector<8x128xf32> to vector<1x8x128xf32>
    tpu.vector_store %arg7[%474, %c0_194, %c0_195], %477 {strides = array<i32>} : memref<8x8x128xf32, #tpu.memory_space<vmem>>, vector<1x8x128xf32>,
    %c6_i32 = arith.constant 6 : i32
    %478 = arith.index_cast %c6_i32 : i32 to index
    %c0_196 = arith.constant 0 : index
    %c0_197 = arith.constant 0 : index
    %479 = vector.load %arg2[%478, %c0_196, %c0_197] : memref<8x8x512xf32, #tpu.memory_space<vmem>>, vector<1x8x512xf32>
    %480 = vector.shape_cast %479 : vector<1x8x512xf32> to vector<8x512xf32>
    %c0_198 = arith.constant 0 : index
    %c0_199 = arith.constant 0 : index
    %481 = vector.load %arg3[%c0_198, %c0_199] : memref<128x512xf32, #tpu.memory_space<vmem>>, vector<128x512xf32>
    %cst_200 = arith.constant dense<0.000000e+00> : vector<8x512xf32>
    %482 = tpu.matmul %436, %481, %cst_200 {dimension_numbers = #tpu.dot_dimension_numbers<[1], [0], [0], [1], [0, 0, 1, 1], [], []>} : vector<8x128xf32>, vector<128x512xf32>, vector<8x512xf32> -> vector<8x512xf32>
    %483 = arith.addf %480, %482 : vector<8x512xf32>
    %484 = vector.extract_strided_slice %483 {offsets = [0, 0], sizes = [8, 128], strides = [1, 1]} : vector<8x512xf32> to vector<8x128xf32>
    %cst_201 = arith.constant 5.000000e-01 : f32
    %485 = vector.broadcast %cst_201 : f32 to vector<8x128xf32>
    %486 = arith.mulf %485, %484 : vector<8x128xf32>
    %487 = math.tanh %486 : vector<8x128xf32>
    %cst_202 = arith.constant 1.000000e+00 : f32
    %488 = vector.broadcast %cst_202 : f32 to vector<8x128xf32>
    %489 = arith.addf %487, %488 : vector<8x128xf32>
    %cst_203 = arith.constant 5.000000e-01 : f32
    %490 = vector.broadcast %cst_203 : f32 to vector<8x128xf32>
    %491 = arith.mulf %490, %489 : vector<8x128xf32>
    %492 = vector.extract_strided_slice %483 {offsets = [0, 128], sizes = [8, 128], strides = [1, 1]} : vector<8x512xf32> to vector<8x128xf32>
    %cst_204 = arith.constant 5.000000e-01 : f32
    %493 = vector.broadcast %cst_204 : f32 to vector<8x128xf32>
    %494 = arith.mulf %493, %492 : vector<8x128xf32>
    %495 = math.tanh %494 : vector<8x128xf32>
    %cst_205 = arith.constant 1.000000e+00 : f32
    %496 = vector.broadcast %cst_205 : f32 to vector<8x128xf32>
    %497 = arith.addf %495, %496 : vector<8x128xf32>
    %cst_206 = arith.constant 5.000000e-01 : f32
    %498 = vector.broadcast %cst_206 : f32 to vector<8x128xf32>
    %499 = arith.mulf %498, %497 : vector<8x128xf32>
    %500 = vector.extract_strided_slice %483 {offsets = [0, 256], sizes = [8, 128], strides = [1, 1]} : vector<8x512xf32> to vector<8x128xf32>
    %501 = math.tanh %500 : vector<8x128xf32>
    %502 = vector.extract_strided_slice %483 {offsets = [0, 384], sizes = [8, 128], strides = [1, 1]} : vector<8x512xf32> to vector<8x128xf32>
    %cst_207 = arith.constant 5.000000e-01 : f32
    %503 = vector.broadcast %cst_207 : f32 to vector<8x128xf32>
    %504 = arith.mulf %503, %502 : vector<8x128xf32>
    %505 = math.tanh %504 : vector<8x128xf32>
    %cst_208 = arith.constant 1.000000e+00 : f32
    %506 = vector.broadcast %cst_208 : f32 to vector<8x128xf32>
    %507 = arith.addf %505, %506 : vector<8x128xf32>
    %cst_209 = arith.constant 5.000000e-01 : f32
    %508 = vector.broadcast %cst_209 : f32 to vector<8x128xf32>
    %509 = arith.mulf %508, %507 : vector<8x128xf32>
    %510 = arith.mulf %499, %434 : vector<8x128xf32>
    %511 = arith.mulf %491, %501 : vector<8x128xf32>
    %512 = arith.addf %510, %511 : vector<8x128xf32>
    %513 = math.tanh %512 : vector<8x128xf32>
    %514 = arith.mulf %509, %513 : vector<8x128xf32>
    %c0_210 = arith.constant 0 : index
    %c0_211 = arith.constant 0 : index
    %515 = vector.load %arg4[%c0_210, %c0_211] : memref<128x512xf32, #tpu.memory_space<vmem>>, vector<128x512xf32>
    %cst_212 = arith.constant dense<0.000000e+00> : vector<8x512xf32>
    %516 = tpu.matmul %514, %515, %cst_212 {dimension_numbers = #tpu.dot_dimension_numbers<[1], [0], [0], [1], [0, 0, 1, 1], [], []>} : vector<8x128xf32>, vector<128x512xf32>, vector<8x512xf32> -> vector<8x512xf32>
    %c0_213 = arith.constant 0 : index
    %c0_214 = arith.constant 0 : index
    %517 = vector.load %arg5[%c0_213, %c0_214] : memref<128x512xf32, #tpu.memory_space<vmem>>, vector<128x512xf32>
    %cst_215 = arith.constant dense<0.000000e+00> : vector<8x512xf32>
    %518 = tpu.matmul %473, %517, %cst_215 {dimension_numbers = #tpu.dot_dimension_numbers<[1], [0], [0], [1], [0, 0, 1, 1], [], []>} : vector<8x128xf32>, vector<128x512xf32>, vector<8x512xf32> -> vector<8x512xf32>
    %519 = arith.addf %516, %518 : vector<8x512xf32>
    %520 = arith.addf %519, %5 : vector<8x512xf32>
    %521 = vector.extract_strided_slice %520 {offsets = [0, 0], sizes = [8, 128], strides = [1, 1]} : vector<8x512xf32> to vector<8x128xf32>
    %cst_216 = arith.constant 5.000000e-01 : f32
    %522 = vector.broadcast %cst_216 : f32 to vector<8x128xf32>
    %523 = arith.mulf %522, %521 : vector<8x128xf32>
    %524 = math.tanh %523 : vector<8x128xf32>
    %cst_217 = arith.constant 1.000000e+00 : f32
    %525 = vector.broadcast %cst_217 : f32 to vector<8x128xf32>
    %526 = arith.addf %524, %525 : vector<8x128xf32>
    %cst_218 = arith.constant 5.000000e-01 : f32
    %527 = vector.broadcast %cst_218 : f32 to vector<8x128xf32>
    %528 = arith.mulf %527, %526 : vector<8x128xf32>
    %529 = vector.extract_strided_slice %520 {offsets = [0, 128], sizes = [8, 128], strides = [1, 1]} : vector<8x512xf32> to vector<8x128xf32>
    %cst_219 = arith.constant 5.000000e-01 : f32
    %530 = vector.broadcast %cst_219 : f32 to vector<8x128xf32>
    %531 = arith.mulf %530, %529 : vector<8x128xf32>
    %532 = math.tanh %531 : vector<8x128xf32>
    %cst_220 = arith.constant 1.000000e+00 : f32
    %533 = vector.broadcast %cst_220 : f32 to vector<8x128xf32>
    %534 = arith.addf %532, %533 : vector<8x128xf32>
    %cst_221 = arith.constant 5.000000e-01 : f32
    %535 = vector.broadcast %cst_221 : f32 to vector<8x128xf32>
    %536 = arith.mulf %535, %534 : vector<8x128xf32>
    %537 = vector.extract_strided_slice %520 {offsets = [0, 256], sizes = [8, 128], strides = [1, 1]} : vector<8x512xf32> to vector<8x128xf32>
    %538 = math.tanh %537 : vector<8x128xf32>
    %539 = vector.extract_strided_slice %520 {offsets = [0, 384], sizes = [8, 128], strides = [1, 1]} : vector<8x512xf32> to vector<8x128xf32>
    %cst_222 = arith.constant 5.000000e-01 : f32
    %540 = vector.broadcast %cst_222 : f32 to vector<8x128xf32>
    %541 = arith.mulf %540, %539 : vector<8x128xf32>
    %542 = math.tanh %541 : vector<8x128xf32>
    %cst_223 = arith.constant 1.000000e+00 : f32
    %543 = vector.broadcast %cst_223 : f32 to vector<8x128xf32>
    %544 = arith.addf %542, %543 : vector<8x128xf32>
    %cst_224 = arith.constant 5.000000e-01 : f32
    %545 = vector.broadcast %cst_224 : f32 to vector<8x128xf32>
    %546 = arith.mulf %545, %544 : vector<8x128xf32>
    %547 = arith.mulf %536, %471 : vector<8x128xf32>
    %548 = arith.mulf %528, %538 : vector<8x128xf32>
    %549 = arith.addf %547, %548 : vector<8x128xf32>
    %550 = math.tanh %549 : vector<8x128xf32>
    %551 = arith.mulf %546, %550 : vector<8x128xf32>
    %552 = arith.index_cast %c6_i32 : i32 to index
    %c0_225 = arith.constant 0 : index
    %c0_226 = arith.constant 0 : index
    %553 = vector.load %arg7[%552, %c0_225, %c0_226] : memref<8x8x128xf32, #tpu.memory_space<vmem>>, vector<1x8x128xf32>
    %554 = vector.shape_cast %553 : vector<1x8x128xf32> to vector<8x128xf32>
    %555 = vector.shape_cast %551 : vector<8x128xf32> to vector<1x8x128xf32>
    tpu.vector_store %arg7[%552, %c0_225, %c0_226], %555 {strides = array<i32>} : memref<8x8x128xf32, #tpu.memory_space<vmem>>, vector<1x8x128xf32>,
    %c7_i32 = arith.constant 7 : i32
    %556 = arith.index_cast %c7_i32 : i32 to index
    %c0_227 = arith.constant 0 : index
    %c0_228 = arith.constant 0 : index
    %557 = vector.load %arg2[%556, %c0_227, %c0_228] : memref<8x8x512xf32, #tpu.memory_space<vmem>>, vector<1x8x512xf32>
    %558 = vector.shape_cast %557 : vector<1x8x512xf32> to vector<8x512xf32>
    %c0_229 = arith.constant 0 : index
    %c0_230 = arith.constant 0 : index
    %559 = vector.load %arg3[%c0_229, %c0_230] : memref<128x512xf32, #tpu.memory_space<vmem>>, vector<128x512xf32>
    %cst_231 = arith.constant dense<0.000000e+00> : vector<8x512xf32>
    %560 = tpu.matmul %514, %559, %cst_231 {dimension_numbers = #tpu.dot_dimension_numbers<[1], [0], [0], [1], [0, 0, 1, 1], [], []>} : vector<8x128xf32>, vector<128x512xf32>, vector<8x512xf32> -> vector<8x512xf32>
    %561 = arith.addf %558, %560 : vector<8x512xf32>
    %562 = vector.extract_strided_slice %561 {offsets = [0, 0], sizes = [8, 128], strides = [1, 1]} : vector<8x512xf32> to vector<8x128xf32>
    %cst_232 = arith.constant 5.000000e-01 : f32
    %563 = vector.broadcast %cst_232 : f32 to vector<8x128xf32>
    %564 = arith.mulf %563, %562 : vector<8x128xf32>
    %565 = math.tanh %564 : vector<8x128xf32>
    %cst_233 = arith.constant 1.000000e+00 : f32
    %566 = vector.broadcast %cst_233 : f32 to vector<8x128xf32>
    %567 = arith.addf %565, %566 : vector<8x128xf32>
    %cst_234 = arith.constant 5.000000e-01 : f32
    %568 = vector.broadcast %cst_234 : f32 to vector<8x128xf32>
    %569 = arith.mulf %568, %567 : vector<8x128xf32>
    %570 = vector.extract_strided_slice %561 {offsets = [0, 128], sizes = [8, 128], strides = [1, 1]} : vector<8x512xf32> to vector<8x128xf32>
    %cst_235 = arith.constant 5.000000e-01 : f32
    %571 = vector.broadcast %cst_235 : f32 to vector<8x128xf32>
    %572 = arith.mulf %571, %570 : vector<8x128xf32>
    %573 = math.tanh %572 : vector<8x128xf32>
    %cst_236 = arith.constant 1.000000e+00 : f32
    %574 = vector.broadcast %cst_236 : f32 to vector<8x128xf32>
    %575 = arith.addf %573, %574 : vector<8x128xf32>
    %cst_237 = arith.constant 5.000000e-01 : f32
    %576 = vector.broadcast %cst_237 : f32 to vector<8x128xf32>
    %577 = arith.mulf %576, %575 : vector<8x128xf32>
    %578 = vector.extract_strided_slice %561 {offsets = [0, 256], sizes = [8, 128], strides = [1, 1]} : vector<8x512xf32> to vector<8x128xf32>
    %579 = math.tanh %578 : vector<8x128xf32>
    %580 = vector.extract_strided_slice %561 {offsets = [0, 384], sizes = [8, 128], strides = [1, 1]} : vector<8x512xf32> to vector<8x128xf32>
    %cst_238 = arith.constant 5.000000e-01 : f32
    %581 = vector.broadcast %cst_238 : f32 to vector<8x128xf32>
    %582 = arith.mulf %581, %580 : vector<8x128xf32>
    %583 = math.tanh %582 : vector<8x128xf32>
    %cst_239 = arith.constant 1.000000e+00 : f32
    %584 = vector.broadcast %cst_239 : f32 to vector<8x128xf32>
    %585 = arith.addf %583, %584 : vector<8x128xf32>
    %cst_240 = arith.constant 5.000000e-01 : f32
    %586 = vector.broadcast %cst_240 : f32 to vector<8x128xf32>
    %587 = arith.mulf %586, %585 : vector<8x128xf32>
    %588 = arith.mulf %577, %512 : vector<8x128xf32>
    %589 = arith.mulf %569, %579 : vector<8x128xf32>
    %590 = arith.addf %588, %589 : vector<8x128xf32>
    %591 = math.tanh %590 : vector<8x128xf32>
    %592 = arith.mulf %587, %591 : vector<8x128xf32>
    %c0_241 = arith.constant 0 : index
    %c0_242 = arith.constant 0 : index
    %593 = vector.load %arg4[%c0_241, %c0_242] : memref<128x512xf32, #tpu.memory_space<vmem>>, vector<128x512xf32>
    %cst_243 = arith.constant dense<0.000000e+00> : vector<8x512xf32>
    %594 = tpu.matmul %592, %593, %cst_243 {dimension_numbers = #tpu.dot_dimension_numbers<[1], [0], [0], [1], [0, 0, 1, 1], [], []>} : vector<8x128xf32>, vector<128x512xf32>, vector<8x512xf32> -> vector<8x512xf32>
    %c0_244 = arith.constant 0 : index
    %c0_245 = arith.constant 0 : index
    %595 = vector.load %arg5[%c0_244, %c0_245] : memref<128x512xf32, #tpu.memory_space<vmem>>, vector<128x512xf32>
    %cst_246 = arith.constant dense<0.000000e+00> : vector<8x512xf32>
    %596 = tpu.matmul %551, %595, %cst_246 {dimension_numbers = #tpu.dot_dimension_numbers<[1], [0], [0], [1], [0, 0, 1, 1], [], []>} : vector<8x128xf32>, vector<128x512xf32>, vector<8x512xf32> -> vector<8x512xf32>
    %597 = arith.addf %594, %596 : vector<8x512xf32>
    %598 = arith.addf %597, %5 : vector<8x512xf32>
    %599 = vector.extract_strided_slice %598 {offsets = [0, 0], sizes = [8, 128], strides = [1, 1]} : vector<8x512xf32> to vector<8x128xf32>
    %cst_247 = arith.constant 5.000000e-01 : f32
    %600 = vector.broadcast %cst_247 : f32 to vector<8x128xf32>
    %601 = arith.mulf %600, %599 : vector<8x128xf32>
    %602 = math.tanh %601 : vector<8x128xf32>
    %cst_248 = arith.constant 1.000000e+00 : f32
    %603 = vector.broadcast %cst_248 : f32 to vector<8x128xf32>
    %604 = arith.addf %602, %603 : vector<8x128xf32>
    %cst_249 = arith.constant 5.000000e-01 : f32
    %605 = vector.broadcast %cst_249 : f32 to vector<8x128xf32>
    %606 = arith.mulf %605, %604 : vector<8x128xf32>
    %607 = vector.extract_strided_slice %598 {offsets = [0, 128], sizes = [8, 128], strides = [1, 1]} : vector<8x512xf32> to vector<8x128xf32>
    %cst_250 = arith.constant 5.000000e-01 : f32
    %608 = vector.broadcast %cst_250 : f32 to vector<8x128xf32>
    %609 = arith.mulf %608, %607 : vector<8x128xf32>
    %610 = math.tanh %609 : vector<8x128xf32>
    %cst_251 = arith.constant 1.000000e+00 : f32
    %611 = vector.broadcast %cst_251 : f32 to vector<8x128xf32>
    %612 = arith.addf %610, %611 : vector<8x128xf32>
    %cst_252 = arith.constant 5.000000e-01 : f32
    %613 = vector.broadcast %cst_252 : f32 to vector<8x128xf32>
    %614 = arith.mulf %613, %612 : vector<8x128xf32>
    %615 = vector.extract_strided_slice %598 {offsets = [0, 256], sizes = [8, 128], strides = [1, 1]} : vector<8x512xf32> to vector<8x128xf32>
    %616 = math.tanh %615 : vector<8x128xf32>
    %617 = vector.extract_strided_slice %598 {offsets = [0, 384], sizes = [8, 128], strides = [1, 1]} : vector<8x512xf32> to vector<8x128xf32>
    %cst_253 = arith.constant 5.000000e-01 : f32
    %618 = vector.broadcast %cst_253 : f32 to vector<8x128xf32>
    %619 = arith.mulf %618, %617 : vector<8x128xf32>
    %620 = math.tanh %619 : vector<8x128xf32>
    %cst_254 = arith.constant 1.000000e+00 : f32
    %621 = vector.broadcast %cst_254 : f32 to vector<8x128xf32>
    %622 = arith.addf %620, %621 : vector<8x128xf32>
    %cst_255 = arith.constant 5.000000e-01 : f32
    %623 = vector.broadcast %cst_255 : f32 to vector<8x128xf32>
    %624 = arith.mulf %623, %622 : vector<8x128xf32>
    %625 = arith.mulf %614, %549 : vector<8x128xf32>
    %626 = arith.mulf %606, %616 : vector<8x128xf32>
    %627 = arith.addf %625, %626 : vector<8x128xf32>
    %628 = math.tanh %627 : vector<8x128xf32>
    %629 = arith.mulf %624, %628 : vector<8x128xf32>
    %630 = arith.index_cast %c7_i32 : i32 to index
    %c0_256 = arith.constant 0 : index
    %c0_257 = arith.constant 0 : index
    %631 = vector.load %arg7[%630, %c0_256, %c0_257] : memref<8x8x128xf32, #tpu.memory_space<vmem>>, vector<1x8x128xf32>
    %632 = vector.shape_cast %631 : vector<1x8x128xf32> to vector<8x128xf32>
    %633 = vector.shape_cast %629 : vector<8x128xf32> to vector<1x8x128xf32>
    tpu.vector_store %arg7[%630, %c0_256, %c0_257], %633 {strides = array<i32>} : memref<8x8x128xf32, #tpu.memory_space<vmem>>, vector<1x8x128xf32>,
    %c8_i32 = arith.constant 8 : i32
    %c0_258 = arith.constant 0 : index
    %c0_259 = arith.constant 0 : index
    %634 = vector.load %arg8[%c0_258, %c0_259] : memref<8x128xf32, #tpu.memory_space<vmem>>, vector<8x128xf32>
    tpu.vector_store %arg8[%c0_258, %c0_259], %592 {strides = array<i32>} : memref<8x128xf32, #tpu.memory_space<vmem>>, vector<8x128xf32>,
    %c0_260 = arith.constant 0 : index
    %c0_261 = arith.constant 0 : index
    %635 = vector.load %arg9[%c0_260, %c0_261] : memref<8x128xf32, #tpu.memory_space<vmem>>, vector<8x128xf32>
    tpu.vector_store %arg9[%c0_260, %c0_261], %590 {strides = array<i32>} : memref<8x128xf32, #tpu.memory_space<vmem>>, vector<8x128xf32>,
    %c0_262 = arith.constant 0 : index
    %c0_263 = arith.constant 0 : index
    %636 = vector.load %arg10[%c0_262, %c0_263] : memref<8x128xf32, #tpu.memory_space<vmem>>, vector<8x128xf32>
    tpu.vector_store %arg10[%c0_262, %c0_263], %629 {strides = array<i32>} : memref<8x128xf32, #tpu.memory_space<vmem>>, vector<8x128xf32>,
    %c0_264 = arith.constant 0 : index
    %c0_265 = arith.constant 0 : index
    %637 = vector.load %arg11[%c0_264, %c0_265] : memref<8x128xf32, #tpu.memory_space<vmem>>, vector<8x128xf32>
    tpu.vector_store %arg11[%c0_264, %c0_265], %627 {strides = array<i32>} : memref<8x128xf32, #tpu.memory_space<vmem>>, vector<8x128xf32>,
    return
  }
  func.func @transform_0(%arg0: i32, %arg1: i32) -> (i32, i32, i32) {
    %c0_i32 = arith.constant 0 : i32
    %c0_i32_0 = arith.constant 0 : i32
    return %arg1, %arg0, %c0_i32 : i32, i32, i32
  }
  func.func @transform_1(%arg0: i32, %arg1: i32) -> (i32, i32) {
    %c0_i32 = arith.constant 0 : i32
    %c0_i32_0 = arith.constant 0 : i32
    %c0_i32_1 = arith.constant 0 : i32
    return %c0_i32, %c0_i32_0 : i32, i32
  }
  func.func @transform_2(%arg0: i32, %arg1: i32) -> (i32, i32) {
    %c0_i32 = arith.constant 0 : i32
    %c0_i32_0 = arith.constant 0 : i32
    %c0_i32_1 = arith.constant 0 : i32
    return %c0_i32, %c0_i32_0 : i32, i32
  }
  func.func @transform_3(%arg0: i32, %arg1: i32) -> (i32, i32) {
    %c0_i32 = arith.constant 0 : i32
    %c0_i32_0 = arith.constant 0 : i32
    %c0_i32_1 = arith.constant 0 : i32
    return %c0_i32, %c0_i32_0 : i32, i32
  }
  func.func @transform_4(%arg0: i32, %arg1: i32) -> (i32, i32) {
    %c0_i32 = arith.constant 0 : i32
    %c0_i32_0 = arith.constant 0 : i32
    %c0_i32_1 = arith.constant 0 : i32
    return %c0_i32, %c0_i32_0 : i32, i32
  }
  func.func @transform_5(%arg0: i32, %arg1: i32) -> (i32, i32, i32) {
    %c0_i32 = arith.constant 0 : i32
    %c0_i32_0 = arith.constant 0 : i32
    return %arg1, %arg0, %c0_i32 : i32, i32, i32
  }
}

</mosaic_0001>

<llo_original>
// kernel: tpu_custom_call.1
$region0: #{tpu_custom_call.1}
  #allocation0 [shape = 'u32[]', space=smem, size = 0x4, offset = 0x4, fixed_abs, tag = 'smem constant byte address 0x4 - core index']
  #allocation1 [shape = 'u32[144,128]{1,0:T(1,128)}', space=vmem, size = 0x12000, scoped, tag = 'internal scratch']
  #allocation2 [shape = 'f32[8,128]{1,0:T(8,128)}', space=vmem, size = 0x1000, scoped, tag = 'scratch operand']
  #allocation3 [shape = 'f32[8,128]{1,0:T(8,128)}', space=vmem, size = 0x1000, scoped, tag = 'scratch operand']
  #allocation4 [shape = 'f32[8,128]{1,0:T(8,128)}', space=vmem, size = 0x1000, scoped, tag = 'scratch operand']
  #allocation5 [shape = 'f32[8,128]{1,0:T(8,128)}', space=vmem, size = 0x1000, scoped, tag = 'scratch operand']
  %s0 = inlined_call_operand.hbm [shape: f32[8,8,512], index: 0, kind: input, shape index: {}]
  %s1 = inlined_call_operand.hbm [shape: f32[128,512], index: 1, kind: input, shape index: {}]
  %s2 = inlined_call_operand.hbm [shape: f32[128,512], index: 2, kind: input, shape index: {}]
  %s3 = inlined_call_operand.hbm [shape: f32[128,512], index: 3, kind: input, shape index: {}]
  %s4 = inlined_call_operand.vmem [shape: f32[1,512], index: 4, kind: input, shape index: {}]
  %s5 = inlined_call_operand.hbm [shape: f32[8,8,128], index: 5, kind: output, shape index: {}]
  %s6 = sld [smem:[#allocation0]]
  $region50: #{tpu_custom_call.1} parent=0
    _
  %s8 = ssub.s32 1, %s6
  %s9 = scalar_select 0, %s8, %s6
  $region1: #{tpu_custom_call.1} parent=0
    #allocation6 [shape = 'u8[131072]{0}', space=vmem, size = 0x20000, scoped, tag = 'input window, operand 0, single buffered']
    #allocation7 [shape = 's32[1]{0}', space=sflag, size = 0x4, scoped, tag = 'scoped memory for tpu_custom_call.1']
    #allocation8 [shape = 's32[1]{0}', space=sflag, size = 0x4, scoped, tag = 'scoped memory for tpu_custom_call.1']
    #allocation9 [shape = 'u8[262144]{0}', space=vmem, size = 0x40000, scoped, tag = 'input window, operand 1, single buffered']
    #allocation10 [shape = 's32[1]{0}', space=sflag, size = 0x4, scoped, tag = 'scoped memory for tpu_custom_call.1']
    #allocation11 [shape = 'u8[262144]{0}', space=vmem, size = 0x40000, scoped, tag = 'input window, operand 2, single buffered']
    #allocation12 [shape = 'u8[262144]{0}', space=vmem, size = 0x40000, scoped, tag = 'input window, operand 3, single buffered']
    #allocation13 [shape = 's32[1]{0}', space=sflag, size = 0x4, scoped, tag = 'scoped memory for tpu_custom_call.1']
    #allocation14 [shape = 'u8[32768]{0}', space=vmem, size = 0x8000, scoped, tag = 'output window, operand 0, single buffered']
    %10 = vsyncpa [#allocation7], 0
    %11 = vsyncpa [#allocation10], 0
    %12 = vsyncpa [#allocation13], 0
    %13 = vsyncpa [#allocation8], 0
    // Predicated region
    $region2: #{tpu_custom_call.1} parent=1 // pred_check
      _
    $region3: #{tpu_custom_call.1} parent=1 // pred_check_branch
      %15 = sbr.rel (0) target = $region5
    $region4: #{tpu_custom_call.1} parent=1 // pred_region
      %s17 = ssub.s32 4096, 4096
      %18 = vsyncadd [#allocation7], %s17
      %s19 = sshll.u32 [#allocation6], 4
      %s20 = int_to_ptr.vmem [resolvable:$true] %s19
      %25 = dma.hbm_to_vmem [thread:$0]  %s0, 4096, %s20, [#allocation7], 512, 512, 32
    $region5: #{tpu_custom_call.1} parent=1 // pred_fallthru
      _
    // Predicated region
    $region6: #{tpu_custom_call.1} parent=1 // pred_check
      _
    $region7: #{tpu_custom_call.1} parent=1 // pred_check_branch
      %27 = sbr.rel (0) target = $region9
    $region8: #{tpu_custom_call.1} parent=1 // pred_region
      %s29 = ssub.s32 8192, 8192
      %30 = vsyncadd [#allocation10], %s29
      %s31 = sshll.u32 [#allocation9], 4
      %s32 = int_to_ptr.vmem [resolvable:$true] %s31
      %37 = dma.hbm_to_vmem [thread:$0]  %s1, 8192, %s32, [#allocation10], 512, 512, 32
    $region9: #{tpu_custom_call.1} parent=1 // pred_fallthru
      _
    // Predicated region
    $region10: #{tpu_custom_call.1} parent=1 // pred_check
      _
    $region11: #{tpu_custom_call.1} parent=1 // pred_check_branch
      %39 = sbr.rel (0) target = $region13
    $region12: #{tpu_custom_call.1} parent=1 // pred_region
      %s41 = ssub.s32 8192, 8192
      %42 = vsyncadd [#allocation10], %s41
      %s43 = sshll.u32 [#allocation11], 4
      %s44 = int_to_ptr.vmem [resolvable:$true] %s43
      %49 = dma.hbm_to_vmem [thread:$0]  %s2, 8192, %s44, [#allocation10], 512, 512, 32
    $region13: #{tpu_custom_call.1} parent=1 // pred_fallthru
      _
    // Predicated region
    $region14: #{tpu_custom_call.1} parent=1 // pred_check
      _
    $region15: #{tpu_custom_call.1} parent=1 // pred_check_branch
      %51 = sbr.rel (0) target = $region17
    $region16: #{tpu_custom_call.1} parent=1 // pred_region
      %s53 = ssub.s32 8192, 8192
      %54 = vsyncadd [#allocation13], %s53
      %s55 = sshll.u32 [#allocation12], 4
      %s56 = int_to_ptr.vmem [resolvable:$true] %s55
      %61 = dma.hbm_to_vmem [thread:$0]  %s3, 8192, %s56, [#allocation13], 512, 512, 32
    $region17: #{tpu_custom_call.1} parent=1 // pred_fallthru
      _
    // Predicated region
    $region18: #{tpu_custom_call.1} parent=1 // pred_check
      _
    $region19: #{tpu_custom_call.1} parent=1 // pred_check_branch
      %63 = sbr.rel (0) target = $region21
    $region20: #{tpu_custom_call.1} parent=1 // pred_region
      _
    $region21: #{tpu_custom_call.1} parent=1 // pred_fallthru
      _
    // Predicated region
    $region22: #{tpu_custom_call.1} parent=1 // pred_check
      _
    $region23: #{tpu_custom_call.1} parent=1 // pred_check_branch
      %65 = sbr.rel (0) target = $region25
    $region24: #{tpu_custom_call.1} parent=1 // pred_region
      %66 = dma.done [#allocation7], 4096
    $region25: #{tpu_custom_call.1} parent=1 // pred_fallthru
      _
    // Predicated region
    $region26: #{tpu_custom_call.1} parent=1 // pred_check
      _
    $region27: #{tpu_custom_call.1} parent=1 // pred_check_branch
      %68 = sbr.rel (0) target = $region29
    $region28: #{tpu_custom_call.1} parent=1 // pred_region
      %69 = dma.done [#allocation10], 8192
    $region29: #{tpu_custom_call.1} parent=1 // pred_fallthru
      _
    // Predicated region
    $region30: #{tpu_custom_call.1} parent=1 // pred_check
      _
    $region31: #{tpu_custom_call.1} parent=1 // pred_check_branch
      %71 = sbr.rel (0) target = $region33
    $region32: #{tpu_custom_call.1} parent=1 // pred_region
      %72 = dma.done [#allocation10], 8192
    $region33: #{tpu_custom_call.1} parent=1 // pred_fallthru
      _
    // Predicated region
    $region34: #{tpu_custom_call.1} parent=1 // pred_check
      _
    $region35: #{tpu_custom_call.1} parent=1 // pred_check_branch
      %74 = sbr.rel (0) target = $region37
    $region36: #{tpu_custom_call.1} parent=1 // pred_region
      %75 = dma.done [#allocation13], 8192
    $region37: #{tpu_custom_call.1} parent=1 // pred_fallthru
      _
    %p76 = scmp.eq.s32.totalorder 0, 0
    // Predicated region
    $region38: #{tpu_custom_call.1} parent=1 // pred_check
      %p77 = pneg %p76
    $region39: #{tpu_custom_call.1} parent=1 // pred_check_branch
      %79 = sbr.rel (%p77) target = $region41
    $region40: #{tpu_custom_call.1} parent=1 // pred_region
      %80 = vst [vmem:[#allocation2] sm:$0xff] 0.0
      %81 = vst [vmem:[#allocation3] sm:$0xff] 0.0
      %82 = vst [vmem:[#allocation4] sm:$0xff] 0.0
      %83 = vst [vmem:[#allocation5] sm:$0xff] 0.0
    $region41: #{tpu_custom_call.1} parent=1 // pred_fallthru
      _
    %v84 = vld [vmem:[%s4] sm:$0xf]
    %v86 = vlaneseq
    %v87 = vshrl.u32 %v86, 7
    %v88 = vsub.s32 0, %v87
    %v89 = vrot.slane %v84, %v88
    %v90 = vlaneseq
    %v91 = vshrl.u32 %v90, 7
    %v92 = vsub.s32 1, %v91
    %v93 = vrot.slane %v84, %v92
    %v94 = vlaneseq
    %v95 = vshrl.u32 %v94, 7
    %v96 = vsub.s32 2, %v95
    %v97 = vrot.slane %v84, %v96
    %v98 = vlaneseq
    %v99 = vshrl.u32 %v98, 7
    %v100 = vsub.s32 3, %v99
    %v101 = vrot.slane %v84, %v100
    %v106 = vld [vmem:[#allocation2] sm:$0xff]
    %v107 = vld [vmem:[#allocation3] sm:$0xff]
    %v108 = vld [vmem:[#allocation4] sm:$0xff]
    %v109 = vld [vmem:[#allocation5] sm:$0xff]
    %v110 = vld [vmem:[#allocation6] sm:$0xff]
    %v111 = vld [vmem:[#allocation6 + $0x8] sm:$0xff]
    %v112 = vld [vmem:[#allocation6 + $0x10] sm:$0xff]
    %v113 = vld [vmem:[#allocation6 + $0x18] sm:$0xff]
    %v114 = vld [vmem:[#allocation9] sm:$0xff]
    %v115 = vld [vmem:[#allocation9 + $0x8] sm:$0xff]
    %v116 = vld [vmem:[#allocation9 + $0x10] sm:$0xff]
    %v117 = vld [vmem:[#allocation9 + $0x18] sm:$0xff]
    %v118 = vld [vmem:[#allocation9 + $0x20] sm:$0xff]
    %v119 = vld [vmem:[#allocation9 + $0x28] sm:$0xff]
    %v120 = vld [vmem:[#allocation9 + $0x30] sm:$0xff]
    %v121 = vld [vmem:[#allocation9 + $0x38] sm:$0xff]
    %v122 = vld [vmem:[#allocation9 + $0x40] sm:$0xff]
    %v123 = vld [vmem:[#allocation9 + $0x48] sm:$0xff]
    %v124 = vld [vmem:[#allocation9 + $0x50] sm:$0xff]
    %v125 = vld [vmem:[#allocation9 + $0x58] sm:$0xff]
    %v126 = vld [vmem:[#allocation9 + $0x60] sm:$0xff]
    %v127 = vld [vmem:[#allocation9 + $0x68] sm:$0xff]
    %v128 = vld [vmem:[#allocation9 + $0x70] sm:$0xff]
    %v129 = vld [vmem:[#allocation9 + $0x78] sm:$0xff]
    %v130 = vld [vmem:[#allocation9 + $0x80] sm:$0xff]
    %v131 = vld [vmem:[#allocation9 + $0x88] sm:$0xff]
    %v132 = vld [vmem:[#allocation9 + $0x90] sm:$0xff]
    %v133 = vld [vmem:[#allocation9 + $0x98] sm:$0xff]
    %v134 = vld [vmem:[#allocation9 + $0xa0] sm:$0xff]
    %v135 = vld [vmem:[#allocation9 + $0xa8] sm:$0xff]
    %v136 = vld [vmem:[#allocation9 + $0xb0] sm:$0xff]
    %v137 = vld [vmem:[#allocation9 + $0xb8] sm:$0xff]
    %v138 = vld [vmem:[#allocation9 + $0xc0] sm:$0xff]
    %v139 = vld [vmem:[#allocation9 + $0xc8] sm:$0xff]
    %v140 = vld [vmem:[#allocation9 + $0xd0] sm:$0xff]
    %v141 = vld [vmem:[#allocation9 + $0xd8] sm:$0xff]
    %v142 = vld [vmem:[#allocation9 + $0xe0] sm:$0xff]
    %v143 = vld [vmem:[#allocation9 + $0xe8] sm:$0xff]
    %v144 = vld [vmem:[#allocation9 + $0xf0] sm:$0xff]
    %v145 = vld [vmem:[#allocation9 + $0xf8] sm:$0xff]
    %v146 = vld [vmem:[#allocation9 + $0x100] sm:$0xff]
    %v147 = vld [vmem:[#allocation9 + $0x108] sm:$0xff]
    %v148 = vld [vmem:[#allocation9 + $0x110] sm:$0xff]
    %v149 = vld [vmem:[#allocation9 + $0x118] sm:$0xff]
    %v150 = vld [vmem:[#allocation9 + $0x120] sm:$0xff]
    %v151 = vld [vmem:[#allocation9 + $0x128] sm:$0xff]
    %v152 = vld [vmem:[#allocation9 + $0x130] sm:$0xff]
    %v153 = vld [vmem:[#allocation9 + $0x138] sm:$0xff]
    %v154 = vld [vmem:[#allocation9 + $0x140] sm:$0xff]
    %v155 = vld [vmem:[#allocation9 + $0x148] sm:$0xff]
    %v156 = vld [vmem:[#allocation9 + $0x150] sm:$0xff]
    %v157 = vld [vmem:[#allocation9 + $0x158] sm:$0xff]
    %v158 = vld [vmem:[#allocation9 + $0x160] sm:$0xff]
    %v159 = vld [vmem:[#allocation9 + $0x168] sm:$0xff]
    %v160 = vld [vmem:[#allocation9 + $0x170] sm:$0xff]
    %v161 = vld [vmem:[#allocation9 + $0x178] sm:$0xff]
    %v162 = vld [vmem:[#allocation9 + $0x180] sm:$0xff]
    %v163 = vld [vmem:[#allocation9 + $0x188] sm:$0xff]
    %v164 = vld [vmem:[#allocation9 + $0x190] sm:$0xff]
    %v165 = vld [vmem:[#allocation9 + $0x198] sm:$0xff]
    %v166 = vld [vmem:[#allocation9 + $0x1a0] sm:$0xff]
    %v167 = vld [vmem:[#allocation9 + $0x1a8] sm:$0xff]
    %v168 = vld [vmem:[#allocation9 + $0x1b0] sm:$0xff]
    %v169 = vld [vmem:[#allocation9 + $0x1b8] sm:$0xff]
    %v170 = vld [vmem:[#allocation9 + $0x1c0] sm:$0xff]
    %v171 = vld [vmem:[#allocation9 + $0x1c8] sm:$0xff]
    %v172 = vld [vmem:[#allocation9 + $0x1d0] sm:$0xff]
    %v173 = vld [vmem:[#allocation9 + $0x1d8] sm:$0xff]
    %v174 = vld [vmem:[#allocation9 + $0x1e0] sm:$0xff]
    %v175 = vld [vmem:[#allocation9 + $0x1e8] sm:$0xff]
    %v176 = vld [vmem:[#allocation9 + $0x1f0] sm:$0xff]
    %v177 = vld [vmem:[#allocation9 + $0x1f8] sm:$0xff]
    %178 = vmatprep.subr.mxu0 %v175
    %179 = vmatpush1.msra.mxu0 %v174
    %180 = vmatprep.subr.mxu0 %v171
    %181 = vmatpush1.msra.mxu0 %v170
    %182 = vmatprep.subr.mxu0 %v167
    %183 = vmatpush1.msra.mxu0 %v166
    %184 = vmatprep.subr.mxu0 %v163
    %185 = vmatpush1.msra.mxu0 %v162
    %186 = vmatprep.subr.mxu0 %v159
    %187 = vmatpush1.msra.mxu0 %v158
    %188 = vmatprep.subr.mxu0 %v155
    %189 = vmatpush1.msra.mxu0 %v154
    %190 = vmatprep.subr.mxu0 %v151
    %191 = vmatpush1.msra.mxu0 %v150
    %192 = vmatprep.subr.mxu0 %v147
    %193 = vmatpush1.msra.mxu0 %v146
    %194 = vmatprep.subr.mxu0 %v143
    %195 = vmatpush1.msra.mxu0 %v142
    %196 = vmatprep.subr.mxu0 %v139
    %197 = vmatpush1.msra.mxu0 %v138
    %198 = vmatprep.subr.mxu0 %v135
    %199 = vmatpush1.msra.mxu0 %v134
    %200 = vmatprep.subr.mxu0 %v131
    %201 = vmatpush1.msra.mxu0 %v130
    %202 = vmatprep.subr.mxu0 %v127
    %203 = vmatpush1.msra.mxu0 %v126
    %204 = vmatprep.subr.mxu0 %v123
    %205 = vmatpush1.msra.mxu0 %v122
    %206 = vmatprep.subr.mxu0 %v119
    %207 = vmatpush1.msra.mxu0 %v118
    %208 = vmatprep.subr.mxu0 %v115
    %209 = vmatpush1.msra.mxu0 %v114
    %210 = vmatprep.subr.mxu0 0.0
    %211 = vmatpush2.msra.mxu0 0.0
    %212 = vmatprep.subr.mxu0 0.0
    %213 = vmatpush2.msra.mxu0 0.0
    %214 = vmatprep.subr.mxu0 0.0
    %215 = vmatpush2.msra.mxu0 0.0
    %216 = vmatprep.subr.mxu0 0.0
    %217 = vmatpush2.msra.mxu0 0.0
    %218 = vmatprep.subr.mxu0 0.0
    %219 = vmatpush2.msra.mxu0 0.0
    %220 = vmatprep.subr.mxu0 0.0
    %221 = vmatpush2.msra.mxu0 0.0
    %222 = vmatprep.subr.mxu0 0.0
    %223 = vmatpush2.msra.mxu0 0.0
    %224 = vmatprep.subr.mxu0 0.0
    %225 = vmatpush2.msra.mxu0 0.0
    %226 = vmatprep.subr.mxu0 0.0
    %227 = vmatpush2.msra.mxu0 0.0
    %228 = vmatprep.subr.mxu0 0.0
    %229 = vmatpush2.msra.mxu0 0.0
    %230 = vmatprep.subr.mxu0 0.0
    %231 = vmatpush2.msra.mxu0 0.0
    %232 = vmatprep.subr.mxu0 0.0
    %233 = vmatpush2.msra.mxu0 0.0
    %234 = vmatprep.subr.mxu0 0.0
    %235 = vmatpush2.msra.mxu0 0.0
    %236 = vmatprep.subr.mxu0 0.0
    %237 = vmatpush2.msra.mxu0 0.0
    %238 = vmatprep.subr.mxu0 0.0
    %239 = vmatpush2.msra.mxu0 0.0
    %240 = vmatprep.subr.mxu0 0.0
    %241 = vmatpush2.msra.mxu0 0.0
    %242 = vmatprep.mubr.f32.mxu0 0.0
    %243 = vmatmul.mubr.f32.gmra.mxu0 %v106
    %v244 = vpop.f32.mrf.mxu0
    %v245 = vadd.f32 0.0, %v244
    %v246 = vpop.f32.mrf.mxu0
    %v247 = vadd.f32 0.0, %v246
    %248 = vdwg.mxu0
    %249 = vmatprep.subr.mxu0 %v177
    %250 = vmatpush1.msra.mxu0 %v176
    %251 = vmatprep.subr.mxu0 %v173
    %252 = vmatpush1.msra.mxu0 %v172
    %253 = vmatprep.subr.mxu0 %v169
    %254 = vmatpush1.msra.mxu0 %v168
    %255 = vmatprep.subr.mxu0 %v165
    %256 = vmatpush1.msra.mxu0 %v164
    %257 = vmatprep.subr.mxu0 %v161
    %258 = vmatpush1.msra.mxu0 %v160
    %259 = vmatprep.subr.mxu0 %v157
    %260 = vmatpush1.msra.mxu0 %v156
    %261 = vmatprep.subr.mxu0 %v153
    %262 = vmatpush1.msra.mxu0 %v152
    %263 = vmatprep.subr.mxu0 %v149
    %264 = vmatpush1.msra.mxu0 %v148
    %265 = vmatprep.subr.mxu0 %v145
    %266 = vmatpush1.msra.mxu0 %v144
    %267 = vmatprep.subr.mxu0 %v141
    %268 = vmatpush1.msra.mxu0 %v140
    %269 = vmatprep.subr.mxu0 %v137
    %270 = vmatpush1.msra.mxu0 %v136
    %271 = vmatprep.subr.mxu0 %v133
    %272 = vmatpush1.msra.mxu0 %v132
    %273 = vmatprep.subr.mxu0 %v129
    %274 = vmatpush1.msra.mxu0 %v128
    %275 = vmatprep.subr.mxu0 %v125
    %276 = vmatpush1.msra.mxu0 %v124
    %277 = vmatprep.subr.mxu0 %v121
    %278 = vmatpush1.msra.mxu0 %v120
    %279 = vmatprep.subr.mxu0 %v117
    %280 = vmatpush1.msra.mxu0 %v116
    %281 = vmatprep.subr.mxu0 0.0
    %282 = vmatpush2.msra.mxu0 0.0
    %283 = vmatprep.subr.mxu0 0.0
    %284 = vmatpush2.msra.mxu0 0.0
    %285 = vmatprep.subr.mxu0 0.0
    %286 = vmatpush2.msra.mxu0 0.0
    %287 = vmatprep.subr.mxu0 0.0
    %288 = vmatpush2.msra.mxu0 0.0
    %289 = vmatprep.subr.mxu0 0.0
    %290 = vmatpush2.msra.mxu0 0.0
    %291 = vmatprep.subr.mxu0 0.0
    %292 = vmatpush2.msra.mxu0 0.0
    %293 = vmatprep.subr.mxu0 0.0
    %294 = vmatpush2.msra.mxu0 0.0
    %295 = vmatprep.subr.mxu0 0.0
    %296 = vmatpush2.msra.mxu0 0.0
    %297 = vmatprep.subr.mxu0 0.0
    %298 = vmatpush2.msra.mxu0 0.0
    %299 = vmatprep.subr.mxu0 0.0
    %300 = vmatpush2.msra.mxu0 0.0
    %301 = vmatprep.subr.mxu0 0.0
    %302 = vmatpush2.msra.mxu0 0.0
    %303 = vmatprep.subr.mxu0 0.0
    %304 = vmatpush2.msra.mxu0 0.0
    %305 = vmatprep.subr.mxu0 0.0
    %306 = vmatpush2.msra.mxu0 0.0
    %307 = vmatprep.subr.mxu0 0.0
    %308 = vmatpush2.msra.mxu0 0.0
    %309 = vmatprep.subr.mxu0 0.0
    %310 = vmatpush2.msra.mxu0 0.0
    %311 = vmatprep.subr.mxu0 0.0
    %312 = vmatpush2.msra.mxu0 0.0
    %313 = vmatprep.mubr.f32.mxu0 0.0
    %314 = vmatmul.mubr.f32.gmra.mxu0 %v106
    %v315 = vpop.f32.mrf.mxu0
    %v316 = vadd.f32 0.0, %v315
    %v317 = vpop.f32.mrf.mxu0
    %v318 = vadd.f32 0.0, %v317
    %319 = vdwg.mxu0
    %v320 = vadd.f32 %v110, %v245
    %v321 = vadd.f32 %v111, %v247
    %v322 = vadd.f32 %v112, %v316
    %v323 = vadd.f32 %v113, %v318
    %v324 = vmul.f32 %v320, 0.5
    %v325 = vtanh.pop %v324
    %v326 = vadd.f32 %v325, 1.0
    %v327 = vmul.f32 %v326, 0.5
    %v328 = vmul.f32 %v321, 0.5
    %v329 = vtanh.pop %v328
    %v330 = vadd.f32 %v329, 1.0
    %v331 = vmul.f32 %v330, 0.5
    %v332 = vtanh.pop %v322
    %v333 = vmul.f32 %v323, 0.5
    %v334 = vtanh.pop %v333
    %v335 = vadd.f32 %v334, 1.0
    %v336 = vmul.f32 %v335, 0.5
    %v337 = vmul.f32 %v331, %v107
    %v338 = vmul.f32 %v327, %v332
    %v339 = vadd.f32 %v337, %v338
    %v340 = vtanh.pop %v339
    %v341 = vmul.f32 %v336, %v340
    %v342 = vld [vmem:[#allocation11] sm:$0xff]
    %v343 = vld [vmem:[#allocation11 + $0x8] sm:$0xff]
    %v344 = vld [vmem:[#allocation11 + $0x10] sm:$0xff]
    %v345 = vld [vmem:[#allocation11 + $0x18] sm:$0xff]
    %v346 = vld [vmem:[#allocation11 + $0x20] sm:$0xff]
    %v347 = vld [vmem:[#allocation11 + $0x28] sm:$0xff]
    %v348 = vld [vmem:[#allocation11 + $0x30] sm:$0xff]
    %v349 = vld [vmem:[#allocation11 + $0x38] sm:$0xff]
    %v350 = vld [vmem:[#allocation11 + $0x40] sm:$0xff]
    %v351 = vld [vmem:[#allocation11 + $0x48] sm:$0xff]
    %v352 = vld [vmem:[#allocation11 + $0x50] sm:$0xff]
    %v353 = vld [vmem:[#allocation11 + $0x58] sm:$0xff]
    %v354 = vld [vmem:[#allocation11 + $0x60] sm:$0xff]
    %v355 = vld [vmem:[#allocation11 + $0x68] sm:$0xff]
    %v356 = vld [vmem:[#allocation11 + $0x70] sm:$0xff]
    %v357 = vld [vmem:[#allocation11 + $0x78] sm:$0xff]
    %v358 = vld [vmem:[#allocation11 + $0x80] sm:$0xff]
    %v359 = vld [vmem:[#allocation11 + $0x88] sm:$0xff]
    %v360 = vld [vmem:[#allocation11 + $0x90] sm:$0xff]
    %v361 = vld [vmem:[#allocation11 + $0x98] sm:$0xff]
    %v362 = vld [vmem:[#allocation11 + $0xa0] sm:$0xff]
    %v363 = vld [vmem:[#allocation11 + $0xa8] sm:$0xff]
    %v364 = vld [vmem:[#allocation11 + $0xb0] sm:$0xff]
    %v365 = vld [vmem:[#allocation11 + $0xb8] sm:$0xff]
    %v366 = vld [vmem:[#allocation11 + $0xc0] sm:$0xff]
    %v367 = vld [vmem:[#allocation11 + $0xc8] sm:$0xff]
    %v368 = vld [vmem:[#allocation11 + $0xd0] sm:$0xff]
    %v369 = vld [vmem:[#allocation11 + $0xd8] sm:$0xff]
    %v370 = vld [vmem:[#allocation11 + $0xe0] sm:$0xff]
    %v371 = vld [vmem:[#allocation11 + $0xe8] sm:$0xff]
    %v372 = vld [vmem:[#allocation11 + $0xf0] sm:$0xff]
    %v373 = vld [vmem:[#allocation11 + $0xf8] sm:$0xff]
    %v374 = vld [vmem:[#allocation11 + $0x100] sm:$0xff]
    %v375 = vld [vmem:[#allocation11 + $0x108] sm:$0xff]
    %v376 = vld [vmem:[#allocation11 + $0x110] sm:$0xff]
    %v377 = vld [vmem:[#allocation11 + $0x118] sm:$0xff]
    %v378 = vld [vmem:[#allocation11 + $0x120] sm:$0xff]
    %v379 = vld [vmem:[#allocation11 + $0x128] sm:$0xff]
    %v380 = vld [vmem:[#allocation11 + $0x130] sm:$0xff]
    %v381 = vld [vmem:[#allocation11 + $0x138] sm:$0xff]
    %v382 = vld [vmem:[#allocation11 + $0x140] sm:$0xff]
    %v383 = vld [vmem:[#allocation11 + $0x148] sm:$0xff]
    %v384 = vld [vmem:[#allocation11 + $0x150] sm:$0xff]
    %v385 = vld [vmem:[#allocation11 + $0x158] sm:$0xff]
    %v386 = vld [vmem:[#allocation11 + $0x160] sm:$0xff]
    %v387 = vld [vmem:[#allocation11 + $0x168] sm:$0xff]
    %v388 = vld [vmem:[#allocation11 + $0x170] sm:$0xff]
    %v389 = vld [vmem:[#allocation11 + $0x178] sm:$0xff]
    %v390 = vld [vmem:[#allocation11 + $0x180] sm:$0xff]
    %v391 = vld [vmem:[#allocation11 + $0x188] sm:$0xff]
    %v392 = vld [vmem:[#allocation11 + $0x190] sm:$0xff]
    %v393 = vld [vmem:[#allocation11 + $0x198] sm:$0xff]
    %v394 = vld [vmem:[#allocation11 + $0x1a0] sm:$0xff]
    %v395 = vld [vmem:[#allocation11 + $0x1a8] sm:$0xff]
    %v396 = vld [vmem:[#allocation11 + $0x1b0] sm:$0xff]
    %v397 = vld [vmem:[#allocation11 + $0x1b8] sm:$0xff]
    %v398 = vld [vmem:[#allocation11 + $0x1c0] sm:$0xff]
    %v399 = vld [vmem:[#allocation11 + $0x1c8] sm:$0xff]
    %v400 = vld [vmem:[#allocation11 + $0x1d0] sm:$0xff]
    %v401 = vld [vmem:[#allocation11 + $0x1d8] sm:$0xff]
    %v402 = vld [vmem:[#allocation11 + $0x1e0] sm:$0xff]
    %v403 = vld [vmem:[#allocation11 + $0x1e8] sm:$0xff]
    %v404 = vld [vmem:[#allocation11 + $0x1f0] sm:$0xff]
    %v405 = vld [vmem:[#allocation11 + $0x1f8] sm:$0xff]
    %v406 = vld [vmem:[#allocation12] sm:$0xff]
    %v407 = vld [vmem:[#allocation12 + $0x8] sm:$0xff]
    %v408 = vld [vmem:[#allocation12 + $0x10] sm:$0xff]
    %v409 = vld [vmem:[#allocation12 + $0x18] sm:$0xff]
    %v410 = vld [vmem:[#allocation12 + $0x20] sm:$0xff]
    %v411 = vld [vmem:[#allocation12 + $0x28] sm:$0xff]
    %v412 = vld [vmem:[#allocation12 + $0x30] sm:$0xff]
    %v413 = vld [vmem:[#allocation12 + $0x38] sm:$0xff]
    %v414 = vld [vmem:[#allocation12 + $0x40] sm:$0xff]
    %v415 = vld [vmem:[#allocation12 + $0x48] sm:$0xff]
    %v416 = vld [vmem:[#allocation12 + $0x50] sm:$0xff]
    %v417 = vld [vmem:[#allocation12 + $0x58] sm:$0xff]
    %v418 = vld [vmem:[#allocation12 + $0x60] sm:$0xff]
    %v419 = vld [vmem:[#allocation12 + $0x68] sm:$0xff]
    %v420 = vld [vmem:[#allocation12 + $0x70] sm:$0xff]
    %v421 = vld [vmem:[#allocation12 + $0x78] sm:$0xff]
    %v422 = vld [vmem:[#allocation12 + $0x80] sm:$0xff]
    %v423 = vld [vmem:[#allocation12 + $0x88] sm:$0xff]
    %v424 = vld [vmem:[#allocation12 + $0x90] sm:$0xff]
    %v425 = vld [vmem:[#allocation12 + $0x98] sm:$0xff]
    %v426 = vld [vmem:[#allocation12 + $0xa0] sm:$0xff]
    %v427 = vld [vmem:[#allocation12 + $0xa8] sm:$0xff]
    %v428 = vld [vmem:[#allocation12 + $0xb0] sm:$0xff]
    %v429 = vld [vmem:[#allocation12 + $0xb8] sm:$0xff]
    %v430 = vld [vmem:[#allocation12 + $0xc0] sm:$0xff]
    %v431 = vld [vmem:[#allocation12 + $0xc8] sm:$0xff]
    %v432 = vld [vmem:[#allocation12 + $0xd0] sm:$0xff]
    %v433 = vld [vmem:[#allocation12 + $0xd8] sm:$0xff]
    %v434 = vld [vmem:[#allocation12 + $0xe0] sm:$0xff]
    %v435 = vld [vmem:[#allocation12 + $0xe8] sm:$0xff]
    %v436 = vld [vmem:[#allocation12 + $0xf0] sm:$0xff]
    %v437 = vld [vmem:[#allocation12 + $0xf8] sm:$0xff]
    %v438 = vld [vmem:[#allocation12 + $0x100] sm:$0xff]
    %v439 = vld [vmem:[#allocation12 + $0x108] sm:$0xff]
    %v440 = vld [vmem:[#allocation12 + $0x110] sm:$0xff]
    %v441 = vld [vmem:[#allocation12 + $0x118] sm:$0xff]
    %v442 = vld [vmem:[#allocation12 + $0x120] sm:$0xff]
    %v443 = vld [vmem:[#allocation12 + $0x128] sm:$0xff]
    %v444 = vld [vmem:[#allocation12 + $0x130] sm:$0xff]
    %v445 = vld [vmem:[#allocation12 + $0x138] sm:$0xff]
    %v446 = vld [vmem:[#allocation12 + $0x140] sm:$0xff]
    %v447 = vld [vmem:[#allocation12 + $0x148] sm:$0xff]
    %v448 = vld [vmem:[#allocation12 + $0x150] sm:$0xff]
    %v449 = vld [vmem:[#allocation12 + $0x158] sm:$0xff]
    %v450 = vld [vmem:[#allocation12 + $0x160] sm:$0xff]
    %v451 = vld [vmem:[#allocation12 + $0x168] sm:$0xff]
    %v452 = vld [vmem:[#allocation12 + $0x170] sm:$0xff]
    %v453 = vld [vmem:[#allocation12 + $0x178] sm:$0xff]
    %v454 = vld [vmem:[#allocation12 + $0x180] sm:$0xff]
    %v455 = vld [vmem:[#allocation12 + $0x188] sm:$0xff]
    %v456 = vld [vmem:[#allocation12 + $0x190] sm:$0xff]
    %v457 = vld [vmem:[#allocation12 + $0x198] sm:$0xff]
    %v458 = vld [vmem:[#allocation12 + $0x1a0] sm:$0xff]
    %v459 = vld [vmem:[#allocation12 + $0x1a8] sm:$0xff]
    %v460 = vld [vmem:[#allocation12 + $0x1b0] sm:$0xff]
    %v461 = vld [vmem:[#allocation12 + $0x1b8] sm:$0xff]
    %v462 = vld [vmem:[#allocation12 + $0x1c0] sm:$0xff]
    %v463 = vld [vmem:[#allocation12 + $0x1c8] sm:$0xff]
    %v464 = vld [vmem:[#allocation12 + $0x1d0] sm:$0xff]
    %v465 = vld [vmem:[#allocation12 + $0x1d8] sm:$0xff]
    %v466 = vld [vmem:[#allocation12 + $0x1e0] sm:$0xff]
    %v467 = vld [vmem:[#allocation12 + $0x1e8] sm:$0xff]
    %v468 = vld [vmem:[#allocation12 + $0x1f0] sm:$0xff]
    %v469 = vld [vmem:[#allocation12 + $0x1f8] sm:$0xff]
    %470 = vmatprep.subr.mxu0 %v467
    %471 = vmatpush1.msra.mxu0 %v466
    %472 = vmatprep.subr.mxu0 %v463
    %473 = vmatpush1.msra.mxu0 %v462
    %474 = vmatprep.subr.mxu0 %v459
    %475 = vmatpush1.msra.mxu0 %v458
    %476 = vmatprep.subr.mxu0 %v455
    %477 = vmatpush1.msra.mxu0 %v454
    %478 = vmatprep.subr.mxu0 %v451
    %479 = vmatpush1.msra.mxu0 %v450
    %480 = vmatprep.subr.mxu0 %v447
    %481 = vmatpush1.msra.mxu0 %v446
    %482 = vmatprep.subr.mxu0 %v443
    %483 = vmatpush1.msra.mxu0 %v442
    %484 = vmatprep.subr.mxu0 %v439
    %485 = vmatpush1.msra.mxu0 %v438
    %486 = vmatprep.subr.mxu0 %v435
    %487 = vmatpush1.msra.mxu0 %v434
    %488 = vmatprep.subr.mxu0 %v431
    %489 = vmatpush1.msra.mxu0 %v430
    %490 = vmatprep.subr.mxu0 %v427
    %491 = vmatpush1.msra.mxu0 %v426
    %492 = vmatprep.subr.mxu0 %v423
    %493 = vmatpush1.msra.mxu0 %v422
    %494 = vmatprep.subr.mxu0 %v419
    %495 = vmatpush1.msra.mxu0 %v418
    %496 = vmatprep.subr.mxu0 %v415
    %497 = vmatpush1.msra.mxu0 %v414
    %498 = vmatprep.subr.mxu0 %v411
    %499 = vmatpush1.msra.mxu0 %v410
    %500 = vmatprep.subr.mxu0 %v407
    %501 = vmatpush1.msra.mxu0 %v406
    %502 = vmatprep.subr.mxu0 0.0
    %503 = vmatpush2.msra.mxu0 0.0
    %504 = vmatprep.subr.mxu0 0.0
    %505 = vmatpush2.msra.mxu0 0.0
    %506 = vmatprep.subr.mxu0 0.0
    %507 = vmatpush2.msra.mxu0 0.0
    %508 = vmatprep.subr.mxu0 0.0
    %509 = vmatpush2.msra.mxu0 0.0
    %510 = vmatprep.subr.mxu0 0.0
    %511 = vmatpush2.msra.mxu0 0.0
    %512 = vmatprep.subr.mxu0 0.0
    %513 = vmatpush2.msra.mxu0 0.0
    %514 = vmatprep.subr.mxu0 0.0
    %515 = vmatpush2.msra.mxu0 0.0
    %516 = vmatprep.subr.mxu0 0.0
    %517 = vmatpush2.msra.mxu0 0.0
    %518 = vmatprep.subr.mxu0 0.0
    %519 = vmatpush2.msra.mxu0 0.0
    %520 = vmatprep.subr.mxu0 0.0
    %521 = vmatpush2.msra.mxu0 0.0
    %522 = vmatprep.subr.mxu0 0.0
    %523 = vmatpush2.msra.mxu0 0.0
    %524 = vmatprep.subr.mxu0 0.0
    %525 = vmatpush2.msra.mxu0 0.0
    %526 = vmatprep.subr.mxu0 0.0
    %527 = vmatpush2.msra.mxu0 0.0
    %528 = vmatprep.subr.mxu0 0.0
    %529 = vmatpush2.msra.mxu0 0.0
    %530 = vmatprep.subr.mxu0 0.0
    %531 = vmatpush2.msra.mxu0 0.0
    %532 = vmatprep.subr.mxu0 0.0
    %533 = vmatpush2.msra.mxu0 0.0
    %534 = vmatprep.mubr.f32.mxu0 0.0
    %535 = vmatmul.mubr.f32.gmra.mxu0 %v108
    %v536 = vpop.f32.mrf.mxu0
    %v537 = vadd.f32 0.0, %v536
    %v538 = vpop.f32.mrf.mxu0
    %v539 = vadd.f32 0.0, %v538
    %540 = vdwg.mxu0
    %541 = vmatprep.subr.mxu0 %v469
    %542 = vmatpush1.msra.mxu0 %v468
    %543 = vmatprep.subr.mxu0 %v465
    %544 = vmatpush1.msra.mxu0 %v464
    %545 = vmatprep.subr.mxu0 %v461
    %546 = vmatpush1.msra.mxu0 %v460
    %547 = vmatprep.subr.mxu0 %v457
    %548 = vmatpush1.msra.mxu0 %v456
    %549 = vmatprep.subr.mxu0 %v453
    %550 = vmatpush1.msra.mxu0 %v452
    %551 = vmatprep.subr.mxu0 %v449
    %552 = vmatpush1.msra.mxu0 %v448
    %553 = vmatprep.subr.mxu0 %v445
    %554 = vmatpush1.msra.mxu0 %v444
    %555 = vmatprep.subr.mxu0 %v441
    %556 = vmatpush1.msra.mxu0 %v440
    %557 = vmatprep.subr.mxu0 %v437
    %558 = vmatpush1.msra.mxu0 %v436
    %559 = vmatprep.subr.mxu0 %v433
    %560 = vmatpush1.msra.mxu0 %v432
    %561 = vmatprep.subr.mxu0 %v429
    %562 = vmatpush1.msra.mxu0 %v428
    %563 = vmatprep.subr.mxu0 %v425
    %564 = vmatpush1.msra.mxu0 %v424
    %565 = vmatprep.subr.mxu0 %v421
    %566 = vmatpush1.msra.mxu0 %v420
    %567 = vmatprep.subr.mxu0 %v417
    %568 = vmatpush1.msra.mxu0 %v416
    %569 = vmatprep.subr.mxu0 %v413
    %570 = vmatpush1.msra.mxu0 %v412
    %571 = vmatprep.subr.mxu0 %v409
    %572 = vmatpush1.msra.mxu0 %v408
    %573 = vmatprep.subr.mxu0 0.0
    %574 = vmatpush2.msra.mxu0 0.0
    %575 = vmatprep.subr.mxu0 0.0
    %576 = vmatpush2.msra.mxu0 0.0
    %577 = vmatprep.subr.mxu0 0.0
    %578 = vmatpush2.msra.mxu0 0.0
    %579 = vmatprep.subr.mxu0 0.0
    %580 = vmatpush2.msra.mxu0 0.0
    %581 = vmatprep.subr.mxu0 0.0
    %582 = vmatpush2.msra.mxu0 0.0
    %583 = vmatprep.subr.mxu0 0.0
    %584 = vmatpush2.msra.mxu0 0.0
    %585 = vmatprep.subr.mxu0 0.0
    %586 = vmatpush2.msra.mxu0 0.0
    %587 = vmatprep.subr.mxu0 0.0
    %588 = vmatpush2.msra.mxu0 0.0
    %589 = vmatprep.subr.mxu0 0.0
    %590 = vmatpush2.msra.mxu0 0.0
    %591 = vmatprep.subr.mxu0 0.0
    %592 = vmatpush2.msra.mxu0 0.0
    %593 = vmatprep.subr.mxu0 0.0
    %594 = vmatpush2.msra.mxu0 0.0
    %595 = vmatprep.subr.mxu0 0.0
    %596 = vmatpush2.msra.mxu0 0.0
    %597 = vmatprep.subr.mxu0 0.0
    %598 = vmatpush2.msra.mxu0 0.0
    %599 = vmatprep.subr.mxu0 0.0
    %600 = vmatpush2.msra.mxu0 0.0
    %601 = vmatprep.subr.mxu0 0.0
    %602 = vmatpush2.msra.mxu0 0.0
    %603 = vmatprep.subr.mxu0 0.0
    %604 = vmatpush2.msra.mxu0 0.0
    %605 = vmatprep.mubr.f32.mxu0 0.0
    %606 = vmatmul.mubr.f32.gmra.mxu0 %v108
    %v607 = vpop.f32.mrf.mxu0
    %v608 = vadd.f32 0.0, %v607
    %v609 = vpop.f32.mrf.mxu0
    %v610 = vadd.f32 0.0, %v609
    %611 = vdwg.mxu0
    %612 = vmatprep.subr.mxu0 %v403
    %613 = vmatpush1.msra.mxu0 %v402
    %614 = vmatprep.subr.mxu0 %v399
    %615 = vmatpush1.msra.mxu0 %v398
    %616 = vmatprep.subr.mxu0 %v395
    %617 = vmatpush1.msra.mxu0 %v394
    %618 = vmatprep.subr.mxu0 %v391
    %619 = vmatpush1.msra.mxu0 %v390
    %620 = vmatprep.subr.mxu0 %v387
    %621 = vmatpush1.msra.mxu0 %v386
    %622 = vmatprep.subr.mxu0 %v383
    %623 = vmatpush1.msra.mxu0 %v382
    %624 = vmatprep.subr.mxu0 %v379
    %625 = vmatpush1.msra.mxu0 %v378
    %626 = vmatprep.subr.mxu0 %v375
    %627 = vmatpush1.msra.mxu0 %v374
    %628 = vmatprep.subr.mxu0 %v371
    %629 = vmatpush1.msra.mxu0 %v370
    %630 = vmatprep.subr.mxu0 %v367
    %631 = vmatpush1.msra.mxu0 %v366
    %632 = vmatprep.subr.mxu0 %v363
    %633 = vmatpush1.msra.mxu0 %v362
    %634 = vmatprep.subr.mxu0 %v359
    %635 = vmatpush1.msra.mxu0 %v358
    %636 = vmatprep.subr.mxu0 %v355
    %637 = vmatpush1.msra.mxu0 %v354
    %638 = vmatprep.subr.mxu0 %v351
    %639 = vmatpush1.msra.mxu0 %v350
    %640 = vmatprep.subr.mxu0 %v347
    %641 = vmatpush1.msra.mxu0 %v346
    %642 = vmatprep.subr.mxu0 %v343
    %643 = vmatpush1.msra.mxu0 %v342
    %644 = vmatprep.subr.mxu0 0.0
    %645 = vmatpush2.msra.mxu0 0.0
    %646 = vmatprep.subr.mxu0 0.0
    %647 = vmatpush2.msra.mxu0 0.0
    %648 = vmatprep.subr.mxu0 0.0
    %649 = vmatpush2.msra.mxu0 0.0
    %650 = vmatprep.subr.mxu0 0.0
    %651 = vmatpush2.msra.mxu0 0.0
    %652 = vmatprep.subr.mxu0 0.0
    %653 = vmatpush2.msra.mxu0 0.0
    %654 = vmatprep.subr.mxu0 0.0
    %655 = vmatpush2.msra.mxu0 0.0
    %656 = vmatprep.subr.mxu0 0.0
    %657 = vmatpush2.msra.mxu0 0.0
    %658 = vmatprep.subr.mxu0 0.0
    %659 = vmatpush2.msra.mxu0 0.0
    %660 = vmatprep.subr.mxu0 0.0
    %661 = vmatpush2.msra.mxu0 0.0
    %662 = vmatprep.subr.mxu0 0.0
    %663 = vmatpush2.msra.mxu0 0.0
    %664 = vmatprep.subr.mxu0 0.0
    %665 = vmatpush2.msra.mxu0 0.0
    %666 = vmatprep.subr.mxu0 0.0
    %667 = vmatpush2.msra.mxu0 0.0
    %668 = vmatprep.subr.mxu0 0.0
    %669 = vmatpush2.msra.mxu0 0.0
    %670 = vmatprep.subr.mxu0 0.0
    %671 = vmatpush2.msra.mxu0 0.0
    %672 = vmatprep.subr.mxu0 0.0
    %673 = vmatpush2.msra.mxu0 0.0
    %674 = vmatprep.subr.mxu0 0.0
    %675 = vmatpush2.msra.mxu0 0.0
    %676 = vmatprep.mubr.f32.mxu0 0.0
    %677 = vmatmul.mubr.f32.gmra.mxu0 %v341
    %v678 = vpop.f32.mrf.mxu0
    %v679 = vadd.f32 %v537, %v678
    %v680 = vpop.f32.mrf.mxu0
    %v681 = vadd.f32 %v539, %v680
    %682 = vdwg.mxu0
    %683 = vmatprep.subr.mxu0 %v405
    %684 = vmatpush1.msra.mxu0 %v404
    %685 = vmatprep.subr.mxu0 %v401
    %686 = vmatpush1.msra.mxu0 %v400
    %687 = vmatprep.subr.mxu0 %v397
    %688 = vmatpush1.msra.mxu0 %v396
    %689 = vmatprep.subr.mxu0 %v393
    %690 = vmatpush1.msra.mxu0 %v392
    %691 = vmatprep.subr.mxu0 %v389
    %692 = vmatpush1.msra.mxu0 %v388
    %693 = vmatprep.subr.mxu0 %v385
    %694 = vmatpush1.msra.mxu0 %v384
    %695 = vmatprep.subr.mxu0 %v381
    %696 = vmatpush1.msra.mxu0 %v380
    %697 = vmatprep.subr.mxu0 %v377
    %698 = vmatpush1.msra.mxu0 %v376
    %699 = vmatprep.subr.mxu0 %v373
    %700 = vmatpush1.msra.mxu0 %v372
    %701 = vmatprep.subr.mxu0 %v369
    %702 = vmatpush1.msra.mxu0 %v368
    %703 = vmatprep.subr.mxu0 %v365
    %704 = vmatpush1.msra.mxu0 %v364
    %705 = vmatprep.subr.mxu0 %v361
    %706 = vmatpush1.msra.mxu0 %v360
    %707 = vmatprep.subr.mxu0 %v357
    %708 = vmatpush1.msra.mxu0 %v356
    %709 = vmatprep.subr.mxu0 %v353
    %710 = vmatpush1.msra.mxu0 %v352
    %711 = vmatprep.subr.mxu0 %v349
    %712 = vmatpush1.msra.mxu0 %v348
    %713 = vmatprep.subr.mxu0 %v345
    %714 = vmatpush1.msra.mxu0 %v344
    %715 = vmatprep.subr.mxu0 0.0
    %716 = vmatpush2.msra.mxu0 0.0
    %717 = vmatprep.subr.mxu0 0.0
    %718 = vmatpush2.msra.mxu0 0.0
    %719 = vmatprep.subr.mxu0 0.0
    %720 = vmatpush2.msra.mxu0 0.0
    %721 = vmatprep.subr.mxu0 0.0
    %722 = vmatpush2.msra.mxu0 0.0
    %723 = vmatprep.subr.mxu0 0.0
    %724 = vmatpush2.msra.mxu0 0.0
    %725 = vmatprep.subr.mxu0 0.0
    %726 = vmatpush2.msra.mxu0 0.0
    %727 = vmatprep.subr.mxu0 0.0
    %728 = vmatpush2.msra.mxu0 0.0
    %729 = vmatprep.subr.mxu0 0.0
    %730 = vmatpush2.msra.mxu0 0.0
    %731 = vmatprep.subr.mxu0 0.0
    %732 = vmatpush2.msra.mxu0 0.0
    %733 = vmatprep.subr.mxu0 0.0
    %734 = vmatpush2.msra.mxu0 0.0
    %735 = vmatprep.subr.mxu0 0.0
    %736 = vmatpush2.msra.mxu0 0.0
    %737 = vmatprep.subr.mxu0 0.0
    %738 = vmatpush2.msra.mxu0 0.0
    %739 = vmatprep.subr.mxu0 0.0
    %740 = vmatpush2.msra.mxu0 0.0
    %741 = vmatprep.subr.mxu0 0.0
    %742 = vmatpush2.msra.mxu0 0.0
    %743 = vmatprep.subr.mxu0 0.0
    %744 = vmatpush2.msra.mxu0 0.0
    %745 = vmatprep.subr.mxu0 0.0
    %746 = vmatpush2.msra.mxu0 0.0
    %747 = vmatprep.mubr.f32.mxu0 0.0
    %748 = vmatmul.mubr.f32.gmra.mxu0 %v341
    %v749 = vpop.f32.mrf.mxu0
    %v750 = vadd.f32 %v608, %v749
    %v751 = vpop.f32.mrf.mxu0
    %v752 = vadd.f32 %v610, %v751
    %753 = vdwg.mxu0
    %v754 = vadd.f32 %v679, %v89
    %v755 = vadd.f32 %v681, %v93
    %v756 = vadd.f32 %v750, %v97
    %v757 = vadd.f32 %v752, %v101
    %v758 = vmul.f32 %v754, 0.5
    %v759 = vtanh.pop %v758
    %v760 = vadd.f32 %v759, 1.0
    %v761 = vmul.f32 %v760, 0.5
    %v762 = vmul.f32 %v755, 0.5
    %v763 = vtanh.pop %v762
    %v764 = vadd.f32 %v763, 1.0
    %v765 = vmul.f32 %v764, 0.5
    %v766 = vtanh.pop %v756
    %v767 = vmul.f32 %v757, 0.5
    %v768 = vtanh.pop %v767
    %v769 = vadd.f32 %v768, 1.0
    %v770 = vmul.f32 %v769, 0.5
    %v771 = vmul.f32 %v765, %v109
    %v772 = vmul.f32 %v761, %v766
    %v773 = vadd.f32 %v771, %v772
    %v774 = vtanh.pop %v773
    %v775 = vmul.f32 %v770, %v774
    %776 = vst [vmem:[#allocation14] sm:$0xff] %v775
    %s777 = scalar_lea.vmem [#allocation6], 32
    %v778 = vld [vmem:[%s777] sm:$0xff]
    %v779 = vld [vmem:[%s777 + $0x8] sm:$0xff]
    %v780 = vld [vmem:[%s777 + $0x10] sm:$0xff]
    %v781 = vld [vmem:[%s777 + $0x18] sm:$0xff]
    %v782 = vld [vmem:[#allocation9] sm:$0xff]
    %v783 = vld [vmem:[#allocation9 + $0x8] sm:$0xff]
    %v784 = vld [vmem:[#allocation9 + $0x10] sm:$0xff]
    %v785 = vld [vmem:[#allocation9 + $0x18] sm:$0xff]
    %v786 = vld [vmem:[#allocation9 + $0x20] sm:$0xff]
    %v787 = vld [vmem:[#allocation9 + $0x28] sm:$0xff]
    %v788 = vld [vmem:[#allocation9 + $0x30] sm:$0xff]
    %v789 = vld [vmem:[#allocation9 + $0x38] sm:$0xff]
    %v790 = vld [vmem:[#allocation9 + $0x40] sm:$0xff]
    %v791 = vld [vmem:[#allocation9 + $0x48] sm:$0xff]
    %v792 = vld [vmem:[#allocation9 + $0x50] sm:$0xff]
    %v793 = vld [vmem:[#allocation9 + $0x58] sm:$0xff]
    %v794 = vld [vmem:[#allocation9 + $0x60] sm:$0xff]
    %v795 = vld [vmem:[#allocation9 + $0x68] sm:$0xff]
    %v796 = vld [vmem:[#allocation9 + $0x70] sm:$0xff]
    %v797 = vld [vmem:[#allocation9 + $0x78] sm:$0xff]
    %v798 = vld [vmem:[#allocation9 + $0x80] sm:$0xff]
    %v799 = vld [vmem:[#allocation9 + $0x88] sm:$0xff]
    %v800 = vld [vmem:[#allocation9 + $0x90] sm:$0xff]
    %v801 = vld [vmem:[#allocation9 + $0x98] sm:$0xff]
    %v802 = vld [vmem:[#allocation9 + $0xa0] sm:$0xff]
    %v803 = vld [vmem:[#allocation9 + $0xa8] sm:$0xff]
    %v804 = vld [vmem:[#allocation9 + $0xb0] sm:$0xff]
    %v805 = vld [vmem:[#allocation9 + $0xb8] sm:$0xff]
    %v806 = vld [vmem:[#allocation9 + $0xc0] sm:$0xff]
    %v807 = vld [vmem:[#allocation9 + $0xc8] sm:$0xff]
    %v808 = vld [vmem:[#allocation9 + $0xd0] sm:$0xff]
    %v809 = vld [vmem:[#allocation9 + $0xd8] sm:$0xff]
    %v810 = vld [vmem:[#allocation9 + $0xe0] sm:$0xff]
    %v811 = vld [vmem:[#allocation9 + $0xe8] sm:$0xff]
    %v812 = vld [vmem:[#allocation9 + $0xf0] sm:$0xff]
    %v813 = vld [vmem:[#allocation9 + $0xf8] sm:$0xff]
    %v814 = vld [vmem:[#allocation9 + $0x100] sm:$0xff]
    %v815 = vld [vmem:[#allocation9 + $0x108] sm:$0xff]
    %v816 = vld [vmem:[#allocation9 + $0x110] sm:$0xff]
    %v817 = vld [vmem:[#allocation9 + $0x118] sm:$0xff]
    %v818 = vld [vmem:[#allocation9 + $0x120] sm:$0xff]
    %v819 = vld [vmem:[#allocation9 + $0x128] sm:$0xff]
    %v820 = vld [vmem:[#allocation9 + $0x130] sm:$0xff]
    %v821 = vld [vmem:[#allocation9 + $0x138] sm:$0xff]
    %v822 = vld [vmem:[#allocation9 + $0x140] sm:$0xff]
    %v823 = vld [vmem:[#allocation9 + $0x148] sm:$0xff]
    %v824 = vld [vmem:[#allocation9 + $0x150] sm:$0xff]
    %v825 = vld [vmem:[#allocation9 + $0x158] sm:$0xff]
    %v826 = vld [vmem:[#allocation9 + $0x160] sm:$0xff]
    %v827 = vld [vmem:[#allocation9 + $0x168] sm:$0xff]
    %v828 = vld [vmem:[#allocation9 + $0x170] sm:$0xff]
    %v829 = vld [vmem:[#allocation9 + $0x178] sm:$0xff]
    %v830 = vld [vmem:[#allocation9 + $0x180] sm:$0xff]
    %v831 = vld [vmem:[#allocation9 + $0x188] sm:$0xff]
    %v832 = vld [vmem:[#allocation9 + $0x190] sm:$0xff]
    %v833 = vld [vmem:[#allocation9 + $0x198] sm:$0xff]
    %v834 = vld [vmem:[#allocation9 + $0x1a0] sm:$0xff]
    %v835 = vld [vmem:[#allocation9 + $0x1a8] sm:$0xff]
    %v836 = vld [vmem:[#allocation9 + $0x1b0] sm:$0xff]
    %v837 = vld [vmem:[#allocation9 + $0x1b8] sm:$0xff]
    %v838 = vld [vmem:[#allocation9 + $0x1c0] sm:$0xff]
    %v839 = vld [vmem:[#allocation9 + $0x1c8] sm:$0xff]
    %v840 = vld [vmem:[#allocation9 + $0x1d0] sm:$0xff]
    %v841 = vld [vmem:[#allocation9 + $0x1d8] sm:$0xff]
    %v842 = vld [vmem:[#allocation9 + $0x1e0] sm:$0xff]
    %v843 = vld [vmem:[#allocation9 + $0x1e8] sm:$0xff]
    %v844 = vld [vmem:[#allocation9 + $0x1f0] sm:$0xff]
    %v845 = vld [vmem:[#allocation9 + $0x1f8] sm:$0xff]
    %846 = vmatprep.subr.mxu0 %v843
    %847 = vmatpush1.msra.mxu0 %v842
    %848 = vmatprep.subr.mxu0 %v839
    %849 = vmatpush1.msra.mxu0 %v838
    %850 = vmatprep.subr.mxu0 %v835
    %851 = vmatpush1.msra.mxu0 %v834
    %852 = vmatprep.subr.mxu0 %v831
    %853 = vmatpush1.msra.mxu0 %v830
    %854 = vmatprep.subr.mxu0 %v827
    %855 = vmatpush1.msra.mxu0 %v826
    %856 = vmatprep.subr.mxu0 %v823
    %857 = vmatpush1.msra.mxu0 %v822
    %858 = vmatprep.subr.mxu0 %v819
    %859 = vmatpush1.msra.mxu0 %v818
    %860 = vmatprep.subr.mxu0 %v815
    %861 = vmatpush1.msra.mxu0 %v814
    %862 = vmatprep.subr.mxu0 %v811
    %863 = vmatpush1.msra.mxu0 %v810
    %864 = vmatprep.subr.mxu0 %v807
    %865 = vmatpush1.msra.mxu0 %v806
    %866 = vmatprep.subr.mxu0 %v803
    %867 = vmatpush1.msra.mxu0 %v802
    %868 = vmatprep.subr.mxu0 %v799
    %869 = vmatpush1.msra.mxu0 %v798
    %870 = vmatprep.subr.mxu0 %v795
    %871 = vmatpush1.msra.mxu0 %v794
    %872 = vmatprep.subr.mxu0 %v791
    %873 = vmatpush1.msra.mxu0 %v790
    %874 = vmatprep.subr.mxu0 %v787
    %875 = vmatpush1.msra.mxu0 %v786
    %876 = vmatprep.subr.mxu0 %v783
    %877 = vmatpush1.msra.mxu0 %v782
    %878 = vmatprep.subr.mxu0 0.0
    %879 = vmatpush2.msra.mxu0 0.0
    %880 = vmatprep.subr.mxu0 0.0
    %881 = vmatpush2.msra.mxu0 0.0
    %882 = vmatprep.subr.mxu0 0.0
    %883 = vmatpush2.msra.mxu0 0.0
    %884 = vmatprep.subr.mxu0 0.0
    %885 = vmatpush2.msra.mxu0 0.0
    %886 = vmatprep.subr.mxu0 0.0
    %887 = vmatpush2.msra.mxu0 0.0
    %888 = vmatprep.subr.mxu0 0.0
    %889 = vmatpush2.msra.mxu0 0.0
    %890 = vmatprep.subr.mxu0 0.0
    %891 = vmatpush2.msra.mxu0 0.0
    %892 = vmatprep.subr.mxu0 0.0
    %893 = vmatpush2.msra.mxu0 0.0
    %894 = vmatprep.subr.mxu0 0.0
    %895 = vmatpush2.msra.mxu0 0.0
    %896 = vmatprep.subr.mxu0 0.0
    %897 = vmatpush2.msra.mxu0 0.0
    %898 = vmatprep.subr.mxu0 0.0
    %899 = vmatpush2.msra.mxu0 0.0
    %900 = vmatprep.subr.mxu0 0.0
    %901 = vmatpush2.msra.mxu0 0.0
    %902 = vmatprep.subr.mxu0 0.0
    %903 = vmatpush2.msra.mxu0 0.0
    %904 = vmatprep.subr.mxu0 0.0
    %905 = vmatpush2.msra.mxu0 0.0
    %906 = vmatprep.subr.mxu0 0.0
    %907 = vmatpush2.msra.mxu0 0.0
    %908 = vmatprep.subr.mxu0 0.0
    %909 = vmatpush2.msra.mxu0 0.0
    %910 = vmatprep.mubr.f32.mxu0 0.0
    %911 = vmatmul.mubr.f32.gmra.mxu0 %v341
    %v912 = vpop.f32.mrf.mxu0
    %v913 = vadd.f32 0.0, %v912
    %v914 = vpop.f32.mrf.mxu0
    %v915 = vadd.f32 0.0, %v914
    %916 = vdwg.mxu0
    %917 = vmatprep.subr.mxu0 %v845
    %918 = vmatpush1.msra.mxu0 %v844
    %919 = vmatprep.subr.mxu0 %v841
    %920 = vmatpush1.msra.mxu0 %v840
    %921 = vmatprep.subr.mxu0 %v837
    %922 = vmatpush1.msra.mxu0 %v836
    %923 = vmatprep.subr.mxu0 %v833
    %924 = vmatpush1.msra.mxu0 %v832
    %925 = vmatprep.subr.mxu0 %v829
    %926 = vmatpush1.msra.mxu0 %v828
    %927 = vmatprep.subr.mxu0 %v825
    %928 = vmatpush1.msra.mxu0 %v824
    %929 = vmatprep.subr.mxu0 %v821
    %930 = vmatpush1.msra.mxu0 %v820
    %931 = vmatprep.subr.mxu0 %v817
    %932 = vmatpush1.msra.mxu0 %v816
    %933 = vmatprep.subr.mxu0 %v813
    %934 = vmatpush1.msra.mxu0 %v812
    %935 = vmatprep.subr.mxu0 %v809
    %936 = vmatpush1.msra.mxu0 %v808
    %937 = vmatprep.subr.mxu0 %v805
    %938 = vmatpush1.msra.mxu0 %v804
    %939 = vmatprep.subr.mxu0 %v801
    %940 = vmatpush1.msra.mxu0 %v800
    %941 = vmatprep.subr.mxu0 %v797
    %942 = vmatpush1.msra.mxu0 %v796
    %943 = vmatprep.subr.mxu0 %v793
    %944 = vmatpush1.msra.mxu0 %v792
    %945 = vmatprep.subr.mxu0 %v789
    %946 = vmatpush1.msra.mxu0 %v788
    %947 = vmatprep.subr.mxu0 %v785
    %948 = vmatpush1.msra.mxu0 %v784
    %949 = vmatprep.subr.mxu0 0.0
    %950 = vmatpush2.msra.mxu0 0.0
    %951 = vmatprep.subr.mxu0 0.0
    %952 = vmatpush2.msra.mxu0 0.0
    %953 = vmatprep.subr.mxu0 0.0
    %954 = vmatpush2.msra.mxu0 0.0
    %955 = vmatprep.subr.mxu0 0.0
    %956 = vmatpush2.msra.mxu0 0.0
    %957 = vmatprep.subr.mxu0 0.0
    %958 = vmatpush2.msra.mxu0 0.0
    %959 = vmatprep.subr.mxu0 0.0
    %960 = vmatpush2.msra.mxu0 0.0
    %961 = vmatprep.subr.mxu0 0.0
    %962 = vmatpush2.msra.mxu0 0.0
    %963 = vmatprep.subr.mxu0 0.0
    %964 = vmatpush2.msra.mxu0 0.0
    %965 = vmatprep.subr.mxu0 0.0
    %966 = vmatpush2.msra.mxu0 0.0
    %967 = vmatprep.subr.mxu0 0.0
    %968 = vmatpush2.msra.mxu0 0.0
    %969 = vmatprep.subr.mxu0 0.0
    %970 = vmatpush2.msra.mxu0 0.0
    %971 = vmatprep.subr.mxu0 0.0
    %972 = vmatpush2.msra.mxu0 0.0
    %973 = vmatprep.subr.mxu0 0.0
    %974 = vmatpush2.msra.mxu0 0.0
    %975 = vmatprep.subr.mxu0 0.0
    %976 = vmatpush2.msra.mxu0 0.0
    %977 = vmatprep.subr.mxu0 0.0
    %978 = vmatpush2.msra.mxu0 0.0
    %979 = vmatprep.subr.mxu0 0.0
    %980 = vmatpush2.msra.mxu0 0.0
    %981 = vmatprep.mubr.f32.mxu0 0.0
    %982 = vmatmul.mubr.f32.gmra.mxu0 %v341
    %v983 = vpop.f32.mrf.mxu0
    %v984 = vadd.f32 0.0, %v983
    %v985 = vpop.f32.mrf.mxu0
    %v986 = vadd.f32 0.0, %v985
    %987 = vdwg.mxu0
    %v988 = vadd.f32 %v778, %v913
    %v989 = vadd.f32 %v779, %v915
    %v990 = vadd.f32 %v780, %v984
    %v991 = vadd.f32 %v781, %v986
    %v992 = vmul.f32 %v988, 0.5
    %v993 = vtanh.pop %v992
    %v994 = vadd.f32 %v993, 1.0
    %v995 = vmul.f32 %v994, 0.5
    %v996 = vmul.f32 %v989, 0.5
    %v997 = vtanh.pop %v996
    %v998 = vadd.f32 %v997, 1.0
    %v999 = vmul.f32 %v998, 0.5
    %v1000 = vtanh.pop %v990
    %v1001 = vmul.f32 %v991, 0.5
    %v1002 = vtanh.pop %v1001
    %v1003 = vadd.f32 %v1002, 1.0
    %v1004 = vmul.f32 %v1003, 0.5
    %v1005 = vmul.f32 %v999, %v339
    %v1006 = vmul.f32 %v995, %v1000
    %v1007 = vadd.f32 %v1005, %v1006
    %v1008 = vtanh.pop %v1007
    %v1009 = vmul.f32 %v1004, %v1008
    %v1010 = vld [vmem:[#allocation11] sm:$0xff]
    %v1011 = vld [vmem:[#allocation11 + $0x8] sm:$0xff]
    %v1012 = vld [vmem:[#allocation11 + $0x10] sm:$0xff]
    %v1013 = vld [vmem:[#allocation11 + $0x18] sm:$0xff]
    %v1014 = vld [vmem:[#allocation11 + $0x20] sm:$0xff]
    %v1015 = vld [vmem:[#allocation11 + $0x28] sm:$0xff]
    %v1016 = vld [vmem:[#allocation11 + $0x30] sm:$0xff]
    %v1017 = vld [vmem:[#allocation11 + $0x38] sm:$0xff]
    %v1018 = vld [vmem:[#allocation11 + $0x40] sm:$0xff]
    %v1019 = vld [vmem:[#allocation11 + $0x48] sm:$0xff]
    %v1020 = vld [vmem:[#allocation11 + $0x50] sm:$0xff]
    %v1021 = vld [vmem:[#allocation11 + $0x58] sm:$0xff]
    %v1022 = vld [vmem:[#allocation11 + $0x60] sm:$0xff]
    %v1023 = vld [vmem:[#allocation11 + $0x68] sm:$0xff]
    %v1024 = vld [vmem:[#allocation11 + $0x70] sm:$0xff]
    %v1025 = vld [vmem:[#allocation11 + $0x78] sm:$0xff]
    %v1026 = vld [vmem:[#allocation11 + $0x80] sm:$0xff]
    %v1027 = vld [vmem:[#allocation11 + $0x88] sm:$0xff]
    %v1028 = vld [vmem:[#allocation11 + $0x90] sm:$0xff]
    %v1029 = vld [vmem:[#allocation11 + $0x98] sm:$0xff]
    %v1030 = vld [vmem:[#allocation11 + $0xa0] sm:$0xff]
    %v1031 = vld [vmem:[#allocation11 + $0xa8] sm:$0xff]
    %v1032 = vld [vmem:[#allocation11 + $0xb0] sm:$0xff]
    %v1033 = vld [vmem:[#allocation11 + $0xb8] sm:$0xff]
    %v1034 = vld [vmem:[#allocation11 + $0xc0] sm:$0xff]
    %v1035 = vld [vmem:[#allocation11 + $0xc8] sm:$0xff]
    %v1036 = vld [vmem:[#allocation11 + $0xd0] sm:$0xff]
    %v1037 = vld [vmem:[#allocation11 + $0xd8] sm:$0xff]
    %v1038 = vld [vmem:[#allocation11 + $0xe0] sm:$0xff]
    %v1039 = vld [vmem:[#allocation11 + $0xe8] sm:$0xff]
    %v1040 = vld [vmem:[#allocation11 + $0xf0] sm:$0xff]
    %v1041 = vld [vmem:[#allocation11 + $0xf8] sm:$0xff]
    %v1042 = vld [vmem:[#allocation11 + $0x100] sm:$0xff]
    %v1043 = vld [vmem:[#allocation11 + $0x108] sm:$0xff]
    %v1044 = vld [vmem:[#allocation11 + $0x110] sm:$0xff]
    %v1045 = vld [vmem:[#allocation11 + $0x118] sm:$0xff]
    %v1046 = vld [vmem:[#allocation11 + $0x120] sm:$0xff]
    %v1047 = vld [vmem:[#allocation11 + $0x128] sm:$0xff]
    %v1048 = vld [vmem:[#allocation11 + $0x130] sm:$0xff]
    %v1049 = vld [vmem:[#allocation11 + $0x138] sm:$0xff]
    %v1050 = vld [vmem:[#allocation11 + $0x140] sm:$0xff]
    %v1051 = vld [vmem:[#allocation11 + $0x148] sm:$0xff]
    %v1052 = vld [vmem:[#allocation11 + $0x150] sm:$0xff]
    %v1053 = vld [vmem:[#allocation11 + $0x158] sm:$0xff]
    %v1054 = vld [vmem:[#allocation11 + $0x160] sm:$0xff]
    %v1055 = vld [vmem:[#allocation11 + $0x168] sm:$0xff]
    %v1056 = vld [vmem:[#allocation11 + $0x170] sm:$0xff]
    %v1057 = vld [vmem:[#allocation11 + $0x178] sm:$0xff]
    %v1058 = vld [vmem:[#allocation11 + $0x180] sm:$0xff]
    %v1059 = vld [vmem:[#allocation11 + $0x188] sm:$0xff]
    %v1060 = vld [vmem:[#allocation11 + $0x190] sm:$0xff]
    %v1061 = vld [vmem:[#allocation11 + $0x198] sm:$0xff]
    %v1062 = vld [vmem:[#allocation11 + $0x1a0] sm:$0xff]
    %v1063 = vld [vmem:[#allocation11 + $0x1a8] sm:$0xff]
    %v1064 = vld [vmem:[#allocation11 + $0x1b0] sm:$0xff]
    %v1065 = vld [vmem:[#allocation11 + $0x1b8] sm:$0xff]
    %v1066 = vld [vmem:[#allocation11 + $0x1c0] sm:$0xff]
    %v1067 = vld [vmem:[#allocation11 + $0x1c8] sm:$0xff]
    %v1068 = vld [vmem:[#allocation11 + $0x1d0] sm:$0xff]
    %v1069 = vld [vmem:[#allocation11 + $0x1d8] sm:$0xff]
    %v1070 = vld [vmem:[#allocation11 + $0x1e0] sm:$0xff]
    %v1071 = vld [vmem:[#allocation11 + $0x1e8] sm:$0xff]
    %v1072 = vld [vmem:[#allocation11 + $0x1f0] sm:$0xff]
    %v1073 = vld [vmem:[#allocation11 + $0x1f8] sm:$0xff]
    %v1074 = vld [vmem:[#allocation12] sm:$0xff]
    %v1075 = vld [vmem:[#allocation12 + $0x8] sm:$0xff]
    %v1076 = vld [vmem:[#allocation12 + $0x10] sm:$0xff]
    %v1077 = vld [vmem:[#allocation12 + $0x18] sm:$0xff]
    %v1078 = vld [vmem:[#allocation12 + $0x20] sm:$0xff]
    %v1079 = vld [vmem:[#allocation12 + $0x28] sm:$0xff]
    %v1080 = vld [vmem:[#allocation12 + $0x30] sm:$0xff]
    %v1081 = vld [vmem:[#allocation12 + $0x38] sm:$0xff]
    %v1082 = vld [vmem:[#allocation12 + $0x40] sm:$0xff]
    %v1083 = vld [vmem:[#allocation12 + $0x48] sm:$0xff]
    %v1084 = vld [vmem:[#allocation12 + $0x50] sm:$0xff]
    %v1085 = vld [vmem:[#allocation12 + $0x58] sm:$0xff]
    %v1086 = vld [vmem:[#allocation12 + $0x60] sm:$0xff]
    %v1087 = vld [vmem:[#allocation12 + $0x68] sm:$0xff]
    %v1088 = vld [vmem:[#allocation12 + $0x70] sm:$0xff]
    %v1089 = vld [vmem:[#allocation12 + $0x78] sm:$0xff]
    %v1090 = vld [vmem:[#allocation12 + $0x80] sm:$0xff]
    %v1091 = vld [vmem:[#allocation12 + $0x88] sm:$0xff]
    %v1092 = vld [vmem:[#allocation12 + $0x90] sm:$0xff]
    %v1093 = vld [vmem:[#allocation12 + $0x98] sm:$0xff]
    %v1094 = vld [vmem:[#allocation12 + $0xa0] sm:$0xff]
    %v1095 = vld [vmem:[#allocation12 + $0xa8] sm:$0xff]
    %v1096 = vld [vmem:[#allocation12 + $0xb0] sm:$0xff]
    %v1097 = vld [vmem:[#allocation12 + $0xb8] sm:$0xff]
    %v1098 = vld [vmem:[#allocation12 + $0xc0] sm:$0xff]
    %v1099 = vld [vmem:[#allocation12 + $0xc8] sm:$0xff]
    %v1100 = vld [vmem:[#allocation12 + $0xd0] sm:$0xff]
    %v1101 = vld [vmem:[#allocation12 + $0xd8] sm:$0xff]
    %v1102 = vld [vmem:[#allocation12 + $0xe0] sm:$0xff]
    %v1103 = vld [vmem:[#allocation12 + $0xe8] sm:$0xff]
    %v1104 = vld [vmem:[#allocation12 + $0xf0] sm:$0xff]
    %v1105 = vld [vmem:[#allocation12 + $0xf8] sm:$0xff]
    %v1106 = vld [vmem:[#allocation12 + $0x100] sm:$0xff]
    %v1107 = vld [vmem:[#allocation12 + $0x108] sm:$0xff]
    %v1108 = vld [vmem:[#allocation12 + $0x110] sm:$0xff]
    %v1109 = vld [vmem:[#allocation12 + $0x118] sm:$0xff]
    %v1110 = vld [vmem:[#allocation12 + $0x120] sm:$0xff]
    %v1111 = vld [vmem:[#allocation12 + $0x128] sm:$0xff]
    %v1112 = vld [vmem:[#allocation12 + $0x130] sm:$0xff]
    %v1113 = vld [vmem:[#allocation12 + $0x138] sm:$0xff]
    %v1114 = vld [vmem:[#allocation12 + $0x140] sm:$0xff]
    %v1115 = vld [vmem:[#allocation12 + $0x148] sm:$0xff]
    %v1116 = vld [vmem:[#allocation12 + $0x150] sm:$0xff]
    %v1117 = vld [vmem:[#allocation12 + $0x158] sm:$0xff]
    %v1118 = vld [vmem:[#allocation12 + $0x160] sm:$0xff]
    %v1119 = vld [vmem:[#allocation12 + $0x168] sm:$0xff]
    %v1120 = vld [vmem:[#allocation12 + $0x170] sm:$0xff]
    %v1121 = vld [vmem:[#allocation12 + $0x178] sm:$0xff]
    %v1122 = vld [vmem:[#allocation12 + $0x180] sm:$0xff]
    %v1123 = vld [vmem:[#allocation12 + $0x188] sm:$0xff]
    %v1124 = vld [vmem:[#allocation12 + $0x190] sm:$0xff]
    %v1125 = vld [vmem:[#allocation12 + $0x198] sm:$0xff]
    %v1126 = vld [vmem:[#allocation12 + $0x1a0] sm:$0xff]
    %v1127 = vld [vmem:[#allocation12 + $0x1a8] sm:$0xff]
    %v1128 = vld [vmem:[#allocation12 + $0x1b0] sm:$0xff]
    %v1129 = vld [vmem:[#allocation12 + $0x1b8] sm:$0xff]
    %v1130 = vld [vmem:[#allocation12 + $0x1c0] sm:$0xff]
    %v1131 = vld [vmem:[#allocation12 + $0x1c8] sm:$0xff]
    %v1132 = vld [vmem:[#allocation12 + $0x1d0] sm:$0xff]
    %v1133 = vld [vmem:[#allocation12 + $0x1d8] sm:$0xff]
    %v1134 = vld [vmem:[#allocation12 + $0x1e0] sm:$0xff]
    %v1135 = vld [vmem:[#allocation12 + $0x1e8] sm:$0xff]
    %v1136 = vld [vmem:[#allocation12 + $0x1f0] sm:$0xff]
    %v1137 = vld [vmem:[#allocation12 + $0x1f8] sm:$0xff]
    %1138 = vmatprep.subr.mxu0 %v1135
    %1139 = vmatpush1.msra.mxu0 %v1134
    %1140 = vmatprep.subr.mxu0 %v1131
    %1141 = vmatpush1.msra.mxu0 %v1130
    %1142 = vmatprep.subr.mxu0 %v1127
    %1143 = vmatpush1.msra.mxu0 %v1126
    %1144 = vmatprep.subr.mxu0 %v1123
    %1145 = vmatpush1.msra.mxu0 %v1122
    %1146 = vmatprep.subr.mxu0 %v1119
    %1147 = vmatpush1.msra.mxu0 %v1118
    %1148 = vmatprep.subr.mxu0 %v1115
    %1149 = vmatpush1.msra.mxu0 %v1114
    %1150 = vmatprep.subr.mxu0 %v1111
    %1151 = vmatpush1.msra.mxu0 %v1110
    %1152 = vmatprep.subr.mxu0 %v1107
    %1153 = vmatpush1.msra.mxu0 %v1106
    %1154 = vmatprep.subr.mxu0 %v1103
    %1155 = vmatpush1.msra.mxu0 %v1102
    %1156 = vmatprep.subr.mxu0 %v1099
    %1157 = vmatpush1.msra.mxu0 %v1098
    %1158 = vmatprep.subr.mxu0 %v1095
    %1159 = vmatpush1.msra.mxu0 %v1094
    %1160 = vmatprep.subr.mxu0 %v1091
    %1161 = vmatpush1.msra.mxu0 %v1090
    %1162 = vmatprep.subr.mxu0 %v1087
    %1163 = vmatpush1.msra.mxu0 %v1086
    %1164 = vmatprep.subr.mxu0 %v1083
    %1165 = vmatpush1.msra.mxu0 %v1082
    %1166 = vmatprep.subr.mxu0 %v1079
    %1167 = vmatpush1.msra.mxu0 %v1078
    %1168 = vmatprep.subr.mxu0 %v1075
    %1169 = vmatpush1.msra.mxu0 %v1074
    %1170 = vmatprep.subr.mxu0 0.0
    %1171 = vmatpush2.msra.mxu0 0.0
    %1172 = vmatprep.subr.mxu0 0.0
    %1173 = vmatpush2.msra.mxu0 0.0
    %1174 = vmatprep.subr.mxu0 0.0
    %1175 = vmatpush2.msra.mxu0 0.0
    %1176 = vmatprep.subr.mxu0 0.0
    %1177 = vmatpush2.msra.mxu0 0.0
    %1178 = vmatprep.subr.mxu0 0.0
    %1179 = vmatpush2.msra.mxu0 0.0
    %1180 = vmatprep.subr.mxu0 0.0
    %1181 = vmatpush2.msra.mxu0 0.0
    %1182 = vmatprep.subr.mxu0 0.0
    %1183 = vmatpush2.msra.mxu0 0.0
    %1184 = vmatprep.subr.mxu0 0.0
    %1185 = vmatpush2.msra.mxu0 0.0
    %1186 = vmatprep.subr.mxu0 0.0
    %1187 = vmatpush2.msra.mxu0 0.0
    %1188 = vmatprep.subr.mxu0 0.0
    %1189 = vmatpush2.msra.mxu0 0.0
    %1190 = vmatprep.subr.mxu0 0.0
    %1191 = vmatpush2.msra.mxu0 0.0
    %1192 = vmatprep.subr.mxu0 0.0
    %1193 = vmatpush2.msra.mxu0 0.0
    %1194 = vmatprep.subr.mxu0 0.0
    %1195 = vmatpush2.msra.mxu0 0.0
    %1196 = vmatprep.subr.mxu0 0.0
    %1197 = vmatpush2.msra.mxu0 0.0
    %1198 = vmatprep.subr.mxu0 0.0
    %1199 = vmatpush2.msra.mxu0 0.0
    %1200 = vmatprep.subr.mxu0 0.0
    %1201 = vmatpush2.msra.mxu0 0.0
    %1202 = vmatprep.mubr.f32.mxu0 0.0
    %1203 = vmatmul.mubr.f32.gmra.mxu0 %v775
    %v1204 = vpop.f32.mrf.mxu0
    %v1205 = vadd.f32 0.0, %v1204
    %v1206 = vpop.f32.mrf.mxu0
    %v1207 = vadd.f32 0.0, %v1206
    %1208 = vdwg.mxu0
    %1209 = vmatprep.subr.mxu0 %v1137
    %1210 = vmatpush1.msra.mxu0 %v1136
    %1211 = vmatprep.subr.mxu0 %v1133
    %1212 = vmatpush1.msra.mxu0 %v1132
    %1213 = vmatprep.subr.mxu0 %v1129
    %1214 = vmatpush1.msra.mxu0 %v1128
    %1215 = vmatprep.subr.mxu0 %v1125
    %1216 = vmatpush1.msra.mxu0 %v1124
    %1217 = vmatprep.subr.mxu0 %v1121
    %1218 = vmatpush1.msra.mxu0 %v1120
    %1219 = vmatprep.subr.mxu0 %v1117
    %1220 = vmatpush1.msra.mxu0 %v1116
    %1221 = vmatprep.subr.mxu0 %v1113
    %1222 = vmatpush1.msra.mxu0 %v1112
    %1223 = vmatprep.subr.mxu0 %v1109
    %1224 = vmatpush1.msra.mxu0 %v1108
    %1225 = vmatprep.subr.mxu0 %v1105
    %1226 = vmatpush1.msra.mxu0 %v1104
    %1227 = vmatprep.subr.mxu0 %v1101
    %1228 = vmatpush1.msra.mxu0 %v1100
    %1229 = vmatprep.subr.mxu0 %v1097
    %1230 = vmatpush1.msra.mxu0 %v1096
    %1231 = vmatprep.subr.mxu0 %v1093
    %1232 = vmatpush1.msra.mxu0 %v1092
    %1233 = vmatprep.subr.mxu0 %v1089
    %1234 = vmatpush1.msra.mxu0 %v1088
    %1235 = vmatprep.subr.mxu0 %v1085
    %1236 = vmatpush1.msra.mxu0 %v1084
    %1237 = vmatprep.subr.mxu0 %v1081
    %1238 = vmatpush1.msra.mxu0 %v1080
    %1239 = vmatprep.subr.mxu0 %v1077
    %1240 = vmatpush1.msra.mxu0 %v1076
    %1241 = vmatprep.subr.mxu0 0.0
    %1242 = vmatpush2.msra.mxu0 0.0
    %1243 = vmatprep.subr.mxu0 0.0
    %1244 = vmatpush2.msra.mxu0 0.0
    %1245 = vmatprep.subr.mxu0 0.0
    %1246 = vmatpush2.msra.mxu0 0.0
    %1247 = vmatprep.subr.mxu0 0.0
    %1248 = vmatpush2.msra.mxu0 0.0
    %1249 = vmatprep.subr.mxu0 0.0
    %1250 = vmatpush2.msra.mxu0 0.0
    %1251 = vmatprep.subr.mxu0 0.0
    %1252 = vmatpush2.msra.mxu0 0.0
    %1253 = vmatprep.subr.mxu0 0.0
    %1254 = vmatpush2.msra.mxu0 0.0
    %1255 = vmatprep.subr.mxu0 0.0
    %1256 = vmatpush2.msra.mxu0 0.0
    %1257 = vmatprep.subr.mxu0 0.0
    %1258 = vmatpush2.msra.mxu0 0.0
    %1259 = vmatprep.subr.mxu0 0.0
    %1260 = vmatpush2.msra.mxu0 0.0
    %1261 = vmatprep.subr.mxu0 0.0
    %1262 = vmatpush2.msra.mxu0 0.0
    %1263 = vmatprep.subr.mxu0 0.0
    %1264 = vmatpush2.msra.mxu0 0.0
    %1265 = vmatprep.subr.mxu0 0.0
    %1266 = vmatpush2.msra.mxu0 0.0
    %1267 = vmatprep.subr.mxu0 0.0
    %1268 = vmatpush2.msra.mxu0 0.0
    %1269 = vmatprep.subr.mxu0 0.0
    %1270 = vmatpush2.msra.mxu0 0.0
    %1271 = vmatprep.subr.mxu0 0.0
    %1272 = vmatpush2.msra.mxu0 0.0
    %1273 = vmatprep.mubr.f32.mxu0 0.0
    %1274 = vmatmul.mubr.f32.gmra.mxu0 %v775
    %v1275 = vpop.f32.mrf.mxu0
    %v1276 = vadd.f32 0.0, %v1275
    %v1277 = vpop.f32.mrf.mxu0
    %v1278 = vadd.f32 0.0, %v1277
    %1279 = vdwg.mxu0
    %1280 = vmatprep.subr.mxu0 %v1071
    %1281 = vmatpush1.msra.mxu0 %v1070
    %1282 = vmatprep.subr.mxu0 %v1067
    %1283 = vmatpush1.msra.mxu0 %v1066
    %1284 = vmatprep.subr.mxu0 %v1063
    %1285 = vmatpush1.msra.mxu0 %v1062
    %1286 = vmatprep.subr.mxu0 %v1059
    %1287 = vmatpush1.msra.mxu0 %v1058
    %1288 = vmatprep.subr.mxu0 %v1055
    %1289 = vmatpush1.msra.mxu0 %v1054
    %1290 = vmatprep.subr.mxu0 %v1051
    %1291 = vmatpush1.msra.mxu0 %v1050
    %1292 = vmatprep.subr.mxu0 %v1047
    %1293 = vmatpush1.msra.mxu0 %v1046
    %1294 = vmatprep.subr.mxu0 %v1043
    %1295 = vmatpush1.msra.mxu0 %v1042
    %1296 = vmatprep.subr.mxu0 %v1039
    %1297 = vmatpush1.msra.mxu0 %v1038
    %1298 = vmatprep.subr.mxu0 %v1035
    %1299 = vmatpush1.msra.mxu0 %v1034
    %1300 = vmatprep.subr.mxu0 %v1031
    %1301 = vmatpush1.msra.mxu0 %v1030
    %1302 = vmatprep.subr.mxu0 %v1027
    %1303 = vmatpush1.msra.mxu0 %v1026
    %1304 = vmatprep.subr.mxu0 %v1023
    %1305 = vmatpush1.msra.mxu0 %v1022
    %1306 = vmatprep.subr.mxu0 %v1019
    %1307 = vmatpush1.msra.mxu0 %v1018
    %1308 = vmatprep.subr.mxu0 %v1015
    %1309 = vmatpush1.msra.mxu0 %v1014
    %1310 = vmatprep.subr.mxu0 %v1011
    %1311 = vmatpush1.msra.mxu0 %v1010
    %1312 = vmatprep.subr.mxu0 0.0
    %1313 = vmatpush2.msra.mxu0 0.0
    %1314 = vmatprep.subr.mxu0 0.0
    %1315 = vmatpush2.msra.mxu0 0.0
    %1316 = vmatprep.subr.mxu0 0.0
    %1317 = vmatpush2.msra.mxu0 0.0
    %1318 = vmatprep.subr.mxu0 0.0
    %1319 = vmatpush2.msra.mxu0 0.0
    %1320 = vmatprep.subr.mxu0 0.0
    %1321 = vmatpush2.msra.mxu0 0.0
    %1322 = vmatprep.subr.mxu0 0.0
    %1323 = vmatpush2.msra.mxu0 0.0
    %1324 = vmatprep.subr.mxu0 0.0
    %1325 = vmatpush2.msra.mxu0 0.0
    %1326 = vmatprep.subr.mxu0 0.0
    %1327 = vmatpush2.msra.mxu0 0.0
    %1328 = vmatprep.subr.mxu0 0.0
    %1329 = vmatpush2.msra.mxu0 0.0
    %1330 = vmatprep.subr.mxu0 0.0
    %1331 = vmatpush2.msra.mxu0 0.0
    %1332 = vmatprep.subr.mxu0 0.0
    %1333 = vmatpush2.msra.mxu0 0.0
    %1334 = vmatprep.subr.mxu0 0.0
    %1335 = vmatpush2.msra.mxu0 0.0
    %1336 = vmatprep.subr.mxu0 0.0
    %1337 = vmatpush2.msra.mxu0 0.0
    %1338 = vmatprep.subr.mxu0 0.0
    %1339 = vmatpush2.msra.mxu0 0.0
    %1340 = vmatprep.subr.mxu0 0.0
    %1341 = vmatpush2.msra.mxu0 0.0
    %1342 = vmatprep.subr.mxu0 0.0
    %1343 = vmatpush2.msra.mxu0 0.0
    %1344 = vmatprep.mubr.f32.mxu0 0.0
    %1345 = vmatmul.mubr.f32.gmra.mxu0 %v1009
    %v1346 = vpop.f32.mrf.mxu0
    %v1347 = vadd.f32 %v1205, %v1346
    %v1348 = vpop.f32.mrf.mxu0
    %v1349 = vadd.f32 %v1207, %v1348
    %1350 = vdwg.mxu0
    %1351 = vmatprep.subr.mxu0 %v1073
    %1352 = vmatpush1.msra.mxu0 %v1072
    %1353 = vmatprep.subr.mxu0 %v1069
    %1354 = vmatpush1.msra.mxu0 %v1068
    %1355 = vmatprep.subr.mxu0 %v1065
    %1356 = vmatpush1.msra.mxu0 %v1064
    %1357 = vmatprep.subr.mxu0 %v1061
    %1358 = vmatpush1.msra.mxu0 %v1060
    %1359 = vmatprep.subr.mxu0 %v1057
    %1360 = vmatpush1.msra.mxu0 %v1056
    %1361 = vmatprep.subr.mxu0 %v1053
    %1362 = vmatpush1.msra.mxu0 %v1052
    %1363 = vmatprep.subr.mxu0 %v1049
    %1364 = vmatpush1.msra.mxu0 %v1048
    %1365 = vmatprep.subr.mxu0 %v1045
    %1366 = vmatpush1.msra.mxu0 %v1044
    %1367 = vmatprep.subr.mxu0 %v1041
    %1368 = vmatpush1.msra.mxu0 %v1040
    %1369 = vmatprep.subr.mxu0 %v1037
    %1370 = vmatpush1.msra.mxu0 %v1036
    %1371 = vmatprep.subr.mxu0 %v1033
    %1372 = vmatpush1.msra.mxu0 %v1032
    %1373 = vmatprep.subr.mxu0 %v1029
    %1374 = vmatpush1.msra.mxu0 %v1028
    %1375 = vmatprep.subr.mxu0 %v1025
    %1376 = vmatpush1.msra.mxu0 %v1024
    %1377 = vmatprep.subr.mxu0 %v1021
    %1378 = vmatpush1.msra.mxu0 %v1020
    %1379 = vmatprep.subr.mxu0 %v1017
    %1380 = vmatpush1.msra.mxu0 %v1016
    %1381 = vmatprep.subr.mxu0 %v1013
    %1382 = vmatpush1.msra.mxu0 %v1012
    %1383 = vmatprep.subr.mxu0 0.0
    %1384 = vmatpush2.msra.mxu0 0.0
    %1385 = vmatprep.subr.mxu0 0.0
    %1386 = vmatpush2.msra.mxu0 0.0
    %1387 = vmatprep.subr.mxu0 0.0
    %1388 = vmatpush2.msra.mxu0 0.0
    %1389 = vmatprep.subr.mxu0 0.0
    %1390 = vmatpush2.msra.mxu0 0.0
    %1391 = vmatprep.subr.mxu0 0.0
    %1392 = vmatpush2.msra.mxu0 0.0
    %1393 = vmatprep.subr.mxu0 0.0
    %1394 = vmatpush2.msra.mxu0 0.0
    %1395 = vmatprep.subr.mxu0 0.0
    %1396 = vmatpush2.msra.mxu0 0.0
    %1397 = vmatprep.subr.mxu0 0.0
    %1398 = vmatpush2.msra.mxu0 0.0
    %1399 = vmatprep.subr.mxu0 0.0
    %1400 = vmatpush2.msra.mxu0 0.0
    %1401 = vmatprep.subr.mxu0 0.0
    %1402 = vmatpush2.msra.mxu0 0.0
    %1403 = vmatprep.subr.mxu0 0.0
    %1404 = vmatpush2.msra.mxu0 0.0
    %1405 = vmatprep.subr.mxu0 0.0
    %1406 = vmatpush2.msra.mxu0 0.0
    %1407 = vmatprep.subr.mxu0 0.0
    %1408 = vmatpush2.msra.mxu0 0.0
    %1409 = vmatprep.subr.mxu0 0.0
    %1410 = vmatpush2.msra.mxu0 0.0
    %1411 = vmatprep.subr.mxu0 0.0
    %1412 = vmatpush2.msra.mxu0 0.0
    %1413 = vmatprep.subr.mxu0 0.0
    %1414 = vmatpush2.msra.mxu0 0.0
    %1415 = vmatprep.mubr.f32.mxu0 0.0
    %1416 = vmatmul.mubr.f32.gmra.mxu0 %v1009
    %v1417 = vpop.f32.mrf.mxu0
    %v1418 = vadd.f32 %v1276, %v1417
    %v1419 = vpop.f32.mrf.mxu0
    %v1420 = vadd.f32 %v1278, %v1419
    %1421 = vdwg.mxu0
    %v1422 = vadd.f32 %v1347, %v89
    %v1423 = vadd.f32 %v1349, %v93
    %v1424 = vadd.f32 %v1418, %v97
    %v1425 = vadd.f32 %v1420, %v101
    %v1426 = vmul.f32 %v1422, 0.5
    %v1427 = vtanh.pop %v1426
    %v1428 = vadd.f32 %v1427, 1.0
    %v1429 = vmul.f32 %v1428, 0.5
    %v1430 = vmul.f32 %v1423, 0.5
    %v1431 = vtanh.pop %v1430
    %v1432 = vadd.f32 %v1431, 1.0
    %v1433 = vmul.f32 %v1432, 0.5
    %v1434 = vtanh.pop %v1424
    %v1435 = vmul.f32 %v1425, 0.5
    %v1436 = vtanh.pop %v1435
    %v1437 = vadd.f32 %v1436, 1.0
    %v1438 = vmul.f32 %v1437, 0.5
    %v1439 = vmul.f32 %v1433, %v773
    %v1440 = vmul.f32 %v1429, %v1434
    %v1441 = vadd.f32 %v1439, %v1440
    %v1442 = vtanh.pop %v1441
    %v1443 = vmul.f32 %v1438, %v1442
    %s1444 = scalar_lea.vmem [#allocation14], 8
    %1445 = vst [vmem:[%s1444] sm:$0xff] %v1443
    %s1446 = scalar_lea.vmem [#allocation6], 64
    %v1447 = vld [vmem:[%s1446] sm:$0xff]
    %v1448 = vld [vmem:[%s1446 + $0x8] sm:$0xff]
    %v1449 = vld [vmem:[%s1446 + $0x10] sm:$0xff]
    %v1450 = vld [vmem:[%s1446 + $0x18] sm:$0xff]
    %v1451 = vld [vmem:[#allocation9] sm:$0xff]
    %v1452 = vld [vmem:[#allocation9 + $0x8] sm:$0xff]
    %v1453 = vld [vmem:[#allocation9 + $0x10] sm:$0xff]
    %v1454 = vld [vmem:[#allocation9 + $0x18] sm:$0xff]
    %v1455 = vld [vmem:[#allocation9 + $0x20] sm:$0xff]
    %v1456 = vld [vmem:[#allocation9 + $0x28] sm:$0xff]
    %v1457 = vld [vmem:[#allocation9 + $0x30] sm:$0xff]
    %v1458 = vld [vmem:[#allocation9 + $0x38] sm:$0xff]
    %v1459 = vld [vmem:[#allocation9 + $0x40] sm:$0xff]
    %v1460 = vld [vmem:[#allocation9 + $0x48] sm:$0xff]
    %v1461 = vld [vmem:[#allocation9 + $0x50] sm:$0xff]
    %v1462 = vld [vmem:[#allocation9 + $0x58] sm:$0xff]
    %v1463 = vld [vmem:[#allocation9 + $0x60] sm:$0xff]
    %v1464 = vld [vmem:[#allocation9 + $0x68] sm:$0xff]
    %v1465 = vld [vmem:[#allocation9 + $0x70] sm:$0xff]
    %v1466 = vld [vmem:[#allocation9 + $0x78] sm:$0xff]
    %v1467 = vld [vmem:[#allocation9 + $0x80] sm:$0xff]
    %v1468 = vld [vmem:[#allocation9 + $0x88] sm:$0xff]
    %v1469 = vld [vmem:[#allocation9 + $0x90] sm:$0xff]
    %v1470 = vld [vmem:[#allocation9 + $0x98] sm:$0xff]
    %v1471 = vld [vmem:[#allocation9 + $0xa0] sm:$0xff]
    %v1472 = vld [vmem:[#allocation9 + $0xa8] sm:$0xff]
    %v1473 = vld [vmem:[#allocation9 + $0xb0] sm:$0xff]
    %v1474 = vld [vmem:[#allocation9 + $0xb8] sm:$0xff]
    %v1475 = vld [vmem:[#allocation9 + $0xc0] sm:$0xff]
    %v1476 = vld [vmem:[#allocation9 + $0xc8] sm:$0xff]
    %v1477 = vld [vmem:[#allocation9 + $0xd0] sm:$0xff]
    %v1478 = vld [vmem:[#allocation9 + $0xd8] sm:$0xff]
    %v1479 = vld [vmem:[#allocation9 + $0xe0] sm:$0xff]
    %v1480 = vld [vmem:[#allocation9 + $0xe8] sm:$0xff]
    %v1481 = vld [vmem:[#allocation9 + $0xf0] sm:$0xff]
    %v1482 = vld [vmem:[#allocation9 + $0xf8] sm:$0xff]
    %v1483 = vld [vmem:[#allocation9 + $0x100] sm:$0xff]
    %v1484 = vld [vmem:[#allocation9 + $0x108] sm:$0xff]
    %v1485 = vld [vmem:[#allocation9 + $0x110] sm:$0xff]
    %v1486 = vld [vmem:[#allocation9 + $0x118] sm:$0xff]
    %v1487 = vld [vmem:[#allocation9 + $0x120] sm:$0xff]
    %v1488 = vld [vmem:[#allocation9 + $0x128] sm:$0xff]
    %v1489 = vld [vmem:[#allocation9 + $0x130] sm:$0xff]
    %v1490 = vld [vmem:[#allocation9 + $0x138] sm:$0xff]
    %v1491 = vld [vmem:[#allocation9 + $0x140] sm:$0xff]
    %v1492 = vld [vmem:[#allocation9 + $0x148] sm:$0xff]
    %v1493 = vld [vmem:[#allocation9 + $0x150] sm:$0xff]
    %v1494 = vld [vmem:[#allocation9 + $0x158] sm:$0xff]
    %v1495 = vld [vmem:[#allocation9 + $0x160] sm:$0xff]
    %v1496 = vld [vmem:[#allocation9 + $0x168] sm:$0xff]
    %v1497 = vld [vmem:[#allocation9 + $0x170] sm:$0xff]
    %v1498 = vld [vmem:[#allocation9 + $0x178] sm:$0xff]
    %v1499 = vld [vmem:[#allocation9 + $0x180] sm:$0xff]
    %v1500 = vld [vmem:[#allocation9 + $0x188] sm:$0xff]
    %v1501 = vld [vmem:[#allocation9 + $0x190] sm:$0xff]
    %v1502 = vld [vmem:[#allocation9 + $0x198] sm:$0xff]
    %v1503 = vld [vmem:[#allocation9 + $0x1a0] sm:$0xff]
    %v1504 = vld [vmem:[#allocation9 + $0x1a8] sm:$0xff]
    %v1505 = vld [vmem:[#allocation9 + $0x1b0] sm:$0xff]
    %v1506 = vld [vmem:[#allocation9 + $0x1b8] sm:$0xff]
    %v1507 = vld [vmem:[#allocation9 + $0x1c0] sm:$0xff]
    %v1508 = vld [vmem:[#allocation9 + $0x1c8] sm:$0xff]
    %v1509 = vld [vmem:[#allocation9 + $0x1d0] sm:$0xff]
    %v1510 = vld [vmem:[#allocation9 + $0x1d8] sm:$0xff]
    %v1511 = vld [vmem:[#allocation9 + $0x1e0] sm:$0xff]
    %v1512 = vld [vmem:[#allocation9 + $0x1e8] sm:$0xff]
    %v1513 = vld [vmem:[#allocation9 + $0x1f0] sm:$0xff]
    %v1514 = vld [vmem:[#allocation9 + $0x1f8] sm:$0xff]
    %1515 = vmatprep.subr.mxu0 %v1512
    %1516 = vmatpush1.msra.mxu0 %v1511
    %1517 = vmatprep.subr.mxu0 %v1508
    %1518 = vmatpush1.msra.mxu0 %v1507
    %1519 = vmatprep.subr.mxu0 %v1504
    %1520 = vmatpush1.msra.mxu0 %v1503
    %1521 = vmatprep.subr.mxu0 %v1500
    %1522 = vmatpush1.msra.mxu0 %v1499
    %1523 = vmatprep.subr.mxu0 %v1496
    %1524 = vmatpush1.msra.mxu0 %v1495
    %1525 = vmatprep.subr.mxu0 %v1492
    %1526 = vmatpush1.msra.mxu0 %v1491
    %1527 = vmatprep.subr.mxu0 %v1488
    %1528 = vmatpush1.msra.mxu0 %v1487
    %1529 = vmatprep.subr.mxu0 %v1484
    %1530 = vmatpush1.msra.mxu0 %v1483
    %1531 = vmatprep.subr.mxu0 %v1480
    %1532 = vmatpush1.msra.mxu0 %v1479
    %1533 = vmatprep.subr.mxu0 %v1476
    %1534 = vmatpush1.msra.mxu0 %v1475
    %1535 = vmatprep.subr.mxu0 %v1472
    %1536 = vmatpush1.msra.mxu0 %v1471
    %1537 = vmatprep.subr.mxu0 %v1468
    %1538 = vmatpush1.msra.mxu0 %v1467
    %1539 = vmatprep.subr.mxu0 %v1464
    %1540 = vmatpush1.msra.mxu0 %v1463
    %1541 = vmatprep.subr.mxu0 %v1460
    %1542 = vmatpush1.msra.mxu0 %v1459
    %1543 = vmatprep.subr.mxu0 %v1456
    %1544 = vmatpush1.msra.mxu0 %v1455
    %1545 = vmatprep.subr.mxu0 %v1452
    %1546 = vmatpush1.msra.mxu0 %v1451
    %1547 = vmatprep.subr.mxu0 0.0
    %1548 = vmatpush2.msra.mxu0 0.0
    %1549 = vmatprep.subr.mxu0 0.0
    %1550 = vmatpush2.msra.mxu0 0.0
    %1551 = vmatprep.subr.mxu0 0.0
    %1552 = vmatpush2.msra.mxu0 0.0
    %1553 = vmatprep.subr.mxu0 0.0
    %1554 = vmatpush2.msra.mxu0 0.0
    %1555 = vmatprep.subr.mxu0 0.0
    %1556 = vmatpush2.msra.mxu0 0.0
    %1557 = vmatprep.subr.mxu0 0.0
    %1558 = vmatpush2.msra.mxu0 0.0
    %1559 = vmatprep.subr.mxu0 0.0
    %1560 = vmatpush2.msra.mxu0 0.0
    %1561 = vmatprep.subr.mxu0 0.0
    %1562 = vmatpush2.msra.mxu0 0.0
    %1563 = vmatprep.subr.mxu0 0.0
    %1564 = vmatpush2.msra.mxu0 0.0
    %1565 = vmatprep.subr.mxu0 0.0
    %1566 = vmatpush2.msra.mxu0 0.0
    %1567 = vmatprep.subr.mxu0 0.0
    %1568 = vmatpush2.msra.mxu0 0.0
    %1569 = vmatprep.subr.mxu0 0.0
    %1570 = vmatpush2.msra.mxu0 0.0
    %1571 = vmatprep.subr.mxu0 0.0
    %1572 = vmatpush2.msra.mxu0 0.0
    %1573 = vmatprep.subr.mxu0 0.0
    %1574 = vmatpush2.msra.mxu0 0.0
    %1575 = vmatprep.subr.mxu0 0.0
    %1576 = vmatpush2.msra.mxu0 0.0
    %1577 = vmatprep.subr.mxu0 0.0
    %1578 = vmatpush2.msra.mxu0 0.0
    %1579 = vmatprep.mubr.f32.mxu0 0.0
    %1580 = vmatmul.mubr.f32.gmra.mxu0 %v1009
    %v1581 = vpop.f32.mrf.mxu0
    %v1582 = vadd.f32 0.0, %v1581
    %v1583 = vpop.f32.mrf.mxu0
    %v1584 = vadd.f32 0.0, %v1583
    %1585 = vdwg.mxu0
    %1586 = vmatprep.subr.mxu0 %v1514
    %1587 = vmatpush1.msra.mxu0 %v1513
    %1588 = vmatprep.subr.mxu0 %v1510
    %1589 = vmatpush1.msra.mxu0 %v1509
    %1590 = vmatprep.subr.mxu0 %v1506
    %1591 = vmatpush1.msra.mxu0 %v1505
    %1592 = vmatprep.subr.mxu0 %v1502
    %1593 = vmatpush1.msra.mxu0 %v1501
    %1594 = vmatprep.subr.mxu0 %v1498
    %1595 = vmatpush1.msra.mxu0 %v1497
    %1596 = vmatprep.subr.mxu0 %v1494
    %1597 = vmatpush1.msra.mxu0 %v1493
    %1598 = vmatprep.subr.mxu0 %v1490
    %1599 = vmatpush1.msra.mxu0 %v1489
    %1600 = vmatprep.subr.mxu0 %v1486
    %1601 = vmatpush1.msra.mxu0 %v1485
    %1602 = vmatprep.subr.mxu0 %v1482
    %1603 = vmatpush1.msra.mxu0 %v1481
    %1604 = vmatprep.subr.mxu0 %v1478
    %1605 = vmatpush1.msra.mxu0 %v1477
    %1606 = vmatprep.subr.mxu0 %v1474
    %1607 = vmatpush1.msra.mxu0 %v1473
    %1608 = vmatprep.subr.mxu0 %v1470
    %1609 = vmatpush1.msra.mxu0 %v1469
    %1610 = vmatprep.subr.mxu0 %v1466
    %1611 = vmatpush1.msra.mxu0 %v1465
    %1612 = vmatprep.subr.mxu0 %v1462
    %1613 = vmatpush1.msra.mxu0 %v1461
    %1614 = vmatprep.subr.mxu0 %v1458
    %1615 = vmatpush1.msra.mxu0 %v1457
    %1616 = vmatprep.subr.mxu0 %v1454
    %1617 = vmatpush1.msra.mxu0 %v1453
    %1618 = vmatprep.subr.mxu0 0.0
    %1619 = vmatpush2.msra.mxu0 0.0
    %1620 = vmatprep.subr.mxu0 0.0
    %1621 = vmatpush2.msra.mxu0 0.0
    %1622 = vmatprep.subr.mxu0 0.0
    %1623 = vmatpush2.msra.mxu0 0.0
    %1624 = vmatprep.subr.mxu0 0.0
    %1625 = vmatpush2.msra.mxu0 0.0
    %1626 = vmatprep.subr.mxu0 0.0
    %1627 = vmatpush2.msra.mxu0 0.0
    %1628 = vmatprep.subr.mxu0 0.0
    %1629 = vmatpush2.msra.mxu0 0.0
    %1630 = vmatprep.subr.mxu0 0.0
    %1631 = vmatpush2.msra.mxu0 0.0
    %1632 = vmatprep.subr.mxu0 0.0
    %1633 = vmatpush2.msra.mxu0 0.0
    %1634 = vmatprep.subr.mxu0 0.0
    %1635 = vmatpush2.msra.mxu0 0.0
    %1636 = vmatprep.subr.mxu0 0.0
    %1637 = vmatpush2.msra.mxu0 0.0
    %1638 = vmatprep.subr.mxu0 0.0
    %1639 = vmatpush2.msra.mxu0 0.0
    %1640 = vmatprep.subr.mxu0 0.0
    %1641 = vmatpush2.msra.mxu0 0.0
    %1642 = vmatprep.subr.mxu0 0.0
    %1643 = vmatpush2.msra.mxu0 0.0
    %1644 = vmatprep.subr.mxu0 0.0
    %1645 = vmatpush2.msra.mxu0 0.0
    %1646 = vmatprep.subr.mxu0 0.0
    %1647 = vmatpush2.msra.mxu0 0.0
    %1648 = vmatprep.subr.mxu0 0.0
    %1649 = vmatpush2.msra.mxu0 0.0
    %1650 = vmatprep.mubr.f32.mxu0 0.0
    %1651 = vmatmul.mubr.f32.gmra.mxu0 %v1009
    %v1652 = vpop.f32.mrf.mxu0
    %v1653 = vadd.f32 0.0, %v1652
    %v1654 = vpop.f32.mrf.mxu0
    %v1655 = vadd.f32 0.0, %v1654
    %1656 = vdwg.mxu0
    %v1657 = vadd.f32 %v1447, %v1582
    %v1658 = vadd.f32 %v1448, %v1584
    %v1659 = vadd.f32 %v1449, %v1653
    %v1660 = vadd.f32 %v1450, %v1655
    %v1661 = vmul.f32 %v1657, 0.5
    %v1662 = vtanh.pop %v1661
    %v1663 = vadd.f32 %v1662, 1.0
    %v1664 = vmul.f32 %v1663, 0.5
    %v1665 = vmul.f32 %v1658, 0.5
    %v1666 = vtanh.pop %v1665
    %v1667 = vadd.f32 %v1666, 1.0
    %v1668 = vmul.f32 %v1667, 0.5
    %v1669 = vtanh.pop %v1659
    %v1670 = vmul.f32 %v1660, 0.5
    %v1671 = vtanh.pop %v1670
    %v1672 = vadd.f32 %v1671, 1.0
    %v1673 = vmul.f32 %v1672, 0.5
    %v1674 = vmul.f32 %v1668, %v1007
    %v1675 = vmul.f32 %v1664, %v1669
    %v1676 = vadd.f32 %v1674, %v1675
    %v1677 = vtanh.pop %v1676
    %v1678 = vmul.f32 %v1673, %v1677
    %v1679 = vld [vmem:[#allocation11] sm:$0xff]
    %v1680 = vld [vmem:[#allocation11 + $0x8] sm:$0xff]
    %v1681 = vld [vmem:[#allocation11 + $0x10] sm:$0xff]
    %v1682 = vld [vmem:[#allocation11 + $0x18] sm:$0xff]
    %v1683 = vld [vmem:[#allocation11 + $0x20] sm:$0xff]
    %v1684 = vld [vmem:[#allocation11 + $0x28] sm:$0xff]
    %v1685 = vld [vmem:[#allocation11 + $0x30] sm:$0xff]
    %v1686 = vld [vmem:[#allocation11 + $0x38] sm:$0xff]
    %v1687 = vld [vmem:[#allocation11 + $0x40] sm:$0xff]
    %v1688 = vld [vmem:[#allocation11 + $0x48] sm:$0xff]
    %v1689 = vld [vmem:[#allocation11 + $0x50] sm:$0xff]
    %v1690 = vld [vmem:[#allocation11 + $0x58] sm:$0xff]
    %v1691 = vld [vmem:[#allocation11 + $0x60] sm:$0xff]
    %v1692 = vld [vmem:[#allocation11 + $0x68] sm:$0xff]
    %v1693 = vld [vmem:[#allocation11 + $0x70] sm:$0xff]
    %v1694 = vld [vmem:[#allocation11 + $0x78] sm:$0xff]
    %v1695 = vld [vmem:[#allocation11 + $0x80] sm:$0xff]
    %v1696 = vld [vmem:[#allocation11 + $0x88] sm:$0xff]
    %v1697 = vld [vmem:[#allocation11 + $0x90] sm:$0xff]
    %v1698 = vld [vmem:[#allocation11 + $0x98] sm:$0xff]
    %v1699 = vld [vmem:[#allocation11 + $0xa0] sm:$0xff]
    %v1700 = vld [vmem:[#allocation11 + $0xa8] sm:$0xff]
    %v1701 = vld [vmem:[#allocation11 + $0xb0] sm:$0xff]
    %v1702 = vld [vmem:[#allocation11 + $0xb8] sm:$0xff]
    %v1703 = vld [vmem:[#allocation11 + $0xc0] sm:$0xff]
    %v1704 = vld [vmem:[#allocation11 + $0xc8] sm:$0xff]
    %v1705 = vld [vmem:[#allocation11 + $0xd0] sm:$0xff]
    %v1706 = vld [vmem:[#allocation11 + $0xd8] sm:$0xff]
    %v1707 = vld [vmem:[#allocation11 + $0xe0] sm:$0xff]
    %v1708 = vld [vmem:[#allocation11 + $0xe8] sm:$0xff]
    %v1709 = vld [vmem:[#allocation11 + $0xf0] sm:$0xff]
    %v1710 = vld [vmem:[#allocation11 + $0xf8] sm:$0xff]
    %v1711 = vld [vmem:[#allocation11 + $0x100] sm:$0xff]
    %v1712 = vld [vmem:[#allocation11 + $0x108] sm:$0xff]
    %v1713 = vld [vmem:[#allocation11 + $0x110] sm:$0xff]
    %v1714 = vld [vmem:[#allocation11 + $0x118] sm:$0xff]
    %v1715 = vld [vmem:[#allocation11 + $0x120] sm:$0xff]
    %v1716 = vld [vmem:[#allocation11 + $0x128] sm:$0xff]
    %v1717 = vld [vmem:[#allocation11 + $0x130] sm:$0xff]
    %v1718 = vld [vmem:[#allocation11 + $0x138] sm:$0xff]
    %v1719 = vld [vmem:[#allocation11 + $0x140] sm:$0xff]
    %v1720 = vld [vmem:[#allocation11 + $0x148] sm:$0xff]
    %v1721 = vld [vmem:[#allocation11 + $0x150] sm:$0xff]
    %v1722 = vld [vmem:[#allocation11 + $0x158] sm:$0xff]
    %v1723 = vld [vmem:[#allocation11 + $0x160] sm:$0xff]
    %v1724 = vld [vmem:[#allocation11 + $0x168] sm:$0xff]
    %v1725 = vld [vmem:[#allocation11 + $0x170] sm:$0xff]
    %v1726 = vld [vmem:[#allocation11 + $0x178] sm:$0xff]
    %v1727 = vld [vmem:[#allocation11 + $0x180] sm:$0xff]
    %v1728 = vld [vmem:[#allocation11 + $0x188] sm:$0xff]
    %v1729 = vld [vmem:[#allocation11 + $0x190] sm:$0xff]
    %v1730 = vld [vmem:[#allocation11 + $0x198] sm:$0xff]
    %v1731 = vld [vmem:[#allocation11 + $0x1a0] sm:$0xff]
    %v1732 = vld [vmem:[#allocation11 + $0x1a8] sm:$0xff]
    %v1733 = vld [vmem:[#allocation11 + $0x1b0] sm:$0xff]
    %v1734 = vld [vmem:[#allocation11 + $0x1b8] sm:$0xff]
    %v1735 = vld [vmem:[#allocation11 + $0x1c0] sm:$0xff]
    %v1736 = vld [vmem:[#allocation11 + $0x1c8] sm:$0xff]
    %v1737 = vld [vmem:[#allocation11 + $0x1d0] sm:$0xff]
    %v1738 = vld [vmem:[#allocation11 + $0x1d8] sm:$0xff]
    %v1739 = vld [vmem:[#allocation11 + $0x1e0] sm:$0xff]
    %v1740 = vld [vmem:[#allocation11 + $0x1e8] sm:$0xff]
    %v1741 = vld [vmem:[#allocation11 + $0x1f0] sm:$0xff]
    %v1742 = vld [vmem:[#allocation11 + $0x1f8] sm:$0xff]
    %v1743 = vld [vmem:[#allocation12] sm:$0xff]
    %v1744 = vld [vmem:[#allocation12 + $0x8] sm:$0xff]
    %v1745 = vld [vmem:[#allocation12 + $0x10] sm:$0xff]
    %v1746 = vld [vmem:[#allocation12 + $0x18] sm:$0xff]
    %v1747 = vld [vmem:[#allocation12 + $0x20] sm:$0xff]
    %v1748 = vld [vmem:[#allocation12 + $0x28] sm:$0xff]
    %v1749 = vld [vmem:[#allocation12 + $0x30] sm:$0xff]
    %v1750 = vld [vmem:[#allocation12 + $0x38] sm:$0xff]
    %v1751 = vld [vmem:[#allocation12 + $0x40] sm:$0xff]
    %v1752 = vld [vmem:[#allocation12 + $0x48] sm:$0xff]
    %v1753 = vld [vmem:[#allocation12 + $0x50] sm:$0xff]
    %v1754 = vld [vmem:[#allocation12 + $0x58] sm:$0xff]
    %v1755 = vld [vmem:[#allocation12 + $0x60] sm:$0xff]
    %v1756 = vld [vmem:[#allocation12 + $0x68] sm:$0xff]
    %v1757 = vld [vmem:[#allocation12 + $0x70] sm:$0xff]
    %v1758 = vld [vmem:[#allocation12 + $0x78] sm:$0xff]
    %v1759 = vld [vmem:[#allocation12 + $0x80] sm:$0xff]
    %v1760 = vld [vmem:[#allocation12 + $0x88] sm:$0xff]
    %v1761 = vld [vmem:[#allocation12 + $0x90] sm:$0xff]
    %v1762 = vld [vmem:[#allocation12 + $0x98] sm:$0xff]
    %v1763 = vld [vmem:[#allocation12 + $0xa0] sm:$0xff]
    %v1764 = vld [vmem:[#allocation12 + $0xa8] sm:$0xff]
    %v1765 = vld [vmem:[#allocation12 + $0xb0] sm:$0xff]
    %v1766 = vld [vmem:[#allocation12 + $0xb8] sm:$0xff]
    %v1767 = vld [vmem:[#allocation12 + $0xc0] sm:$0xff]
    %v1768 = vld [vmem:[#allocation12 + $0xc8] sm:$0xff]
    %v1769 = vld [vmem:[#allocation12 + $0xd0] sm:$0xff]
    %v1770 = vld [vmem:[#allocation12 + $0xd8] sm:$0xff]
    %v1771 = vld [vmem:[#allocation12 + $0xe0] sm:$0xff]
    %v1772 = vld [vmem:[#allocation12 + $0xe8] sm:$0xff]
    %v1773 = vld [vmem:[#allocation12 + $0xf0] sm:$0xff]
    %v1774 = vld [vmem:[#allocation12 + $0xf8] sm:$0xff]
    %v1775 = vld [vmem:[#allocation12 + $0x100] sm:$0xff]
    %v1776 = vld [vmem:[#allocation12 + $0x108] sm:$0xff]
    %v1777 = vld [vmem:[#allocation12 + $0x110] sm:$0xff]
    %v1778 = vld [vmem:[#allocation12 + $0x118] sm:$0xff]
    %v1779 = vld [vmem:[#allocation12 + $0x120] sm:$0xff]
    %v1780 = vld [vmem:[#allocation12 + $0x128] sm:$0xff]
    %v1781 = vld [vmem:[#allocation12 + $0x130] sm:$0xff]
    %v1782 = vld [vmem:[#allocation12 + $0x138] sm:$0xff]
    %v1783 = vld [vmem:[#allocation12 + $0x140] sm:$0xff]
    %v1784 = vld [vmem:[#allocation12 + $0x148] sm:$0xff]
    %v1785 = vld [vmem:[#allocation12 + $0x150] sm:$0xff]
    %v1786 = vld [vmem:[#allocation12 + $0x158] sm:$0xff]
    %v1787 = vld [vmem:[#allocation12 + $0x160] sm:$0xff]
    %v1788 = vld [vmem:[#allocation12 + $0x168] sm:$0xff]
    %v1789 = vld [vmem:[#allocation12 + $0x170] sm:$0xff]
    %v1790 = vld [vmem:[#allocation12 + $0x178] sm:$0xff]
    %v1791 = vld [vmem:[#allocation12 + $0x180] sm:$0xff]
    %v1792 = vld [vmem:[#allocation12 + $0x188] sm:$0xff]
    %v1793 = vld [vmem:[#allocation12 + $0x190] sm:$0xff]
    %v1794 = vld [vmem:[#allocation12 + $0x198] sm:$0xff]
    %v1795 = vld [vmem:[#allocation12 + $0x1a0] sm:$0xff]
    %v1796 = vld [vmem:[#allocation12 + $0x1a8] sm:$0xff]
    %v1797 = vld [vmem:[#allocation12 + $0x1b0] sm:$0xff]
    %v1798 = vld [vmem:[#allocation12 + $0x1b8] sm:$0xff]
    %v1799 = vld [vmem:[#allocation12 + $0x1c0] sm:$0xff]
    %v1800 = vld [vmem:[#allocation12 + $0x1c8] sm:$0xff]
    %v1801 = vld [vmem:[#allocation12 + $0x1d0] sm:$0xff]
    %v1802 = vld [vmem:[#allocation12 + $0x1d8] sm:$0xff]
    %v1803 = vld [vmem:[#allocation12 + $0x1e0] sm:$0xff]
    %v1804 = vld [vmem:[#allocation12 + $0x1e8] sm:$0xff]
    %v1805 = vld [vmem:[#allocation12 + $0x1f0] sm:$0xff]
    %v1806 = vld [vmem:[#allocation12 + $0x1f8] sm:$0xff]
    %1807 = vmatprep.subr.mxu0 %v1804
    %1808 = vmatpush1.msra.mxu0 %v1803
    %1809 = vmatprep.subr.mxu0 %v1800
    %1810 = vmatpush1.msra.mxu0 %v1799
    %1811 = vmatprep.subr.mxu0 %v1796
    %1812 = vmatpush1.msra.mxu0 %v1795
    %1813 = vmatprep.subr.mxu0 %v1792
    %1814 = vmatpush1.msra.mxu0 %v1791
    %1815 = vmatprep.subr.mxu0 %v1788
    %1816 = vmatpush1.msra.mxu0 %v1787
    %1817 = vmatprep.subr.mxu0 %v1784
    %1818 = vmatpush1.msra.mxu0 %v1783
    %1819 = vmatprep.subr.mxu0 %v1780
    %1820 = vmatpush1.msra.mxu0 %v1779
    %1821 = vmatprep.subr.mxu0 %v1776
    %1822 = vmatpush1.msra.mxu0 %v1775
    %1823 = vmatprep.subr.mxu0 %v1772
    %1824 = vmatpush1.msra.mxu0 %v1771
    %1825 = vmatprep.subr.mxu0 %v1768
    %1826 = vmatpush1.msra.mxu0 %v1767
    %1827 = vmatprep.subr.mxu0 %v1764
    %1828 = vmatpush1.msra.mxu0 %v1763
    %1829 = vmatprep.subr.mxu0 %v1760
    %1830 = vmatpush1.msra.mxu0 %v1759
    %1831 = vmatprep.subr.mxu0 %v1756
    %1832 = vmatpush1.msra.mxu0 %v1755
    %1833 = vmatprep.subr.mxu0 %v1752
    %1834 = vmatpush1.msra.mxu0 %v1751
    %1835 = vmatprep.subr.mxu0 %v1748
    %1836 = vmatpush1.msra.mxu0 %v1747
    %1837 = vmatprep.subr.mxu0 %v1744
    %1838 = vmatpush1.msra.mxu0 %v1743
    %1839 = vmatprep.subr.mxu0 0.0
    %1840 = vmatpush2.msra.mxu0 0.0
    %1841 = vmatprep.subr.mxu0 0.0
    %1842 = vmatpush2.msra.mxu0 0.0
    %1843 = vmatprep.subr.mxu0 0.0
    %1844 = vmatpush2.msra.mxu0 0.0
    %1845 = vmatprep.subr.mxu0 0.0
    %1846 = vmatpush2.msra.mxu0 0.0
    %1847 = vmatprep.subr.mxu0 0.0
    %1848 = vmatpush2.msra.mxu0 0.0
    %1849 = vmatprep.subr.mxu0 0.0
    %1850 = vmatpush2.msra.mxu0 0.0
    %1851 = vmatprep.subr.mxu0 0.0
    %1852 = vmatpush2.msra.mxu0 0.0
    %1853 = vmatprep.subr.mxu0 0.0
    %1854 = vmatpush2.msra.mxu0 0.0
    %1855 = vmatprep.subr.mxu0 0.0
    %1856 = vmatpush2.msra.mxu0 0.0
    %1857 = vmatprep.subr.mxu0 0.0
    %1858 = vmatpush2.msra.mxu0 0.0
    %1859 = vmatprep.subr.mxu0 0.0
    %1860 = vmatpush2.msra.mxu0 0.0
    %1861 = vmatprep.subr.mxu0 0.0
    %1862 = vmatpush2.msra.mxu0 0.0
    %1863 = vmatprep.subr.mxu0 0.0
    %1864 = vmatpush2.msra.mxu0 0.0
    %1865 = vmatprep.subr.mxu0 0.0
    %1866 = vmatpush2.msra.mxu0 0.0
    %1867 = vmatprep.subr.mxu0 0.0
    %1868 = vmatpush2.msra.mxu0 0.0
    %1869 = vmatprep.subr.mxu0 0.0
    %1870 = vmatpush2.msra.mxu0 0.0
    %1871 = vmatprep.mubr.f32.mxu0 0.0
    %1872 = vmatmul.mubr.f32.gmra.mxu0 %v1443
    %v1873 = vpop.f32.mrf.mxu0
    %v1874 = vadd.f32 0.0, %v1873
    %v1875 = vpop.f32.mrf.mxu0
    %v1876 = vadd.f32 0.0, %v1875
    %1877 = vdwg.mxu0
    %1878 = vmatprep.subr.mxu0 %v1806
    %1879 = vmatpush1.msra.mxu0 %v1805
    %1880 = vmatprep.subr.mxu0 %v1802
    %1881 = vmatpush1.msra.mxu0 %v1801
    %1882 = vmatprep.subr.mxu0 %v1798
    %1883 = vmatpush1.msra.mxu0 %v1797
    %1884 = vmatprep.subr.mxu0 %v1794
    %1885 = vmatpush1.msra.mxu0 %v1793
    %1886 = vmatprep.subr.mxu0 %v1790
    %1887 = vmatpush1.msra.mxu0 %v1789
    %1888 = vmatprep.subr.mxu0 %v1786
    %1889 = vmatpush1.msra.mxu0 %v1785
    %1890 = vmatprep.subr.mxu0 %v1782
    %1891 = vmatpush1.msra.mxu0 %v1781
    %1892 = vmatprep.subr.mxu0 %v1778
    %1893 = vmatpush1.msra.mxu0 %v1777
    %1894 = vmatprep.subr.mxu0 %v1774
    %1895 = vmatpush1.msra.mxu0 %v1773
    %1896 = vmatprep.subr.mxu0 %v1770
    %1897 = vmatpush1.msra.mxu0 %v1769
    %1898 = vmatprep.subr.mxu0 %v1766
    %1899 = vmatpush1.msra.mxu0 %v1765
    %1900 = vmatprep.subr.mxu0 %v1762
    %1901 = vmatpush1.msra.mxu0 %v1761
    %1902 = vmatprep.subr.mxu0 %v1758
    %1903 = vmatpush1.msra.mxu0 %v1757
    %1904 = vmatprep.subr.mxu0 %v1754
    %1905 = vmatpush1.msra.mxu0 %v1753
    %1906 = vmatprep.subr.mxu0 %v1750
    %1907 = vmatpush1.msra.mxu0 %v1749
    %1908 = vmatprep.subr.mxu0 %v1746
    %1909 = vmatpush1.msra.mxu0 %v1745
    %1910 = vmatprep.subr.mxu0 0.0
    %1911 = vmatpush2.msra.mxu0 0.0
    %1912 = vmatprep.subr.mxu0 0.0
    %1913 = vmatpush2.msra.mxu0 0.0
    %1914 = vmatprep.subr.mxu0 0.0
    %1915 = vmatpush2.msra.mxu0 0.0
    %1916 = vmatprep.subr.mxu0 0.0
    %1917 = vmatpush2.msra.mxu0 0.0
    %1918 = vmatprep.subr.mxu0 0.0
    %1919 = vmatpush2.msra.mxu0 0.0
    %1920 = vmatprep.subr.mxu0 0.0
    %1921 = vmatpush2.msra.mxu0 0.0
    %1922 = vmatprep.subr.mxu0 0.0
    %1923 = vmatpush2.msra.mxu0 0.0
    %1924 = vmatprep.subr.mxu0 0.0
    %1925 = vmatpush2.msra.mxu0 0.0
    %1926 = vmatprep.subr.mxu0 0.0
    %1927 = vmatpush2.msra.mxu0 0.0
    %1928 = vmatprep.subr.mxu0 0.0
    %1929 = vmatpush2.msra.mxu0 0.0
    %1930 = vmatprep.subr.mxu0 0.0
    %1931 = vmatpush2.msra.mxu0 0.0
    %1932 = vmatprep.subr.mxu0 0.0
    %1933 = vmatpush2.msra.mxu0 0.0
    %1934 = vmatprep.subr.mxu0 0.0
    %1935 = vmatpush2.msra.mxu0 0.0
    %1936 = vmatprep.subr.mxu0 0.0
    %1937 = vmatpush2.msra.mxu0 0.0
    %1938 = vmatprep.subr.mxu0 0.0
    %1939 = vmatpush2.msra.mxu0 0.0
    %1940 = vmatprep.subr.mxu0 0.0
    %1941 = vmatpush2.msra.mxu0 0.0
    %1942 = vmatprep.mubr.f32.mxu0 0.0
    %1943 = vmatmul.mubr.f32.gmra.mxu0 %v1443
    %v1944 = vpop.f32.mrf.mxu0
    %v1945 = vadd.f32 0.0, %v1944
    %v1946 = vpop.f32.mrf.mxu0
    %v1947 = vadd.f32 0.0, %v1946
    %1948 = vdwg.mxu0
    %1949 = vmatprep.subr.mxu0 %v1740
    %1950 = vmatpush1.msra.mxu0 %v1739
    %1951 = vmatprep.subr.mxu0 %v1736
    %1952 = vmatpush1.msra.mxu0 %v1735
    %1953 = vmatprep.subr.mxu0 %v1732
    %1954 = vmatpush1.msra.mxu0 %v1731
    %1955 = vmatprep.subr.mxu0 %v1728
    %1956 = vmatpush1.msra.mxu0 %v1727
    %1957 = vmatprep.subr.mxu0 %v1724
    %1958 = vmatpush1.msra.mxu0 %v1723
    %1959 = vmatprep.subr.mxu0 %v1720
    %1960 = vmatpush1.msra.mxu0 %v1719
    %1961 = vmatprep.subr.mxu0 %v1716
    %1962 = vmatpush1.msra.mxu0 %v1715
    %1963 = vmatprep.subr.mxu0 %v1712
    %1964 = vmatpush1.msra.mxu0 %v1711
    %1965 = vmatprep.subr.mxu0 %v1708
    %1966 = vmatpush1.msra.mxu0 %v1707
    %1967 = vmatprep.subr.mxu0 %v1704
    %1968 = vmatpush1.msra.mxu0 %v1703
    %1969 = vmatprep.subr.mxu0 %v1700
    %1970 = vmatpush1.msra.mxu0 %v1699
    %1971 = vmatprep.subr.mxu0 %v1696
    %1972 = vmatpush1.msra.mxu0 %v1695
    %1973 = vmatprep.subr.mxu0 %v1692
    %1974 = vmatpush1.msra.mxu0 %v1691
    %1975 = vmatprep.subr.mxu0 %v1688
    %1976 = vmatpush1.msra.mxu0 %v1687
    %1977 = vmatprep.subr.mxu0 %v1684
    %1978 = vmatpush1.msra.mxu0 %v1683
    %1979 = vmatprep.subr.mxu0 %v1680
    %1980 = vmatpush1.msra.mxu0 %v1679
    %1981 = vmatprep.subr.mxu0 0.0
    %1982 = vmatpush2.msra.mxu0 0.0
    %1983 = vmatprep.subr.mxu0 0.0
    %1984 = vmatpush2.msra.mxu0 0.0
    %1985 = vmatprep.subr.mxu0 0.0
    %1986 = vmatpush2.msra.mxu0 0.0
    %1987 = vmatprep.subr.mxu0 0.0
    %1988 = vmatpush2.msra.mxu0 0.0
    %1989 = vmatprep.subr.mxu0 0.0
    %1990 = vmatpush2.msra.mxu0 0.0
    %1991 = vmatprep.subr.mxu0 0.0
    %1992 = vmatpush2.msra.mxu0 0.0
    %1993 = vmatprep.subr.mxu0 0.0
    %1994 = vmatpush2.msra.mxu0 0.0
    %1995 = vmatprep.subr.mxu0 0.0
    %1996 = vmatpush2.msra.mxu0 0.0
    %1997 = vmatprep.subr.mxu0 0.0
    %1998 = vmatpush2.msra.mxu0 0.0
    %1999 = vmatprep.subr.mxu0 0.0
    %2000 = vmatpush2.msra.mxu0 0.0
    %2001 = vmatprep.subr.mxu0 0.0
    %2002 = vmatpush2.msra.mxu0 0.0
    %2003 = vmatprep.subr.mxu0 0.0
    %2004 = vmatpush2.msra.mxu0 0.0
    %2005 = vmatprep.subr.mxu0 0.0
    %2006 = vmatpush2.msra.mxu0 0.0
    %2007 = vmatprep.subr.mxu0 0.0
    %2008 = vmatpush2.msra.mxu0 0.0
    %2009 = vmatprep.subr.mxu0 0.0
    %2010 = vmatpush2.msra.mxu0 0.0
    %2011 = vmatprep.subr.mxu0 0.0
    %2012 = vmatpush2.msra.mxu0 0.0
    %2013 = vmatprep.mubr.f32.mxu0 0.0
    %2014 = vmatmul.mubr.f32.gmra.mxu0 %v1678
    %v2015 = vpop.f32.mrf.mxu0
    %v2016 = vadd.f32 %v1874, %v2015
    %v2017 = vpop.f32.mrf.mxu0
    %v2018 = vadd.f32 %v1876, %v2017
    %2019 = vdwg.mxu0
    %2020 = vmatprep.subr.mxu0 %v1742
    %2021 = vmatpush1.msra.mxu0 %v1741
    %2022 = vmatprep.subr.mxu0 %v1738
    %2023 = vmatpush1.msra.mxu0 %v1737
    %2024 = vmatprep.subr.mxu0 %v1734
    %2025 = vmatpush1.msra.mxu0 %v1733
    %2026 = vmatprep.subr.mxu0 %v1730
    %2027 = vmatpush1.msra.mxu0 %v1729
    %2028 = vmatprep.subr.mxu0 %v1726
    %2029 = vmatpush1.msra.mxu0 %v1725
    %2030 = vmatprep.subr.mxu0 %v1722
    %2031 = vmatpush1.msra.mxu0 %v1721
    %2032 = vmatprep.subr.mxu0 %v1718
    %2033 = vmatpush1.msra.mxu0 %v1717
    %2034 = vmatprep.subr.mxu0 %v1714
    %2035 = vmatpush1.msra.mxu0 %v1713
    %2036 = vmatprep.subr.mxu0 %v1710
    %2037 = vmatpush1.msra.mxu0 %v1709
    %2038 = vmatprep.subr.mxu0 %v1706
    %2039 = vmatpush1.msra.mxu0 %v1705
    %2040 = vmatprep.subr.mxu0 %v1702
    %2041 = vmatpush1.msra.mxu0 %v1701
    %2042 = vmatprep.subr.mxu0 %v1698
    %2043 = vmatpush1.msra.mxu0 %v1697
    %2044 = vmatprep.subr.mxu0 %v1694
    %2045 = vmatpush1.msra.mxu0 %v1693
    %2046 = vmatprep.subr.mxu0 %v1690
    %2047 = vmatpush1.msra.mxu0 %v1689
    %2048 = vmatprep.subr.mxu0 %v1686
    %2049 = vmatpush1.msra.mxu0 %v1685
    %2050 = vmatprep.subr.mxu0 %v1682
    %2051 = vmatpush1.msra.mxu0 %v1681
    %2052 = vmatprep.subr.mxu0 0.0
    %2053 = vmatpush2.msra.mxu0 0.0
    %2054 = vmatprep.subr.mxu0 0.0
    %2055 = vmatpush2.msra.mxu0 0.0
    %2056 = vmatprep.subr.mxu0 0.0
    %2057 = vmatpush2.msra.mxu0 0.0
    %2058 = vmatprep.subr.mxu0 0.0
    %2059 = vmatpush2.msra.mxu0 0.0
    %2060 = vmatprep.subr.mxu0 0.0
    %2061 = vmatpush2.msra.mxu0 0.0
    %2062 = vmatprep.subr.mxu0 0.0
    %2063 = vmatpush2.msra.mxu0 0.0
    %2064 = vmatprep.subr.mxu0 0.0
    %2065 = vmatpush2.msra.mxu0 0.0
    %2066 = vmatprep.subr.mxu0 0.0
    %2067 = vmatpush2.msra.mxu0 0.0
    %2068 = vmatprep.subr.mxu0 0.0
    %2069 = vmatpush2.msra.mxu0 0.0
    %2070 = vmatprep.subr.mxu0 0.0
    %2071 = vmatpush2.msra.mxu0 0.0
    %2072 = vmatprep.subr.mxu0 0.0
    %2073 = vmatpush2.msra.mxu0 0.0
    %2074 = vmatprep.subr.mxu0 0.0
    %2075 = vmatpush2.msra.mxu0 0.0
    %2076 = vmatprep.subr.mxu0 0.0
    %2077 = vmatpush2.msra.mxu0 0.0
    %2078 = vmatprep.subr.mxu0 0.0
    %2079 = vmatpush2.msra.mxu0 0.0
    %2080 = vmatprep.subr.mxu0 0.0
    %2081 = vmatpush2.msra.mxu0 0.0
    %2082 = vmatprep.subr.mxu0 0.0
    %2083 = vmatpush2.msra.mxu0 0.0
    %2084 = vmatprep.mubr.f32.mxu0 0.0
    %2085 = vmatmul.mubr.f32.gmra.mxu0 %v1678
    %v2086 = vpop.f32.mrf.mxu0
    %v2087 = vadd.f32 %v1945, %v2086
    %v2088 = vpop.f32.mrf.mxu0
    %v2089 = vadd.f32 %v1947, %v2088
    %2090 = vdwg.mxu0
    %v2091 = vadd.f32 %v2016, %v89
    %v2092 = vadd.f32 %v2018, %v93
    %v2093 = vadd.f32 %v2087, %v97
    %v2094 = vadd.f32 %v2089, %v101
    %v2095 = vmul.f32 %v2091, 0.5
    %v2096 = vtanh.pop %v2095
    %v2097 = vadd.f32 %v2096, 1.0
    %v2098 = vmul.f32 %v2097, 0.5
    %v2099 = vmul.f32 %v2092, 0.5
    %v2100 = vtanh.pop %v2099
    %v2101 = vadd.f32 %v2100, 1.0
    %v2102 = vmul.f32 %v2101, 0.5
    %v2103 = vtanh.pop %v2093
    %v2104 = vmul.f32 %v2094, 0.5
    %v2105 = vtanh.pop %v2104
    %v2106 = vadd.f32 %v2105, 1.0
    %v2107 = vmul.f32 %v2106, 0.5
    %v2108 = vmul.f32 %v2102, %v1441
    %v2109 = vmul.f32 %v2098, %v2103
    %v2110 = vadd.f32 %v2108, %v2109
    %v2111 = vtanh.pop %v2110
    %v2112 = vmul.f32 %v2107, %v2111
    %s2113 = scalar_lea.vmem [#allocation14], 16
    %2114 = vst [vmem:[%s2113] sm:$0xff] %v2112
    %s2115 = scalar_lea.vmem [#allocation6], 96
    %v2116 = vld [vmem:[%s2115] sm:$0xff]
    %v2117 = vld [vmem:[%s2115 + $0x8] sm:$0xff]
    %v2118 = vld [vmem:[%s2115 + $0x10] sm:$0xff]
    %v2119 = vld [vmem:[%s2115 + $0x18] sm:$0xff]
    %v2120 = vld [vmem:[#allocation9] sm:$0xff]
    %v2121 = vld [vmem:[#allocation9 + $0x8] sm:$0xff]
    %v2122 = vld [vmem:[#allocation9 + $0x10] sm:$0xff]
    %v2123 = vld [vmem:[#allocation9 + $0x18] sm:$0xff]
    %v2124 = vld [vmem:[#allocation9 + $0x20] sm:$0xff]
    %v2125 = vld [vmem:[#allocation9 + $0x28] sm:$0xff]
    %v2126 = vld [vmem:[#allocation9 + $0x30] sm:$0xff]
    %v2127 = vld [vmem:[#allocation9 + $0x38] sm:$0xff]
    %v2128 = vld [vmem:[#allocation9 + $0x40] sm:$0xff]
    %v2129 = vld [vmem:[#allocation9 + $0x48] sm:$0xff]
    %v2130 = vld [vmem:[#allocation9 + $0x50] sm:$0xff]
    %v2131 = vld [vmem:[#allocation9 + $0x58] sm:$0xff]
    %v2132 = vld [vmem:[#allocation9 + $0x60] sm:$0xff]
    %v2133 = vld [vmem:[#allocation9 + $0x68] sm:$0xff]
    %v2134 = vld [vmem:[#allocation9 + $0x70] sm:$0xff]
    %v2135 = vld [vmem:[#allocation9 + $0x78] sm:$0xff]
    %v2136 = vld [vmem:[#allocation9 + $0x80] sm:$0xff]
    %v2137 = vld [vmem:[#allocation9 + $0x88] sm:$0xff]
    %v2138 = vld [vmem:[#allocation9 + $0x90] sm:$0xff]
    %v2139 = vld [vmem:[#allocation9 + $0x98] sm:$0xff]
    %v2140 = vld [vmem:[#allocation9 + $0xa0] sm:$0xff]
    %v2141 = vld [vmem:[#allocation9 + $0xa8] sm:$0xff]
    %v2142 = vld [vmem:[#allocation9 + $0xb0] sm:$0xff]
    %v2143 = vld [vmem:[#allocation9 + $0xb8] sm:$0xff]
    %v2144 = vld [vmem:[#allocation9 + $0xc0] sm:$0xff]
    %v2145 = vld [vmem:[#allocation9 + $0xc8] sm:$0xff]
    %v2146 = vld [vmem:[#allocation9 + $0xd0] sm:$0xff]
    %v2147 = vld [vmem:[#allocation9 + $0xd8] sm:$0xff]
    %v2148 = vld [vmem:[#allocation9 + $0xe0] sm:$0xff]
    %v2149 = vld [vmem:[#allocation9 + $0xe8] sm:$0xff]
    %v2150 = vld [vmem:[#allocation9 + $0xf0] sm:$0xff]
    %v2151 = vld [vmem:[#allocation9 + $0xf8] sm:$0xff]
    %v2152 = vld [vmem:[#allocation9 + $0x100] sm:$0xff]
    %v2153 = vld [vmem:[#allocation9 + $0x108] sm:$0xff]
    %v2154 = vld [vmem:[#allocation9 + $0x110] sm:$0xff]
    %v2155 = vld [vmem:[#allocation9 + $0x118] sm:$0xff]
    %v2156 = vld [vmem:[#allocation9 + $0x120] sm:$0xff]
    %v2157 = vld [vmem:[#allocation9 + $0x128] sm:$0xff]
    %v2158 = vld [vmem:[#allocation9 + $0x130] sm:$0xff]
    %v2159 = vld [vmem:[#allocation9 + $0x138] sm:$0xff]
    %v2160 = vld [vmem:[#allocation9 + $0x140] sm:$0xff]
    %v2161 = vld [vmem:[#allocation9 + $0x148] sm:$0xff]
    %v2162 = vld [vmem:[#allocation9 + $0x150] sm:$0xff]
    %v2163 = vld [vmem:[#allocation9 + $0x158] sm:$0xff]
    %v2164 = vld [vmem:[#allocation9 + $0x160] sm:$0xff]
    %v2165 = vld [vmem:[#allocation9 + $0x168] sm:$0xff]
    %v2166 = vld [vmem:[#allocation9 + $0x170] sm:$0xff]
    %v2167 = vld [vmem:[#allocation9 + $0x178] sm:$0xff]
    %v2168 = vld [vmem:[#allocation9 + $0x180] sm:$0xff]
    %v2169 = vld [vmem:[#allocation9 + $0x188] sm:$0xff]
    %v2170 = vld [vmem:[#allocation9 + $0x190] sm:$0xff]
    %v2171 = vld [vmem:[#allocation9 + $0x198] sm:$0xff]
    %v2172 = vld [vmem:[#allocation9 + $0x1a0] sm:$0xff]
    %v2173 = vld [vmem:[#allocation9 + $0x1a8] sm:$0xff]
    %v2174 = vld [vmem:[#allocation9 + $0x1b0] sm:$0xff]
    %v2175 = vld [vmem:[#allocation9 + $0x1b8] sm:$0xff]
    %v2176 = vld [vmem:[#allocation9 + $0x1c0] sm:$0xff]
    %v2177 = vld [vmem:[#allocation9 + $0x1c8] sm:$0xff]
    %v2178 = vld [vmem:[#allocation9 + $0x1d0] sm:$0xff]
    %v2179 = vld [vmem:[#allocation9 + $0x1d8] sm:$0xff]
    %v2180 = vld [vmem:[#allocation9 + $0x1e0] sm:$0xff]
    %v2181 = vld [vmem:[#allocation9 + $0x1e8] sm:$0xff]
    %v2182 = vld [vmem:[#allocation9 + $0x1f0] sm:$0xff]
    %v2183 = vld [vmem:[#allocation9 + $0x1f8] sm:$0xff]
    %2184 = vmatprep.subr.mxu0 %v2181
    %2185 = vmatpush1.msra.mxu0 %v2180
    %2186 = vmatprep.subr.mxu0 %v2177
    %2187 = vmatpush1.msra.mxu0 %v2176
    %2188 = vmatprep.subr.mxu0 %v2173
    %2189 = vmatpush1.msra.mxu0 %v2172
    %2190 = vmatprep.subr.mxu0 %v2169
    %2191 = vmatpush1.msra.mxu0 %v2168
    %2192 = vmatprep.subr.mxu0 %v2165
    %2193 = vmatpush1.msra.mxu0 %v2164
    %2194 = vmatprep.subr.mxu0 %v2161
    %2195 = vmatpush1.msra.mxu0 %v2160
    %2196 = vmatprep.subr.mxu0 %v2157
    %2197 = vmatpush1.msra.mxu0 %v2156
    %2198 = vmatprep.subr.mxu0 %v2153
    %2199 = vmatpush1.msra.mxu0 %v2152
    %2200 = vmatprep.subr.mxu0 %v2149
    %2201 = vmatpush1.msra.mxu0 %v2148
    %2202 = vmatprep.subr.mxu0 %v2145
    %2203 = vmatpush1.msra.mxu0 %v2144
    %2204 = vmatprep.subr.mxu0 %v2141
    %2205 = vmatpush1.msra.mxu0 %v2140
    %2206 = vmatprep.subr.mxu0 %v2137
    %2207 = vmatpush1.msra.mxu0 %v2136
    %2208 = vmatprep.subr.mxu0 %v2133
    %2209 = vmatpush1.msra.mxu0 %v2132
    %2210 = vmatprep.subr.mxu0 %v2129
    %2211 = vmatpush1.msra.mxu0 %v2128
    %2212 = vmatprep.subr.mxu0 %v2125
    %2213 = vmatpush1.msra.mxu0 %v2124
    %2214 = vmatprep.subr.mxu0 %v2121
    %2215 = vmatpush1.msra.mxu0 %v2120
    %2216 = vmatprep.subr.mxu0 0.0
    %2217 = vmatpush2.msra.mxu0 0.0
    %2218 = vmatprep.subr.mxu0 0.0
    %2219 = vmatpush2.msra.mxu0 0.0
    %2220 = vmatprep.subr.mxu0 0.0
    %2221 = vmatpush2.msra.mxu0 0.0
    %2222 = vmatprep.subr.mxu0 0.0
    %2223 = vmatpush2.msra.mxu0 0.0
    %2224 = vmatprep.subr.mxu0 0.0
    %2225 = vmatpush2.msra.mxu0 0.0
    %2226 = vmatprep.subr.mxu0 0.0
    %2227 = vmatpush2.msra.mxu0 0.0
    %2228 = vmatprep.subr.mxu0 0.0
    %2229 = vmatpush2.msra.mxu0 0.0
    %2230 = vmatprep.subr.mxu0 0.0
    %2231 = vmatpush2.msra.mxu0 0.0
    %2232 = vmatprep.subr.mxu0 0.0
    %2233 = vmatpush2.msra.mxu0 0.0
    %2234 = vmatprep.subr.mxu0 0.0
    %2235 = vmatpush2.msra.mxu0 0.0
    %2236 = vmatprep.subr.mxu0 0.0
    %2237 = vmatpush2.msra.mxu0 0.0
    %2238 = vmatprep.subr.mxu0 0.0
    %2239 = vmatpush2.msra.mxu0 0.0
    %2240 = vmatprep.subr.mxu0 0.0
    %2241 = vmatpush2.msra.mxu0 0.0
    %2242 = vmatprep.subr.mxu0 0.0
    %2243 = vmatpush2.msra.mxu0 0.0
    %2244 = vmatprep.subr.mxu0 0.0
    %2245 = vmatpush2.msra.mxu0 0.0
    %2246 = vmatprep.subr.mxu0 0.0
    %2247 = vmatpush2.msra.mxu0 0.0
    %2248 = vmatprep.mubr.f32.mxu0 0.0
    %2249 = vmatmul.mubr.f32.gmra.mxu0 %v1678
    %v2250 = vpop.f32.mrf.mxu0
    %v2251 = vadd.f32 0.0, %v2250
    %v2252 = vpop.f32.mrf.mxu0
    %v2253 = vadd.f32 0.0, %v2252
    %2254 = vdwg.mxu0
    %2255 = vmatprep.subr.mxu0 %v2183
    %2256 = vmatpush1.msra.mxu0 %v2182
    %2257 = vmatprep.subr.mxu0 %v2179
    %2258 = vmatpush1.msra.mxu0 %v2178
    %2259 = vmatprep.subr.mxu0 %v2175
    %2260 = vmatpush1.msra.mxu0 %v2174
    %2261 = vmatprep.subr.mxu0 %v2171
    %2262 = vmatpush1.msra.mxu0 %v2170
    %2263 = vmatprep.subr.mxu0 %v2167
    %2264 = vmatpush1.msra.mxu0 %v2166
    %2265 = vmatprep.subr.mxu0 %v2163
    %2266 = vmatpush1.msra.mxu0 %v2162
    %2267 = vmatprep.subr.mxu0 %v2159
    %2268 = vmatpush1.msra.mxu0 %v2158
    %2269 = vmatprep.subr.mxu0 %v2155
    %2270 = vmatpush1.msra.mxu0 %v2154
    %2271 = vmatprep.subr.mxu0 %v2151
    %2272 = vmatpush1.msra.mxu0 %v2150
    %2273 = vmatprep.subr.mxu0 %v2147
    %2274 = vmatpush1.msra.mxu0 %v2146
    %2275 = vmatprep.subr.mxu0 %v2143
    %2276 = vmatpush1.msra.mxu0 %v2142
    %2277 = vmatprep.subr.mxu0 %v2139
    %2278 = vmatpush1.msra.mxu0 %v2138
    %2279 = vmatprep.subr.mxu0 %v2135
    %2280 = vmatpush1.msra.mxu0 %v2134
    %2281 = vmatprep.subr.mxu0 %v2131
    %2282 = vmatpush1.msra.mxu0 %v2130
    %2283 = vmatprep.subr.mxu0 %v2127
    %2284 = vmatpush1.msra.mxu0 %v2126
    %2285 = vmatprep.subr.mxu0 %v2123
    %2286 = vmatpush1.msra.mxu0 %v2122
    %2287 = vmatprep.subr.mxu0 0.0
    %2288 = vmatpush2.msra.mxu0 0.0
    %2289 = vmatprep.subr.mxu0 0.0
    %2290 = vmatpush2.msra.mxu0 0.0
    %2291 = vmatprep.subr.mxu0 0.0
    %2292 = vmatpush2.msra.mxu0 0.0
    %2293 = vmatprep.subr.mxu0 0.0
    %2294 = vmatpush2.msra.mxu0 0.0
    %2295 = vmatprep.subr.mxu0 0.0
    %2296 = vmatpush2.msra.mxu0 0.0
    %2297 = vmatprep.subr.mxu0 0.0
    %2298 = vmatpush2.msra.mxu0 0.0
    %2299 = vmatprep.subr.mxu0 0.0
    %2300 = vmatpush2.msra.mxu0 0.0
    %2301 = vmatprep.subr.mxu0 0.0
    %2302 = vmatpush2.msra.mxu0 0.0
    %2303 = vmatprep.subr.mxu0 0.0
    %2304 = vmatpush2.msra.mxu0 0.0
    %2305 = vmatprep.subr.mxu0 0.0
    %2306 = vmatpush2.msra.mxu0 0.0
    %2307 = vmatprep.subr.mxu0 0.0
    %2308 = vmatpush2.msra.mxu0 0.0
    %2309 = vmatprep.subr.mxu0 0.0
    %2310 = vmatpush2.msra.mxu0 0.0
    %2311 = vmatprep.subr.mxu0 0.0
    %2312 = vmatpush2.msra.mxu0 0.0
    %2313 = vmatprep.subr.mxu0 0.0
    %2314 = vmatpush2.msra.mxu0 0.0
    %2315 = vmatprep.subr.mxu0 0.0
    %2316 = vmatpush2.msra.mxu0 0.0
    %2317 = vmatprep.subr.mxu0 0.0
    %2318 = vmatpush2.msra.mxu0 0.0
    %2319 = vmatprep.mubr.f32.mxu0 0.0
    %2320 = vmatmul.mubr.f32.gmra.mxu0 %v1678
    %v2321 = vpop.f32.mrf.mxu0
    %v2322 = vadd.f32 0.0, %v2321
    %v2323 = vpop.f32.mrf.mxu0
    %v2324 = vadd.f32 0.0, %v2323
    %2325 = vdwg.mxu0
    %v2326 = vadd.f32 %v2116, %v2251
    %v2327 = vadd.f32 %v2117, %v2253
    %v2328 = vadd.f32 %v2118, %v2322
    %v2329 = vadd.f32 %v2119, %v2324
    %v2330 = vmul.f32 %v2326, 0.5
    %v2331 = vtanh.pop %v2330
    %v2332 = vadd.f32 %v2331, 1.0
    %v2333 = vmul.f32 %v2332, 0.5
    %v2334 = vmul.f32 %v2327, 0.5
    %v2335 = vtanh.pop %v2334
    %v2336 = vadd.f32 %v2335, 1.0
    %v2337 = vmul.f32 %v2336, 0.5
    %v2338 = vtanh.pop %v2328
    %v2339 = vmul.f32 %v2329, 0.5
    %v2340 = vtanh.pop %v2339
    %v2341 = vadd.f32 %v2340, 1.0
    %v2342 = vmul.f32 %v2341, 0.5
    %v2343 = vmul.f32 %v2337, %v1676
    %v2344 = vmul.f32 %v2333, %v2338
    %v2345 = vadd.f32 %v2343, %v2344
    %v2346 = vtanh.pop %v2345
    %v2347 = vmul.f32 %v2342, %v2346
    %v2348 = vld [vmem:[#allocation11] sm:$0xff]
    %v2349 = vld [vmem:[#allocation11 + $0x8] sm:$0xff]
    %v2350 = vld [vmem:[#allocation11 + $0x10] sm:$0xff]
    %v2351 = vld [vmem:[#allocation11 + $0x18] sm:$0xff]
    %v2352 = vld [vmem:[#allocation11 + $0x20] sm:$0xff]
    %v2353 = vld [vmem:[#allocation11 + $0x28] sm:$0xff]
    %v2354 = vld [vmem:[#allocation11 + $0x30] sm:$0xff]
    %v2355 = vld [vmem:[#allocation11 + $0x38] sm:$0xff]
    %v2356 = vld [vmem:[#allocation11 + $0x40] sm:$0xff]
    %v2357 = vld [vmem:[#allocation11 + $0x48] sm:$0xff]
    %v2358 = vld [vmem:[#allocation11 + $0x50] sm:$0xff]
    %v2359 = vld [vmem:[#allocation11 + $0x58] sm:$0xff]
    %v2360 = vld [vmem:[#allocation11 + $0x60] sm:$0xff]
    %v2361 = vld [vmem:[#allocation11 + $0x68] sm:$0xff]
    %v2362 = vld [vmem:[#allocation11 + $0x70] sm:$0xff]
    %v2363 = vld [vmem:[#allocation11 + $0x78] sm:$0xff]
    %v2364 = vld [vmem:[#allocation11 + $0x80] sm:$0xff]
    %v2365 = vld [vmem:[#allocation11 + $0x88] sm:$0xff]
    %v2366 = vld [vmem:[#allocation11 + $0x90] sm:$0xff]
    %v2367 = vld [vmem:[#allocation11 + $0x98] sm:$0xff]
    %v2368 = vld [vmem:[#allocation11 + $0xa0] sm:$0xff]
    %v2369 = vld [vmem:[#allocation11 + $0xa8] sm:$0xff]
    %v2370 = vld [vmem:[#allocation11 + $0xb0] sm:$0xff]
    %v2371 = vld [vmem:[#allocation11 + $0xb8] sm:$0xff]
    %v2372 = vld [vmem:[#allocation11 + $0xc0] sm:$0xff]
    %v2373 = vld [vmem:[#allocation11 + $0xc8] sm:$0xff]
    %v2374 = vld [vmem:[#allocation11 + $0xd0] sm:$0xff]
    %v2375 = vld [vmem:[#allocation11 + $0xd8] sm:$0xff]
    %v2376 = vld [vmem:[#allocation11 + $0xe0] sm:$0xff]
    %v2377 = vld [vmem:[#allocation11 + $0xe8] sm:$0xff]
    %v2378 = vld [vmem:[#allocation11 + $0xf0] sm:$0xff]
    %v2379 = vld [vmem:[#allocation11 + $0xf8] sm:$0xff]
    %v2380 = vld [vmem:[#allocation11 + $0x100] sm:$0xff]
    %v2381 = vld [vmem:[#allocation11 + $0x108] sm:$0xff]
    %v2382 = vld [vmem:[#allocation11 + $0x110] sm:$0xff]
    %v2383 = vld [vmem:[#allocation11 + $0x118] sm:$0xff]
    %v2384 = vld [vmem:[#allocation11 + $0x120] sm:$0xff]
    %v2385 = vld [vmem:[#allocation11 + $0x128] sm:$0xff]
    %v2386 = vld [vmem:[#allocation11 + $0x130] sm:$0xff]
    %v2387 = vld [vmem:[#allocation11 + $0x138] sm:$0xff]
    %v2388 = vld [vmem:[#allocation11 + $0x140] sm:$0xff]
    %v2389 = vld [vmem:[#allocation11 + $0x148] sm:$0xff]
    %v2390 = vld [vmem:[#allocation11 + $0x150] sm:$0xff]
    %v2391 = vld [vmem:[#allocation11 + $0x158] sm:$0xff]
    %v2392 = vld [vmem:[#allocation11 + $0x160] sm:$0xff]
    %v2393 = vld [vmem:[#allocation11 + $0x168] sm:$0xff]
    %v2394 = vld [vmem:[#allocation11 + $0x170] sm:$0xff]
    %v2395 = vld [vmem:[#allocation11 + $0x178] sm:$0xff]
    %v2396 = vld [vmem:[#allocation11 + $0x180] sm:$0xff]
    %v2397 = vld [vmem:[#allocation11 + $0x188] sm:$0xff]
    %v2398 = vld [vmem:[#allocation11 + $0x190] sm:$0xff]
    %v2399 = vld [vmem:[#allocation11 + $0x198] sm:$0xff]
    %v2400 = vld [vmem:[#allocation11 + $0x1a0] sm:$0xff]
    %v2401 = vld [vmem:[#allocation11 + $0x1a8] sm:$0xff]
    %v2402 = vld [vmem:[#allocation11 + $0x1b0] sm:$0xff]
    %v2403 = vld [vmem:[#allocation11 + $0x1b8] sm:$0xff]
    %v2404 = vld [vmem:[#allocation11 + $0x1c0] sm:$0xff]
    %v2405 = vld [vmem:[#allocation11 + $0x1c8] sm:$0xff]
    %v2406 = vld [vmem:[#allocation11 + $0x1d0] sm:$0xff]
    %v2407 = vld [vmem:[#allocation11 + $0x1d8] sm:$0xff]
    %v2408 = vld [vmem:[#allocation11 + $0x1e0] sm:$0xff]
    %v2409 = vld [vmem:[#allocation11 + $0x1e8] sm:$0xff]
    %v2410 = vld [vmem:[#allocation11 + $0x1f0] sm:$0xff]
    %v2411 = vld [vmem:[#allocation11 + $0x1f8] sm:$0xff]
    %v2412 = vld [vmem:[#allocation12] sm:$0xff]
    %v2413 = vld [vmem:[#allocation12 + $0x8] sm:$0xff]
    %v2414 = vld [vmem:[#allocation12 + $0x10] sm:$0xff]
    %v2415 = vld [vmem:[#allocation12 + $0x18] sm:$0xff]
    %v2416 = vld [vmem:[#allocation12 + $0x20] sm:$0xff]
    %v2417 = vld [vmem:[#allocation12 + $0x28] sm:$0xff]
    %v2418 = vld [vmem:[#allocation12 + $0x30] sm:$0xff]
    %v2419 = vld [vmem:[#allocation12 + $0x38] sm:$0xff]
    %v2420 = vld [vmem:[#allocation12 + $0x40] sm:$0xff]
    %v2421 = vld [vmem:[#allocation12 + $0x48] sm:$0xff]
    %v2422 = vld [vmem:[#allocation12 + $0x50] sm:$0xff]
    %v2423 = vld [vmem:[#allocation12 + $0x58] sm:$0xff]
    %v2424 = vld [vmem:[#allocation12 + $0x60] sm:$0xff]
    %v2425 = vld [vmem:[#allocation12 + $0x68] sm:$0xff]
    %v2426 = vld [vmem:[#allocation12 + $0x70] sm:$0xff]
    %v2427 = vld [vmem:[#allocation12 + $0x78] sm:$0xff]
    %v2428 = vld [vmem:[#allocation12 + $0x80] sm:$0xff]
    %v2429 = vld [vmem:[#allocation12 + $0x88] sm:$0xff]
    %v2430 = vld [vmem:[#allocation12 + $0x90] sm:$0xff]
    %v2431 = vld [vmem:[#allocation12 + $0x98] sm:$0xff]
    %v2432 = vld [vmem:[#allocation12 + $0xa0] sm:$0xff]
    %v2433 = vld [vmem:[#allocation12 + $0xa8] sm:$0xff]
    %v2434 = vld [vmem:[#allocation12 + $0xb0] sm:$0xff]
    %v2435 = vld [vmem:[#allocation12 + $0xb8] sm:$0xff]
    %v2436 = vld [vmem:[#allocation12 + $0xc0] sm:$0xff]
    %v2437 = vld [vmem:[#allocation12 + $0xc8] sm:$0xff]
    %v2438 = vld [vmem:[#allocation12 + $0xd0] sm:$0xff]
    %v2439 = vld [vmem:[#allocation12 + $0xd8] sm:$0xff]
    %v2440 = vld [vmem:[#allocation12 + $0xe0] sm:$0xff]
    %v2441 = vld [vmem:[#allocation12 + $0xe8] sm:$0xff]
    %v2442 = vld [vmem:[#allocation12 + $0xf0] sm:$0xff]
    %v2443 = vld [vmem:[#allocation12 + $0xf8] sm:$0xff]
    %v2444 = vld [vmem:[#allocation12 + $0x100] sm:$0xff]
    %v2445 = vld [vmem:[#allocation12 + $0x108] sm:$0xff]
    %v2446 = vld [vmem:[#allocation12 + $0x110] sm:$0xff]
    %v2447 = vld [vmem:[#allocation12 + $0x118] sm:$0xff]
    %v2448 = vld [vmem:[#allocation12 + $0x120] sm:$0xff]
    %v2449 = vld [vmem:[#allocation12 + $0x128] sm:$0xff]
    %v2450 = vld [vmem:[#allocation12 + $0x130] sm:$0xff]
    %v2451 = vld [vmem:[#allocation12 + $0x138] sm:$0xff]
    %v2452 = vld [vmem:[#allocation12 + $0x140] sm:$0xff]
    %v2453 = vld [vmem:[#allocation12 + $0x148] sm:$0xff]
    %v2454 = vld [vmem:[#allocation12 + $0x150] sm:$0xff]
    %v2455 = vld [vmem:[#allocation12 + $0x158] sm:$0xff]
    %v2456 = vld [vmem:[#allocation12 + $0x160] sm:$0xff]
    %v2457 = vld [vmem:[#allocation12 + $0x168] sm:$0xff]
    %v2458 = vld [vmem:[#allocation12 + $0x170] sm:$0xff]
    %v2459 = vld [vmem:[#allocation12 + $0x178] sm:$0xff]
    %v2460 = vld [vmem:[#allocation12 + $0x180] sm:$0xff]
    %v2461 = vld [vmem:[#allocation12 + $0x188] sm:$0xff]
    %v2462 = vld [vmem:[#allocation12 + $0x190] sm:$0xff]
    %v2463 = vld [vmem:[#allocation12 + $0x198] sm:$0xff]
    %v2464 = vld [vmem:[#allocation12 + $0x1a0] sm:$0xff]
    %v2465 = vld [vmem:[#allocation12 + $0x1a8] sm:$0xff]
    %v2466 = vld [vmem:[#allocation12 + $0x1b0] sm:$0xff]
    %v2467 = vld [vmem:[#allocation12 + $0x1b8] sm:$0xff]
    %v2468 = vld [vmem:[#allocation12 + $0x1c0] sm:$0xff]
    %v2469 = vld [vmem:[#allocation12 + $0x1c8] sm:$0xff]
    %v2470 = vld [vmem:[#allocation12 + $0x1d0] sm:$0xff]
    %v2471 = vld [vmem:[#allocation12 + $0x1d8] sm:$0xff]
    %v2472 = vld [vmem:[#allocation12 + $0x1e0] sm:$0xff]
    %v2473 = vld [vmem:[#allocation12 + $0x1e8] sm:$0xff]
    %v2474 = vld [vmem:[#allocation12 + $0x1f0] sm:$0xff]
    %v2475 = vld [vmem:[#allocation12 + $0x1f8] sm:$0xff]
    %2476 = vmatprep.subr.mxu0 %v2473
    %2477 = vmatpush1.msra.mxu0 %v2472
    %2478 = vmatprep.subr.mxu0 %v2469
    %2479 = vmatpush1.msra.mxu0 %v2468
    %2480 = vmatprep.subr.mxu0 %v2465
    %2481 = vmatpush1.msra.mxu0 %v2464
    %2482 = vmatprep.subr.mxu0 %v2461
    %2483 = vmatpush1.msra.mxu0 %v2460
    %2484 = vmatprep.subr.mxu0 %v2457
    %2485 = vmatpush1.msra.mxu0 %v2456
    %2486 = vmatprep.subr.mxu0 %v2453
    %2487 = vmatpush1.msra.mxu0 %v2452
    %2488 = vmatprep.subr.mxu0 %v2449
    %2489 = vmatpush1.msra.mxu0 %v2448
    %2490 = vmatprep.subr.mxu0 %v2445
    %2491 = vmatpush1.msra.mxu0 %v2444
    %2492 = vmatprep.subr.mxu0 %v2441
    %2493 = vmatpush1.msra.mxu0 %v2440
    %2494 = vmatprep.subr.mxu0 %v2437
    %2495 = vmatpush1.msra.mxu0 %v2436
    %2496 = vmatprep.subr.mxu0 %v2433
    %2497 = vmatpush1.msra.mxu0 %v2432
    %2498 = vmatprep.subr.mxu0 %v2429
    %2499 = vmatpush1.msra.mxu0 %v2428
    %2500 = vmatprep.subr.mxu0 %v2425
    %2501 = vmatpush1.msra.mxu0 %v2424
    %2502 = vmatprep.subr.mxu0 %v2421
    %2503 = vmatpush1.msra.mxu0 %v2420
    %2504 = vmatprep.subr.mxu0 %v2417
    %2505 = vmatpush1.msra.mxu0 %v2416
    %2506 = vmatprep.subr.mxu0 %v2413
    %2507 = vmatpush1.msra.mxu0 %v2412
    %2508 = vmatprep.subr.mxu0 0.0
    %2509 = vmatpush2.msra.mxu0 0.0
    %2510 = vmatprep.subr.mxu0 0.0
    %2511 = vmatpush2.msra.mxu0 0.0
    %2512 = vmatprep.subr.mxu0 0.0
    %2513 = vmatpush2.msra.mxu0 0.0
    %2514 = vmatprep.subr.mxu0 0.0
    %2515 = vmatpush2.msra.mxu0 0.0
    %2516 = vmatprep.subr.mxu0 0.0
    %2517 = vmatpush2.msra.mxu0 0.0
    %2518 = vmatprep.subr.mxu0 0.0
    %2519 = vmatpush2.msra.mxu0 0.0
    %2520 = vmatprep.subr.mxu0 0.0
    %2521 = vmatpush2.msra.mxu0 0.0
    %2522 = vmatprep.subr.mxu0 0.0
    %2523 = vmatpush2.msra.mxu0 0.0
    %2524 = vmatprep.subr.mxu0 0.0
    %2525 = vmatpush2.msra.mxu0 0.0
    %2526 = vmatprep.subr.mxu0 0.0
    %2527 = vmatpush2.msra.mxu0 0.0
    %2528 = vmatprep.subr.mxu0 0.0
    %2529 = vmatpush2.msra.mxu0 0.0
    %2530 = vmatprep.subr.mxu0 0.0
    %2531 = vmatpush2.msra.mxu0 0.0
    %2532 = vmatprep.subr.mxu0 0.0
    %2533 = vmatpush2.msra.mxu0 0.0
    %2534 = vmatprep.subr.mxu0 0.0
    %2535 = vmatpush2.msra.mxu0 0.0
    %2536 = vmatprep.subr.mxu0 0.0
    %2537 = vmatpush2.msra.mxu0 0.0
    %2538 = vmatprep.subr.mxu0 0.0
    %2539 = vmatpush2.msra.mxu0 0.0
    %2540 = vmatprep.mubr.f32.mxu0 0.0
    %2541 = vmatmul.mubr.f32.gmra.mxu0 %v2112
    %v2542 = vpop.f32.mrf.mxu0
    %v2543 = vadd.f32 0.0, %v2542
    %v2544 = vpop.f32.mrf.mxu0
    %v2545 = vadd.f32 0.0, %v2544
    %2546 = vdwg.mxu0
    %2547 = vmatprep.subr.mxu0 %v2475
    %2548 = vmatpush1.msra.mxu0 %v2474
    %2549 = vmatprep.subr.mxu0 %v2471
    %2550 = vmatpush1.msra.mxu0 %v2470
    %2551 = vmatprep.subr.mxu0 %v2467
    %2552 = vmatpush1.msra.mxu0 %v2466
    %2553 = vmatprep.subr.mxu0 %v2463
    %2554 = vmatpush1.msra.mxu0 %v2462
    %2555 = vmatprep.subr.mxu0 %v2459
    %2556 = vmatpush1.msra.mxu0 %v2458
    %2557 = vmatprep.subr.mxu0 %v2455
    %2558 = vmatpush1.msra.mxu0 %v2454
    %2559 = vmatprep.subr.mxu0 %v2451
    %2560 = vmatpush1.msra.mxu0 %v2450
    %2561 = vmatprep.subr.mxu0 %v2447
    %2562 = vmatpush1.msra.mxu0 %v2446
    %2563 = vmatprep.subr.mxu0 %v2443
    %2564 = vmatpush1.msra.mxu0 %v2442
    %2565 = vmatprep.subr.mxu0 %v2439
    %2566 = vmatpush1.msra.mxu0 %v2438
    %2567 = vmatprep.subr.mxu0 %v2435
    %2568 = vmatpush1.msra.mxu0 %v2434
    %2569 = vmatprep.subr.mxu0 %v2431
    %2570 = vmatpush1.msra.mxu0 %v2430
    %2571 = vmatprep.subr.mxu0 %v2427
    %2572 = vmatpush1.msra.mxu0 %v2426
    %2573 = vmatprep.subr.mxu0 %v2423
    %2574 = vmatpush1.msra.mxu0 %v2422
    %2575 = vmatprep.subr.mxu0 %v2419
    %2576 = vmatpush1.msra.mxu0 %v2418
    %2577 = vmatprep.subr.mxu0 %v2415
    %2578 = vmatpush1.msra.mxu0 %v2414
    %2579 = vmatprep.subr.mxu0 0.0
    %2580 = vmatpush2.msra.mxu0 0.0
    %2581 = vmatprep.subr.mxu0 0.0
    %2582 = vmatpush2.msra.mxu0 0.0
    %2583 = vmatprep.subr.mxu0 0.0
    %2584 = vmatpush2.msra.mxu0 0.0
    %2585 = vmatprep.subr.mxu0 0.0
    %2586 = vmatpush2.msra.mxu0 0.0
    %2587 = vmatprep.subr.mxu0 0.0
    %2588 = vmatpush2.msra.mxu0 0.0
    %2589 = vmatprep.subr.mxu0 0.0
    %2590 = vmatpush2.msra.mxu0 0.0
    %2591 = vmatprep.subr.mxu0 0.0
    %2592 = vmatpush2.msra.mxu0 0.0
    %2593 = vmatprep.subr.mxu0 0.0
    %2594 = vmatpush2.msra.mxu0 0.0
    %2595 = vmatprep.subr.mxu0 0.0
    %2596 = vmatpush2.msra.mxu0 0.0
    %2597 = vmatprep.subr.mxu0 0.0
    %2598 = vmatpush2.msra.mxu0 0.0
    %2599 = vmatprep.subr.mxu0 0.0
    %2600 = vmatpush2.msra.mxu0 0.0
    %2601 = vmatprep.subr.mxu0 0.0
    %2602 = vmatpush2.msra.mxu0 0.0
    %2603 = vmatprep.subr.mxu0 0.0
    %2604 = vmatpush2.msra.mxu0 0.0
    %2605 = vmatprep.subr.mxu0 0.0
    %2606 = vmatpush2.msra.mxu0 0.0
    %2607 = vmatprep.subr.mxu0 0.0
    %2608 = vmatpush2.msra.mxu0 0.0
    %2609 = vmatprep.subr.mxu0 0.0
    %2610 = vmatpush2.msra.mxu0 0.0
    %2611 = vmatprep.mubr.f32.mxu0 0.0
    %2612 = vmatmul.mubr.f32.gmra.mxu0 %v2112
    %v2613 = vpop.f32.mrf.mxu0
    %v2614 = vadd.f32 0.0, %v2613
    %v2615 = vpop.f32.mrf.mxu0
    %v2616 = vadd.f32 0.0, %v2615
    %2617 = vdwg.mxu0
    %2618 = vmatprep.subr.mxu0 %v2409
    %2619 = vmatpush1.msra.mxu0 %v2408
    %2620 = vmatprep.subr.mxu0 %v2405
    %2621 = vmatpush1.msra.mxu0 %v2404
    %2622 = vmatprep.subr.mxu0 %v2401
    %2623 = vmatpush1.msra.mxu0 %v2400
    %2624 = vmatprep.subr.mxu0 %v2397
    %2625 = vmatpush1.msra.mxu0 %v2396
    %2626 = vmatprep.subr.mxu0 %v2393
    %2627 = vmatpush1.msra.mxu0 %v2392
    %2628 = vmatprep.subr.mxu0 %v2389
    %2629 = vmatpush1.msra.mxu0 %v2388
    %2630 = vmatprep.subr.mxu0 %v2385
    %2631 = vmatpush1.msra.mxu0 %v2384
    %2632 = vmatprep.subr.mxu0 %v2381
    %2633 = vmatpush1.msra.mxu0 %v2380
    %2634 = vmatprep.subr.mxu0 %v2377
    %2635 = vmatpush1.msra.mxu0 %v2376
    %2636 = vmatprep.subr.mxu0 %v2373
    %2637 = vmatpush1.msra.mxu0 %v2372
    %2638 = vmatprep.subr.mxu0 %v2369
    %2639 = vmatpush1.msra.mxu0 %v2368
    %2640 = vmatprep.subr.mxu0 %v2365
    %2641 = vmatpush1.msra.mxu0 %v2364
    %2642 = vmatprep.subr.mxu0 %v2361
    %2643 = vmatpush1.msra.mxu0 %v2360
    %2644 = vmatprep.subr.mxu0 %v2357
    %2645 = vmatpush1.msra.mxu0 %v2356
    %2646 = vmatprep.subr.mxu0 %v2353
    %2647 = vmatpush1.msra.mxu0 %v2352
    %2648 = vmatprep.subr.mxu0 %v2349
    %2649 = vmatpush1.msra.mxu0 %v2348
    %2650 = vmatprep.subr.mxu0 0.0
    %2651 = vmatpush2.msra.mxu0 0.0
    %2652 = vmatprep.subr.mxu0 0.0
    %2653 = vmatpush2.msra.mxu0 0.0
    %2654 = vmatprep.subr.mxu0 0.0
    %2655 = vmatpush2.msra.mxu0 0.0
    %2656 = vmatprep.subr.mxu0 0.0
    %2657 = vmatpush2.msra.mxu0 0.0
    %2658 = vmatprep.subr.mxu0 0.0
    %2659 = vmatpush2.msra.mxu0 0.0
    %2660 = vmatprep.subr.mxu0 0.0
    %2661 = vmatpush2.msra.mxu0 0.0
    %2662 = vmatprep.subr.mxu0 0.0
    %2663 = vmatpush2.msra.mxu0 0.0
    %2664 = vmatprep.subr.mxu0 0.0
    %2665 = vmatpush2.msra.mxu0 0.0
    %2666 = vmatprep.subr.mxu0 0.0
    %2667 = vmatpush2.msra.mxu0 0.0
    %2668 = vmatprep.subr.mxu0 0.0
    %2669 = vmatpush2.msra.mxu0 0.0
    %2670 = vmatprep.subr.mxu0 0.0
    %2671 = vmatpush2.msra.mxu0 0.0
    %2672 = vmatprep.subr.mxu0 0.0
    %2673 = vmatpush2.msra.mxu0 0.0
    %2674 = vmatprep.subr.mxu0 0.0
    %2675 = vmatpush2.msra.mxu0 0.0
    %2676 = vmatprep.subr.mxu0 0.0
    %2677 = vmatpush2.msra.mxu0 0.0
    %2678 = vmatprep.subr.mxu0 0.0
    %2679 = vmatpush2.msra.mxu0 0.0
    %2680 = vmatprep.subr.mxu0 0.0
    %2681 = vmatpush2.msra.mxu0 0.0
    %2682 = vmatprep.mubr.f32.mxu0 0.0
    %2683 = vmatmul.mubr.f32.gmra.mxu0 %v2347
    %v2684 = vpop.f32.mrf.mxu0
    %v2685 = vadd.f32 %v2543, %v2684
    %v2686 = vpop.f32.mrf.mxu0
    %v2687 = vadd.f32 %v2545, %v2686
    %2688 = vdwg.mxu0
    %2689 = vmatprep.subr.mxu0 %v2411
    %2690 = vmatpush1.msra.mxu0 %v2410
    %2691 = vmatprep.subr.mxu0 %v2407
    %2692 = vmatpush1.msra.mxu0 %v2406
    %2693 = vmatprep.subr.mxu0 %v2403
    %2694 = vmatpush1.msra.mxu0 %v2402
    %2695 = vmatprep.subr.mxu0 %v2399
    %2696 = vmatpush1.msra.mxu0 %v2398
    %2697 = vmatprep.subr.mxu0 %v2395
    %2698 = vmatpush1.msra.mxu0 %v2394
    %2699 = vmatprep.subr.mxu0 %v2391
    %2700 = vmatpush1.msra.mxu0 %v2390
    %2701 = vmatprep.subr.mxu0 %v2387
    %2702 = vmatpush1.msra.mxu0 %v2386
    %2703 = vmatprep.subr.mxu0 %v2383
    %2704 = vmatpush1.msra.mxu0 %v2382
    %2705 = vmatprep.subr.mxu0 %v2379
    %2706 = vmatpush1.msra.mxu0 %v2378
    %2707 = vmatprep.subr.mxu0 %v2375
    %2708 = vmatpush1.msra.mxu0 %v2374
    %2709 = vmatprep.subr.mxu0 %v2371
    %2710 = vmatpush1.msra.mxu0 %v2370
    %2711 = vmatprep.subr.mxu0 %v2367
    %2712 = vmatpush1.msra.mxu0 %v2366
    %2713 = vmatprep.subr.mxu0 %v2363
    %2714 = vmatpush1.msra.mxu0 %v2362
    %2715 = vmatprep.subr.mxu0 %v2359
    %2716 = vmatpush1.msra.mxu0 %v2358
    %2717 = vmatprep.subr.mxu0 %v2355
    %2718 = vmatpush1.msra.mxu0 %v2354
    %2719 = vmatprep.subr.mxu0 %v2351
    %2720 = vmatpush1.msra.mxu0 %v2350
    %2721 = vmatprep.subr.mxu0 0.0
    %2722 = vmatpush2.msra.mxu0 0.0
    %2723 = vmatprep.subr.mxu0 0.0
    %2724 = vmatpush2.msra.mxu0 0.0
    %2725 = vmatprep.subr.mxu0 0.0
    %2726 = vmatpush2.msra.mxu0 0.0
    %2727 = vmatprep.subr.mxu0 0.0
    %2728 = vmatpush2.msra.mxu0 0.0
    %2729 = vmatprep.subr.mxu0 0.0
    %2730 = vmatpush2.msra.mxu0 0.0
    %2731 = vmatprep.subr.mxu0 0.0
    %2732 = vmatpush2.msra.mxu0 0.0
    %2733 = vmatprep.subr.mxu0 0.0
    %2734 = vmatpush2.msra.mxu0 0.0
    %2735 = vmatprep.subr.mxu0 0.0
    %2736 = vmatpush2.msra.mxu0 0.0
    %2737 = vmatprep.subr.mxu0 0.0
    %2738 = vmatpush2.msra.mxu0 0.0
    %2739 = vmatprep.subr.mxu0 0.0
    %2740 = vmatpush2.msra.mxu0 0.0
    %2741 = vmatprep.subr.mxu0 0.0
    %2742 = vmatpush2.msra.mxu0 0.0
    %2743 = vmatprep.subr.mxu0 0.0
    %2744 = vmatpush2.msra.mxu0 0.0
    %2745 = vmatprep.subr.mxu0 0.0
    %2746 = vmatpush2.msra.mxu0 0.0
    %2747 = vmatprep.subr.mxu0 0.0
    %2748 = vmatpush2.msra.mxu0 0.0
    %2749 = vmatprep.subr.mxu0 0.0
    %2750 = vmatpush2.msra.mxu0 0.0
    %2751 = vmatprep.subr.mxu0 0.0
    %2752 = vmatpush2.msra.mxu0 0.0
    %2753 = vmatprep.mubr.f32.mxu0 0.0
    %2754 = vmatmul.mubr.f32.gmra.mxu0 %v2347
    %v2755 = vpop.f32.mrf.mxu0
    %v2756 = vadd.f32 %v2614, %v2755
    %v2757 = vpop.f32.mrf.mxu0
    %v2758 = vadd.f32 %v2616, %v2757
    %2759 = vdwg.mxu0
    %v2760 = vadd.f32 %v2685, %v89
    %v2761 = vadd.f32 %v2687, %v93
    %v2762 = vadd.f32 %v2756, %v97
    %v2763 = vadd.f32 %v2758, %v101
    %v2764 = vmul.f32 %v2760, 0.5
    %v2765 = vtanh.pop %v2764
    %v2766 = vadd.f32 %v2765, 1.0
    %v2767 = vmul.f32 %v2766, 0.5
    %v2768 = vmul.f32 %v2761, 0.5
    %v2769 = vtanh.pop %v2768
    %v2770 = vadd.f32 %v2769, 1.0
    %v2771 = vmul.f32 %v2770, 0.5
    %v2772 = vtanh.pop %v2762
    %v2773 = vmul.f32 %v2763, 0.5
    %v2774 = vtanh.pop %v2773
    %v2775 = vadd.f32 %v2774, 1.0
    %v2776 = vmul.f32 %v2775, 0.5
    %v2777 = vmul.f32 %v2771, %v2110
    %v2778 = vmul.f32 %v2767, %v2772
    %v2779 = vadd.f32 %v2777, %v2778
    %v2780 = vtanh.pop %v2779
    %v2781 = vmul.f32 %v2776, %v2780
    %s2782 = scalar_lea.vmem [#allocation14], 24
    %2783 = vst [vmem:[%s2782] sm:$0xff] %v2781
    %s2784 = scalar_lea.vmem [#allocation6], 128
    %v2785 = vld [vmem:[%s2784] sm:$0xff]
    %v2786 = vld [vmem:[%s2784 + $0x8] sm:$0xff]
    %v2787 = vld [vmem:[%s2784 + $0x10] sm:$0xff]
    %v2788 = vld [vmem:[%s2784 + $0x18] sm:$0xff]
    %v2789 = vld [vmem:[#allocation9] sm:$0xff]
    %v2790 = vld [vmem:[#allocation9 + $0x8] sm:$0xff]
    %v2791 = vld [vmem:[#allocation9 + $0x10] sm:$0xff]
    %v2792 = vld [vmem:[#allocation9 + $0x18] sm:$0xff]
    %v2793 = vld [vmem:[#allocation9 + $0x20] sm:$0xff]
    %v2794 = vld [vmem:[#allocation9 + $0x28] sm:$0xff]
    %v2795 = vld [vmem:[#allocation9 + $0x30] sm:$0xff]
    %v2796 = vld [vmem:[#allocation9 + $0x38] sm:$0xff]
    %v2797 = vld [vmem:[#allocation9 + $0x40] sm:$0xff]
    %v2798 = vld [vmem:[#allocation9 + $0x48] sm:$0xff]
    %v2799 = vld [vmem:[#allocation9 + $0x50] sm:$0xff]
    %v2800 = vld [vmem:[#allocation9 + $0x58] sm:$0xff]
    %v2801 = vld [vmem:[#allocation9 + $0x60] sm:$0xff]
    %v2802 = vld [vmem:[#allocation9 + $0x68] sm:$0xff]
    %v2803 = vld [vmem:[#allocation9 + $0x70] sm:$0xff]
    %v2804 = vld [vmem:[#allocation9 + $0x78] sm:$0xff]
    %v2805 = vld [vmem:[#allocation9 + $0x80] sm:$0xff]
    %v2806 = vld [vmem:[#allocation9 + $0x88] sm:$0xff]
    %v2807 = vld [vmem:[#allocation9 + $0x90] sm:$0xff]
    %v2808 = vld [vmem:[#allocation9 + $0x98] sm:$0xff]
    %v2809 = vld [vmem:[#allocation9 + $0xa0] sm:$0xff]
    %v2810 = vld [vmem:[#allocation9 + $0xa8] sm:$0xff]
    %v2811 = vld [vmem:[#allocation9 + $0xb0] sm:$0xff]
    %v2812 = vld [vmem:[#allocation9 + $0xb8] sm:$0xff]
    %v2813 = vld [vmem:[#allocation9 + $0xc0] sm:$0xff]
    %v2814 = vld [vmem:[#allocation9 + $0xc8] sm:$0xff]
    %v2815 = vld [vmem:[#allocation9 + $0xd0] sm:$0xff]
    %v2816 = vld [vmem:[#allocation9 + $0xd8] sm:$0xff]
    %v2817 = vld [vmem:[#allocation9 + $0xe0] sm:$0xff]
    %v2818 = vld [vmem:[#allocation9 + $0xe8] sm:$0xff]
    %v2819 = vld [vmem:[#allocation9 + $0xf0] sm:$0xff]
    %v2820 = vld [vmem:[#allocation9 + $0xf8] sm:$0xff]
    %v2821 = vld [vmem:[#allocation9 + $0x100] sm:$0xff]
    %v2822 = vld [vmem:[#allocation9 + $0x108] sm:$0xff]
    %v2823 = vld [vmem:[#allocation9 + $0x110] sm:$0xff]
    %v2824 = vld [vmem:[#allocation9 + $0x118] sm:$0xff]
    %v2825 = vld [vmem:[#allocation9 + $0x120] sm:$0xff]
    %v2826 = vld [vmem:[#allocation9 + $0x128] sm:$0xff]
    %v2827 = vld [vmem:[#allocation9 + $0x130] sm:$0xff]
    %v2828 = vld [vmem:[#allocation9 + $0x138] sm:$0xff]
    %v2829 = vld [vmem:[#allocation9 + $0x140] sm:$0xff]
    %v2830 = vld [vmem:[#allocation9 + $0x148] sm:$0xff]
    %v2831 = vld [vmem:[#allocation9 + $0x150] sm:$0xff]
    %v2832 = vld [vmem:[#allocation9 + $0x158] sm:$0xff]
    %v2833 = vld [vmem:[#allocation9 + $0x160] sm:$0xff]
    %v2834 = vld [vmem:[#allocation9 + $0x168] sm:$0xff]
    %v2835 = vld [vmem:[#allocation9 + $0x170] sm:$0xff]
    %v2836 = vld [vmem:[#allocation9 + $0x178] sm:$0xff]
    %v2837 = vld [vmem:[#allocation9 + $0x180] sm:$0xff]
    %v2838 = vld [vmem:[#allocation9 + $0x188] sm:$0xff]
    %v2839 = vld [vmem:[#allocation9 + $0x190] sm:$0xff]
    %v2840 = vld [vmem:[#allocation9 + $0x198] sm:$0xff]
    %v2841 = vld [vmem:[#allocation9 + $0x1a0] sm:$0xff]
    %v2842 = vld [vmem:[#allocation9 + $0x1a8] sm:$0xff]
    %v2843 = vld [vmem:[#allocation9 + $0x1b0] sm:$0xff]
    %v2844 = vld [vmem:[#allocation9 + $0x1b8] sm:$0xff]
    %v2845 = vld [vmem:[#allocation9 + $0x1c0] sm:$0xff]
    %v2846 = vld [vmem:[#allocation9 + $0x1c8] sm:$0xff]
    %v2847 = vld [vmem:[#allocation9 + $0x1d0] sm:$0xff]
    %v2848 = vld [vmem:[#allocation9 + $0x1d8] sm:$0xff]
    %v2849 = vld [vmem:[#allocation9 + $0x1e0] sm:$0xff]
    %v2850 = vld [vmem:[#allocation9 + $0x1e8] sm:$0xff]
    %v2851 = vld [vmem:[#allocation9 + $0x1f0] sm:$0xff]
    %v2852 = vld [vmem:[#allocation9 + $0x1f8] sm:$0xff]
    %2853 = vmatprep.subr.mxu0 %v2850
    %2854 = vmatpush1.msra.mxu0 %v2849
    %2855 = vmatprep.subr.mxu0 %v2846
    %2856 = vmatpush1.msra.mxu0 %v2845
    %2857 = vmatprep.subr.mxu0 %v2842
    %2858 = vmatpush1.msra.mxu0 %v2841
    %2859 = vmatprep.subr.mxu0 %v2838
    %2860 = vmatpush1.msra.mxu0 %v2837
    %2861 = vmatprep.subr.mxu0 %v2834
    %2862 = vmatpush1.msra.mxu0 %v2833
    %2863 = vmatprep.subr.mxu0 %v2830
    %2864 = vmatpush1.msra.mxu0 %v2829
    %2865 = vmatprep.subr.mxu0 %v2826
    %2866 = vmatpush1.msra.mxu0 %v2825
    %2867 = vmatprep.subr.mxu0 %v2822
    %2868 = vmatpush1.msra.mxu0 %v2821
    %2869 = vmatprep.subr.mxu0 %v2818
    %2870 = vmatpush1.msra.mxu0 %v2817
    %2871 = vmatprep.subr.mxu0 %v2814
    %2872 = vmatpush1.msra.mxu0 %v2813
    %2873 = vmatprep.subr.mxu0 %v2810
    %2874 = vmatpush1.msra.mxu0 %v2809
    %2875 = vmatprep.subr.mxu0 %v2806
    %2876 = vmatpush1.msra.mxu0 %v2805
    %2877 = vmatprep.subr.mxu0 %v2802
    %2878 = vmatpush1.msra.mxu0 %v2801
    %2879 = vmatprep.subr.mxu0 %v2798
    %2880 = vmatpush1.msra.mxu0 %v2797
    %2881 = vmatprep.subr.mxu0 %v2794
    %2882 = vmatpush1.msra.mxu0 %v2793
    %2883 = vmatprep.subr.mxu0 %v2790
    %2884 = vmatpush1.msra.mxu0 %v2789
    %2885 = vmatprep.subr.mxu0 0.0
    %2886 = vmatpush2.msra.mxu0 0.0
    %2887 = vmatprep.subr.mxu0 0.0
    %2888 = vmatpush2.msra.mxu0 0.0
    %2889 = vmatprep.subr.mxu0 0.0
    %2890 = vmatpush2.msra.mxu0 0.0
    %2891 = vmatprep.subr.mxu0 0.0
    %2892 = vmatpush2.msra.mxu0 0.0
    %2893 = vmatprep.subr.mxu0 0.0
    %2894 = vmatpush2.msra.mxu0 0.0
    %2895 = vmatprep.subr.mxu0 0.0
    %2896 = vmatpush2.msra.mxu0 0.0
    %2897 = vmatprep.subr.mxu0 0.0
    %2898 = vmatpush2.msra.mxu0 0.0
    %2899 = vmatprep.subr.mxu0 0.0
    %2900 = vmatpush2.msra.mxu0 0.0
    %2901 = vmatprep.subr.mxu0 0.0
    %2902 = vmatpush2.msra.mxu0 0.0
    %2903 = vmatprep.subr.mxu0 0.0
    %2904 = vmatpush2.msra.mxu0 0.0
    %2905 = vmatprep.subr.mxu0 0.0
    %2906 = vmatpush2.msra.mxu0 0.0
    %2907 = vmatprep.subr.mxu0 0.0
    %2908 = vmatpush2.msra.mxu0 0.0
    %2909 = vmatprep.subr.mxu0 0.0
    %2910 = vmatpush2.msra.mxu0 0.0
    %2911 = vmatprep.subr.mxu0 0.0
    %2912 = vmatpush2.msra.mxu0 0.0
    %2913 = vmatprep.subr.mxu0 0.0
    %2914 = vmatpush2.msra.mxu0 0.0
    %2915 = vmatprep.subr.mxu0 0.0
    %2916 = vmatpush2.msra.mxu0 0.0
    %2917 = vmatprep.mubr.f32.mxu0 0.0
    %2918 = vmatmul.mubr.f32.gmra.mxu0 %v2347
    %v2919 = vpop.f32.mrf.mxu0
    %v2920 = vadd.f32 0.0, %v2919
    %v2921 = vpop.f32.mrf.mxu0
    %v2922 = vadd.f32 0.0, %v2921
    %2923 = vdwg.mxu0
    %2924 = vmatprep.subr.mxu0 %v2852
    %2925 = vmatpush1.msra.mxu0 %v2851
    %2926 = vmatprep.subr.mxu0 %v2848
    %2927 = vmatpush1.msra.mxu0 %v2847
    %2928 = vmatprep.subr.mxu0 %v2844
    %2929 = vmatpush1.msra.mxu0 %v2843
    %2930 = vmatprep.subr.mxu0 %v2840
    %2931 = vmatpush1.msra.mxu0 %v2839
    %2932 = vmatprep.subr.mxu0 %v2836
    %2933 = vmatpush1.msra.mxu0 %v2835
    %2934 = vmatprep.subr.mxu0 %v2832
    %2935 = vmatpush1.msra.mxu0 %v2831
    %2936 = vmatprep.subr.mxu0 %v2828
    %2937 = vmatpush1.msra.mxu0 %v2827
    %2938 = vmatprep.subr.mxu0 %v2824
    %2939 = vmatpush1.msra.mxu0 %v2823
    %2940 = vmatprep.subr.mxu0 %v2820
    %2941 = vmatpush1.msra.mxu0 %v2819
    %2942 = vmatprep.subr.mxu0 %v2816
    %2943 = vmatpush1.msra.mxu0 %v2815
    %2944 = vmatprep.subr.mxu0 %v2812
    %2945 = vmatpush1.msra.mxu0 %v2811
    %2946 = vmatprep.subr.mxu0 %v2808
    %2947 = vmatpush1.msra.mxu0 %v2807
    %2948 = vmatprep.subr.mxu0 %v2804
    %2949 = vmatpush1.msra.mxu0 %v2803
    %2950 = vmatprep.subr.mxu0 %v2800
    %2951 = vmatpush1.msra.mxu0 %v2799
    %2952 = vmatprep.subr.mxu0 %v2796
    %2953 = vmatpush1.msra.mxu0 %v2795
    %2954 = vmatprep.subr.mxu0 %v2792
    %2955 = vmatpush1.msra.mxu0 %v2791
    %2956 = vmatprep.subr.mxu0 0.0
    %2957 = vmatpush2.msra.mxu0 0.0
    %2958 = vmatprep.subr.mxu0 0.0
    %2959 = vmatpush2.msra.mxu0 0.0
    %2960 = vmatprep.subr.mxu0 0.0
    %2961 = vmatpush2.msra.mxu0 0.0
    %2962 = vmatprep.subr.mxu0 0.0
    %2963 = vmatpush2.msra.mxu0 0.0
    %2964 = vmatprep.subr.mxu0 0.0
    %2965 = vmatpush2.msra.mxu0 0.0
    %2966 = vmatprep.subr.mxu0 0.0
    %2967 = vmatpush2.msra.mxu0 0.0
    %2968 = vmatprep.subr.mxu0 0.0
    %2969 = vmatpush2.msra.mxu0 0.0
    %2970 = vmatprep.subr.mxu0 0.0
    %2971 = vmatpush2.msra.mxu0 0.0
    %2972 = vmatprep.subr.mxu0 0.0
    %2973 = vmatpush2.msra.mxu0 0.0
    %2974 = vmatprep.subr.mxu0 0.0
    %2975 = vmatpush2.msra.mxu0 0.0
    %2976 = vmatprep.subr.mxu0 0.0
    %2977 = vmatpush2.msra.mxu0 0.0
    %2978 = vmatprep.subr.mxu0 0.0
    %2979 = vmatpush2.msra.mxu0 0.0
    %2980 = vmatprep.subr.mxu0 0.0
    %2981 = vmatpush2.msra.mxu0 0.0
    %2982 = vmatprep.subr.mxu0 0.0
    %2983 = vmatpush2.msra.mxu0 0.0
    %2984 = vmatprep.subr.mxu0 0.0
    %2985 = vmatpush2.msra.mxu0 0.0
    %2986 = vmatprep.subr.mxu0 0.0
    %2987 = vmatpush2.msra.mxu0 0.0
    %2988 = vmatprep.mubr.f32.mxu0 0.0
    %2989 = vmatmul.mubr.f32.gmra.mxu0 %v2347
    %v2990 = vpop.f32.mrf.mxu0
    %v2991 = vadd.f32 0.0, %v2990
    %v2992 = vpop.f32.mrf.mxu0
    %v2993 = vadd.f32 0.0, %v2992
    %2994 = vdwg.mxu0
    %v2995 = vadd.f32 %v2785, %v2920
    %v2996 = vadd.f32 %v2786, %v2922
    %v2997 = vadd.f32 %v2787, %v2991
    %v2998 = vadd.f32 %v2788, %v2993
    %v2999 = vmul.f32 %v2995, 0.5
    %v3000 = vtanh.pop %v2999
    %v3001 = vadd.f32 %v3000, 1.0
    %v3002 = vmul.f32 %v3001, 0.5
    %v3003 = vmul.f32 %v2996, 0.5
    %v3004 = vtanh.pop %v3003
    %v3005 = vadd.f32 %v3004, 1.0
    %v3006 = vmul.f32 %v3005, 0.5
    %v3007 = vtanh.pop %v2997
    %v3008 = vmul.f32 %v2998, 0.5
    %v3009 = vtanh.pop %v3008
    %v3010 = vadd.f32 %v3009, 1.0
    %v3011 = vmul.f32 %v3010, 0.5
    %v3012 = vmul.f32 %v3006, %v2345
    %v3013 = vmul.f32 %v3002, %v3007
    %v3014 = vadd.f32 %v3012, %v3013
    %v3015 = vtanh.pop %v3014
    %v3016 = vmul.f32 %v3011, %v3015
    %v3017 = vld [vmem:[#allocation11] sm:$0xff]
    %v3018 = vld [vmem:[#allocation11 + $0x8] sm:$0xff]
    %v3019 = vld [vmem:[#allocation11 + $0x10] sm:$0xff]
    %v3020 = vld [vmem:[#allocation11 + $0x18] sm:$0xff]
    %v3021 = vld [vmem:[#allocation11 + $0x20] sm:$0xff]
    %v3022 = vld [vmem:[#allocation11 + $0x28] sm:$0xff]
    %v3023 = vld [vmem:[#allocation11 + $0x30] sm:$0xff]
    %v3024 = vld [vmem:[#allocation11 + $0x38] sm:$0xff]
    %v3025 = vld [vmem:[#allocation11 + $0x40] sm:$0xff]
    %v3026 = vld [vmem:[#allocation11 + $0x48] sm:$0xff]
    %v3027 = vld [vmem:[#allocation11 + $0x50] sm:$0xff]
    %v3028 = vld [vmem:[#allocation11 + $0x58] sm:$0xff]
    %v3029 = vld [vmem:[#allocation11 + $0x60] sm:$0xff]
    %v3030 = vld [vmem:[#allocation11 + $0x68] sm:$0xff]
    %v3031 = vld [vmem:[#allocation11 + $0x70] sm:$0xff]
    %v3032 = vld [vmem:[#allocation11 + $0x78] sm:$0xff]
    %v3033 = vld [vmem:[#allocation11 + $0x80] sm:$0xff]
    %v3034 = vld [vmem:[#allocation11 + $0x88] sm:$0xff]
    %v3035 = vld [vmem:[#allocation11 + $0x90] sm:$0xff]
    %v3036 = vld [vmem:[#allocation11 + $0x98] sm:$0xff]
    %v3037 = vld [vmem:[#allocation11 + $0xa0] sm:$0xff]
    %v3038 = vld [vmem:[#allocation11 + $0xa8] sm:$0xff]
    %v3039 = vld [vmem:[#allocation11 + $0xb0] sm:$0xff]
    %v3040 = vld [vmem:[#allocation11 + $0xb8] sm:$0xff]
    %v3041 = vld [vmem:[#allocation11 + $0xc0] sm:$0xff]
    %v3042 = vld [vmem:[#allocation11 + $0xc8] sm:$0xff]
    %v3043 = vld [vmem:[#allocation11 + $0xd0] sm:$0xff]
    %v3044 = vld [vmem:[#allocation11 + $0xd8] sm:$0xff]
    %v3045 = vld [vmem:[#allocation11 + $0xe0] sm:$0xff]
    %v3046 = vld [vmem:[#allocation11 + $0xe8] sm:$0xff]
    %v3047 = vld [vmem:[#allocation11 + $0xf0] sm:$0xff]
    %v3048 = vld [vmem:[#allocation11 + $0xf8] sm:$0xff]
    %v3049 = vld [vmem:[#allocation11 + $0x100] sm:$0xff]
    %v3050 = vld [vmem:[#allocation11 + $0x108] sm:$0xff]
    %v3051 = vld [vmem:[#allocation11 + $0x110] sm:$0xff]
    %v3052 = vld [vmem:[#allocation11 + $0x118] sm:$0xff]
    %v3053 = vld [vmem:[#allocation11 + $0x120] sm:$0xff]
    %v3054 = vld [vmem:[#allocation11 + $0x128] sm:$0xff]
    %v3055 = vld [vmem:[#allocation11 + $0x130] sm:$0xff]
    %v3056 = vld [vmem:[#allocation11 + $0x138] sm:$0xff]
    %v3057 = vld [vmem:[#allocation11 + $0x140] sm:$0xff]
    %v3058 = vld [vmem:[#allocation11 + $0x148] sm:$0xff]
    %v3059 = vld [vmem:[#allocation11 + $0x150] sm:$0xff]
    %v3060 = vld [vmem:[#allocation11 + $0x158] sm:$0xff]
    %v3061 = vld [vmem:[#allocation11 + $0x160] sm:$0xff]
    %v3062 = vld [vmem:[#allocation11 + $0x168] sm:$0xff]
    %v3063 = vld [vmem:[#allocation11 + $0x170] sm:$0xff]
    %v3064 = vld [vmem:[#allocation11 + $0x178] sm:$0xff]
    %v3065 = vld [vmem:[#allocation11 + $0x180] sm:$0xff]
    %v3066 = vld [vmem:[#allocation11 + $0x188] sm:$0xff]
    %v3067 = vld [vmem:[#allocation11 + $0x190] sm:$0xff]
    %v3068 = vld [vmem:[#allocation11 + $0x198] sm:$0xff]
    %v3069 = vld [vmem:[#allocation11 + $0x1a0] sm:$0xff]
    %v3070 = vld [vmem:[#allocation11 + $0x1a8] sm:$0xff]
    %v3071 = vld [vmem:[#allocation11 + $0x1b0] sm:$0xff]
    %v3072 = vld [vmem:[#allocation11 + $0x1b8] sm:$0xff]
    %v3073 = vld [vmem:[#allocation11 + $0x1c0] sm:$0xff]
    %v3074 = vld [vmem:[#allocation11 + $0x1c8] sm:$0xff]
    %v3075 = vld [vmem:[#allocation11 + $0x1d0] sm:$0xff]
    %v3076 = vld [vmem:[#allocation11 + $0x1d8] sm:$0xff]
    %v3077 = vld [vmem:[#allocation11 + $0x1e0] sm:$0xff]
    %v3078 = vld [vmem:[#allocation11 + $0x1e8] sm:$0xff]
    %v3079 = vld [vmem:[#allocation11 + $0x1f0] sm:$0xff]
    %v3080 = vld [vmem:[#allocation11 + $0x1f8] sm:$0xff]
    %v3081 = vld [vmem:[#allocation12] sm:$0xff]
    %v3082 = vld [vmem:[#allocation12 + $0x8] sm:$0xff]
    %v3083 = vld [vmem:[#allocation12 + $0x10] sm:$0xff]
    %v3084 = vld [vmem:[#allocation12 + $0x18] sm:$0xff]
    %v3085 = vld [vmem:[#allocation12 + $0x20] sm:$0xff]
    %v3086 = vld [vmem:[#allocation12 + $0x28] sm:$0xff]
    %v3087 = vld [vmem:[#allocation12 + $0x30] sm:$0xff]
    %v3088 = vld [vmem:[#allocation12 + $0x38] sm:$0xff]
    %v3089 = vld [vmem:[#allocation12 + $0x40] sm:$0xff]
    %v3090 = vld [vmem:[#allocation12 + $0x48] sm:$0xff]
    %v3091 = vld [vmem:[#allocation12 + $0x50] sm:$0xff]
    %v3092 = vld [vmem:[#allocation12 + $0x58] sm:$0xff]
    %v3093 = vld [vmem:[#allocation12 + $0x60] sm:$0xff]
    %v3094 = vld [vmem:[#allocation12 + $0x68] sm:$0xff]
    %v3095 = vld [vmem:[#allocation12 + $0x70] sm:$0xff]
    %v3096 = vld [vmem:[#allocation12 + $0x78] sm:$0xff]
    %v3097 = vld [vmem:[#allocation12 + $0x80] sm:$0xff]
    %v3098 = vld [vmem:[#allocation12 + $0x88] sm:$0xff]
    %v3099 = vld [vmem:[#allocation12 + $0x90] sm:$0xff]
    %v3100 = vld [vmem:[#allocation12 + $0x98] sm:$0xff]
    %v3101 = vld [vmem:[#allocation12 + $0xa0] sm:$0xff]
    %v3102 = vld [vmem:[#allocation12 + $0xa8] sm:$0xff]
    %v3103 = vld [vmem:[#allocation12 + $0xb0] sm:$0xff]
    %v3104 = vld [vmem:[#allocation12 + $0xb8] sm:$0xff]
    %v3105 = vld [vmem:[#allocation12 + $0xc0] sm:$0xff]
    %v3106 = vld [vmem:[#allocation12 + $0xc8] sm:$0xff]
    %v3107 = vld [vmem:[#allocation12 + $0xd0] sm:$0xff]
    %v3108 = vld [vmem:[#allocation12 + $0xd8] sm:$0xff]
    %v3109 = vld [vmem:[#allocation12 + $0xe0] sm:$0xff]
    %v3110 = vld [vmem:[#allocation12 + $0xe8] sm:$0xff]
    %v3111 = vld [vmem:[#allocation12 + $0xf0] sm:$0xff]
    %v3112 = vld [vmem:[#allocation12 + $0xf8] sm:$0xff]
    %v3113 = vld [vmem:[#allocation12 + $0x100] sm:$0xff]
    %v3114 = vld [vmem:[#allocation12 + $0x108] sm:$0xff]
    %v3115 = vld [vmem:[#allocation12 + $0x110] sm:$0xff]
    %v3116 = vld [vmem:[#allocation12 + $0x118] sm:$0xff]
    %v3117 = vld [vmem:[#allocation12 + $0x120] sm:$0xff]
    %v3118 = vld [vmem:[#allocation12 + $0x128] sm:$0xff]
    %v3119 = vld [vmem:[#allocation12 + $0x130] sm:$0xff]
    %v3120 = vld [vmem:[#allocation12 + $0x138] sm:$0xff]
    %v3121 = vld [vmem:[#allocation12 + $0x140] sm:$0xff]
    %v3122 = vld [vmem:[#allocation12 + $0x148] sm:$0xff]
    %v3123 = vld [vmem:[#allocation12 + $0x150] sm:$0xff]
    %v3124 = vld [vmem:[#allocation12 + $0x158] sm:$0xff]
    %v3125 = vld [vmem:[#allocation12 + $0x160] sm:$0xff]
    %v3126 = vld [vmem:[#allocation12 + $0x168] sm:$0xff]
    %v3127 = vld [vmem:[#allocation12 + $0x170] sm:$0xff]
    %v3128 = vld [vmem:[#allocation12 + $0x178] sm:$0xff]
    %v3129 = vld [vmem:[#allocation12 + $0x180] sm:$0xff]
    %v3130 = vld [vmem:[#allocation12 + $0x188] sm:$0xff]
    %v3131 = vld [vmem:[#allocation12 + $0x190] sm:$0xff]
    %v3132 = vld [vmem:[#allocation12 + $0x198] sm:$0xff]
    %v3133 = vld [vmem:[#allocation12 + $0x1a0] sm:$0xff]
    %v3134 = vld [vmem:[#allocation12 + $0x1a8] sm:$0xff]
    %v3135 = vld [vmem:[#allocation12 + $0x1b0] sm:$0xff]
    %v3136 = vld [vmem:[#allocation12 + $0x1b8] sm:$0xff]
    %v3137 = vld [vmem:[#allocation12 + $0x1c0] sm:$0xff]
    %v3138 = vld [vmem:[#allocation12 + $0x1c8] sm:$0xff]
    %v3139 = vld [vmem:[#allocation12 + $0x1d0] sm:$0xff]
    %v3140 = vld [vmem:[#allocation12 + $0x1d8] sm:$0xff]
    %v3141 = vld [vmem:[#allocation12 + $0x1e0] sm:$0xff]
    %v3142 = vld [vmem:[#allocation12 + $0x1e8] sm:$0xff]
    %v3143 = vld [vmem:[#allocation12 + $0x1f0] sm:$0xff]
    %v3144 = vld [vmem:[#allocation12 + $0x1f8] sm:$0xff]
    %3145 = vmatprep.subr.mxu0 %v3142
    %3146 = vmatpush1.msra.mxu0 %v3141
    %3147 = vmatprep.subr.mxu0 %v3138
    %3148 = vmatpush1.msra.mxu0 %v3137
    %3149 = vmatprep.subr.mxu0 %v3134
    %3150 = vmatpush1.msra.mxu0 %v3133
    %3151 = vmatprep.subr.mxu0 %v3130
    %3152 = vmatpush1.msra.mxu0 %v3129
    %3153 = vmatprep.subr.mxu0 %v3126
    %3154 = vmatpush1.msra.mxu0 %v3125
    %3155 = vmatprep.subr.mxu0 %v3122
    %3156 = vmatpush1.msra.mxu0 %v3121
    %3157 = vmatprep.subr.mxu0 %v3118
    %3158 = vmatpush1.msra.mxu0 %v3117
    %3159 = vmatprep.subr.mxu0 %v3114
    %3160 = vmatpush1.msra.mxu0 %v3113
    %3161 = vmatprep.subr.mxu0 %v3110
    %3162 = vmatpush1.msra.mxu0 %v3109
    %3163 = vmatprep.subr.mxu0 %v3106
    %3164 = vmatpush1.msra.mxu0 %v3105
    %3165 = vmatprep.subr.mxu0 %v3102
    %3166 = vmatpush1.msra.mxu0 %v3101
    %3167 = vmatprep.subr.mxu0 %v3098
    %3168 = vmatpush1.msra.mxu0 %v3097
    %3169 = vmatprep.subr.mxu0 %v3094
    %3170 = vmatpush1.msra.mxu0 %v3093
    %3171 = vmatprep.subr.mxu0 %v3090
    %3172 = vmatpush1.msra.mxu0 %v3089
    %3173 = vmatprep.subr.mxu0 %v3086
    %3174 = vmatpush1.msra.mxu0 %v3085
    %3175 = vmatprep.subr.mxu0 %v3082
    %3176 = vmatpush1.msra.mxu0 %v3081
    %3177 = vmatprep.subr.mxu0 0.0
    %3178 = vmatpush2.msra.mxu0 0.0
    %3179 = vmatprep.subr.mxu0 0.0
    %3180 = vmatpush2.msra.mxu0 0.0
    %3181 = vmatprep.subr.mxu0 0.0
    %3182 = vmatpush2.msra.mxu0 0.0
    %3183 = vmatprep.subr.mxu0 0.0
    %3184 = vmatpush2.msra.mxu0 0.0
    %3185 = vmatprep.subr.mxu0 0.0
    %3186 = vmatpush2.msra.mxu0 0.0
    %3187 = vmatprep.subr.mxu0 0.0
    %3188 = vmatpush2.msra.mxu0 0.0
    %3189 = vmatprep.subr.mxu0 0.0
    %3190 = vmatpush2.msra.mxu0 0.0
    %3191 = vmatprep.subr.mxu0 0.0
    %3192 = vmatpush2.msra.mxu0 0.0
    %3193 = vmatprep.subr.mxu0 0.0
    %3194 = vmatpush2.msra.mxu0 0.0
    %3195 = vmatprep.subr.mxu0 0.0
    %3196 = vmatpush2.msra.mxu0 0.0
    %3197 = vmatprep.subr.mxu0 0.0
    %3198 = vmatpush2.msra.mxu0 0.0
    %3199 = vmatprep.subr.mxu0 0.0
    %3200 = vmatpush2.msra.mxu0 0.0
    %3201 = vmatprep.subr.mxu0 0.0
    %3202 = vmatpush2.msra.mxu0 0.0
    %3203 = vmatprep.subr.mxu0 0.0
    %3204 = vmatpush2.msra.mxu0 0.0
    %3205 = vmatprep.subr.mxu0 0.0
    %3206 = vmatpush2.msra.mxu0 0.0
    %3207 = vmatprep.subr.mxu0 0.0
    %3208 = vmatpush2.msra.mxu0 0.0
    %3209 = vmatprep.mubr.f32.mxu0 0.0
    %3210 = vmatmul.mubr.f32.gmra.mxu0 %v2781
    %v3211 = vpop.f32.mrf.mxu0
    %v3212 = vadd.f32 0.0, %v3211
    %v3213 = vpop.f32.mrf.mxu0
    %v3214 = vadd.f32 0.0, %v3213
    %3215 = vdwg.mxu0
    %3216 = vmatprep.subr.mxu0 %v3144
    %3217 = vmatpush1.msra.mxu0 %v3143
    %3218 = vmatprep.subr.mxu0 %v3140
    %3219 = vmatpush1.msra.mxu0 %v3139
    %3220 = vmatprep.subr.mxu0 %v3136
    %3221 = vmatpush1.msra.mxu0 %v3135
    %3222 = vmatprep.subr.mxu0 %v3132
    %3223 = vmatpush1.msra.mxu0 %v3131
    %3224 = vmatprep.subr.mxu0 %v3128
    %3225 = vmatpush1.msra.mxu0 %v3127
    %3226 = vmatprep.subr.mxu0 %v3124
    %3227 = vmatpush1.msra.mxu0 %v3123
    %3228 = vmatprep.subr.mxu0 %v3120
    %3229 = vmatpush1.msra.mxu0 %v3119
    %3230 = vmatprep.subr.mxu0 %v3116
    %3231 = vmatpush1.msra.mxu0 %v3115
    %3232 = vmatprep.subr.mxu0 %v3112
    %3233 = vmatpush1.msra.mxu0 %v3111
    %3234 = vmatprep.subr.mxu0 %v3108
    %3235 = vmatpush1.msra.mxu0 %v3107
    %3236 = vmatprep.subr.mxu0 %v3104
    %3237 = vmatpush1.msra.mxu0 %v3103
    %3238 = vmatprep.subr.mxu0 %v3100
    %3239 = vmatpush1.msra.mxu0 %v3099
    %3240 = vmatprep.subr.mxu0 %v3096
    %3241 = vmatpush1.msra.mxu0 %v3095
    %3242 = vmatprep.subr.mxu0 %v3092
    %3243 = vmatpush1.msra.mxu0 %v3091
    %3244 = vmatprep.subr.mxu0 %v3088
    %3245 = vmatpush1.msra.mxu0 %v3087
    %3246 = vmatprep.subr.mxu0 %v3084
    %3247 = vmatpush1.msra.mxu0 %v3083
    %3248 = vmatprep.subr.mxu0 0.0
    %3249 = vmatpush2.msra.mxu0 0.0
    %3250 = vmatprep.subr.mxu0 0.0
    %3251 = vmatpush2.msra.mxu0 0.0
    %3252 = vmatprep.subr.mxu0 0.0
    %3253 = vmatpush2.msra.mxu0 0.0
    %3254 = vmatprep.subr.mxu0 0.0
    %3255 = vmatpush2.msra.mxu0 0.0
    %3256 = vmatprep.subr.mxu0 0.0
    %3257 = vmatpush2.msra.mxu0 0.0
    %3258 = vmatprep.subr.mxu0 0.0
    %3259 = vmatpush2.msra.mxu0 0.0
    %3260 = vmatprep.subr.mxu0 0.0
    %3261 = vmatpush2.msra.mxu0 0.0
    %3262 = vmatprep.subr.mxu0 0.0
    %3263 = vmatpush2.msra.mxu0 0.0
    %3264 = vmatprep.subr.mxu0 0.0
    %3265 = vmatpush2.msra.mxu0 0.0
    %3266 = vmatprep.subr.mxu0 0.0
    %3267 = vmatpush2.msra.mxu0 0.0
    %3268 = vmatprep.subr.mxu0 0.0
    %3269 = vmatpush2.msra.mxu0 0.0
    %3270 = vmatprep.subr.mxu0 0.0
    %3271 = vmatpush2.msra.mxu0 0.0
    %3272 = vmatprep.subr.mxu0 0.0
    %3273 = vmatpush2.msra.mxu0 0.0
    %3274 = vmatprep.subr.mxu0 0.0
    %3275 = vmatpush2.msra.mxu0 0.0
    %3276 = vmatprep.subr.mxu0 0.0
    %3277 = vmatpush2.msra.mxu0 0.0
    %3278 = vmatprep.subr.mxu0 0.0
    %3279 = vmatpush2.msra.mxu0 0.0
    %3280 = vmatprep.mubr.f32.mxu0 0.0
    %3281 = vmatmul.mubr.f32.gmra.mxu0 %v2781
    %v3282 = vpop.f32.mrf.mxu0
    %v3283 = vadd.f32 0.0, %v3282
    %v3284 = vpop.f32.mrf.mxu0
    %v3285 = vadd.f32 0.0, %v3284
    %3286 = vdwg.mxu0
    %3287 = vmatprep.subr.mxu0 %v3078
    %3288 = vmatpush1.msra.mxu0 %v3077
    %3289 = vmatprep.subr.mxu0 %v3074
    %3290 = vmatpush1.msra.mxu0 %v3073
    %3291 = vmatprep.subr.mxu0 %v3070
    %3292 = vmatpush1.msra.mxu0 %v3069
    %3293 = vmatprep.subr.mxu0 %v3066
    %3294 = vmatpush1.msra.mxu0 %v3065
    %3295 = vmatprep.subr.mxu0 %v3062
    %3296 = vmatpush1.msra.mxu0 %v3061
    %3297 = vmatprep.subr.mxu0 %v3058
    %3298 = vmatpush1.msra.mxu0 %v3057
    %3299 = vmatprep.subr.mxu0 %v3054
    %3300 = vmatpush1.msra.mxu0 %v3053
    %3301 = vmatprep.subr.mxu0 %v3050
    %3302 = vmatpush1.msra.mxu0 %v3049
    %3303 = vmatprep.subr.mxu0 %v3046
    %3304 = vmatpush1.msra.mxu0 %v3045
    %3305 = vmatprep.subr.mxu0 %v3042
    %3306 = vmatpush1.msra.mxu0 %v3041
    %3307 = vmatprep.subr.mxu0 %v3038
    %3308 = vmatpush1.msra.mxu0 %v3037
    %3309 = vmatprep.subr.mxu0 %v3034
    %3310 = vmatpush1.msra.mxu0 %v3033
    %3311 = vmatprep.subr.mxu0 %v3030
    %3312 = vmatpush1.msra.mxu0 %v3029
    %3313 = vmatprep.subr.mxu0 %v3026
    %3314 = vmatpush1.msra.mxu0 %v3025
    %3315 = vmatprep.subr.mxu0 %v3022
    %3316 = vmatpush1.msra.mxu0 %v3021
    %3317 = vmatprep.subr.mxu0 %v3018
    %3318 = vmatpush1.msra.mxu0 %v3017
    %3319 = vmatprep.subr.mxu0 0.0
    %3320 = vmatpush2.msra.mxu0 0.0
    %3321 = vmatprep.subr.mxu0 0.0
    %3322 = vmatpush2.msra.mxu0 0.0
    %3323 = vmatprep.subr.mxu0 0.0
    %3324 = vmatpush2.msra.mxu0 0.0
    %3325 = vmatprep.subr.mxu0 0.0
    %3326 = vmatpush2.msra.mxu0 0.0
    %3327 = vmatprep.subr.mxu0 0.0
    %3328 = vmatpush2.msra.mxu0 0.0
    %3329 = vmatprep.subr.mxu0 0.0
    %3330 = vmatpush2.msra.mxu0 0.0
    %3331 = vmatprep.subr.mxu0 0.0
    %3332 = vmatpush2.msra.mxu0 0.0
    %3333 = vmatprep.subr.mxu0 0.0
    %3334 = vmatpush2.msra.mxu0 0.0
    %3335 = vmatprep.subr.mxu0 0.0
    %3336 = vmatpush2.msra.mxu0 0.0
    %3337 = vmatprep.subr.mxu0 0.0
    %3338 = vmatpush2.msra.mxu0 0.0
    %3339 = vmatprep.subr.mxu0 0.0
    %3340 = vmatpush2.msra.mxu0 0.0
    %3341 = vmatprep.subr.mxu0 0.0
    %3342 = vmatpush2.msra.mxu0 0.0
    %3343 = vmatprep.subr.mxu0 0.0
    %3344 = vmatpush2.msra.mxu0 0.0
    %3345 = vmatprep.subr.mxu0 0.0
    %3346 = vmatpush2.msra.mxu0 0.0
    %3347 = vmatprep.subr.mxu0 0.0
    %3348 = vmatpush2.msra.mxu0 0.0
    %3349 = vmatprep.subr.mxu0 0.0
    %3350 = vmatpush2.msra.mxu0 0.0
    %3351 = vmatprep.mubr.f32.mxu0 0.0
    %3352 = vmatmul.mubr.f32.gmra.mxu0 %v3016
    %v3353 = vpop.f32.mrf.mxu0
    %v3354 = vadd.f32 %v3212, %v3353
    %v3355 = vpop.f32.mrf.mxu0
    %v3356 = vadd.f32 %v3214, %v3355
    %3357 = vdwg.mxu0
    %3358 = vmatprep.subr.mxu0 %v3080
    %3359 = vmatpush1.msra.mxu0 %v3079
    %3360 = vmatprep.subr.mxu0 %v3076
    %3361 = vmatpush1.msra.mxu0 %v3075
    %3362 = vmatprep.subr.mxu0 %v3072
    %3363 = vmatpush1.msra.mxu0 %v3071
    %3364 = vmatprep.subr.mxu0 %v3068
    %3365 = vmatpush1.msra.mxu0 %v3067
    %3366 = vmatprep.subr.mxu0 %v3064
    %3367 = vmatpush1.msra.mxu0 %v3063
    %3368 = vmatprep.subr.mxu0 %v3060
    %3369 = vmatpush1.msra.mxu0 %v3059
    %3370 = vmatprep.subr.mxu0 %v3056
    %3371 = vmatpush1.msra.mxu0 %v3055
    %3372 = vmatprep.subr.mxu0 %v3052
    %3373 = vmatpush1.msra.mxu0 %v3051
    %3374 = vmatprep.subr.mxu0 %v3048
    %3375 = vmatpush1.msra.mxu0 %v3047
    %3376 = vmatprep.subr.mxu0 %v3044
    %3377 = vmatpush1.msra.mxu0 %v3043
    %3378 = vmatprep.subr.mxu0 %v3040
    %3379 = vmatpush1.msra.mxu0 %v3039
    %3380 = vmatprep.subr.mxu0 %v3036
    %3381 = vmatpush1.msra.mxu0 %v3035
    %3382 = vmatprep.subr.mxu0 %v3032
    %3383 = vmatpush1.msra.mxu0 %v3031
    %3384 = vmatprep.subr.mxu0 %v3028
    %3385 = vmatpush1.msra.mxu0 %v3027
    %3386 = vmatprep.subr.mxu0 %v3024
    %3387 = vmatpush1.msra.mxu0 %v3023
    %3388 = vmatprep.subr.mxu0 %v3020
    %3389 = vmatpush1.msra.mxu0 %v3019
    %3390 = vmatprep.subr.mxu0 0.0
    %3391 = vmatpush2.msra.mxu0 0.0
    %3392 = vmatprep.subr.mxu0 0.0
    %3393 = vmatpush2.msra.mxu0 0.0
    %3394 = vmatprep.subr.mxu0 0.0
    %3395 = vmatpush2.msra.mxu0 0.0
    %3396 = vmatprep.subr.mxu0 0.0
    %3397 = vmatpush2.msra.mxu0 0.0
    %3398 = vmatprep.subr.mxu0 0.0
    %3399 = vmatpush2.msra.mxu0 0.0
    %3400 = vmatprep.subr.mxu0 0.0
    %3401 = vmatpush2.msra.mxu0 0.0
    %3402 = vmatprep.subr.mxu0 0.0
    %3403 = vmatpush2.msra.mxu0 0.0
    %3404 = vmatprep.subr.mxu0 0.0
    %3405 = vmatpush2.msra.mxu0 0.0
    %3406 = vmatprep.subr.mxu0 0.0
    %3407 = vmatpush2.msra.mxu0 0.0
    %3408 = vmatprep.subr.mxu0 0.0
    %3409 = vmatpush2.msra.mxu0 0.0
    %3410 = vmatprep.subr.mxu0 0.0
    %3411 = vmatpush2.msra.mxu0 0.0
    %3412 = vmatprep.subr.mxu0 0.0
    %3413 = vmatpush2.msra.mxu0 0.0
    %3414 = vmatprep.subr.mxu0 0.0
    %3415 = vmatpush2.msra.mxu0 0.0
    %3416 = vmatprep.subr.mxu0 0.0
    %3417 = vmatpush2.msra.mxu0 0.0
    %3418 = vmatprep.subr.mxu0 0.0
    %3419 = vmatpush2.msra.mxu0 0.0
    %3420 = vmatprep.subr.mxu0 0.0
    %3421 = vmatpush2.msra.mxu0 0.0
    %3422 = vmatprep.mubr.f32.mxu0 0.0
    %3423 = vmatmul.mubr.f32.gmra.mxu0 %v3016
    %v3424 = vpop.f32.mrf.mxu0
    %v3425 = vadd.f32 %v3283, %v3424
    %v3426 = vpop.f32.mrf.mxu0
    %v3427 = vadd.f32 %v3285, %v3426
    %3428 = vdwg.mxu0
    %v3429 = vadd.f32 %v3354, %v89
    %v3430 = vadd.f32 %v3356, %v93
    %v3431 = vadd.f32 %v3425, %v97
    %v3432 = vadd.f32 %v3427, %v101
    %v3433 = vmul.f32 %v3429, 0.5
    %v3434 = vtanh.pop %v3433
    %v3435 = vadd.f32 %v3434, 1.0
    %v3436 = vmul.f32 %v3435, 0.5
    %v3437 = vmul.f32 %v3430, 0.5
    %v3438 = vtanh.pop %v3437
    %v3439 = vadd.f32 %v3438, 1.0
    %v3440 = vmul.f32 %v3439, 0.5
    %v3441 = vtanh.pop %v3431
    %v3442 = vmul.f32 %v3432, 0.5
    %v3443 = vtanh.pop %v3442
    %v3444 = vadd.f32 %v3443, 1.0
    %v3445 = vmul.f32 %v3444, 0.5
    %v3446 = vmul.f32 %v3440, %v2779
    %v3447 = vmul.f32 %v3436, %v3441
    %v3448 = vadd.f32 %v3446, %v3447
    %v3449 = vtanh.pop %v3448
    %v3450 = vmul.f32 %v3445, %v3449
    %s3451 = scalar_lea.vmem [#allocation14], 32
    %3452 = vst [vmem:[%s3451] sm:$0xff] %v3450
    %s3453 = scalar_lea.vmem [#allocation6], 160
    %v3454 = vld [vmem:[%s3453] sm:$0xff]
    %v3455 = vld [vmem:[%s3453 + $0x8] sm:$0xff]
    %v3456 = vld [vmem:[%s3453 + $0x10] sm:$0xff]
    %v3457 = vld [vmem:[%s3453 + $0x18] sm:$0xff]
    %v3458 = vld [vmem:[#allocation9] sm:$0xff]
    %v3459 = vld [vmem:[#allocation9 + $0x8] sm:$0xff]
    %v3460 = vld [vmem:[#allocation9 + $0x10] sm:$0xff]
    %v3461 = vld [vmem:[#allocation9 + $0x18] sm:$0xff]
    %v3462 = vld [vmem:[#allocation9 + $0x20] sm:$0xff]
    %v3463 = vld [vmem:[#allocation9 + $0x28] sm:$0xff]
    %v3464 = vld [vmem:[#allocation9 + $0x30] sm:$0xff]
    %v3465 = vld [vmem:[#allocation9 + $0x38] sm:$0xff]
    %v3466 = vld [vmem:[#allocation9 + $0x40] sm:$0xff]
    %v3467 = vld [vmem:[#allocation9 + $0x48] sm:$0xff]
    %v3468 = vld [vmem:[#allocation9 + $0x50] sm:$0xff]
    %v3469 = vld [vmem:[#allocation9 + $0x58] sm:$0xff]
    %v3470 = vld [vmem:[#allocation9 + $0x60] sm:$0xff]
    %v3471 = vld [vmem:[#allocation9 + $0x68] sm:$0xff]
    %v3472 = vld [vmem:[#allocation9 + $0x70] sm:$0xff]
    %v3473 = vld [vmem:[#allocation9 + $0x78] sm:$0xff]
    %v3474 = vld [vmem:[#allocation9 + $0x80] sm:$0xff]
    %v3475 = vld [vmem:[#allocation9 + $0x88] sm:$0xff]
    %v3476 = vld [vmem:[#allocation9 + $0x90] sm:$0xff]
    %v3477 = vld [vmem:[#allocation9 + $0x98] sm:$0xff]
    %v3478 = vld [vmem:[#allocation9 + $0xa0] sm:$0xff]
    %v3479 = vld [vmem:[#allocation9 + $0xa8] sm:$0xff]
    %v3480 = vld [vmem:[#allocation9 + $0xb0] sm:$0xff]
    %v3481 = vld [vmem:[#allocation9 + $0xb8] sm:$0xff]
    %v3482 = vld [vmem:[#allocation9 + $0xc0] sm:$0xff]
    %v3483 = vld [vmem:[#allocation9 + $0xc8] sm:$0xff]
    %v3484 = vld [vmem:[#allocation9 + $0xd0] sm:$0xff]
    %v3485 = vld [vmem:[#allocation9 + $0xd8] sm:$0xff]
    %v3486 = vld [vmem:[#allocation9 + $0xe0] sm:$0xff]
    %v3487 = vld [vmem:[#allocation9 + $0xe8] sm:$0xff]
    %v3488 = vld [vmem:[#allocation9 + $0xf0] sm:$0xff]
    %v3489 = vld [vmem:[#allocation9 + $0xf8] sm:$0xff]
    %v3490 = vld [vmem:[#allocation9 + $0x100] sm:$0xff]
    %v3491 = vld [vmem:[#allocation9 + $0x108] sm:$0xff]
    %v3492 = vld [vmem:[#allocation9 + $0x110] sm:$0xff]
    %v3493 = vld [vmem:[#allocation9 + $0x118] sm:$0xff]
    %v3494 = vld [vmem:[#allocation9 + $0x120] sm:$0xff]
    %v3495 = vld [vmem:[#allocation9 + $0x128] sm:$0xff]
    %v3496 = vld [vmem:[#allocation9 + $0x130] sm:$0xff]
    %v3497 = vld [vmem:[#allocation9 + $0x138] sm:$0xff]
    %v3498 = vld [vmem:[#allocation9 + $0x140] sm:$0xff]
    %v3499 = vld [vmem:[#allocation9 + $0x148] sm:$0xff]
    %v3500 = vld [vmem:[#allocation9 + $0x150] sm:$0xff]
    %v3501 = vld [vmem:[#allocation9 + $0x158] sm:$0xff]
    %v3502 = vld [vmem:[#allocation9 + $0x160] sm:$0xff]
    %v3503 = vld [vmem:[#allocation9 + $0x168] sm:$0xff]
    %v3504 = vld [vmem:[#allocation9 + $0x170] sm:$0xff]
    %v3505 = vld [vmem:[#allocation9 + $0x178] sm:$0xff]
    %v3506 = vld [vmem:[#allocation9 + $0x180] sm:$0xff]
    %v3507 = vld [vmem:[#allocation9 + $0x188] sm:$0xff]
    %v3508 = vld [vmem:[#allocation9 + $0x190] sm:$0xff]
    %v3509 = vld [vmem:[#allocation9 + $0x198] sm:$0xff]
    %v3510 = vld [vmem:[#allocation9 + $0x1a0] sm:$0xff]
    %v3511 = vld [vmem:[#allocation9 + $0x1a8] sm:$0xff]
    %v3512 = vld [vmem:[#allocation9 + $0x1b0] sm:$0xff]
    %v3513 = vld [vmem:[#allocation9 + $0x1b8] sm:$0xff]
    %v3514 = vld [vmem:[#allocation9 + $0x1c0] sm:$0xff]
    %v3515 = vld [vmem:[#allocation9 + $0x1c8] sm:$0xff]
    %v3516 = vld [vmem:[#allocation9 + $0x1d0] sm:$0xff]
    %v3517 = vld [vmem:[#allocation9 + $0x1d8] sm:$0xff]
    %v3518 = vld [vmem:[#allocation9 + $0x1e0] sm:$0xff]
    %v3519 = vld [vmem:[#allocation9 + $0x1e8] sm:$0xff]
    %v3520 = vld [vmem:[#allocation9 + $0x1f0] sm:$0xff]
    %v3521 = vld [vmem:[#allocation9 + $0x1f8] sm:$0xff]
    %3522 = vmatprep.subr.mxu0 %v3519
    %3523 = vmatpush1.msra.mxu0 %v3518
    %3524 = vmatprep.subr.mxu0 %v3515
    %3525 = vmatpush1.msra.mxu0 %v3514
    %3526 = vmatprep.subr.mxu0 %v3511
    %3527 = vmatpush1.msra.mxu0 %v3510
    %3528 = vmatprep.subr.mxu0 %v3507
    %3529 = vmatpush1.msra.mxu0 %v3506
    %3530 = vmatprep.subr.mxu0 %v3503
    %3531 = vmatpush1.msra.mxu0 %v3502
    %3532 = vmatprep.subr.mxu0 %v3499
    %3533 = vmatpush1.msra.mxu0 %v3498
    %3534 = vmatprep.subr.mxu0 %v3495
    %3535 = vmatpush1.msra.mxu0 %v3494
    %3536 = vmatprep.subr.mxu0 %v3491
    %3537 = vmatpush1.msra.mxu0 %v3490
    %3538 = vmatprep.subr.mxu0 %v3487
    %3539 = vmatpush1.msra.mxu0 %v3486
    %3540 = vmatprep.subr.mxu0 %v3483
    %3541 = vmatpush1.msra.mxu0 %v3482
    %3542 = vmatprep.subr.mxu0 %v3479
    %3543 = vmatpush1.msra.mxu0 %v3478
    %3544 = vmatprep.subr.mxu0 %v3475
    %3545 = vmatpush1.msra.mxu0 %v3474
    %3546 = vmatprep.subr.mxu0 %v3471
    %3547 = vmatpush1.msra.mxu0 %v3470
    %3548 = vmatprep.subr.mxu0 %v3467
    %3549 = vmatpush1.msra.mxu0 %v3466
    %3550 = vmatprep.subr.mxu0 %v3463
    %3551 = vmatpush1.msra.mxu0 %v3462
    %3552 = vmatprep.subr.mxu0 %v3459
    %3553 = vmatpush1.msra.mxu0 %v3458
    %3554 = vmatprep.subr.mxu0 0.0
    %3555 = vmatpush2.msra.mxu0 0.0
    %3556 = vmatprep.subr.mxu0 0.0
    %3557 = vmatpush2.msra.mxu0 0.0
    %3558 = vmatprep.subr.mxu0 0.0
    %3559 = vmatpush2.msra.mxu0 0.0
    %3560 = vmatprep.subr.mxu0 0.0
    %3561 = vmatpush2.msra.mxu0 0.0
    %3562 = vmatprep.subr.mxu0 0.0
    %3563 = vmatpush2.msra.mxu0 0.0
    %3564 = vmatprep.subr.mxu0 0.0
    %3565 = vmatpush2.msra.mxu0 0.0
    %3566 = vmatprep.subr.mxu0 0.0
    %3567 = vmatpush2.msra.mxu0 0.0
    %3568 = vmatprep.subr.mxu0 0.0
    %3569 = vmatpush2.msra.mxu0 0.0
    %3570 = vmatprep.subr.mxu0 0.0
    %3571 = vmatpush2.msra.mxu0 0.0
    %3572 = vmatprep.subr.mxu0 0.0
    %3573 = vmatpush2.msra.mxu0 0.0
    %3574 = vmatprep.subr.mxu0 0.0
    %3575 = vmatpush2.msra.mxu0 0.0
    %3576 = vmatprep.subr.mxu0 0.0
    %3577 = vmatpush2.msra.mxu0 0.0
    %3578 = vmatprep.subr.mxu0 0.0
    %3579 = vmatpush2.msra.mxu0 0.0
    %3580 = vmatprep.subr.mxu0 0.0
    %3581 = vmatpush2.msra.mxu0 0.0
    %3582 = vmatprep.subr.mxu0 0.0
    %3583 = vmatpush2.msra.mxu0 0.0
    %3584 = vmatprep.subr.mxu0 0.0
    %3585 = vmatpush2.msra.mxu0 0.0
    %3586 = vmatprep.mubr.f32.mxu0 0.0
    %3587 = vmatmul.mubr.f32.gmra.mxu0 %v3016
    %v3588 = vpop.f32.mrf.mxu0
    %v3589 = vadd.f32 0.0, %v3588
    %v3590 = vpop.f32.mrf.mxu0
    %v3591 = vadd.f32 0.0, %v3590
    %3592 = vdwg.mxu0
    %3593 = vmatprep.subr.mxu0 %v3521
    %3594 = vmatpush1.msra.mxu0 %v3520
    %3595 = vmatprep.subr.mxu0 %v3517
    %3596 = vmatpush1.msra.mxu0 %v3516
    %3597 = vmatprep.subr.mxu0 %v3513
    %3598 = vmatpush1.msra.mxu0 %v3512
    %3599 = vmatprep.subr.mxu0 %v3509
    %3600 = vmatpush1.msra.mxu0 %v3508
    %3601 = vmatprep.subr.mxu0 %v3505
    %3602 = vmatpush1.msra.mxu0 %v3504
    %3603 = vmatprep.subr.mxu0 %v3501
    %3604 = vmatpush1.msra.mxu0 %v3500
    %3605 = vmatprep.subr.mxu0 %v3497
    %3606 = vmatpush1.msra.mxu0 %v3496
    %3607 = vmatprep.subr.mxu0 %v3493
    %3608 = vmatpush1.msra.mxu0 %v3492
    %3609 = vmatprep.subr.mxu0 %v3489
    %3610 = vmatpush1.msra.mxu0 %v3488
    %3611 = vmatprep.subr.mxu0 %v3485
    %3612 = vmatpush1.msra.mxu0 %v3484
    %3613 = vmatprep.subr.mxu0 %v3481
    %3614 = vmatpush1.msra.mxu0 %v3480
    %3615 = vmatprep.subr.mxu0 %v3477
    %3616 = vmatpush1.msra.mxu0 %v3476
    %3617 = vmatprep.subr.mxu0 %v3473
    %3618 = vmatpush1.msra.mxu0 %v3472
    %3619 = vmatprep.subr.mxu0 %v3469
    %3620 = vmatpush1.msra.mxu0 %v3468
    %3621 = vmatprep.subr.mxu0 %v3465
    %3622 = vmatpush1.msra.mxu0 %v3464
    %3623 = vmatprep.subr.mxu0 %v3461
    %3624 = vmatpush1.msra.mxu0 %v3460
    %3625 = vmatprep.subr.mxu0 0.0
    %3626 = vmatpush2.msra.mxu0 0.0
    %3627 = vmatprep.subr.mxu0 0.0
    %3628 = vmatpush2.msra.mxu0 0.0
    %3629 = vmatprep.subr.mxu0 0.0
    %3630 = vmatpush2.msra.mxu0 0.0
    %3631 = vmatprep.subr.mxu0 0.0
    %3632 = vmatpush2.msra.mxu0 0.0
    %3633 = vmatprep.subr.mxu0 0.0
    %3634 = vmatpush2.msra.mxu0 0.0
    %3635 = vmatprep.subr.mxu0 0.0
    %3636 = vmatpush2.msra.mxu0 0.0
    %3637 = vmatprep.subr.mxu0 0.0
    %3638 = vmatpush2.msra.mxu0 0.0
    %3639 = vmatprep.subr.mxu0 0.0
    %3640 = vmatpush2.msra.mxu0 0.0
    %3641 = vmatprep.subr.mxu0 0.0
    %3642 = vmatpush2.msra.mxu0 0.0
    %3643 = vmatprep.subr.mxu0 0.0
    %3644 = vmatpush2.msra.mxu0 0.0
    %3645 = vmatprep.subr.mxu0 0.0
    %3646 = vmatpush2.msra.mxu0 0.0
    %3647 = vmatprep.subr.mxu0 0.0
    %3648 = vmatpush2.msra.mxu0 0.0
    %3649 = vmatprep.subr.mxu0 0.0
    %3650 = vmatpush2.msra.mxu0 0.0
    %3651 = vmatprep.subr.mxu0 0.0
    %3652 = vmatpush2.msra.mxu0 0.0
    %3653 = vmatprep.subr.mxu0 0.0
    %3654 = vmatpush2.msra.mxu0 0.0
    %3655 = vmatprep.subr.mxu0 0.0
    %3656 = vmatpush2.msra.mxu0 0.0
    %3657 = vmatprep.mubr.f32.mxu0 0.0
    %3658 = vmatmul.mubr.f32.gmra.mxu0 %v3016
    %v3659 = vpop.f32.mrf.mxu0
    %v3660 = vadd.f32 0.0, %v3659
    %v3661 = vpop.f32.mrf.mxu0
    %v3662 = vadd.f32 0.0, %v3661
    %3663 = vdwg.mxu0
    %v3664 = vadd.f32 %v3454, %v3589
    %v3665 = vadd.f32 %v3455, %v3591
    %v3666 = vadd.f32 %v3456, %v3660
    %v3667 = vadd.f32 %v3457, %v3662
    %v3668 = vmul.f32 %v3664, 0.5
    %v3669 = vtanh.pop %v3668
    %v3670 = vadd.f32 %v3669, 1.0
    %v3671 = vmul.f32 %v3670, 0.5
    %v3672 = vmul.f32 %v3665, 0.5
    %v3673 = vtanh.pop %v3672
    %v3674 = vadd.f32 %v3673, 1.0
    %v3675 = vmul.f32 %v3674, 0.5
    %v3676 = vtanh.pop %v3666
    %v3677 = vmul.f32 %v3667, 0.5
    %v3678 = vtanh.pop %v3677
    %v3679 = vadd.f32 %v3678, 1.0
    %v3680 = vmul.f32 %v3679, 0.5
    %v3681 = vmul.f32 %v3675, %v3014
    %v3682 = vmul.f32 %v3671, %v3676
    %v3683 = vadd.f32 %v3681, %v3682
    %v3684 = vtanh.pop %v3683
    %v3685 = vmul.f32 %v3680, %v3684
    %v3686 = vld [vmem:[#allocation11] sm:$0xff]
    %v3687 = vld [vmem:[#allocation11 + $0x8] sm:$0xff]
    %v3688 = vld [vmem:[#allocation11 + $0x10] sm:$0xff]
    %v3689 = vld [vmem:[#allocation11 + $0x18] sm:$0xff]
    %v3690 = vld [vmem:[#allocation11 + $0x20] sm:$0xff]
    %v3691 = vld [vmem:[#allocation11 + $0x28] sm:$0xff]
    %v3692 = vld [vmem:[#allocation11 + $0x30] sm:$0xff]
    %v3693 = vld [vmem:[#allocation11 + $0x38] sm:$0xff]
    %v3694 = vld [vmem:[#allocation11 + $0x40] sm:$0xff]
    %v3695 = vld [vmem:[#allocation11 + $0x48] sm:$0xff]
    %v3696 = vld [vmem:[#allocation11 + $0x50] sm:$0xff]
    %v3697 = vld [vmem:[#allocation11 + $0x58] sm:$0xff]
    %v3698 = vld [vmem:[#allocation11 + $0x60] sm:$0xff]
    %v3699 = vld [vmem:[#allocation11 + $0x68] sm:$0xff]
    %v3700 = vld [vmem:[#allocation11 + $0x70] sm:$0xff]
    %v3701 = vld [vmem:[#allocation11 + $0x78] sm:$0xff]
    %v3702 = vld [vmem:[#allocation11 + $0x80] sm:$0xff]
    %v3703 = vld [vmem:[#allocation11 + $0x88] sm:$0xff]
    %v3704 = vld [vmem:[#allocation11 + $0x90] sm:$0xff]
    %v3705 = vld [vmem:[#allocation11 + $0x98] sm:$0xff]
    %v3706 = vld [vmem:[#allocation11 + $0xa0] sm:$0xff]
    %v3707 = vld [vmem:[#allocation11 + $0xa8] sm:$0xff]
    %v3708 = vld [vmem:[#allocation11 + $0xb0] sm:$0xff]
    %v3709 = vld [vmem:[#allocation11 + $0xb8] sm:$0xff]
    %v3710 = vld [vmem:[#allocation11 + $0xc0] sm:$0xff]
    %v3711 = vld [vmem:[#allocation11 + $0xc8] sm:$0xff]
    %v3712 = vld [vmem:[#allocation11 + $0xd0] sm:$0xff]
    %v3713 = vld [vmem:[#allocation11 + $0xd8] sm:$0xff]
    %v3714 = vld [vmem:[#allocation11 + $0xe0] sm:$0xff]
    %v3715 = vld [vmem:[#allocation11 + $0xe8] sm:$0xff]
    %v3716 = vld [vmem:[#allocation11 + $0xf0] sm:$0xff]
    %v3717 = vld [vmem:[#allocation11 + $0xf8] sm:$0xff]
    %v3718 = vld [vmem:[#allocation11 + $0x100] sm:$0xff]
    %v3719 = vld [vmem:[#allocation11 + $0x108] sm:$0xff]
    %v3720 = vld [vmem:[#allocation11 + $0x110] sm:$0xff]
    %v3721 = vld [vmem:[#allocation11 + $0x118] sm:$0xff]
    %v3722 = vld [vmem:[#allocation11 + $0x120] sm:$0xff]
    %v3723 = vld [vmem:[#allocation11 + $0x128] sm:$0xff]
    %v3724 = vld [vmem:[#allocation11 + $0x130] sm:$0xff]
    %v3725 = vld [vmem:[#allocation11 + $0x138] sm:$0xff]
    %v3726 = vld [vmem:[#allocation11 + $0x140] sm:$0xff]
    %v3727 = vld [vmem:[#allocation11 + $0x148] sm:$0xff]
    %v3728 = vld [vmem:[#allocation11 + $0x150] sm:$0xff]
    %v3729 = vld [vmem:[#allocation11 + $0x158] sm:$0xff]
    %v3730 = vld [vmem:[#allocation11 + $0x160] sm:$0xff]
    %v3731 = vld [vmem:[#allocation11 + $0x168] sm:$0xff]
    %v3732 = vld [vmem:[#allocation11 + $0x170] sm:$0xff]
    %v3733 = vld [vmem:[#allocation11 + $0x178] sm:$0xff]
    %v3734 = vld [vmem:[#allocation11 + $0x180] sm:$0xff]
    %v3735 = vld [vmem:[#allocation11 + $0x188] sm:$0xff]
    %v3736 = vld [vmem:[#allocation11 + $0x190] sm:$0xff]
    %v3737 = vld [vmem:[#allocation11 + $0x198] sm:$0xff]
    %v3738 = vld [vmem:[#allocation11 + $0x1a0] sm:$0xff]
    %v3739 = vld [vmem:[#allocation11 + $0x1a8] sm:$0xff]
    %v3740 = vld [vmem:[#allocation11 + $0x1b0] sm:$0xff]
    %v3741 = vld [vmem:[#allocation11 + $0x1b8] sm:$0xff]
    %v3742 = vld [vmem:[#allocation11 + $0x1c0] sm:$0xff]
    %v3743 = vld [vmem:[#allocation11 + $0x1c8] sm:$0xff]
    %v3744 = vld [vmem:[#allocation11 + $0x1d0] sm:$0xff]
    %v3745 = vld [vmem:[#allocation11 + $0x1d8] sm:$0xff]
    %v3746 = vld [vmem:[#allocation11 + $0x1e0] sm:$0xff]
    %v3747 = vld [vmem:[#allocation11 + $0x1e8] sm:$0xff]
    %v3748 = vld [vmem:[#allocation11 + $0x1f0] sm:$0xff]
    %v3749 = vld [vmem:[#allocation11 + $0x1f8] sm:$0xff]
    %v3750 = vld [vmem:[#allocation12] sm:$0xff]
    %v3751 = vld [vmem:[#allocation12 + $0x8] sm:$0xff]
    %v3752 = vld [vmem:[#allocation12 + $0x10] sm:$0xff]
    %v3753 = vld [vmem:[#allocation12 + $0x18] sm:$0xff]
    %v3754 = vld [vmem:[#allocation12 + $0x20] sm:$0xff]
    %v3755 = vld [vmem:[#allocation12 + $0x28] sm:$0xff]
    %v3756 = vld [vmem:[#allocation12 + $0x30] sm:$0xff]
    %v3757 = vld [vmem:[#allocation12 + $0x38] sm:$0xff]
    %v3758 = vld [vmem:[#allocation12 + $0x40] sm:$0xff]
    %v3759 = vld [vmem:[#allocation12 + $0x48] sm:$0xff]
    %v3760 = vld [vmem:[#allocation12 + $0x50] sm:$0xff]
    %v3761 = vld [vmem:[#allocation12 + $0x58] sm:$0xff]
    %v3762 = vld [vmem:[#allocation12 + $0x60] sm:$0xff]
    %v3763 = vld [vmem:[#allocation12 + $0x68] sm:$0xff]
    %v3764 = vld [vmem:[#allocation12 + $0x70] sm:$0xff]
    %v3765 = vld [vmem:[#allocation12 + $0x78] sm:$0xff]
    %v3766 = vld [vmem:[#allocation12 + $0x80] sm:$0xff]
    %v3767 = vld [vmem:[#allocation12 + $0x88] sm:$0xff]
    %v3768 = vld [vmem:[#allocation12 + $0x90] sm:$0xff]
    %v3769 = vld [vmem:[#allocation12 + $0x98] sm:$0xff]
    %v3770 = vld [vmem:[#allocation12 + $0xa0] sm:$0xff]
    %v3771 = vld [vmem:[#allocation12 + $0xa8] sm:$0xff]
    %v3772 = vld [vmem:[#allocation12 + $0xb0] sm:$0xff]
    %v3773 = vld [vmem:[#allocation12 + $0xb8] sm:$0xff]
    %v3774 = vld [vmem:[#allocation12 + $0xc0] sm:$0xff]
    %v3775 = vld [vmem:[#allocation12 + $0xc8] sm:$0xff]
    %v3776 = vld [vmem:[#allocation12 + $0xd0] sm:$0xff]
    %v3777 = vld [vmem:[#allocation12 + $0xd8] sm:$0xff]
    %v3778 = vld [vmem:[#allocation12 + $0xe0] sm:$0xff]
    %v3779 = vld [vmem:[#allocation12 + $0xe8] sm:$0xff]
    %v3780 = vld [vmem:[#allocation12 + $0xf0] sm:$0xff]
    %v3781 = vld [vmem:[#allocation12 + $0xf8] sm:$0xff]
    %v3782 = vld [vmem:[#allocation12 + $0x100] sm:$0xff]
    %v3783 = vld [vmem:[#allocation12 + $0x108] sm:$0xff]
    %v3784 = vld [vmem:[#allocation12 + $0x110] sm:$0xff]
    %v3785 = vld [vmem:[#allocation12 + $0x118] sm:$0xff]
    %v3786 = vld [vmem:[#allocation12 + $0x120] sm:$0xff]
    %v3787 = vld [vmem:[#allocation12 + $0x128] sm:$0xff]
    %v3788 = vld [vmem:[#allocation12 + $0x130] sm:$0xff]
    %v3789 = vld [vmem:[#allocation12 + $0x138] sm:$0xff]
    %v3790 = vld [vmem:[#allocation12 + $0x140] sm:$0xff]
    %v3791 = vld [vmem:[#allocation12 + $0x148] sm:$0xff]
    %v3792 = vld [vmem:[#allocation12 + $0x150] sm:$0xff]
    %v3793 = vld [vmem:[#allocation12 + $0x158] sm:$0xff]
    %v3794 = vld [vmem:[#allocation12 + $0x160] sm:$0xff]
    %v3795 = vld [vmem:[#allocation12 + $0x168] sm:$0xff]
    %v3796 = vld [vmem:[#allocation12 + $0x170] sm:$0xff]
    %v3797 = vld [vmem:[#allocation12 + $0x178] sm:$0xff]
    %v3798 = vld [vmem:[#allocation12 + $0x180] sm:$0xff]
    %v3799 = vld [vmem:[#allocation12 + $0x188] sm:$0xff]
    %v3800 = vld [vmem:[#allocation12 + $0x190] sm:$0xff]
    %v3801 = vld [vmem:[#allocation12 + $0x198] sm:$0xff]
    %v3802 = vld [vmem:[#allocation12 + $0x1a0] sm:$0xff]
    %v3803 = vld [vmem:[#allocation12 + $0x1a8] sm:$0xff]
    %v3804 = vld [vmem:[#allocation12 + $0x1b0] sm:$0xff]
    %v3805 = vld [vmem:[#allocation12 + $0x1b8] sm:$0xff]
    %v3806 = vld [vmem:[#allocation12 + $0x1c0] sm:$0xff]
    %v3807 = vld [vmem:[#allocation12 + $0x1c8] sm:$0xff]
    %v3808 = vld [vmem:[#allocation12 + $0x1d0] sm:$0xff]
    %v3809 = vld [vmem:[#allocation12 + $0x1d8] sm:$0xff]
    %v3810 = vld [vmem:[#allocation12 + $0x1e0] sm:$0xff]
    %v3811 = vld [vmem:[#allocation12 + $0x1e8] sm:$0xff]
    %v3812 = vld [vmem:[#allocation12 + $0x1f0] sm:$0xff]
    %v3813 = vld [vmem:[#allocation12 + $0x1f8] sm:$0xff]
    %3814 = vmatprep.subr.mxu0 %v3811
    %3815 = vmatpush1.msra.mxu0 %v3810
    %3816 = vmatprep.subr.mxu0 %v3807
    %3817 = vmatpush1.msra.mxu0 %v3806
    %3818 = vmatprep.subr.mxu0 %v3803
    %3819 = vmatpush1.msra.mxu0 %v3802
    %3820 = vmatprep.subr.mxu0 %v3799
    %3821 = vmatpush1.msra.mxu0 %v3798
    %3822 = vmatprep.subr.mxu0 %v3795
    %3823 = vmatpush1.msra.mxu0 %v3794
    %3824 = vmatprep.subr.mxu0 %v3791
    %3825 = vmatpush1.msra.mxu0 %v3790
    %3826 = vmatprep.subr.mxu0 %v3787
    %3827 = vmatpush1.msra.mxu0 %v3786
    %3828 = vmatprep.subr.mxu0 %v3783
    %3829 = vmatpush1.msra.mxu0 %v3782
    %3830 = vmatprep.subr.mxu0 %v3779
    %3831 = vmatpush1.msra.mxu0 %v3778
    %3832 = vmatprep.subr.mxu0 %v3775
    %3833 = vmatpush1.msra.mxu0 %v3774
    %3834 = vmatprep.subr.mxu0 %v3771
    %3835 = vmatpush1.msra.mxu0 %v3770
    %3836 = vmatprep.subr.mxu0 %v3767
    %3837 = vmatpush1.msra.mxu0 %v3766
    %3838 = vmatprep.subr.mxu0 %v3763
    %3839 = vmatpush1.msra.mxu0 %v3762
    %3840 = vmatprep.subr.mxu0 %v3759
    %3841 = vmatpush1.msra.mxu0 %v3758
    %3842 = vmatprep.subr.mxu0 %v3755
    %3843 = vmatpush1.msra.mxu0 %v3754
    %3844 = vmatprep.subr.mxu0 %v3751
    %3845 = vmatpush1.msra.mxu0 %v3750
    %3846 = vmatprep.subr.mxu0 0.0
    %3847 = vmatpush2.msra.mxu0 0.0
    %3848 = vmatprep.subr.mxu0 0.0
    %3849 = vmatpush2.msra.mxu0 0.0
    %3850 = vmatprep.subr.mxu0 0.0
    %3851 = vmatpush2.msra.mxu0 0.0
    %3852 = vmatprep.subr.mxu0 0.0
    %3853 = vmatpush2.msra.mxu0 0.0
    %3854 = vmatprep.subr.mxu0 0.0
    %3855 = vmatpush2.msra.mxu0 0.0
    %3856 = vmatprep.subr.mxu0 0.0
    %3857 = vmatpush2.msra.mxu0 0.0
    %3858 = vmatprep.subr.mxu0 0.0
    %3859 = vmatpush2.msra.mxu0 0.0
    %3860 = vmatprep.subr.mxu0 0.0
    %3861 = vmatpush2.msra.mxu0 0.0
    %3862 = vmatprep.subr.mxu0 0.0
    %3863 = vmatpush2.msra.mxu0 0.0
    %3864 = vmatprep.subr.mxu0 0.0
    %3865 = vmatpush2.msra.mxu0 0.0
    %3866 = vmatprep.subr.mxu0 0.0
    %3867 = vmatpush2.msra.mxu0 0.0
    %3868 = vmatprep.subr.mxu0 0.0
    %3869 = vmatpush2.msra.mxu0 0.0
    %3870 = vmatprep.subr.mxu0 0.0
    %3871 = vmatpush2.msra.mxu0 0.0
    %3872 = vmatprep.subr.mxu0 0.0
    %3873 = vmatpush2.msra.mxu0 0.0
    %3874 = vmatprep.subr.mxu0 0.0
    %3875 = vmatpush2.msra.mxu0 0.0
    %3876 = vmatprep.subr.mxu0 0.0
    %3877 = vmatpush2.msra.mxu0 0.0
    %3878 = vmatprep.mubr.f32.mxu0 0.0
    %3879 = vmatmul.mubr.f32.gmra.mxu0 %v3450
    %v3880 = vpop.f32.mrf.mxu0
    %v3881 = vadd.f32 0.0, %v3880
    %v3882 = vpop.f32.mrf.mxu0
    %v3883 = vadd.f32 0.0, %v3882
    %3884 = vdwg.mxu0
    %3885 = vmatprep.subr.mxu0 %v3813
    %3886 = vmatpush1.msra.mxu0 %v3812
    %3887 = vmatprep.subr.mxu0 %v3809
    %3888 = vmatpush1.msra.mxu0 %v3808
    %3889 = vmatprep.subr.mxu0 %v3805
    %3890 = vmatpush1.msra.mxu0 %v3804
    %3891 = vmatprep.subr.mxu0 %v3801
    %3892 = vmatpush1.msra.mxu0 %v3800
    %3893 = vmatprep.subr.mxu0 %v3797
    %3894 = vmatpush1.msra.mxu0 %v3796
    %3895 = vmatprep.subr.mxu0 %v3793
    %3896 = vmatpush1.msra.mxu0 %v3792
    %3897 = vmatprep.subr.mxu0 %v3789
    %3898 = vmatpush1.msra.mxu0 %v3788
    %3899 = vmatprep.subr.mxu0 %v3785
    %3900 = vmatpush1.msra.mxu0 %v3784
    %3901 = vmatprep.subr.mxu0 %v3781
    %3902 = vmatpush1.msra.mxu0 %v3780
    %3903 = vmatprep.subr.mxu0 %v3777
    %3904 = vmatpush1.msra.mxu0 %v3776
    %3905 = vmatprep.subr.mxu0 %v3773
    %3906 = vmatpush1.msra.mxu0 %v3772
    %3907 = vmatprep.subr.mxu0 %v3769
    %3908 = vmatpush1.msra.mxu0 %v3768
    %3909 = vmatprep.subr.mxu0 %v3765
    %3910 = vmatpush1.msra.mxu0 %v3764
    %3911 = vmatprep.subr.mxu0 %v3761
    %3912 = vmatpush1.msra.mxu0 %v3760
    %3913 = vmatprep.subr.mxu0 %v3757
    %3914 = vmatpush1.msra.mxu0 %v3756
    %3915 = vmatprep.subr.mxu0 %v3753
    %3916 = vmatpush1.msra.mxu0 %v3752
    %3917 = vmatprep.subr.mxu0 0.0
    %3918 = vmatpush2.msra.mxu0 0.0
    %3919 = vmatprep.subr.mxu0 0.0
    %3920 = vmatpush2.msra.mxu0 0.0
    %3921 = vmatprep.subr.mxu0 0.0
    %3922 = vmatpush2.msra.mxu0 0.0
    %3923 = vmatprep.subr.mxu0 0.0
    %3924 = vmatpush2.msra.mxu0 0.0
    %3925 = vmatprep.subr.mxu0 0.0
    %3926 = vmatpush2.msra.mxu0 0.0
    %3927 = vmatprep.subr.mxu0 0.0
    %3928 = vmatpush2.msra.mxu0 0.0
    %3929 = vmatprep.subr.mxu0 0.0
    %3930 = vmatpush2.msra.mxu0 0.0
    %3931 = vmatprep.subr.mxu0 0.0
    %3932 = vmatpush2.msra.mxu0 0.0
    %3933 = vmatprep.subr.mxu0 0.0
    %3934 = vmatpush2.msra.mxu0 0.0
    %3935 = vmatprep.subr.mxu0 0.0
    %3936 = vmatpush2.msra.mxu0 0.0
    %3937 = vmatprep.subr.mxu0 0.0
    %3938 = vmatpush2.msra.mxu0 0.0
    %3939 = vmatprep.subr.mxu0 0.0
    %3940 = vmatpush2.msra.mxu0 0.0
    %3941 = vmatprep.subr.mxu0 0.0
    %3942 = vmatpush2.msra.mxu0 0.0
    %3943 = vmatprep.subr.mxu0 0.0
    %3944 = vmatpush2.msra.mxu0 0.0
    %3945 = vmatprep.subr.mxu0 0.0
    %3946 = vmatpush2.msra.mxu0 0.0
    %3947 = vmatprep.subr.mxu0 0.0
    %3948 = vmatpush2.msra.mxu0 0.0
    %3949 = vmatprep.mubr.f32.mxu0 0.0
    %3950 = vmatmul.mubr.f32.gmra.mxu0 %v3450
    %v3951 = vpop.f32.mrf.mxu0
    %v3952 = vadd.f32 0.0, %v3951
    %v3953 = vpop.f32.mrf.mxu0
    %v3954 = vadd.f32 0.0, %v3953
    %3955 = vdwg.mxu0
    %3956 = vmatprep.subr.mxu0 %v3747
    %3957 = vmatpush1.msra.mxu0 %v3746
    %3958 = vmatprep.subr.mxu0 %v3743
    %3959 = vmatpush1.msra.mxu0 %v3742
    %3960 = vmatprep.subr.mxu0 %v3739
    %3961 = vmatpush1.msra.mxu0 %v3738
    %3962 = vmatprep.subr.mxu0 %v3735
    %3963 = vmatpush1.msra.mxu0 %v3734
    %3964 = vmatprep.subr.mxu0 %v3731
    %3965 = vmatpush1.msra.mxu0 %v3730
    %3966 = vmatprep.subr.mxu0 %v3727
    %3967 = vmatpush1.msra.mxu0 %v3726
    %3968 = vmatprep.subr.mxu0 %v3723
    %3969 = vmatpush1.msra.mxu0 %v3722
    %3970 = vmatprep.subr.mxu0 %v3719
    %3971 = vmatpush1.msra.mxu0 %v3718
    %3972 = vmatprep.subr.mxu0 %v3715
    %3973 = vmatpush1.msra.mxu0 %v3714
    %3974 = vmatprep.subr.mxu0 %v3711
    %3975 = vmatpush1.msra.mxu0 %v3710
    %3976 = vmatprep.subr.mxu0 %v3707
    %3977 = vmatpush1.msra.mxu0 %v3706
    %3978 = vmatprep.subr.mxu0 %v3703
    %3979 = vmatpush1.msra.mxu0 %v3702
    %3980 = vmatprep.subr.mxu0 %v3699
    %3981 = vmatpush1.msra.mxu0 %v3698
    %3982 = vmatprep.subr.mxu0 %v3695
    %3983 = vmatpush1.msra.mxu0 %v3694
    %3984 = vmatprep.subr.mxu0 %v3691
    %3985 = vmatpush1.msra.mxu0 %v3690
    %3986 = vmatprep.subr.mxu0 %v3687
    %3987 = vmatpush1.msra.mxu0 %v3686
    %3988 = vmatprep.subr.mxu0 0.0
    %3989 = vmatpush2.msra.mxu0 0.0
    %3990 = vmatprep.subr.mxu0 0.0
    %3991 = vmatpush2.msra.mxu0 0.0
    %3992 = vmatprep.subr.mxu0 0.0
    %3993 = vmatpush2.msra.mxu0 0.0
    %3994 = vmatprep.subr.mxu0 0.0
    %3995 = vmatpush2.msra.mxu0 0.0
    %3996 = vmatprep.subr.mxu0 0.0
    %3997 = vmatpush2.msra.mxu0 0.0
    %3998 = vmatprep.subr.mxu0 0.0
    %3999 = vmatpush2.msra.mxu0 0.0
    %4000 = vmatprep.subr.mxu0 0.0
    %4001 = vmatpush2.msra.mxu0 0.0
    %4002 = vmatprep.subr.mxu0 0.0
    %4003 = vmatpush2.msra.mxu0 0.0
    %4004 = vmatprep.subr.mxu0 0.0
    %4005 = vmatpush2.msra.mxu0 0.0
    %4006 = vmatprep.subr.mxu0 0.0
    %4007 = vmatpush2.msra.mxu0 0.0
    %4008 = vmatprep.subr.mxu0 0.0
    %4009 = vmatpush2.msra.mxu0 0.0
    %4010 = vmatprep.subr.mxu0 0.0
    %4011 = vmatpush2.msra.mxu0 0.0
    %4012 = vmatprep.subr.mxu0 0.0
    %4013 = vmatpush2.msra.mxu0 0.0
    %4014 = vmatprep.subr.mxu0 0.0
    %4015 = vmatpush2.msra.mxu0 0.0
    %4016 = vmatprep.subr.mxu0 0.0
    %4017 = vmatpush2.msra.mxu0 0.0
    %4018 = vmatprep.subr.mxu0 0.0
    %4019 = vmatpush2.msra.mxu0 0.0
    %4020 = vmatprep.mubr.f32.mxu0 0.0
    %4021 = vmatmul.mubr.f32.gmra.mxu0 %v3685
    %v4022 = vpop.f32.mrf.mxu0
    %v4023 = vadd.f32 %v3881, %v4022
    %v4024 = vpop.f32.mrf.mxu0
    %v4025 = vadd.f32 %v3883, %v4024
    %4026 = vdwg.mxu0
    %4027 = vmatprep.subr.mxu0 %v3749
    %4028 = vmatpush1.msra.mxu0 %v3748
    %4029 = vmatprep.subr.mxu0 %v3745
    %4030 = vmatpush1.msra.mxu0 %v3744
    %4031 = vmatprep.subr.mxu0 %v3741
    %4032 = vmatpush1.msra.mxu0 %v3740
    %4033 = vmatprep.subr.mxu0 %v3737
    %4034 = vmatpush1.msra.mxu0 %v3736
    %4035 = vmatprep.subr.mxu0 %v3733
    %4036 = vmatpush1.msra.mxu0 %v3732
    %4037 = vmatprep.subr.mxu0 %v3729
    %4038 = vmatpush1.msra.mxu0 %v3728
    %4039 = vmatprep.subr.mxu0 %v3725
    %4040 = vmatpush1.msra.mxu0 %v3724
    %4041 = vmatprep.subr.mxu0 %v3721
    %4042 = vmatpush1.msra.mxu0 %v3720
    %4043 = vmatprep.subr.mxu0 %v3717
    %4044 = vmatpush1.msra.mxu0 %v3716
    %4045 = vmatprep.subr.mxu0 %v3713
    %4046 = vmatpush1.msra.mxu0 %v3712
    %4047 = vmatprep.subr.mxu0 %v3709
    %4048 = vmatpush1.msra.mxu0 %v3708
    %4049 = vmatprep.subr.mxu0 %v3705
    %4050 = vmatpush1.msra.mxu0 %v3704
    %4051 = vmatprep.subr.mxu0 %v3701
    %4052 = vmatpush1.msra.mxu0 %v3700
    %4053 = vmatprep.subr.mxu0 %v3697
    %4054 = vmatpush1.msra.mxu0 %v3696
    %4055 = vmatprep.subr.mxu0 %v3693
    %4056 = vmatpush1.msra.mxu0 %v3692
    %4057 = vmatprep.subr.mxu0 %v3689
    %4058 = vmatpush1.msra.mxu0 %v3688
    %4059 = vmatprep.subr.mxu0 0.0
    %4060 = vmatpush2.msra.mxu0 0.0
    %4061 = vmatprep.subr.mxu0 0.0
    %4062 = vmatpush2.msra.mxu0 0.0
    %4063 = vmatprep.subr.mxu0 0.0
    %4064 = vmatpush2.msra.mxu0 0.0
    %4065 = vmatprep.subr.mxu0 0.0
    %4066 = vmatpush2.msra.mxu0 0.0
    %4067 = vmatprep.subr.mxu0 0.0
    %4068 = vmatpush2.msra.mxu0 0.0
    %4069 = vmatprep.subr.mxu0 0.0
    %4070 = vmatpush2.msra.mxu0 0.0
    %4071 = vmatprep.subr.mxu0 0.0
    %4072 = vmatpush2.msra.mxu0 0.0
    %4073 = vmatprep.subr.mxu0 0.0
    %4074 = vmatpush2.msra.mxu0 0.0
    %4075 = vmatprep.subr.mxu0 0.0
    %4076 = vmatpush2.msra.mxu0 0.0
    %4077 = vmatprep.subr.mxu0 0.0
    %4078 = vmatpush2.msra.mxu0 0.0
    %4079 = vmatprep.subr.mxu0 0.0
    %4080 = vmatpush2.msra.mxu0 0.0
    %4081 = vmatprep.subr.mxu0 0.0
    %4082 = vmatpush2.msra.mxu0 0.0
    %4083 = vmatprep.subr.mxu0 0.0
    %4084 = vmatpush2.msra.mxu0 0.0
    %4085 = vmatprep.subr.mxu0 0.0
    %4086 = vmatpush2.msra.mxu0 0.0
    %4087 = vmatprep.subr.mxu0 0.0
    %4088 = vmatpush2.msra.mxu0 0.0
    %4089 = vmatprep.subr.mxu0 0.0
    %4090 = vmatpush2.msra.mxu0 0.0
    %4091 = vmatprep.mubr.f32.mxu0 0.0
    %4092 = vmatmul.mubr.f32.gmra.mxu0 %v3685
    %v4093 = vpop.f32.mrf.mxu0
    %v4094 = vadd.f32 %v3952, %v4093
    %v4095 = vpop.f32.mrf.mxu0
    %v4096 = vadd.f32 %v3954, %v4095
    %4097 = vdwg.mxu0
    %v4098 = vadd.f32 %v4023, %v89
    %v4099 = vadd.f32 %v4025, %v93
    %v4100 = vadd.f32 %v4094, %v97
    %v4101 = vadd.f32 %v4096, %v101
    %v4102 = vmul.f32 %v4098, 0.5
    %v4103 = vtanh.pop %v4102
    %v4104 = vadd.f32 %v4103, 1.0
    %v4105 = vmul.f32 %v4104, 0.5
    %v4106 = vmul.f32 %v4099, 0.5
    %v4107 = vtanh.pop %v4106
    %v4108 = vadd.f32 %v4107, 1.0
    %v4109 = vmul.f32 %v4108, 0.5
    %v4110 = vtanh.pop %v4100
    %v4111 = vmul.f32 %v4101, 0.5
    %v4112 = vtanh.pop %v4111
    %v4113 = vadd.f32 %v4112, 1.0
    %v4114 = vmul.f32 %v4113, 0.5
    %v4115 = vmul.f32 %v4109, %v3448
    %v4116 = vmul.f32 %v4105, %v4110
    %v4117 = vadd.f32 %v4115, %v4116
    %v4118 = vtanh.pop %v4117
    %v4119 = vmul.f32 %v4114, %v4118
    %s4120 = scalar_lea.vmem [#allocation14], 40
    %4121 = vst [vmem:[%s4120] sm:$0xff] %v4119
    %s4122 = scalar_lea.vmem [#allocation6], 192
    %v4123 = vld [vmem:[%s4122] sm:$0xff]
    %v4124 = vld [vmem:[%s4122 + $0x8] sm:$0xff]
    %v4125 = vld [vmem:[%s4122 + $0x10] sm:$0xff]
    %v4126 = vld [vmem:[%s4122 + $0x18] sm:$0xff]
    %v4127 = vld [vmem:[#allocation9] sm:$0xff]
    %v4128 = vld [vmem:[#allocation9 + $0x8] sm:$0xff]
    %v4129 = vld [vmem:[#allocation9 + $0x10] sm:$0xff]
    %v4130 = vld [vmem:[#allocation9 + $0x18] sm:$0xff]
    %v4131 = vld [vmem:[#allocation9 + $0x20] sm:$0xff]
    %v4132 = vld [vmem:[#allocation9 + $0x28] sm:$0xff]
    %v4133 = vld [vmem:[#allocation9 + $0x30] sm:$0xff]
    %v4134 = vld [vmem:[#allocation9 + $0x38] sm:$0xff]
    %v4135 = vld [vmem:[#allocation9 + $0x40] sm:$0xff]
    %v4136 = vld [vmem:[#allocation9 + $0x48] sm:$0xff]
    %v4137 = vld [vmem:[#allocation9 + $0x50] sm:$0xff]
    %v4138 = vld [vmem:[#allocation9 + $0x58] sm:$0xff]
    %v4139 = vld [vmem:[#allocation9 + $0x60] sm:$0xff]
    %v4140 = vld [vmem:[#allocation9 + $0x68] sm:$0xff]
    %v4141 = vld [vmem:[#allocation9 + $0x70] sm:$0xff]
    %v4142 = vld [vmem:[#allocation9 + $0x78] sm:$0xff]
    %v4143 = vld [vmem:[#allocation9 + $0x80] sm:$0xff]
    %v4144 = vld [vmem:[#allocation9 + $0x88] sm:$0xff]
    %v4145 = vld [vmem:[#allocation9 + $0x90] sm:$0xff]
    %v4146 = vld [vmem:[#allocation9 + $0x98] sm:$0xff]
    %v4147 = vld [vmem:[#allocation9 + $0xa0] sm:$0xff]
    %v4148 = vld [vmem:[#allocation9 + $0xa8] sm:$0xff]
    %v4149 = vld [vmem:[#allocation9 + $0xb0] sm:$0xff]
    %v4150 = vld [vmem:[#allocation9 + $0xb8] sm:$0xff]
    %v4151 = vld [vmem:[#allocation9 + $0xc0] sm:$0xff]
    %v4152 = vld [vmem:[#allocation9 + $0xc8] sm:$0xff]
    %v4153 = vld [vmem:[#allocation9 + $0xd0] sm:$0xff]
    %v4154 = vld [vmem:[#allocation9 + $0xd8] sm:$0xff]
    %v4155 = vld [vmem:[#allocation9 + $0xe0] sm:$0xff]
    %v4156 = vld [vmem:[#allocation9 + $0xe8] sm:$0xff]
    %v4157 = vld [vmem:[#allocation9 + $0xf0] sm:$0xff]
    %v4158 = vld [vmem:[#allocation9 + $0xf8] sm:$0xff]
    %v4159 = vld [vmem:[#allocation9 + $0x100] sm:$0xff]
    %v4160 = vld [vmem:[#allocation9 + $0x108] sm:$0xff]
    %v4161 = vld [vmem:[#allocation9 + $0x110] sm:$0xff]
    %v4162 = vld [vmem:[#allocation9 + $0x118] sm:$0xff]
    %v4163 = vld [vmem:[#allocation9 + $0x120] sm:$0xff]
    %v4164 = vld [vmem:[#allocation9 + $0x128] sm:$0xff]
    %v4165 = vld [vmem:[#allocation9 + $0x130] sm:$0xff]
    %v4166 = vld [vmem:[#allocation9 + $0x138] sm:$0xff]
    %v4167 = vld [vmem:[#allocation9 + $0x140] sm:$0xff]
    %v4168 = vld [vmem:[#allocation9 + $0x148] sm:$0xff]
    %v4169 = vld [vmem:[#allocation9 + $0x150] sm:$0xff]
    %v4170 = vld [vmem:[#allocation9 + $0x158] sm:$0xff]
    %v4171 = vld [vmem:[#allocation9 + $0x160] sm:$0xff]
    %v4172 = vld [vmem:[#allocation9 + $0x168] sm:$0xff]
    %v4173 = vld [vmem:[#allocation9 + $0x170] sm:$0xff]
    %v4174 = vld [vmem:[#allocation9 + $0x178] sm:$0xff]
    %v4175 = vld [vmem:[#allocation9 + $0x180] sm:$0xff]
    %v4176 = vld [vmem:[#allocation9 + $0x188] sm:$0xff]
    %v4177 = vld [vmem:[#allocation9 + $0x190] sm:$0xff]
    %v4178 = vld [vmem:[#allocation9 + $0x198] sm:$0xff]
    %v4179 = vld [vmem:[#allocation9 + $0x1a0] sm:$0xff]
    %v4180 = vld [vmem:[#allocation9 + $0x1a8] sm:$0xff]
    %v4181 = vld [vmem:[#allocation9 + $0x1b0] sm:$0xff]
    %v4182 = vld [vmem:[#allocation9 + $0x1b8] sm:$0xff]
    %v4183 = vld [vmem:[#allocation9 + $0x1c0] sm:$0xff]
    %v4184 = vld [vmem:[#allocation9 + $0x1c8] sm:$0xff]
    %v4185 = vld [vmem:[#allocation9 + $0x1d0] sm:$0xff]
    %v4186 = vld [vmem:[#allocation9 + $0x1d8] sm:$0xff]
    %v4187 = vld [vmem:[#allocation9 + $0x1e0] sm:$0xff]
    %v4188 = vld [vmem:[#allocation9 + $0x1e8] sm:$0xff]
    %v4189 = vld [vmem:[#allocation9 + $0x1f0] sm:$0xff]
    %v4190 = vld [vmem:[#allocation9 + $0x1f8] sm:$0xff]
    %4191 = vmatprep.subr.mxu0 %v4188
    %4192 = vmatpush1.msra.mxu0 %v4187
    %4193 = vmatprep.subr.mxu0 %v4184
    %4194 = vmatpush1.msra.mxu0 %v4183
    %4195 = vmatprep.subr.mxu0 %v4180
    %4196 = vmatpush1.msra.mxu0 %v4179
    %4197 = vmatprep.subr.mxu0 %v4176
    %4198 = vmatpush1.msra.mxu0 %v4175
    %4199 = vmatprep.subr.mxu0 %v4172
    %4200 = vmatpush1.msra.mxu0 %v4171
    %4201 = vmatprep.subr.mxu0 %v4168
    %4202 = vmatpush1.msra.mxu0 %v4167
    %4203 = vmatprep.subr.mxu0 %v4164
    %4204 = vmatpush1.msra.mxu0 %v4163
    %4205 = vmatprep.subr.mxu0 %v4160
    %4206 = vmatpush1.msra.mxu0 %v4159
    %4207 = vmatprep.subr.mxu0 %v4156
    %4208 = vmatpush1.msra.mxu0 %v4155
    %4209 = vmatprep.subr.mxu0 %v4152
    %4210 = vmatpush1.msra.mxu0 %v4151
    %4211 = vmatprep.subr.mxu0 %v4148
    %4212 = vmatpush1.msra.mxu0 %v4147
    %4213 = vmatprep.subr.mxu0 %v4144
    %4214 = vmatpush1.msra.mxu0 %v4143
    %4215 = vmatprep.subr.mxu0 %v4140
    %4216 = vmatpush1.msra.mxu0 %v4139
    %4217 = vmatprep.subr.mxu0 %v4136
    %4218 = vmatpush1.msra.mxu0 %v4135
    %4219 = vmatprep.subr.mxu0 %v4132
    %4220 = vmatpush1.msra.mxu0 %v4131
    %4221 = vmatprep.subr.mxu0 %v4128
    %4222 = vmatpush1.msra.mxu0 %v4127
    %4223 = vmatprep.subr.mxu0 0.0
    %4224 = vmatpush2.msra.mxu0 0.0
    %4225 = vmatprep.subr.mxu0 0.0
    %4226 = vmatpush2.msra.mxu0 0.0
    %4227 = vmatprep.subr.mxu0 0.0
    %4228 = vmatpush2.msra.mxu0 0.0
    %4229 = vmatprep.subr.mxu0 0.0
    %4230 = vmatpush2.msra.mxu0 0.0
    %4231 = vmatprep.subr.mxu0 0.0
    %4232 = vmatpush2.msra.mxu0 0.0
    %4233 = vmatprep.subr.mxu0 0.0
    %4234 = vmatpush2.msra.mxu0 0.0
    %4235 = vmatprep.subr.mxu0 0.0
    %4236 = vmatpush2.msra.mxu0 0.0
    %4237 = vmatprep.subr.mxu0 0.0
    %4238 = vmatpush2.msra.mxu0 0.0
    %4239 = vmatprep.subr.mxu0 0.0
    %4240 = vmatpush2.msra.mxu0 0.0
    %4241 = vmatprep.subr.mxu0 0.0
    %4242 = vmatpush2.msra.mxu0 0.0
    %4243 = vmatprep.subr.mxu0 0.0
    %4244 = vmatpush2.msra.mxu0 0.0
    %4245 = vmatprep.subr.mxu0 0.0
    %4246 = vmatpush2.msra.mxu0 0.0
    %4247 = vmatprep.subr.mxu0 0.0
    %4248 = vmatpush2.msra.mxu0 0.0
    %4249 = vmatprep.subr.mxu0 0.0
    %4250 = vmatpush2.msra.mxu0 0.0
    %4251 = vmatprep.subr.mxu0 0.0
    %4252 = vmatpush2.msra.mxu0 0.0
    %4253 = vmatprep.subr.mxu0 0.0
    %4254 = vmatpush2.msra.mxu0 0.0
    %4255 = vmatprep.mubr.f32.mxu0 0.0
    %4256 = vmatmul.mubr.f32.gmra.mxu0 %v3685
    %v4257 = vpop.f32.mrf.mxu0
    %v4258 = vadd.f32 0.0, %v4257
    %v4259 = vpop.f32.mrf.mxu0
    %v4260 = vadd.f32 0.0, %v4259
    %4261 = vdwg.mxu0
    %4262 = vmatprep.subr.mxu0 %v4190
    %4263 = vmatpush1.msra.mxu0 %v4189
    %4264 = vmatprep.subr.mxu0 %v4186
    %4265 = vmatpush1.msra.mxu0 %v4185
    %4266 = vmatprep.subr.mxu0 %v4182
    %4267 = vmatpush1.msra.mxu0 %v4181
    %4268 = vmatprep.subr.mxu0 %v4178
    %4269 = vmatpush1.msra.mxu0 %v4177
    %4270 = vmatprep.subr.mxu0 %v4174
    %4271 = vmatpush1.msra.mxu0 %v4173
    %4272 = vmatprep.subr.mxu0 %v4170
    %4273 = vmatpush1.msra.mxu0 %v4169
    %4274 = vmatprep.subr.mxu0 %v4166
    %4275 = vmatpush1.msra.mxu0 %v4165
    %4276 = vmatprep.subr.mxu0 %v4162
    %4277 = vmatpush1.msra.mxu0 %v4161
    %4278 = vmatprep.subr.mxu0 %v4158
    %4279 = vmatpush1.msra.mxu0 %v4157
    %4280 = vmatprep.subr.mxu0 %v4154
    %4281 = vmatpush1.msra.mxu0 %v4153
    %4282 = vmatprep.subr.mxu0 %v4150
    %4283 = vmatpush1.msra.mxu0 %v4149
    %4284 = vmatprep.subr.mxu0 %v4146
    %4285 = vmatpush1.msra.mxu0 %v4145
    %4286 = vmatprep.subr.mxu0 %v4142
    %4287 = vmatpush1.msra.mxu0 %v4141
    %4288 = vmatprep.subr.mxu0 %v4138
    %4289 = vmatpush1.msra.mxu0 %v4137
    %4290 = vmatprep.subr.mxu0 %v4134
    %4291 = vmatpush1.msra.mxu0 %v4133
    %4292 = vmatprep.subr.mxu0 %v4130
    %4293 = vmatpush1.msra.mxu0 %v4129
    %4294 = vmatprep.subr.mxu0 0.0
    %4295 = vmatpush2.msra.mxu0 0.0
    %4296 = vmatprep.subr.mxu0 0.0
    %4297 = vmatpush2.msra.mxu0 0.0
    %4298 = vmatprep.subr.mxu0 0.0
    %4299 = vmatpush2.msra.mxu0 0.0
    %4300 = vmatprep.subr.mxu0 0.0
    %4301 = vmatpush2.msra.mxu0 0.0
    %4302 = vmatprep.subr.mxu0 0.0
    %4303 = vmatpush2.msra.mxu0 0.0
    %4304 = vmatprep.subr.mxu0 0.0
    %4305 = vmatpush2.msra.mxu0 0.0
    %4306 = vmatprep.subr.mxu0 0.0
    %4307 = vmatpush2.msra.mxu0 0.0
    %4308 = vmatprep.subr.mxu0 0.0
    %4309 = vmatpush2.msra.mxu0 0.0
    %4310 = vmatprep.subr.mxu0 0.0
    %4311 = vmatpush2.msra.mxu0 0.0
    %4312 = vmatprep.subr.mxu0 0.0
    %4313 = vmatpush2.msra.mxu0 0.0
    %4314 = vmatprep.subr.mxu0 0.0
    %4315 = vmatpush2.msra.mxu0 0.0
    %4316 = vmatprep.subr.mxu0 0.0
    %4317 = vmatpush2.msra.mxu0 0.0
    %4318 = vmatprep.subr.mxu0 0.0
    %4319 = vmatpush2.msra.mxu0 0.0
    %4320 = vmatprep.subr.mxu0 0.0
    %4321 = vmatpush2.msra.mxu0 0.0
    %4322 = vmatprep.subr.mxu0 0.0
    %4323 = vmatpush2.msra.mxu0 0.0
    %4324 = vmatprep.subr.mxu0 0.0
    %4325 = vmatpush2.msra.mxu0 0.0
    %4326 = vmatprep.mubr.f32.mxu0 0.0
    %4327 = vmatmul.mubr.f32.gmra.mxu0 %v3685
    %v4328 = vpop.f32.mrf.mxu0
    %v4329 = vadd.f32 0.0, %v4328
    %v4330 = vpop.f32.mrf.mxu0
    %v4331 = vadd.f32 0.0, %v4330
    %4332 = vdwg.mxu0
    %v4333 = vadd.f32 %v4123, %v4258
    %v4334 = vadd.f32 %v4124, %v4260
    %v4335 = vadd.f32 %v4125, %v4329
    %v4336 = vadd.f32 %v4126, %v4331
    %v4337 = vmul.f32 %v4333, 0.5
    %v4338 = vtanh.pop %v4337
    %v4339 = vadd.f32 %v4338, 1.0
    %v4340 = vmul.f32 %v4339, 0.5
    %v4341 = vmul.f32 %v4334, 0.5
    %v4342 = vtanh.pop %v4341
    %v4343 = vadd.f32 %v4342, 1.0
    %v4344 = vmul.f32 %v4343, 0.5
    %v4345 = vtanh.pop %v4335
    %v4346 = vmul.f32 %v4336, 0.5
    %v4347 = vtanh.pop %v4346
    %v4348 = vadd.f32 %v4347, 1.0
    %v4349 = vmul.f32 %v4348, 0.5
    %v4350 = vmul.f32 %v4344, %v3683
    %v4351 = vmul.f32 %v4340, %v4345
    %v4352 = vadd.f32 %v4350, %v4351
    %v4353 = vtanh.pop %v4352
    %v4354 = vmul.f32 %v4349, %v4353
    %v4355 = vld [vmem:[#allocation11] sm:$0xff]
    %v4356 = vld [vmem:[#allocation11 + $0x8] sm:$0xff]
    %v4357 = vld [vmem:[#allocation11 + $0x10] sm:$0xff]
    %v4358 = vld [vmem:[#allocation11 + $0x18] sm:$0xff]
    %v4359 = vld [vmem:[#allocation11 + $0x20] sm:$0xff]
    %v4360 = vld [vmem:[#allocation11 + $0x28] sm:$0xff]
    %v4361 = vld [vmem:[#allocation11 + $0x30] sm:$0xff]
    %v4362 = vld [vmem:[#allocation11 + $0x38] sm:$0xff]
    %v4363 = vld [vmem:[#allocation11 + $0x40] sm:$0xff]
    %v4364 = vld [vmem:[#allocation11 + $0x48] sm:$0xff]
    %v4365 = vld [vmem:[#allocation11 + $0x50] sm:$0xff]
    %v4366 = vld [vmem:[#allocation11 + $0x58] sm:$0xff]
    %v4367 = vld [vmem:[#allocation11 + $0x60] sm:$0xff]
    %v4368 = vld [vmem:[#allocation11 + $0x68] sm:$0xff]
    %v4369 = vld [vmem:[#allocation11 + $0x70] sm:$0xff]
    %v4370 = vld [vmem:[#allocation11 + $0x78] sm:$0xff]
    %v4371 = vld [vmem:[#allocation11 + $0x80] sm:$0xff]
    %v4372 = vld [vmem:[#allocation11 + $0x88] sm:$0xff]
    %v4373 = vld [vmem:[#allocation11 + $0x90] sm:$0xff]
    %v4374 = vld [vmem:[#allocation11 + $0x98] sm:$0xff]
    %v4375 = vld [vmem:[#allocation11 + $0xa0] sm:$0xff]
    %v4376 = vld [vmem:[#allocation11 + $0xa8] sm:$0xff]
    %v4377 = vld [vmem:[#allocation11 + $0xb0] sm:$0xff]
    %v4378 = vld [vmem:[#allocation11 + $0xb8] sm:$0xff]
    %v4379 = vld [vmem:[#allocation11 + $0xc0] sm:$0xff]
    %v4380 = vld [vmem:[#allocation11 + $0xc8] sm:$0xff]
    %v4381 = vld [vmem:[#allocation11 + $0xd0] sm:$0xff]
    %v4382 = vld [vmem:[#allocation11 + $0xd8] sm:$0xff]
    %v4383 = vld [vmem:[#allocation11 + $0xe0] sm:$0xff]
    %v4384 = vld [vmem:[#allocation11 + $0xe8] sm:$0xff]
    %v4385 = vld [vmem:[#allocation11 + $0xf0] sm:$0xff]
    %v4386 = vld [vmem:[#allocation11 + $0xf8] sm:$0xff]
    %v4387 = vld [vmem:[#allocation11 + $0x100] sm:$0xff]
    %v4388 = vld [vmem:[#allocation11 + $0x108] sm:$0xff]
    %v4389 = vld [vmem:[#allocation11 + $0x110] sm:$0xff]
    %v4390 = vld [vmem:[#allocation11 + $0x118] sm:$0xff]
    %v4391 = vld [vmem:[#allocation11 + $0x120] sm:$0xff]
    %v4392 = vld [vmem:[#allocation11 + $0x128] sm:$0xff]
    %v4393 = vld [vmem:[#allocation11 + $0x130] sm:$0xff]
    %v4394 = vld [vmem:[#allocation11 + $0x138] sm:$0xff]
    %v4395 = vld [vmem:[#allocation11 + $0x140] sm:$0xff]
    %v4396 = vld [vmem:[#allocation11 + $0x148] sm:$0xff]
    %v4397 = vld [vmem:[#allocation11 + $0x150] sm:$0xff]
    %v4398 = vld [vmem:[#allocation11 + $0x158] sm:$0xff]
    %v4399 = vld [vmem:[#allocation11 + $0x160] sm:$0xff]
    %v4400 = vld [vmem:[#allocation11 + $0x168] sm:$0xff]
    %v4401 = vld [vmem:[#allocation11 + $0x170] sm:$0xff]
    %v4402 = vld [vmem:[#allocation11 + $0x178] sm:$0xff]
    %v4403 = vld [vmem:[#allocation11 + $0x180] sm:$0xff]
    %v4404 = vld [vmem:[#allocation11 + $0x188] sm:$0xff]
    %v4405 = vld [vmem:[#allocation11 + $0x190] sm:$0xff]
    %v4406 = vld [vmem:[#allocation11 + $0x198] sm:$0xff]
    %v4407 = vld [vmem:[#allocation11 + $0x1a0] sm:$0xff]
    %v4408 = vld [vmem:[#allocation11 + $0x1a8] sm:$0xff]
    %v4409 = vld [vmem:[#allocation11 + $0x1b0] sm:$0xff]
    %v4410 = vld [vmem:[#allocation11 + $0x1b8] sm:$0xff]
    %v4411 = vld [vmem:[#allocation11 + $0x1c0] sm:$0xff]
    %v4412 = vld [vmem:[#allocation11 + $0x1c8] sm:$0xff]
    %v4413 = vld [vmem:[#allocation11 + $0x1d0] sm:$0xff]
    %v4414 = vld [vmem:[#allocation11 + $0x1d8] sm:$0xff]
    %v4415 = vld [vmem:[#allocation11 + $0x1e0] sm:$0xff]
    %v4416 = vld [vmem:[#allocation11 + $0x1e8] sm:$0xff]
    %v4417 = vld [vmem:[#allocation11 + $0x1f0] sm:$0xff]
    %v4418 = vld [vmem:[#allocation11 + $0x1f8] sm:$0xff]
    %v4419 = vld [vmem:[#allocation12] sm:$0xff]
    %v4420 = vld [vmem:[#allocation12 + $0x8] sm:$0xff]
    %v4421 = vld [vmem:[#allocation12 + $0x10] sm:$0xff]
    %v4422 = vld [vmem:[#allocation12 + $0x18] sm:$0xff]
    %v4423 = vld [vmem:[#allocation12 + $0x20] sm:$0xff]
    %v4424 = vld [vmem:[#allocation12 + $0x28] sm:$0xff]
    %v4425 = vld [vmem:[#allocation12 + $0x30] sm:$0xff]
    %v4426 = vld [vmem:[#allocation12 + $0x38] sm:$0xff]
    %v4427 = vld [vmem:[#allocation12 + $0x40] sm:$0xff]
    %v4428 = vld [vmem:[#allocation12 + $0x48] sm:$0xff]
    %v4429 = vld [vmem:[#allocation12 + $0x50] sm:$0xff]
    %v4430 = vld [vmem:[#allocation12 + $0x58] sm:$0xff]
    %v4431 = vld [vmem:[#allocation12 + $0x60] sm:$0xff]
    %v4432 = vld [vmem:[#allocation12 + $0x68] sm:$0xff]
    %v4433 = vld [vmem:[#allocation12 + $0x70] sm:$0xff]
    %v4434 = vld [vmem:[#allocation12 + $0x78] sm:$0xff]
    %v4435 = vld [vmem:[#allocation12 + $0x80] sm:$0xff]
    %v4436 = vld [vmem:[#allocation12 + $0x88] sm:$0xff]
    %v4437 = vld [vmem:[#allocation12 + $0x90] sm:$0xff]
    %v4438 = vld [vmem:[#allocation12 + $0x98] sm:$0xff]
    %v4439 = vld [vmem:[#allocation12 + $0xa0] sm:$0xff]
    %v4440 = vld [vmem:[#allocation12 + $0xa8] sm:$0xff]
    %v4441 = vld [vmem:[#allocation12 + $0xb0] sm:$0xff]
    %v4442 = vld [vmem:[#allocation12 + $0xb8] sm:$0xff]
    %v4443 = vld [vmem:[#allocation12 + $0xc0] sm:$0xff]
    %v4444 = vld [vmem:[#allocation12 + $0xc8] sm:$0xff]
    %v4445 = vld [vmem:[#allocation12 + $0xd0] sm:$0xff]
    %v4446 = vld [vmem:[#allocation12 + $0xd8] sm:$0xff]
    %v4447 = vld [vmem:[#allocation12 + $0xe0] sm:$0xff]
    %v4448 = vld [vmem:[#allocation12 + $0xe8] sm:$0xff]
    %v4449 = vld [vmem:[#allocation12 + $0xf0] sm:$0xff]
    %v4450 = vld [vmem:[#allocation12 + $0xf8] sm:$0xff]
    %v4451 = vld [vmem:[#allocation12 + $0x100] sm:$0xff]
    %v4452 = vld [vmem:[#allocation12 + $0x108] sm:$0xff]
    %v4453 = vld [vmem:[#allocation12 + $0x110] sm:$0xff]
    %v4454 = vld [vmem:[#allocation12 + $0x118] sm:$0xff]
    %v4455 = vld [vmem:[#allocation12 + $0x120] sm:$0xff]
    %v4456 = vld [vmem:[#allocation12 + $0x128] sm:$0xff]
    %v4457 = vld [vmem:[#allocation12 + $0x130] sm:$0xff]
    %v4458 = vld [vmem:[#allocation12 + $0x138] sm:$0xff]
    %v4459 = vld [vmem:[#allocation12 + $0x140] sm:$0xff]
    %v4460 = vld [vmem:[#allocation12 + $0x148] sm:$0xff]
    %v4461 = vld [vmem:[#allocation12 + $0x150] sm:$0xff]
    %v4462 = vld [vmem:[#allocation12 + $0x158] sm:$0xff]
    %v4463 = vld [vmem:[#allocation12 + $0x160] sm:$0xff]
    %v4464 = vld [vmem:[#allocation12 + $0x168] sm:$0xff]
    %v4465 = vld [vmem:[#allocation12 + $0x170] sm:$0xff]
    %v4466 = vld [vmem:[#allocation12 + $0x178] sm:$0xff]
    %v4467 = vld [vmem:[#allocation12 + $0x180] sm:$0xff]
    %v4468 = vld [vmem:[#allocation12 + $0x188] sm:$0xff]
    %v4469 = vld [vmem:[#allocation12 + $0x190] sm:$0xff]
    %v4470 = vld [vmem:[#allocation12 + $0x198] sm:$0xff]
    %v4471 = vld [vmem:[#allocation12 + $0x1a0] sm:$0xff]
    %v4472 = vld [vmem:[#allocation12 + $0x1a8] sm:$0xff]
    %v4473 = vld [vmem:[#allocation12 + $0x1b0] sm:$0xff]
    %v4474 = vld [vmem:[#allocation12 + $0x1b8] sm:$0xff]
    %v4475 = vld [vmem:[#allocation12 + $0x1c0] sm:$0xff]
    %v4476 = vld [vmem:[#allocation12 + $0x1c8] sm:$0xff]
    %v4477 = vld [vmem:[#allocation12 + $0x1d0] sm:$0xff]
    %v4478 = vld [vmem:[#allocation12 + $0x1d8] sm:$0xff]
    %v4479 = vld [vmem:[#allocation12 + $0x1e0] sm:$0xff]
    %v4480 = vld [vmem:[#allocation12 + $0x1e8] sm:$0xff]
    %v4481 = vld [vmem:[#allocation12 + $0x1f0] sm:$0xff]
    %v4482 = vld [vmem:[#allocation12 + $0x1f8] sm:$0xff]
    %4483 = vmatprep.subr.mxu0 %v4480
    %4484 = vmatpush1.msra.mxu0 %v4479
    %4485 = vmatprep.subr.mxu0 %v4476
    %4486 = vmatpush1.msra.mxu0 %v4475
    %4487 = vmatprep.subr.mxu0 %v4472
    %4488 = vmatpush1.msra.mxu0 %v4471
    %4489 = vmatprep.subr.mxu0 %v4468
    %4490 = vmatpush1.msra.mxu0 %v4467
    %4491 = vmatprep.subr.mxu0 %v4464
    %4492 = vmatpush1.msra.mxu0 %v4463
    %4493 = vmatprep.subr.mxu0 %v4460
    %4494 = vmatpush1.msra.mxu0 %v4459
    %4495 = vmatprep.subr.mxu0 %v4456
    %4496 = vmatpush1.msra.mxu0 %v4455
    %4497 = vmatprep.subr.mxu0 %v4452
    %4498 = vmatpush1.msra.mxu0 %v4451
    %4499 = vmatprep.subr.mxu0 %v4448
    %4500 = vmatpush1.msra.mxu0 %v4447
    %4501 = vmatprep.subr.mxu0 %v4444
    %4502 = vmatpush1.msra.mxu0 %v4443
    %4503 = vmatprep.subr.mxu0 %v4440
    %4504 = vmatpush1.msra.mxu0 %v4439
    %4505 = vmatprep.subr.mxu0 %v4436
    %4506 = vmatpush1.msra.mxu0 %v4435
    %4507 = vmatprep.subr.mxu0 %v4432
    %4508 = vmatpush1.msra.mxu0 %v4431
    %4509 = vmatprep.subr.mxu0 %v4428
    %4510 = vmatpush1.msra.mxu0 %v4427
    %4511 = vmatprep.subr.mxu0 %v4424
    %4512 = vmatpush1.msra.mxu0 %v4423
    %4513 = vmatprep.subr.mxu0 %v4420
    %4514 = vmatpush1.msra.mxu0 %v4419
    %4515 = vmatprep.subr.mxu0 0.0
    %4516 = vmatpush2.msra.mxu0 0.0
    %4517 = vmatprep.subr.mxu0 0.0
    %4518 = vmatpush2.msra.mxu0 0.0
    %4519 = vmatprep.subr.mxu0 0.0
    %4520 = vmatpush2.msra.mxu0 0.0
    %4521 = vmatprep.subr.mxu0 0.0
    %4522 = vmatpush2.msra.mxu0 0.0
    %4523 = vmatprep.subr.mxu0 0.0
    %4524 = vmatpush2.msra.mxu0 0.0
    %4525 = vmatprep.subr.mxu0 0.0
    %4526 = vmatpush2.msra.mxu0 0.0
    %4527 = vmatprep.subr.mxu0 0.0
    %4528 = vmatpush2.msra.mxu0 0.0
    %4529 = vmatprep.subr.mxu0 0.0
    %4530 = vmatpush2.msra.mxu0 0.0
    %4531 = vmatprep.subr.mxu0 0.0
    %4532 = vmatpush2.msra.mxu0 0.0
    %4533 = vmatprep.subr.mxu0 0.0
    %4534 = vmatpush2.msra.mxu0 0.0
    %4535 = vmatprep.subr.mxu0 0.0
    %4536 = vmatpush2.msra.mxu0 0.0
    %4537 = vmatprep.subr.mxu0 0.0
    %4538 = vmatpush2.msra.mxu0 0.0
    %4539 = vmatprep.subr.mxu0 0.0
    %4540 = vmatpush2.msra.mxu0 0.0
    %4541 = vmatprep.subr.mxu0 0.0
    %4542 = vmatpush2.msra.mxu0 0.0
    %4543 = vmatprep.subr.mxu0 0.0
    %4544 = vmatpush2.msra.mxu0 0.0
    %4545 = vmatprep.subr.mxu0 0.0
    %4546 = vmatpush2.msra.mxu0 0.0
    %4547 = vmatprep.mubr.f32.mxu0 0.0
    %4548 = vmatmul.mubr.f32.gmra.mxu0 %v4119
    %v4549 = vpop.f32.mrf.mxu0
    %v4550 = vadd.f32 0.0, %v4549
    %v4551 = vpop.f32.mrf.mxu0
    %v4552 = vadd.f32 0.0, %v4551
    %4553 = vdwg.mxu0
    %4554 = vmatprep.subr.mxu0 %v4482
    %4555 = vmatpush1.msra.mxu0 %v4481
    %4556 = vmatprep.subr.mxu0 %v4478
    %4557 = vmatpush1.msra.mxu0 %v4477
    %4558 = vmatprep.subr.mxu0 %v4474
    %4559 = vmatpush1.msra.mxu0 %v4473
    %4560 = vmatprep.subr.mxu0 %v4470
    %4561 = vmatpush1.msra.mxu0 %v4469
    %4562 = vmatprep.subr.mxu0 %v4466
    %4563 = vmatpush1.msra.mxu0 %v4465
    %4564 = vmatprep.subr.mxu0 %v4462
    %4565 = vmatpush1.msra.mxu0 %v4461
    %4566 = vmatprep.subr.mxu0 %v4458
    %4567 = vmatpush1.msra.mxu0 %v4457
    %4568 = vmatprep.subr.mxu0 %v4454
    %4569 = vmatpush1.msra.mxu0 %v4453
    %4570 = vmatprep.subr.mxu0 %v4450
    %4571 = vmatpush1.msra.mxu0 %v4449
    %4572 = vmatprep.subr.mxu0 %v4446
    %4573 = vmatpush1.msra.mxu0 %v4445
    %4574 = vmatprep.subr.mxu0 %v4442
    %4575 = vmatpush1.msra.mxu0 %v4441
    %4576 = vmatprep.subr.mxu0 %v4438
    %4577 = vmatpush1.msra.mxu0 %v4437
    %4578 = vmatprep.subr.mxu0 %v4434
    %4579 = vmatpush1.msra.mxu0 %v4433
    %4580 = vmatprep.subr.mxu0 %v4430
    %4581 = vmatpush1.msra.mxu0 %v4429
    %4582 = vmatprep.subr.mxu0 %v4426
    %4583 = vmatpush1.msra.mxu0 %v4425
    %4584 = vmatprep.subr.mxu0 %v4422
    %4585 = vmatpush1.msra.mxu0 %v4421
    %4586 = vmatprep.subr.mxu0 0.0
    %4587 = vmatpush2.msra.mxu0 0.0
    %4588 = vmatprep.subr.mxu0 0.0
    %4589 = vmatpush2.msra.mxu0 0.0
    %4590 = vmatprep.subr.mxu0 0.0
    %4591 = vmatpush2.msra.mxu0 0.0
    %4592 = vmatprep.subr.mxu0 0.0
    %4593 = vmatpush2.msra.mxu0 0.0
    %4594 = vmatprep.subr.mxu0 0.0
    %4595 = vmatpush2.msra.mxu0 0.0
    %4596 = vmatprep.subr.mxu0 0.0
    %4597 = vmatpush2.msra.mxu0 0.0
    %4598 = vmatprep.subr.mxu0 0.0
    %4599 = vmatpush2.msra.mxu0 0.0
    %4600 = vmatprep.subr.mxu0 0.0
    %4601 = vmatpush2.msra.mxu0 0.0
    %4602 = vmatprep.subr.mxu0 0.0
    %4603 = vmatpush2.msra.mxu0 0.0
    %4604 = vmatprep.subr.mxu0 0.0
    %4605 = vmatpush2.msra.mxu0 0.0
    %4606 = vmatprep.subr.mxu0 0.0
    %4607 = vmatpush2.msra.mxu0 0.0
    %4608 = vmatprep.subr.mxu0 0.0
    %4609 = vmatpush2.msra.mxu0 0.0
    %4610 = vmatprep.subr.mxu0 0.0
    %4611 = vmatpush2.msra.mxu0 0.0
    %4612 = vmatprep.subr.mxu0 0.0
    %4613 = vmatpush2.msra.mxu0 0.0
    %4614 = vmatprep.subr.mxu0 0.0
    %4615 = vmatpush2.msra.mxu0 0.0
    %4616 = vmatprep.subr.mxu0 0.0
    %4617 = vmatpush2.msra.mxu0 0.0
    %4618 = vmatprep.mubr.f32.mxu0 0.0
    %4619 = vmatmul.mubr.f32.gmra.mxu0 %v4119
    %v4620 = vpop.f32.mrf.mxu0
    %v4621 = vadd.f32 0.0, %v4620
    %v4622 = vpop.f32.mrf.mxu0
    %v4623 = vadd.f32 0.0, %v4622
    %4624 = vdwg.mxu0
    %4625 = vmatprep.subr.mxu0 %v4416
    %4626 = vmatpush1.msra.mxu0 %v4415
    %4627 = vmatprep.subr.mxu0 %v4412
    %4628 = vmatpush1.msra.mxu0 %v4411
    %4629 = vmatprep.subr.mxu0 %v4408
    %4630 = vmatpush1.msra.mxu0 %v4407
    %4631 = vmatprep.subr.mxu0 %v4404
    %4632 = vmatpush1.msra.mxu0 %v4403
    %4633 = vmatprep.subr.mxu0 %v4400
    %4634 = vmatpush1.msra.mxu0 %v4399
    %4635 = vmatprep.subr.mxu0 %v4396
    %4636 = vmatpush1.msra.mxu0 %v4395
    %4637 = vmatprep.subr.mxu0 %v4392
    %4638 = vmatpush1.msra.mxu0 %v4391
    %4639 = vmatprep.subr.mxu0 %v4388
    %4640 = vmatpush1.msra.mxu0 %v4387
    %4641 = vmatprep.subr.mxu0 %v4384
    %4642 = vmatpush1.msra.mxu0 %v4383
    %4643 = vmatprep.subr.mxu0 %v4380
    %4644 = vmatpush1.msra.mxu0 %v4379
    %4645 = vmatprep.subr.mxu0 %v4376
    %4646 = vmatpush1.msra.mxu0 %v4375
    %4647 = vmatprep.subr.mxu0 %v4372
    %4648 = vmatpush1.msra.mxu0 %v4371
    %4649 = vmatprep.subr.mxu0 %v4368
    %4650 = vmatpush1.msra.mxu0 %v4367
    %4651 = vmatprep.subr.mxu0 %v4364
    %4652 = vmatpush1.msra.mxu0 %v4363
    %4653 = vmatprep.subr.mxu0 %v4360
    %4654 = vmatpush1.msra.mxu0 %v4359
    %4655 = vmatprep.subr.mxu0 %v4356
    %4656 = vmatpush1.msra.mxu0 %v4355
    %4657 = vmatprep.subr.mxu0 0.0
    %4658 = vmatpush2.msra.mxu0 0.0
    %4659 = vmatprep.subr.mxu0 0.0
    %4660 = vmatpush2.msra.mxu0 0.0
    %4661 = vmatprep.subr.mxu0 0.0
    %4662 = vmatpush2.msra.mxu0 0.0
    %4663 = vmatprep.subr.mxu0 0.0
    %4664 = vmatpush2.msra.mxu0 0.0
    %4665 = vmatprep.subr.mxu0 0.0
    %4666 = vmatpush2.msra.mxu0 0.0
    %4667 = vmatprep.subr.mxu0 0.0
    %4668 = vmatpush2.msra.mxu0 0.0
    %4669 = vmatprep.subr.mxu0 0.0
    %4670 = vmatpush2.msra.mxu0 0.0
    %4671 = vmatprep.subr.mxu0 0.0
    %4672 = vmatpush2.msra.mxu0 0.0
    %4673 = vmatprep.subr.mxu0 0.0
    %4674 = vmatpush2.msra.mxu0 0.0
    %4675 = vmatprep.subr.mxu0 0.0
    %4676 = vmatpush2.msra.mxu0 0.0
    %4677 = vmatprep.subr.mxu0 0.0
    %4678 = vmatpush2.msra.mxu0 0.0
    %4679 = vmatprep.subr.mxu0 0.0
    %4680 = vmatpush2.msra.mxu0 0.0
    %4681 = vmatprep.subr.mxu0 0.0
    %4682 = vmatpush2.msra.mxu0 0.0
    %4683 = vmatprep.subr.mxu0 0.0
    %4684 = vmatpush2.msra.mxu0 0.0
    %4685 = vmatprep.subr.mxu0 0.0
    %4686 = vmatpush2.msra.mxu0 0.0
    %4687 = vmatprep.subr.mxu0 0.0
    %4688 = vmatpush2.msra.mxu0 0.0
    %4689 = vmatprep.mubr.f32.mxu0 0.0
    %4690 = vmatmul.mubr.f32.gmra.mxu0 %v4354
    %v4691 = vpop.f32.mrf.mxu0
    %v4692 = vadd.f32 %v4550, %v4691
    %v4693 = vpop.f32.mrf.mxu0
    %v4694 = vadd.f32 %v4552, %v4693
    %4695 = vdwg.mxu0
    %4696 = vmatprep.subr.mxu0 %v4418
    %4697 = vmatpush1.msra.mxu0 %v4417
    %4698 = vmatprep.subr.mxu0 %v4414
    %4699 = vmatpush1.msra.mxu0 %v4413
    %4700 = vmatprep.subr.mxu0 %v4410
    %4701 = vmatpush1.msra.mxu0 %v4409
    %4702 = vmatprep.subr.mxu0 %v4406
    %4703 = vmatpush1.msra.mxu0 %v4405
    %4704 = vmatprep.subr.mxu0 %v4402
    %4705 = vmatpush1.msra.mxu0 %v4401
    %4706 = vmatprep.subr.mxu0 %v4398
    %4707 = vmatpush1.msra.mxu0 %v4397
    %4708 = vmatprep.subr.mxu0 %v4394
    %4709 = vmatpush1.msra.mxu0 %v4393
    %4710 = vmatprep.subr.mxu0 %v4390
    %4711 = vmatpush1.msra.mxu0 %v4389
    %4712 = vmatprep.subr.mxu0 %v4386
    %4713 = vmatpush1.msra.mxu0 %v4385
    %4714 = vmatprep.subr.mxu0 %v4382
    %4715 = vmatpush1.msra.mxu0 %v4381
    %4716 = vmatprep.subr.mxu0 %v4378
    %4717 = vmatpush1.msra.mxu0 %v4377
    %4718 = vmatprep.subr.mxu0 %v4374
    %4719 = vmatpush1.msra.mxu0 %v4373
    %4720 = vmatprep.subr.mxu0 %v4370
    %4721 = vmatpush1.msra.mxu0 %v4369
    %4722 = vmatprep.subr.mxu0 %v4366
    %4723 = vmatpush1.msra.mxu0 %v4365
    %4724 = vmatprep.subr.mxu0 %v4362
    %4725 = vmatpush1.msra.mxu0 %v4361
    %4726 = vmatprep.subr.mxu0 %v4358
    %4727 = vmatpush1.msra.mxu0 %v4357
    %4728 = vmatprep.subr.mxu0 0.0
    %4729 = vmatpush2.msra.mxu0 0.0
    %4730 = vmatprep.subr.mxu0 0.0
    %4731 = vmatpush2.msra.mxu0 0.0
    %4732 = vmatprep.subr.mxu0 0.0
    %4733 = vmatpush2.msra.mxu0 0.0
    %4734 = vmatprep.subr.mxu0 0.0
    %4735 = vmatpush2.msra.mxu0 0.0
    %4736 = vmatprep.subr.mxu0 0.0
    %4737 = vmatpush2.msra.mxu0 0.0
    %4738 = vmatprep.subr.mxu0 0.0
    %4739 = vmatpush2.msra.mxu0 0.0
    %4740 = vmatprep.subr.mxu0 0.0
    %4741 = vmatpush2.msra.mxu0 0.0
    %4742 = vmatprep.subr.mxu0 0.0
    %4743 = vmatpush2.msra.mxu0 0.0
    %4744 = vmatprep.subr.mxu0 0.0
    %4745 = vmatpush2.msra.mxu0 0.0
    %4746 = vmatprep.subr.mxu0 0.0
    %4747 = vmatpush2.msra.mxu0 0.0
    %4748 = vmatprep.subr.mxu0 0.0
    %4749 = vmatpush2.msra.mxu0 0.0
    %4750 = vmatprep.subr.mxu0 0.0
    %4751 = vmatpush2.msra.mxu0 0.0
    %4752 = vmatprep.subr.mxu0 0.0
    %4753 = vmatpush2.msra.mxu0 0.0
    %4754 = vmatprep.subr.mxu0 0.0
    %4755 = vmatpush2.msra.mxu0 0.0
    %4756 = vmatprep.subr.mxu0 0.0
    %4757 = vmatpush2.msra.mxu0 0.0
    %4758 = vmatprep.subr.mxu0 0.0
    %4759 = vmatpush2.msra.mxu0 0.0
    %4760 = vmatprep.mubr.f32.mxu0 0.0
    %4761 = vmatmul.mubr.f32.gmra.mxu0 %v4354
    %v4762 = vpop.f32.mrf.mxu0
    %v4763 = vadd.f32 %v4621, %v4762
    %v4764 = vpop.f32.mrf.mxu0
    %v4765 = vadd.f32 %v4623, %v4764
    %4766 = vdwg.mxu0
    %v4767 = vadd.f32 %v4692, %v89
    %v4768 = vadd.f32 %v4694, %v93
    %v4769 = vadd.f32 %v4763, %v97
    %v4770 = vadd.f32 %v4765, %v101
    %v4771 = vmul.f32 %v4767, 0.5
    %v4772 = vtanh.pop %v4771
    %v4773 = vadd.f32 %v4772, 1.0
    %v4774 = vmul.f32 %v4773, 0.5
    %v4775 = vmul.f32 %v4768, 0.5
    %v4776 = vtanh.pop %v4775
    %v4777 = vadd.f32 %v4776, 1.0
    %v4778 = vmul.f32 %v4777, 0.5
    %v4779 = vtanh.pop %v4769
    %v4780 = vmul.f32 %v4770, 0.5
    %v4781 = vtanh.pop %v4780
    %v4782 = vadd.f32 %v4781, 1.0
    %v4783 = vmul.f32 %v4782, 0.5
    %v4784 = vmul.f32 %v4778, %v4117
    %v4785 = vmul.f32 %v4774, %v4779
    %v4786 = vadd.f32 %v4784, %v4785
    %v4787 = vtanh.pop %v4786
    %v4788 = vmul.f32 %v4783, %v4787
    %s4789 = scalar_lea.vmem [#allocation14], 48
    %4790 = vst [vmem:[%s4789] sm:$0xff] %v4788
    %s4791 = scalar_lea.vmem [#allocation6], 224
    %v4792 = vld [vmem:[%s4791] sm:$0xff]
    %v4793 = vld [vmem:[%s4791 + $0x8] sm:$0xff]
    %v4794 = vld [vmem:[%s4791 + $0x10] sm:$0xff]
    %v4795 = vld [vmem:[%s4791 + $0x18] sm:$0xff]
    %v4796 = vld [vmem:[#allocation9] sm:$0xff]
    %v4797 = vld [vmem:[#allocation9 + $0x8] sm:$0xff]
    %v4798 = vld [vmem:[#allocation9 + $0x10] sm:$0xff]
    %v4799 = vld [vmem:[#allocation9 + $0x18] sm:$0xff]
    %v4800 = vld [vmem:[#allocation9 + $0x20] sm:$0xff]
    %v4801 = vld [vmem:[#allocation9 + $0x28] sm:$0xff]
    %v4802 = vld [vmem:[#allocation9 + $0x30] sm:$0xff]
    %v4803 = vld [vmem:[#allocation9 + $0x38] sm:$0xff]
    %v4804 = vld [vmem:[#allocation9 + $0x40] sm:$0xff]
    %v4805 = vld [vmem:[#allocation9 + $0x48] sm:$0xff]
    %v4806 = vld [vmem:[#allocation9 + $0x50] sm:$0xff]
    %v4807 = vld [vmem:[#allocation9 + $0x58] sm:$0xff]
    %v4808 = vld [vmem:[#allocation9 + $0x60] sm:$0xff]
    %v4809 = vld [vmem:[#allocation9 + $0x68] sm:$0xff]
    %v4810 = vld [vmem:[#allocation9 + $0x70] sm:$0xff]
    %v4811 = vld [vmem:[#allocation9 + $0x78] sm:$0xff]
    %v4812 = vld [vmem:[#allocation9 + $0x80] sm:$0xff]
    %v4813 = vld [vmem:[#allocation9 + $0x88] sm:$0xff]
    %v4814 = vld [vmem:[#allocation9 + $0x90] sm:$0xff]
    %v4815 = vld [vmem:[#allocation9 + $0x98] sm:$0xff]
    %v4816 = vld [vmem:[#allocation9 + $0xa0] sm:$0xff]
    %v4817 = vld [vmem:[#allocation9 + $0xa8] sm:$0xff]
    %v4818 = vld [vmem:[#allocation9 + $0xb0] sm:$0xff]
    %v4819 = vld [vmem:[#allocation9 + $0xb8] sm:$0xff]
    %v4820 = vld [vmem:[#allocation9 + $0xc0] sm:$0xff]
    %v4821 = vld [vmem:[#allocation9 + $0xc8] sm:$0xff]
    %v4822 = vld [vmem:[#allocation9 + $0xd0] sm:$0xff]
    %v4823 = vld [vmem:[#allocation9 + $0xd8] sm:$0xff]
    %v4824 = vld [vmem:[#allocation9 + $0xe0] sm:$0xff]
    %v4825 = vld [vmem:[#allocation9 + $0xe8] sm:$0xff]
    %v4826 = vld [vmem:[#allocation9 + $0xf0] sm:$0xff]
    %v4827 = vld [vmem:[#allocation9 + $0xf8] sm:$0xff]
    %v4828 = vld [vmem:[#allocation9 + $0x100] sm:$0xff]
    %v4829 = vld [vmem:[#allocation9 + $0x108] sm:$0xff]
    %v4830 = vld [vmem:[#allocation9 + $0x110] sm:$0xff]
    %v4831 = vld [vmem:[#allocation9 + $0x118] sm:$0xff]
    %v4832 = vld [vmem:[#allocation9 + $0x120] sm:$0xff]
    %v4833 = vld [vmem:[#allocation9 + $0x128] sm:$0xff]
    %v4834 = vld [vmem:[#allocation9 + $0x130] sm:$0xff]
    %v4835 = vld [vmem:[#allocation9 + $0x138] sm:$0xff]
    %v4836 = vld [vmem:[#allocation9 + $0x140] sm:$0xff]
    %v4837 = vld [vmem:[#allocation9 + $0x148] sm:$0xff]
    %v4838 = vld [vmem:[#allocation9 + $0x150] sm:$0xff]
    %v4839 = vld [vmem:[#allocation9 + $0x158] sm:$0xff]
    %v4840 = vld [vmem:[#allocation9 + $0x160] sm:$0xff]
    %v4841 = vld [vmem:[#allocation9 + $0x168] sm:$0xff]
    %v4842 = vld [vmem:[#allocation9 + $0x170] sm:$0xff]
    %v4843 = vld [vmem:[#allocation9 + $0x178] sm:$0xff]
    %v4844 = vld [vmem:[#allocation9 + $0x180] sm:$0xff]
    %v4845 = vld [vmem:[#allocation9 + $0x188] sm:$0xff]
    %v4846 = vld [vmem:[#allocation9 + $0x190] sm:$0xff]
    %v4847 = vld [vmem:[#allocation9 + $0x198] sm:$0xff]
    %v4848 = vld [vmem:[#allocation9 + $0x1a0] sm:$0xff]
    %v4849 = vld [vmem:[#allocation9 + $0x1a8] sm:$0xff]
    %v4850 = vld [vmem:[#allocation9 + $0x1b0] sm:$0xff]
    %v4851 = vld [vmem:[#allocation9 + $0x1b8] sm:$0xff]
    %v4852 = vld [vmem:[#allocation9 + $0x1c0] sm:$0xff]
    %v4853 = vld [vmem:[#allocation9 + $0x1c8] sm:$0xff]
    %v4854 = vld [vmem:[#allocation9 + $0x1d0] sm:$0xff]
    %v4855 = vld [vmem:[#allocation9 + $0x1d8] sm:$0xff]
    %v4856 = vld [vmem:[#allocation9 + $0x1e0] sm:$0xff]
    %v4857 = vld [vmem:[#allocation9 + $0x1e8] sm:$0xff]
    %v4858 = vld [vmem:[#allocation9 + $0x1f0] sm:$0xff]
    %v4859 = vld [vmem:[#allocation9 + $0x1f8] sm:$0xff]
    %4860 = vmatprep.subr.mxu0 %v4857
    %4861 = vmatpush1.msra.mxu0 %v4856
    %4862 = vmatprep.subr.mxu0 %v4853
    %4863 = vmatpush1.msra.mxu0 %v4852
    %4864 = vmatprep.subr.mxu0 %v4849
    %4865 = vmatpush1.msra.mxu0 %v4848
    %4866 = vmatprep.subr.mxu0 %v4845
    %4867 = vmatpush1.msra.mxu0 %v4844
    %4868 = vmatprep.subr.mxu0 %v4841
    %4869 = vmatpush1.msra.mxu0 %v4840
    %4870 = vmatprep.subr.mxu0 %v4837
    %4871 = vmatpush1.msra.mxu0 %v4836
    %4872 = vmatprep.subr.mxu0 %v4833
    %4873 = vmatpush1.msra.mxu0 %v4832
    %4874 = vmatprep.subr.mxu0 %v4829
    %4875 = vmatpush1.msra.mxu0 %v4828
    %4876 = vmatprep.subr.mxu0 %v4825
    %4877 = vmatpush1.msra.mxu0 %v4824
    %4878 = vmatprep.subr.mxu0 %v4821
    %4879 = vmatpush1.msra.mxu0 %v4820
    %4880 = vmatprep.subr.mxu0 %v4817
    %4881 = vmatpush1.msra.mxu0 %v4816
    %4882 = vmatprep.subr.mxu0 %v4813
    %4883 = vmatpush1.msra.mxu0 %v4812
    %4884 = vmatprep.subr.mxu0 %v4809
    %4885 = vmatpush1.msra.mxu0 %v4808
    %4886 = vmatprep.subr.mxu0 %v4805
    %4887 = vmatpush1.msra.mxu0 %v4804
    %4888 = vmatprep.subr.mxu0 %v4801
    %4889 = vmatpush1.msra.mxu0 %v4800
    %4890 = vmatprep.subr.mxu0 %v4797
    %4891 = vmatpush1.msra.mxu0 %v4796
    %4892 = vmatprep.subr.mxu0 0.0
    %4893 = vmatpush2.msra.mxu0 0.0
    %4894 = vmatprep.subr.mxu0 0.0
    %4895 = vmatpush2.msra.mxu0 0.0
    %4896 = vmatprep.subr.mxu0 0.0
    %4897 = vmatpush2.msra.mxu0 0.0
    %4898 = vmatprep.subr.mxu0 0.0
    %4899 = vmatpush2.msra.mxu0 0.0
    %4900 = vmatprep.subr.mxu0 0.0
    %4901 = vmatpush2.msra.mxu0 0.0
    %4902 = vmatprep.subr.mxu0 0.0
    %4903 = vmatpush2.msra.mxu0 0.0
    %4904 = vmatprep.subr.mxu0 0.0
    %4905 = vmatpush2.msra.mxu0 0.0
    %4906 = vmatprep.subr.mxu0 0.0
    %4907 = vmatpush2.msra.mxu0 0.0
    %4908 = vmatprep.subr.mxu0 0.0
    %4909 = vmatpush2.msra.mxu0 0.0
    %4910 = vmatprep.subr.mxu0 0.0
    %4911 = vmatpush2.msra.mxu0 0.0
    %4912 = vmatprep.subr.mxu0 0.0
    %4913 = vmatpush2.msra.mxu0 0.0
    %4914 = vmatprep.subr.mxu0 0.0
    %4915 = vmatpush2.msra.mxu0 0.0
    %4916 = vmatprep.subr.mxu0 0.0
    %4917 = vmatpush2.msra.mxu0 0.0
    %4918 = vmatprep.subr.mxu0 0.0
    %4919 = vmatpush2.msra.mxu0 0.0
    %4920 = vmatprep.subr.mxu0 0.0
    %4921 = vmatpush2.msra.mxu0 0.0
    %4922 = vmatprep.subr.mxu0 0.0
    %4923 = vmatpush2.msra.mxu0 0.0
    %4924 = vmatprep.mubr.f32.mxu0 0.0
    %4925 = vmatmul.mubr.f32.gmra.mxu0 %v4354
    %v4926 = vpop.f32.mrf.mxu0
    %v4927 = vadd.f32 0.0, %v4926
    %v4928 = vpop.f32.mrf.mxu0
    %v4929 = vadd.f32 0.0, %v4928
    %4930 = vdwg.mxu0
    %4931 = vmatprep.subr.mxu0 %v4859
    %4932 = vmatpush1.msra.mxu0 %v4858
    %4933 = vmatprep.subr.mxu0 %v4855
    %4934 = vmatpush1.msra.mxu0 %v4854
    %4935 = vmatprep.subr.mxu0 %v4851
    %4936 = vmatpush1.msra.mxu0 %v4850
    %4937 = vmatprep.subr.mxu0 %v4847
    %4938 = vmatpush1.msra.mxu0 %v4846
    %4939 = vmatprep.subr.mxu0 %v4843
    %4940 = vmatpush1.msra.mxu0 %v4842
    %4941 = vmatprep.subr.mxu0 %v4839
    %4942 = vmatpush1.msra.mxu0 %v4838
    %4943 = vmatprep.subr.mxu0 %v4835
    %4944 = vmatpush1.msra.mxu0 %v4834
    %4945 = vmatprep.subr.mxu0 %v4831
    %4946 = vmatpush1.msra.mxu0 %v4830
    %4947 = vmatprep.subr.mxu0 %v4827
    %4948 = vmatpush1.msra.mxu0 %v4826
    %4949 = vmatprep.subr.mxu0 %v4823
    %4950 = vmatpush1.msra.mxu0 %v4822
    %4951 = vmatprep.subr.mxu0 %v4819
    %4952 = vmatpush1.msra.mxu0 %v4818
    %4953 = vmatprep.subr.mxu0 %v4815
    %4954 = vmatpush1.msra.mxu0 %v4814
    %4955 = vmatprep.subr.mxu0 %v4811
    %4956 = vmatpush1.msra.mxu0 %v4810
    %4957 = vmatprep.subr.mxu0 %v4807
    %4958 = vmatpush1.msra.mxu0 %v4806
    %4959 = vmatprep.subr.mxu0 %v4803
    %4960 = vmatpush1.msra.mxu0 %v4802
    %4961 = vmatprep.subr.mxu0 %v4799
    %4962 = vmatpush1.msra.mxu0 %v4798
    %4963 = vmatprep.subr.mxu0 0.0
    %4964 = vmatpush2.msra.mxu0 0.0
    %4965 = vmatprep.subr.mxu0 0.0
    %4966 = vmatpush2.msra.mxu0 0.0
    %4967 = vmatprep.subr.mxu0 0.0
    %4968 = vmatpush2.msra.mxu0 0.0
    %4969 = vmatprep.subr.mxu0 0.0
    %4970 = vmatpush2.msra.mxu0 0.0
    %4971 = vmatprep.subr.mxu0 0.0
    %4972 = vmatpush2.msra.mxu0 0.0
    %4973 = vmatprep.subr.mxu0 0.0
    %4974 = vmatpush2.msra.mxu0 0.0
    %4975 = vmatprep.subr.mxu0 0.0
    %4976 = vmatpush2.msra.mxu0 0.0
    %4977 = vmatprep.subr.mxu0 0.0
    %4978 = vmatpush2.msra.mxu0 0.0
    %4979 = vmatprep.subr.mxu0 0.0
    %4980 = vmatpush2.msra.mxu0 0.0
    %4981 = vmatprep.subr.mxu0 0.0
    %4982 = vmatpush2.msra.mxu0 0.0
    %4983 = vmatprep.subr.mxu0 0.0
    %4984 = vmatpush2.msra.mxu0 0.0
    %4985 = vmatprep.subr.mxu0 0.0
    %4986 = vmatpush2.msra.mxu0 0.0
    %4987 = vmatprep.subr.mxu0 0.0
    %4988 = vmatpush2.msra.mxu0 0.0
    %4989 = vmatprep.subr.mxu0 0.0
    %4990 = vmatpush2.msra.mxu0 0.0
    %4991 = vmatprep.subr.mxu0 0.0
    %4992 = vmatpush2.msra.mxu0 0.0
    %4993 = vmatprep.subr.mxu0 0.0
    %4994 = vmatpush2.msra.mxu0 0.0
    %4995 = vmatprep.mubr.f32.mxu0 0.0
    %4996 = vmatmul.mubr.f32.gmra.mxu0 %v4354
    %v4997 = vpop.f32.mrf.mxu0
    %v4998 = vadd.f32 0.0, %v4997
    %v4999 = vpop.f32.mrf.mxu0
    %v5000 = vadd.f32 0.0, %v4999
    %5001 = vdwg.mxu0
    %v5002 = vadd.f32 %v4792, %v4927
    %v5003 = vadd.f32 %v4793, %v4929
    %v5004 = vadd.f32 %v4794, %v4998
    %v5005 = vadd.f32 %v4795, %v5000
    %v5006 = vmul.f32 %v5002, 0.5
    %v5007 = vtanh.pop %v5006
    %v5008 = vadd.f32 %v5007, 1.0
    %v5009 = vmul.f32 %v5008, 0.5
    %v5010 = vmul.f32 %v5003, 0.5
    %v5011 = vtanh.pop %v5010
    %v5012 = vadd.f32 %v5011, 1.0
    %v5013 = vmul.f32 %v5012, 0.5
    %v5014 = vtanh.pop %v5004
    %v5015 = vmul.f32 %v5005, 0.5
    %v5016 = vtanh.pop %v5015
    %v5017 = vadd.f32 %v5016, 1.0
    %v5018 = vmul.f32 %v5017, 0.5
    %v5019 = vmul.f32 %v5013, %v4352
    %v5020 = vmul.f32 %v5009, %v5014
    %v5021 = vadd.f32 %v5019, %v5020
    %v5022 = vtanh.pop %v5021
    %v5023 = vmul.f32 %v5018, %v5022
    %v5024 = vld [vmem:[#allocation11] sm:$0xff]
    %v5025 = vld [vmem:[#allocation11 + $0x8] sm:$0xff]
    %v5026 = vld [vmem:[#allocation11 + $0x10] sm:$0xff]
    %v5027 = vld [vmem:[#allocation11 + $0x18] sm:$0xff]
    %v5028 = vld [vmem:[#allocation11 + $0x20] sm:$0xff]
    %v5029 = vld [vmem:[#allocation11 + $0x28] sm:$0xff]
    %v5030 = vld [vmem:[#allocation11 + $0x30] sm:$0xff]
    %v5031 = vld [vmem:[#allocation11 + $0x38] sm:$0xff]
    %v5032 = vld [vmem:[#allocation11 + $0x40] sm:$0xff]
    %v5033 = vld [vmem:[#allocation11 + $0x48] sm:$0xff]
    %v5034 = vld [vmem:[#allocation11 + $0x50] sm:$0xff]
    %v5035 = vld [vmem:[#allocation11 + $0x58] sm:$0xff]
    %v5036 = vld [vmem:[#allocation11 + $0x60] sm:$0xff]
    %v5037 = vld [vmem:[#allocation11 + $0x68] sm:$0xff]
    %v5038 = vld [vmem:[#allocation11 + $0x70] sm:$0xff]
    %v5039 = vld [vmem:[#allocation11 + $0x78] sm:$0xff]
    %v5040 = vld [vmem:[#allocation11 + $0x80] sm:$0xff]
    %v5041 = vld [vmem:[#allocation11 + $0x88] sm:$0xff]
    %v5042 = vld [vmem:[#allocation11 + $0x90] sm:$0xff]
    %v5043 = vld [vmem:[#allocation11 + $0x98] sm:$0xff]
    %v5044 = vld [vmem:[#allocation11 + $0xa0] sm:$0xff]
    %v5045 = vld [vmem:[#allocation11 + $0xa8] sm:$0xff]
    %v5046 = vld [vmem:[#allocation11 + $0xb0] sm:$0xff]
    %v5047 = vld [vmem:[#allocation11 + $0xb8] sm:$0xff]
    %v5048 = vld [vmem:[#allocation11 + $0xc0] sm:$0xff]
    %v5049 = vld [vmem:[#allocation11 + $0xc8] sm:$0xff]
    %v5050 = vld [vmem:[#allocation11 + $0xd0] sm:$0xff]
    %v5051 = vld [vmem:[#allocation11 + $0xd8] sm:$0xff]
    %v5052 = vld [vmem:[#allocation11 + $0xe0] sm:$0xff]
    %v5053 = vld [vmem:[#allocation11 + $0xe8] sm:$0xff]
    %v5054 = vld [vmem:[#allocation11 + $0xf0] sm:$0xff]
    %v5055 = vld [vmem:[#allocation11 + $0xf8] sm:$0xff]
    %v5056 = vld [vmem:[#allocation11 + $0x100] sm:$0xff]
    %v5057 = vld [vmem:[#allocation11 + $0x108] sm:$0xff]
    %v5058 = vld [vmem:[#allocation11 + $0x110] sm:$0xff]
    %v5059 = vld [vmem:[#allocation11 + $0x118] sm:$0xff]
    %v5060 = vld [vmem:[#allocation11 + $0x120] sm:$0xff]
    %v5061 = vld [vmem:[#allocation11 + $0x128] sm:$0xff]
    %v5062 = vld [vmem:[#allocation11 + $0x130] sm:$0xff]
    %v5063 = vld [vmem:[#allocation11 + $0x138] sm:$0xff]
    %v5064 = vld [vmem:[#allocation11 + $0x140] sm:$0xff]
    %v5065 = vld [vmem:[#allocation11 + $0x148] sm:$0xff]
    %v5066 = vld [vmem:[#allocation11 + $0x150] sm:$0xff]
    %v5067 = vld [vmem:[#allocation11 + $0x158] sm:$0xff]
    %v5068 = vld [vmem:[#allocation11 + $0x160] sm:$0xff]
    %v5069 = vld [vmem:[#allocation11 + $0x168] sm:$0xff]
    %v5070 = vld [vmem:[#allocation11 + $0x170] sm:$0xff]
    %v5071 = vld [vmem:[#allocation11 + $0x178] sm:$0xff]
    %v5072 = vld [vmem:[#allocation11 + $0x180] sm:$0xff]
    %v5073 = vld [vmem:[#allocation11 + $0x188] sm:$0xff]
    %v5074 = vld [vmem:[#allocation11 + $0x190] sm:$0xff]
    %v5075 = vld [vmem:[#allocation11 + $0x198] sm:$0xff]
    %v5076 = vld [vmem:[#allocation11 + $0x1a0] sm:$0xff]
    %v5077 = vld [vmem:[#allocation11 + $0x1a8] sm:$0xff]
    %v5078 = vld [vmem:[#allocation11 + $0x1b0] sm:$0xff]
    %v5079 = vld [vmem:[#allocation11 + $0x1b8] sm:$0xff]
    %v5080 = vld [vmem:[#allocation11 + $0x1c0] sm:$0xff]
    %v5081 = vld [vmem:[#allocation11 + $0x1c8] sm:$0xff]
    %v5082 = vld [vmem:[#allocation11 + $0x1d0] sm:$0xff]
    %v5083 = vld [vmem:[#allocation11 + $0x1d8] sm:$0xff]
    %v5084 = vld [vmem:[#allocation11 + $0x1e0] sm:$0xff]
    %v5085 = vld [vmem:[#allocation11 + $0x1e8] sm:$0xff]
    %v5086 = vld [vmem:[#allocation11 + $0x1f0] sm:$0xff]
    %v5087 = vld [vmem:[#allocation11 + $0x1f8] sm:$0xff]
    %v5088 = vld [vmem:[#allocation12] sm:$0xff]
    %v5089 = vld [vmem:[#allocation12 + $0x8] sm:$0xff]
    %v5090 = vld [vmem:[#allocation12 + $0x10] sm:$0xff]
    %v5091 = vld [vmem:[#allocation12 + $0x18] sm:$0xff]
    %v5092 = vld [vmem:[#allocation12 + $0x20] sm:$0xff]
    %v5093 = vld [vmem:[#allocation12 + $0x28] sm:$0xff]
    %v5094 = vld [vmem:[#allocation12 + $0x30] sm:$0xff]
    %v5095 = vld [vmem:[#allocation12 + $0x38] sm:$0xff]
    %v5096 = vld [vmem:[#allocation12 + $0x40] sm:$0xff]
    %v5097 = vld [vmem:[#allocation12 + $0x48] sm:$0xff]
    %v5098 = vld [vmem:[#allocation12 + $0x50] sm:$0xff]
    %v5099 = vld [vmem:[#allocation12 + $0x58] sm:$0xff]
    %v5100 = vld [vmem:[#allocation12 + $0x60] sm:$0xff]
    %v5101 = vld [vmem:[#allocation12 + $0x68] sm:$0xff]
    %v5102 = vld [vmem:[#allocation12 + $0x70] sm:$0xff]
    %v5103 = vld [vmem:[#allocation12 + $0x78] sm:$0xff]
    %v5104 = vld [vmem:[#allocation12 + $0x80] sm:$0xff]
    %v5105 = vld [vmem:[#allocation12 + $0x88] sm:$0xff]
    %v5106 = vld [vmem:[#allocation12 + $0x90] sm:$0xff]
    %v5107 = vld [vmem:[#allocation12 + $0x98] sm:$0xff]
    %v5108 = vld [vmem:[#allocation12 + $0xa0] sm:$0xff]
    %v5109 = vld [vmem:[#allocation12 + $0xa8] sm:$0xff]
    %v5110 = vld [vmem:[#allocation12 + $0xb0] sm:$0xff]
    %v5111 = vld [vmem:[#allocation12 + $0xb8] sm:$0xff]
    %v5112 = vld [vmem:[#allocation12 + $0xc0] sm:$0xff]
    %v5113 = vld [vmem:[#allocation12 + $0xc8] sm:$0xff]
    %v5114 = vld [vmem:[#allocation12 + $0xd0] sm:$0xff]
    %v5115 = vld [vmem:[#allocation12 + $0xd8] sm:$0xff]
    %v5116 = vld [vmem:[#allocation12 + $0xe0] sm:$0xff]
    %v5117 = vld [vmem:[#allocation12 + $0xe8] sm:$0xff]
    %v5118 = vld [vmem:[#allocation12 + $0xf0] sm:$0xff]
    %v5119 = vld [vmem:[#allocation12 + $0xf8] sm:$0xff]
    %v5120 = vld [vmem:[#allocation12 + $0x100] sm:$0xff]
    %v5121 = vld [vmem:[#allocation12 + $0x108] sm:$0xff]
    %v5122 = vld [vmem:[#allocation12 + $0x110] sm:$0xff]
    %v5123 = vld [vmem:[#allocation12 + $0x118] sm:$0xff]
    %v5124 = vld [vmem:[#allocation12 + $0x120] sm:$0xff]
    %v5125 = vld [vmem:[#allocation12 + $0x128] sm:$0xff]
    %v5126 = vld [vmem:[#allocation12 + $0x130] sm:$0xff]
    %v5127 = vld [vmem:[#allocation12 + $0x138] sm:$0xff]
    %v5128 = vld [vmem:[#allocation12 + $0x140] sm:$0xff]
    %v5129 = vld [vmem:[#allocation12 + $0x148] sm:$0xff]
    %v5130 = vld [vmem:[#allocation12 + $0x150] sm:$0xff]
    %v5131 = vld [vmem:[#allocation12 + $0x158] sm:$0xff]
    %v5132 = vld [vmem:[#allocation12 + $0x160] sm:$0xff]
    %v5133 = vld [vmem:[#allocation12 + $0x168] sm:$0xff]
    %v5134 = vld [vmem:[#allocation12 + $0x170] sm:$0xff]
    %v5135 = vld [vmem:[#allocation12 + $0x178] sm:$0xff]
    %v5136 = vld [vmem:[#allocation12 + $0x180] sm:$0xff]
    %v5137 = vld [vmem:[#allocation12 + $0x188] sm:$0xff]
    %v5138 = vld [vmem:[#allocation12 + $0x190] sm:$0xff]
    %v5139 = vld [vmem:[#allocation12 + $0x198] sm:$0xff]
    %v5140 = vld [vmem:[#allocation12 + $0x1a0] sm:$0xff]
    %v5141 = vld [vmem:[#allocation12 + $0x1a8] sm:$0xff]
    %v5142 = vld [vmem:[#allocation12 + $0x1b0] sm:$0xff]
    %v5143 = vld [vmem:[#allocation12 + $0x1b8] sm:$0xff]
    %v5144 = vld [vmem:[#allocation12 + $0x1c0] sm:$0xff]
    %v5145 = vld [vmem:[#allocation12 + $0x1c8] sm:$0xff]
    %v5146 = vld [vmem:[#allocation12 + $0x1d0] sm:$0xff]
    %v5147 = vld [vmem:[#allocation12 + $0x1d8] sm:$0xff]
    %v5148 = vld [vmem:[#allocation12 + $0x1e0] sm:$0xff]
    %v5149 = vld [vmem:[#allocation12 + $0x1e8] sm:$0xff]
    %v5150 = vld [vmem:[#allocation12 + $0x1f0] sm:$0xff]
    %v5151 = vld [vmem:[#allocation12 + $0x1f8] sm:$0xff]
    %5152 = vmatprep.subr.mxu0 %v5149
    %5153 = vmatpush1.msra.mxu0 %v5148
    %5154 = vmatprep.subr.mxu0 %v5145
    %5155 = vmatpush1.msra.mxu0 %v5144
    %5156 = vmatprep.subr.mxu0 %v5141
    %5157 = vmatpush1.msra.mxu0 %v5140
    %5158 = vmatprep.subr.mxu0 %v5137
    %5159 = vmatpush1.msra.mxu0 %v5136
    %5160 = vmatprep.subr.mxu0 %v5133
    %5161 = vmatpush1.msra.mxu0 %v5132
    %5162 = vmatprep.subr.mxu0 %v5129
    %5163 = vmatpush1.msra.mxu0 %v5128
    %5164 = vmatprep.subr.mxu0 %v5125
    %5165 = vmatpush1.msra.mxu0 %v5124
    %5166 = vmatprep.subr.mxu0 %v5121
    %5167 = vmatpush1.msra.mxu0 %v5120
    %5168 = vmatprep.subr.mxu0 %v5117
    %5169 = vmatpush1.msra.mxu0 %v5116
    %5170 = vmatprep.subr.mxu0 %v5113
    %5171 = vmatpush1.msra.mxu0 %v5112
    %5172 = vmatprep.subr.mxu0 %v5109
    %5173 = vmatpush1.msra.mxu0 %v5108
    %5174 = vmatprep.subr.mxu0 %v5105
    %5175 = vmatpush1.msra.mxu0 %v5104
    %5176 = vmatprep.subr.mxu0 %v5101
    %5177 = vmatpush1.msra.mxu0 %v5100
    %5178 = vmatprep.subr.mxu0 %v5097
    %5179 = vmatpush1.msra.mxu0 %v5096
    %5180 = vmatprep.subr.mxu0 %v5093
    %5181 = vmatpush1.msra.mxu0 %v5092
    %5182 = vmatprep.subr.mxu0 %v5089
    %5183 = vmatpush1.msra.mxu0 %v5088
    %5184 = vmatprep.subr.mxu0 0.0
    %5185 = vmatpush2.msra.mxu0 0.0
    %5186 = vmatprep.subr.mxu0 0.0
    %5187 = vmatpush2.msra.mxu0 0.0
    %5188 = vmatprep.subr.mxu0 0.0
    %5189 = vmatpush2.msra.mxu0 0.0
    %5190 = vmatprep.subr.mxu0 0.0
    %5191 = vmatpush2.msra.mxu0 0.0
    %5192 = vmatprep.subr.mxu0 0.0
    %5193 = vmatpush2.msra.mxu0 0.0
    %5194 = vmatprep.subr.mxu0 0.0
    %5195 = vmatpush2.msra.mxu0 0.0
    %5196 = vmatprep.subr.mxu0 0.0
    %5197 = vmatpush2.msra.mxu0 0.0
    %5198 = vmatprep.subr.mxu0 0.0
    %5199 = vmatpush2.msra.mxu0 0.0
    %5200 = vmatprep.subr.mxu0 0.0
    %5201 = vmatpush2.msra.mxu0 0.0
    %5202 = vmatprep.subr.mxu0 0.0
    %5203 = vmatpush2.msra.mxu0 0.0
    %5204 = vmatprep.subr.mxu0 0.0
    %5205 = vmatpush2.msra.mxu0 0.0
    %5206 = vmatprep.subr.mxu0 0.0
    %5207 = vmatpush2.msra.mxu0 0.0
    %5208 = vmatprep.subr.mxu0 0.0
    %5209 = vmatpush2.msra.mxu0 0.0
    %5210 = vmatprep.subr.mxu0 0.0
    %5211 = vmatpush2.msra.mxu0 0.0
    %5212 = vmatprep.subr.mxu0 0.0
    %5213 = vmatpush2.msra.mxu0 0.0
    %5214 = vmatprep.subr.mxu0 0.0
    %5215 = vmatpush2.msra.mxu0 0.0
    %5216 = vmatprep.mubr.f32.mxu0 0.0
    %5217 = vmatmul.mubr.f32.gmra.mxu0 %v4788
    %v5218 = vpop.f32.mrf.mxu0
    %v5219 = vadd.f32 0.0, %v5218
    %v5220 = vpop.f32.mrf.mxu0
    %v5221 = vadd.f32 0.0, %v5220
    %5222 = vdwg.mxu0
    %5223 = vmatprep.subr.mxu0 %v5151
    %5224 = vmatpush1.msra.mxu0 %v5150
    %5225 = vmatprep.subr.mxu0 %v5147
    %5226 = vmatpush1.msra.mxu0 %v5146
    %5227 = vmatprep.subr.mxu0 %v5143
    %5228 = vmatpush1.msra.mxu0 %v5142
    %5229 = vmatprep.subr.mxu0 %v5139
    %5230 = vmatpush1.msra.mxu0 %v5138
    %5231 = vmatprep.subr.mxu0 %v5135
    %5232 = vmatpush1.msra.mxu0 %v5134
    %5233 = vmatprep.subr.mxu0 %v5131
    %5234 = vmatpush1.msra.mxu0 %v5130
    %5235 = vmatprep.subr.mxu0 %v5127
    %5236 = vmatpush1.msra.mxu0 %v5126
    %5237 = vmatprep.subr.mxu0 %v5123
    %5238 = vmatpush1.msra.mxu0 %v5122
    %5239 = vmatprep.subr.mxu0 %v5119
    %5240 = vmatpush1.msra.mxu0 %v5118
    %5241 = vmatprep.subr.mxu0 %v5115
    %5242 = vmatpush1.msra.mxu0 %v5114
    %5243 = vmatprep.subr.mxu0 %v5111
    %5244 = vmatpush1.msra.mxu0 %v5110
    %5245 = vmatprep.subr.mxu0 %v5107
    %5246 = vmatpush1.msra.mxu0 %v5106
    %5247 = vmatprep.subr.mxu0 %v5103
    %5248 = vmatpush1.msra.mxu0 %v5102
    %5249 = vmatprep.subr.mxu0 %v5099
    %5250 = vmatpush1.msra.mxu0 %v5098
    %5251 = vmatprep.subr.mxu0 %v5095
    %5252 = vmatpush1.msra.mxu0 %v5094
    %5253 = vmatprep.subr.mxu0 %v5091
    %5254 = vmatpush1.msra.mxu0 %v5090
    %5255 = vmatprep.subr.mxu0 0.0
    %5256 = vmatpush2.msra.mxu0 0.0
    %5257 = vmatprep.subr.mxu0 0.0
    %5258 = vmatpush2.msra.mxu0 0.0
    %5259 = vmatprep.subr.mxu0 0.0
    %5260 = vmatpush2.msra.mxu0 0.0
    %5261 = vmatprep.subr.mxu0 0.0
    %5262 = vmatpush2.msra.mxu0 0.0
    %5263 = vmatprep.subr.mxu0 0.0
    %5264 = vmatpush2.msra.mxu0 0.0
    %5265 = vmatprep.subr.mxu0 0.0
    %5266 = vmatpush2.msra.mxu0 0.0
    %5267 = vmatprep.subr.mxu0 0.0
    %5268 = vmatpush2.msra.mxu0 0.0
    %5269 = vmatprep.subr.mxu0 0.0
    %5270 = vmatpush2.msra.mxu0 0.0
    %5271 = vmatprep.subr.mxu0 0.0
    %5272 = vmatpush2.msra.mxu0 0.0
    %5273 = vmatprep.subr.mxu0 0.0
    %5274 = vmatpush2.msra.mxu0 0.0
    %5275 = vmatprep.subr.mxu0 0.0
    %5276 = vmatpush2.msra.mxu0 0.0
    %5277 = vmatprep.subr.mxu0 0.0
    %5278 = vmatpush2.msra.mxu0 0.0
    %5279 = vmatprep.subr.mxu0 0.0
    %5280 = vmatpush2.msra.mxu0 0.0
    %5281 = vmatprep.subr.mxu0 0.0
    %5282 = vmatpush2.msra.mxu0 0.0
    %5283 = vmatprep.subr.mxu0 0.0
    %5284 = vmatpush2.msra.mxu0 0.0
    %5285 = vmatprep.subr.mxu0 0.0
    %5286 = vmatpush2.msra.mxu0 0.0
    %5287 = vmatprep.mubr.f32.mxu0 0.0
    %5288 = vmatmul.mubr.f32.gmra.mxu0 %v4788
    %v5289 = vpop.f32.mrf.mxu0
    %v5290 = vadd.f32 0.0, %v5289
    %v5291 = vpop.f32.mrf.mxu0
    %v5292 = vadd.f32 0.0, %v5291
    %5293 = vdwg.mxu0
    %5294 = vmatprep.subr.mxu0 %v5085
    %5295 = vmatpush1.msra.mxu0 %v5084
    %5296 = vmatprep.subr.mxu0 %v5081
    %5297 = vmatpush1.msra.mxu0 %v5080
    %5298 = vmatprep.subr.mxu0 %v5077
    %5299 = vmatpush1.msra.mxu0 %v5076
    %5300 = vmatprep.subr.mxu0 %v5073
    %5301 = vmatpush1.msra.mxu0 %v5072
    %5302 = vmatprep.subr.mxu0 %v5069
    %5303 = vmatpush1.msra.mxu0 %v5068
    %5304 = vmatprep.subr.mxu0 %v5065
    %5305 = vmatpush1.msra.mxu0 %v5064
    %5306 = vmatprep.subr.mxu0 %v5061
    %5307 = vmatpush1.msra.mxu0 %v5060
    %5308 = vmatprep.subr.mxu0 %v5057
    %5309 = vmatpush1.msra.mxu0 %v5056
    %5310 = vmatprep.subr.mxu0 %v5053
    %5311 = vmatpush1.msra.mxu0 %v5052
    %5312 = vmatprep.subr.mxu0 %v5049
    %5313 = vmatpush1.msra.mxu0 %v5048
    %5314 = vmatprep.subr.mxu0 %v5045
    %5315 = vmatpush1.msra.mxu0 %v5044
    %5316 = vmatprep.subr.mxu0 %v5041
    %5317 = vmatpush1.msra.mxu0 %v5040
    %5318 = vmatprep.subr.mxu0 %v5037
    %5319 = vmatpush1.msra.mxu0 %v5036
    %5320 = vmatprep.subr.mxu0 %v5033
    %5321 = vmatpush1.msra.mxu0 %v5032
    %5322 = vmatprep.subr.mxu0 %v5029
    %5323 = vmatpush1.msra.mxu0 %v5028
    %5324 = vmatprep.subr.mxu0 %v5025
    %5325 = vmatpush1.msra.mxu0 %v5024
    %5326 = vmatprep.subr.mxu0 0.0
    %5327 = vmatpush2.msra.mxu0 0.0
    %5328 = vmatprep.subr.mxu0 0.0
    %5329 = vmatpush2.msra.mxu0 0.0
    %5330 = vmatprep.subr.mxu0 0.0
    %5331 = vmatpush2.msra.mxu0 0.0
    %5332 = vmatprep.subr.mxu0 0.0
    %5333 = vmatpush2.msra.mxu0 0.0
    %5334 = vmatprep.subr.mxu0 0.0
    %5335 = vmatpush2.msra.mxu0 0.0
    %5336 = vmatprep.subr.mxu0 0.0
    %5337 = vmatpush2.msra.mxu0 0.0
    %5338 = vmatprep.subr.mxu0 0.0
    %5339 = vmatpush2.msra.mxu0 0.0
    %5340 = vmatprep.subr.mxu0 0.0
    %5341 = vmatpush2.msra.mxu0 0.0
    %5342 = vmatprep.subr.mxu0 0.0
    %5343 = vmatpush2.msra.mxu0 0.0
    %5344 = vmatprep.subr.mxu0 0.0
    %5345 = vmatpush2.msra.mxu0 0.0
    %5346 = vmatprep.subr.mxu0 0.0
    %5347 = vmatpush2.msra.mxu0 0.0
    %5348 = vmatprep.subr.mxu0 0.0
    %5349 = vmatpush2.msra.mxu0 0.0
    %5350 = vmatprep.subr.mxu0 0.0
    %5351 = vmatpush2.msra.mxu0 0.0
    %5352 = vmatprep.subr.mxu0 0.0
    %5353 = vmatpush2.msra.mxu0 0.0
    %5354 = vmatprep.subr.mxu0 0.0
    %5355 = vmatpush2.msra.mxu0 0.0
    %5356 = vmatprep.subr.mxu0 0.0
    %5357 = vmatpush2.msra.mxu0 0.0
    %5358 = vmatprep.mubr.f32.mxu0 0.0
    %5359 = vmatmul.mubr.f32.gmra.mxu0 %v5023
    %v5360 = vpop.f32.mrf.mxu0
    %v5361 = vadd.f32 %v5219, %v5360
    %v5362 = vpop.f32.mrf.mxu0
    %v5363 = vadd.f32 %v5221, %v5362
    %5364 = vdwg.mxu0
    %5365 = vmatprep.subr.mxu0 %v5087
    %5366 = vmatpush1.msra.mxu0 %v5086
    %5367 = vmatprep.subr.mxu0 %v5083
    %5368 = vmatpush1.msra.mxu0 %v5082
    %5369 = vmatprep.subr.mxu0 %v5079
    %5370 = vmatpush1.msra.mxu0 %v5078
    %5371 = vmatprep.subr.mxu0 %v5075
    %5372 = vmatpush1.msra.mxu0 %v5074
    %5373 = vmatprep.subr.mxu0 %v5071
    %5374 = vmatpush1.msra.mxu0 %v5070
    %5375 = vmatprep.subr.mxu0 %v5067
    %5376 = vmatpush1.msra.mxu0 %v5066
    %5377 = vmatprep.subr.mxu0 %v5063
    %5378 = vmatpush1.msra.mxu0 %v5062
    %5379 = vmatprep.subr.mxu0 %v5059
    %5380 = vmatpush1.msra.mxu0 %v5058
    %5381 = vmatprep.subr.mxu0 %v5055
    %5382 = vmatpush1.msra.mxu0 %v5054
    %5383 = vmatprep.subr.mxu0 %v5051
    %5384 = vmatpush1.msra.mxu0 %v5050
    %5385 = vmatprep.subr.mxu0 %v5047
    %5386 = vmatpush1.msra.mxu0 %v5046
    %5387 = vmatprep.subr.mxu0 %v5043
    %5388 = vmatpush1.msra.mxu0 %v5042
    %5389 = vmatprep.subr.mxu0 %v5039
    %5390 = vmatpush1.msra.mxu0 %v5038
    %5391 = vmatprep.subr.mxu0 %v5035
    %5392 = vmatpush1.msra.mxu0 %v5034
    %5393 = vmatprep.subr.mxu0 %v5031
    %5394 = vmatpush1.msra.mxu0 %v5030
    %5395 = vmatprep.subr.mxu0 %v5027
    %5396 = vmatpush1.msra.mxu0 %v5026
    %5397 = vmatprep.subr.mxu0 0.0
    %5398 = vmatpush2.msra.mxu0 0.0
    %5399 = vmatprep.subr.mxu0 0.0
    %5400 = vmatpush2.msra.mxu0 0.0
    %5401 = vmatprep.subr.mxu0 0.0
    %5402 = vmatpush2.msra.mxu0 0.0
    %5403 = vmatprep.subr.mxu0 0.0
    %5404 = vmatpush2.msra.mxu0 0.0
    %5405 = vmatprep.subr.mxu0 0.0
    %5406 = vmatpush2.msra.mxu0 0.0
    %5407 = vmatprep.subr.mxu0 0.0
    %5408 = vmatpush2.msra.mxu0 0.0
    %5409 = vmatprep.subr.mxu0 0.0
    %5410 = vmatpush2.msra.mxu0 0.0
    %5411 = vmatprep.subr.mxu0 0.0
    %5412 = vmatpush2.msra.mxu0 0.0
    %5413 = vmatprep.subr.mxu0 0.0
    %5414 = vmatpush2.msra.mxu0 0.0
    %5415 = vmatprep.subr.mxu0 0.0
    %5416 = vmatpush2.msra.mxu0 0.0
    %5417 = vmatprep.subr.mxu0 0.0
    %5418 = vmatpush2.msra.mxu0 0.0
    %5419 = vmatprep.subr.mxu0 0.0
    %5420 = vmatpush2.msra.mxu0 0.0
    %5421 = vmatprep.subr.mxu0 0.0
    %5422 = vmatpush2.msra.mxu0 0.0
    %5423 = vmatprep.subr.mxu0 0.0
    %5424 = vmatpush2.msra.mxu0 0.0
    %5425 = vmatprep.subr.mxu0 0.0
    %5426 = vmatpush2.msra.mxu0 0.0
    %5427 = vmatprep.subr.mxu0 0.0
    %5428 = vmatpush2.msra.mxu0 0.0
    %5429 = vmatprep.mubr.f32.mxu0 0.0
    %5430 = vmatmul.mubr.f32.gmra.mxu0 %v5023
    %v5431 = vpop.f32.mrf.mxu0
    %v5432 = vadd.f32 %v5290, %v5431
    %v5433 = vpop.f32.mrf.mxu0
    %v5434 = vadd.f32 %v5292, %v5433
    %5435 = vdwg.mxu0
    %v5436 = vadd.f32 %v5361, %v89
    %v5437 = vadd.f32 %v5363, %v93
    %v5438 = vadd.f32 %v5432, %v97
    %v5439 = vadd.f32 %v5434, %v101
    %v5440 = vmul.f32 %v5436, 0.5
    %v5441 = vtanh.pop %v5440
    %v5442 = vadd.f32 %v5441, 1.0
    %v5443 = vmul.f32 %v5442, 0.5
    %v5444 = vmul.f32 %v5437, 0.5
    %v5445 = vtanh.pop %v5444
    %v5446 = vadd.f32 %v5445, 1.0
    %v5447 = vmul.f32 %v5446, 0.5
    %v5448 = vtanh.pop %v5438
    %v5449 = vmul.f32 %v5439, 0.5
    %v5450 = vtanh.pop %v5449
    %v5451 = vadd.f32 %v5450, 1.0
    %v5452 = vmul.f32 %v5451, 0.5
    %v5453 = vmul.f32 %v5447, %v4786
    %v5454 = vmul.f32 %v5443, %v5448
    %v5455 = vadd.f32 %v5453, %v5454
    %v5456 = vtanh.pop %v5455
    %v5457 = vmul.f32 %v5452, %v5456
    %s5458 = scalar_lea.vmem [#allocation14], 56
    %5459 = vst [vmem:[%s5458] sm:$0xff] %v5457
    %5460 = vst [vmem:[#allocation2] sm:$0xff] %v5023
    %5461 = vst [vmem:[#allocation3] sm:$0xff] %v5021
    %5462 = vst [vmem:[#allocation4] sm:$0xff] %v5457
    %5463 = vst [vmem:[#allocation5] sm:$0xff] %v5455
    // Predicated region
    $region42: #{tpu_custom_call.1} parent=1 // pred_check
      _
    $region43: #{tpu_custom_call.1} parent=1 // pred_check_branch
      %5465 = sbr.rel (0) target = $region45
    $region44: #{tpu_custom_call.1} parent=1 // pred_region
      %s5467 = ssub.s32 1024, 1024
      %5468 = vsyncadd [#allocation8], %s5467
      %s5469 = sshll.u32 [#allocation14], 4
      %s5470 = int_to_ptr.vmem [resolvable:$true] %s5469
      %5475 = dma.vmem_to_hbm [thread:$0]  %s5470, 1024, %s5, [#allocation8], 128, 128, 8
    $region45: #{tpu_custom_call.1} parent=1 // pred_fallthru
      _
    // Predicated region
    $region46: #{tpu_custom_call.1} parent=1 // pred_check
      _
    $region47: #{tpu_custom_call.1} parent=1 // pred_check_branch
      %5477 = sbr.rel (0) target = $region49
    $region48: #{tpu_custom_call.1} parent=1 // pred_region
      %5478 = dma.done [#allocation8], 1024
    $region49: #{tpu_custom_call.1} parent=1 // pred_fallthru
      _
    %5479 = vsyncpa [#allocation7], 1
    %5480 = vsyncpa [#allocation10], 1
    %5481 = vsyncpa [#allocation13], 1
    %5482 = vsyncpa [#allocation8], 1

</llo_original>
